<compile_context>
chip_gen: v7x
topology: tpu7x:2x2x1
jax: 0.10.0
libtpu: 0.0.40
codegen_flags: <defaults>
</compile_context>

<pallas_src>
import functools
import math

import jax
import jax.numpy as jnp
from jax import lax
from jax.experimental import pallas as pl
from jax.experimental.pallas import tpu as pltpu


# ----------------------------- small helpers --------------------------------


def _round_up(x, m):
    return (x + m - 1) // m * m


def _padded_bytes(shape, dtype):
    """VMEM footprint with TPU tiling: last dim -> 128 lanes, 2nd-to-last ->
    8 (f32) / 16 (bf16) sublanes."""
    itemsize = jnp.dtype(dtype).itemsize
    sublane = 8 * (4 // itemsize)
    s = list(shape)
    s[-1] = _round_up(s[-1], 128)
    if len(s) >= 2:
        s[-2] = _round_up(s[-2], sublane)
    n = 1
    for d in s:
        n *= d
    return n * itemsize


def _vmem_capacity_bytes():
    try:
        info = pltpu.get_tpu_info()
        return int(getattr(info, "vmem_capacity_bytes", 64 * 1024 * 1024))
    except Exception:
        return 64 * 1024 * 1024  # v7x per-core size: a safe bound on every generation


def _pick_tile_h(H, W, Wm, Cin, Cmid, Cout_p, cap_bytes):
    """Largest divisor of H whose double-buffered, TPU-padded footprint fits VMEM."""
    budget = int(cap_bytes * 0.70)  # headroom for compiler temporaries / spills

    def tile_bytes(th):
        b = 0
        b += 2 * _padded_bytes((th + 4, Wm + 2, Cin), jnp.bfloat16)   # input halo block x2
        b += 2 * _padded_bytes((th, W, Cout_p), jnp.float32)          # output block x2
        b += _padded_bytes((th + 2, Wm, Cmid), jnp.bfloat16)          # mid scratch
        b += 2 * _padded_bytes((3, 3, Cin, Cmid), jnp.bfloat16)       # weights x2 buffers
        b += 2 * _padded_bytes((3, 3, Cmid, Cout_p), jnp.bfloat16)
        b += _padded_bytes(((th + 2) * Wm, Cmid), jnp.float32)        # stage-1 f32 acc
        b += _padded_bytes((th * W, Cout_p), jnp.float32)             # stage-2 f32 acc
        b += 2 * _padded_bytes(((th + 2) * Wm, max(Cin, Cmid)), jnp.bfloat16)  # patch temps
        return b

    divisors = [d for d in range(H, 0, -1) if H % d == 0]
    for th in divisors:
        if tile_bytes(th) <= budget:
            return th
    return divisors[-1]
    # TODO(synk): support a ragged last H-tile (non-divisor TH) with a row mask.


# ------------------------------- the kernel ---------------------------------


def _unet_conv2_kernel(x_ref, w1_ref, sb1_ref, w2_ref, sb2_ref, o_ref, mid_ref):
    """Fused (conv3x3 + folded-BN + ReLU) x 2 for one (image, H-tile) grid step.

    x_ref  : (1, 1, TH+4, Wm+2, Cin)  bf16  input tile with 2-row / 2-col halo
    w1_ref : (3, 3, Cin, Cmid)        bf16  stage-1 weights (BN scale kept in f32)
    sb1_ref: (2, Cmid)                f32   row 0 = BN scale, row 1 = bias
    w2_ref : (3, 3, Cmid, Cout_p)     bf16  stage-2 weights (Cout padded to 128)
    sb2_ref: (2, Cout_p)              f32
    o_ref  : (1, TH, W, Cout_p)       f32   output tile (lane-dense: Cout_p % 128 == 0)
    mid_ref: (TH+2, Wm, Cmid)         bf16  stage-1 activation incl. its pad=1 frame
    """
    TH, W, Cout_p = o_ref.shape[1], o_ref.shape[2], o_ref.shape[3]
    Cin = x_ref.shape[-1]
    Cmid = w1_ref.shape[-1]
    Wm = mid_ref.shape[1]

    t = pl.program_id(1)
    n_t = pl.num_programs(1)

    def conv3x3(get_patch, w_ref, m, cout):
        # 9 accumulated MXU matmuls (K = Cin per tap), f32 accumulation.
        # TODO(synk): fold the taps into K (im2col) once the lane-axis concat is
        #             bundle-verified; at tiny Cin each tap under-fills the MXU.
        acc = jnp.zeros((m, cout), dtype=jnp.float32)
        for kh in range(3):
            for kw in range(3):
                acc = acc + jnp.dot(
                    get_patch(kh, kw),              # bf16 patch (m, cin)
                    w_ref[kh, kw, :, :],            # bf16 weights (cin, cout)
                    preferred_element_type=jnp.float32,
                )
        return acc

    # ---- stage 1: conv over the full halo'd tile -> (TH+2, Wm) rows/cols of mid ----
    m1 = (TH + 2) * Wm

    def patch1(kh, kw):
        return x_ref[0, 0, kh:kh + TH + 2, kw:kw + Wm, :].reshape(m1, Cin)

    acc1 = conv3x3(patch1, w1_ref, m1, Cmid).reshape(TH + 2, Wm, Cmid)
    y1 = jnp.maximum(acc1 * sb1_ref[0:1, :] + sb1_ref[1:2, :], 0.0)

    # Positions of `mid` that fall outside the original image must be stage-2's
    # zero padding: the 2 border columns always; the top/bottom halo row only on
    # the first/last H-tile.  Masking the value keeps the scratch store a single
    # full-width aligned store (no partial packed-sublane stores, no full zero-fill).
    row = lax.broadcasted_iota(jnp.int32, (TH + 2, Wm, 1), 0)
    col = lax.broadcasted_iota(jnp.int32, (TH + 2, Wm, 1), 1)
    row_lo = jnp.where(t == 0, 1, 0)
    row_hi = jnp.where(t == n_t - 1, TH + 1, TH + 2)
    inside = (row >= row_lo) & (row < row_hi) & (col >= 1) & (col <= W)
    mid_ref[...] = jnp.where(inside, y1, 0.0).astype(jnp.bfloat16)  # single bf16 cast

    # ---- stage 2: conv from the VMEM intermediate -> (TH, W) output rows ----
    m2 = TH * W

    def patch2(kh, kw):
        return mid_ref[kh:kh + TH, kw:kw + W, :].reshape(m2, Cmid)

    acc2 = conv3x3(patch2, w2_ref, m2, Cout_p)
    y2 = jnp.maximum(acc2 * sb2_ref[0:1, :] + sb2_ref[1:2, :], 0.0)
    o_ref[0, :, :, :] = y2.reshape(TH, W, Cout_p).astype(o_ref.dtype)  # lane-dense store


# ------------------------------ pallas wrapper -------------------------------


def unet_conv2_nhwc(x_nhwc, w1, sb1, w2, sb2, *, tile_h=None):
    """x: (N,H,W,Cin) f32; w1:(3,3,Cin,Cmid) bf16; sb1:(2,Cmid) f32;
    w2:(3,3,Cmid,Cout_p) bf16 with Cout_p % 128 == 0; sb2:(2,Cout_p) f32.
    Returns (N, H, W, Cout_p) f32."""
    N, H, W, Cin = x_nhwc.shape
    Cmid = w1.shape[-1]
    Cout_p = w2.shape[-1]
    assert w2.shape[-2] == Cmid, "UNetConv2 requires stage-1 out == stage-2 in channels"
    assert Cout_p % 128 == 0

    # Stage-1 is computed over the full pad=1 frame; its width is rounded up to the
    # bf16 sublane tile so the (rows, Wm, C) -> (rows*Wm, C) patch collapse stays aligned.
    Wm = _round_up(W + 2, 16)

    cap = _vmem_capacity_bytes()
    if tile_h is None:
        tile_h = _pick_tile_h(H, W, Wm, Cin, Cmid, Cout_p, cap)
    if H % tile_h != 0:
        raise ValueError(f"tile_h={tile_h} must divide H={H}")
    T = H // tile_h

    # Pre-cast the input to bf16 (halves its HBM read traffic; the MXU consumes bf16)
    # and materialise the per-tile 2-row halo + W padding wrapper-side so every grid
    # step is a plain rectangular, auto-pipelined block.
    xp = jnp.pad(x_nhwc.astype(jnp.bfloat16), ((0, 0), (2, 2), (2, Wm - W), (0, 0)))
    x_halo = jnp.stack(
        [xp[:, t * tile_h: t * tile_h + tile_h + 4] for t in range(T)], axis=1
    )  # (N, T, TH+4, Wm+2, Cin)

    vmem_limit = int(cap * 0.9)  # generation-aware: ~115 MiB on v5e/v6e, ~57 MiB on v7x

    return pl.pallas_call(
        _unet_conv2_kernel,
        out_shape=jax.ShapeDtypeStruct((N, H, W, Cout_p), jnp.float32),
        grid_spec=pltpu.PrefetchScalarGridSpec(
            num_scalar_prefetch=0,
            grid=(N, T),
            in_specs=[
                pl.BlockSpec((1, 1, tile_h + 4, Wm + 2, Cin),
                             lambda n, t: (n, t, 0, 0, 0)),
                pl.BlockSpec((3, 3, Cin, Cmid), lambda n, t: (0, 0, 0, 0)),
                pl.BlockSpec((2, Cmid), lambda n, t: (0, 0)),
                pl.BlockSpec((3, 3, Cmid, Cout_p), lambda n, t: (0, 0, 0, 0)),
                pl.BlockSpec((2, Cout_p), lambda n, t: (0, 0)),
            ],
            out_specs=pl.BlockSpec((1, tile_h, W, Cout_p), lambda n, t: (n, t, 0, 0)),
            scratch_shapes=[pltpu.VMEM((tile_h + 2, Wm, Cmid), jnp.bfloat16)],
        ),
        compiler_params=pltpu.CompilerParams(
            dimension_semantics=("parallel", "parallel"),
            vmem_limit_bytes=vmem_limit,
        ),
    )(x_halo, w1, sb1, w2, sb2)


# --------------------------- params / public forward -------------------------


def init_unet_conv2_params(key, in_size, out_size, is_bn=True):
    """Deterministic parameter init matching the PyTorch module's shapes."""
    ks = jax.random.split(key, 8)

    def conv_params(kw, kb, cin, cout):
        fan_in = cin * 3 * 3
        bound = 1.0 / math.sqrt(fan_in)
        w = jax.random.uniform(kw, (cout, cin, 3, 3), jnp.float32, -bound, bound)
        b = jax.random.uniform(kb, (cout,), jnp.float32, -bound, bound)
        return w, b

    def bn_params(kg, kb, c):
        gamma = 1.0 + 0.1 * jax.random.normal(kg, (c,), jnp.float32)
        beta = 0.1 * jax.random.normal(kb, (c,), jnp.float32)
        mean = jnp.zeros((c,), jnp.float32)
        var = jnp.ones((c,), jnp.float32)
        return gamma, beta, mean, var

    w1, b1 = conv_params(ks[0], ks[1], in_size, out_size)
    w2, b2 = conv_params(ks[2], ks[3], out_size, out_size)
    params = {"w1": w1, "b1": b1, "w2": w2, "b2": b2}
    if is_bn:
        params["bn1"] = bn_params(ks[4], ks[5], out_size)
        params["bn2"] = bn_params(ks[6], ks[7], out_size)
    return params


def _fold_stage(w_oihw, b, bn, eps=1e-5):
    """OIHW conv weights -> HWIO bf16 for the MXU.  Inference-mode BN is reduced to an
    f32 per-channel (scale, bias) epilogue (scale stays f32 -- not baked into bf16)."""
    w_hwio = jnp.transpose(w_oihw, (2, 3, 1, 0)).astype(jnp.bfloat16)
    cout = w_oihw.shape[0]
    if bn is None:
        scale = jnp.ones((cout,), jnp.float32)
        bias = b.astype(jnp.float32)
    else:
        gamma, beta, mean, var = bn
        scale = (gamma / jnp.sqrt(var + eps)).astype(jnp.float32)
        bias = ((b - mean) * scale + beta).astype(jnp.float32)
    return w_hwio, jnp.stack([scale, bias], axis=0)  # (2, cout) f32


def _pad_channels(a, target):
    pad = target - a.shape[-1]
    if pad == 0:
        return a
    return jnp.pad(a, [(0, 0)] * (a.ndim - 1) + [(0, pad)])


@functools.partial(jax.jit, static_argnames=("is_bn", "tile_h"))
def unet_conv2_forward(x_nchw, params, is_bn=True, tile_h=None):
    """Matches UNetConv2.forward; NCHW in/out like PyTorch (boundary transposes only)."""
    x = jnp.transpose(x_nchw, (0, 2, 3, 1))  # NCHW -> NHWC

    bn1 = params.get("bn1") if is_bn else None
    bn2 = params.get("bn2") if is_bn else None
    w1, sb1 = _fold_stage(params["w1"], params["b1"], bn1)
    w2, sb2 = _fold_stage(params["w2"], params["b2"], bn2)

    cout = w2.shape[-1]
    cout_p = _round_up(cout, 128)      # lane-dense (unmasked) output store + MXU-aligned N
    w2 = _pad_channels(w2, cout_p)     # TODO(synk): keep C a multiple of 128 network-wide
    sb2 = _pad_channels(sb2, cout_p)   #             to avoid the padded HBM writeback.

    y = unet_conv2_nhwc(x, w1, sb1, w2, sb2, tile_h=tile_h)
    y = y[..., :cout]
    return jnp.transpose(y, (0, 3, 1, 2))  # NHWC -> NCHW


# ------------------------------ pure-JAX reference ---------------------------


def unet_conv2_reference(x_nchw, params, is_bn=True, eps=1e-5):
    """f32 reference (inference-mode BN) for numerical validation."""
    def stage(x, w, b, bn):
        y = lax.conv_general_dilated(
            x, w, (1, 1), ((1, 1), (1, 1)),
            dimension_numbers=("NCHW", "OIHW", "NCHW"),
            precision=lax.Precision.HIGHEST,
        )
        y = y + b[None, :, None, None]
        if bn is not None:
            gamma, beta, mean, var = bn
            y = (y - mean[None, :, None, None]) * (
                gamma[None, :, None, None] / jnp.sqrt(var[None, :, None, None] + eps)
            ) + beta[None, :, None, None]
        return jnp.maximum(y, 0.0)

    bn1 = params.get("bn1") if is_bn else None
    bn2 = params.get("bn2") if is_bn else None
    y = stage(x_nchw, params["w1"], params["b1"], bn1)
    return stage(y, params["w2"], params["b2"], bn2)


# ------------------------------------ main -----------------------------------


if __name__ == "__main__":
    key = jax.random.PRNGKey(0)
    k_x, k_p = jax.random.split(key)

    N, Cin, H, W = 2, 4, 16, 16
    Cout = 8

    x = jax.random.normal(k_x, (N, Cin, H, W), dtype=jnp.float32)
    params = init_unet_conv2_params(k_p, Cin, Cout, is_bn=True)

    ref = jax.block_until_ready(unet_conv2_reference(x, params, is_bn=True))
    ref_scale = float(jnp.max(jnp.abs(ref))) + 1e-6

    # tile_h=None -> auto-picked (whole image per step at this size);
    # tile_h=8    -> exercises the H-tiled 2-row-halo path (grid (N, 2)).
    for tile_h in (None, 8):
        out = jax.block_until_ready(
            unet_conv2_forward(x, params, is_bn=True, tile_h=tile_h))
        assert out.shape == (N, Cout, H, W), out.shape
        assert out.dtype == jnp.float32
        assert bool(jnp.all(jnp.isfinite(out)))
        assert bool(jnp.all(out >= 0.0))  # ReLU output
        rel_err = float(jnp.max(jnp.abs(out - ref))) / ref_scale
        assert rel_err < 0.05, (tile_h, rel_err)  # bf16 weights / intermediate tolerance

    print("KERNEL_OK")
</pallas_src>

<mosaic_0001>
module attributes {stable_mosaic.version = 11 : i64} {
  func.func @_unet_conv2_kernel(%arg0: i32, %arg1: i32, %arg2: memref<1x1x20x34x4xbf16, #tpu.memory_space<vmem>>, %arg3: memref<3x3x4x8xbf16, #tpu.memory_space<vmem>>, %arg4: memref<2x8xf32, #tpu.memory_space<vmem>>, %arg5: memref<3x3x8x128xbf16, #tpu.memory_space<vmem>>, %arg6: memref<2x128xf32, #tpu.memory_space<vmem>>, %arg7: memref<1x16x16x128xf32, #tpu.memory_space<vmem>>, %arg8: memref<18x32x8xbf16, #tpu.memory_space<vmem>>) attributes {dimension_semantics = [#tpu.dimension_semantics<parallel>, #tpu.dimension_semantics<parallel>], iteration_bounds = array<i64: 2, 1>, scalar_prefetch = 0 : i64, scratch_operands = 1 : i64, tpu.core_type = #tpu.core_type<tc>, window_params = [{transform_indices = @transform_0, window_bounds = array<i64: 1, 1, 20, 34, 4>}, {pipeline_mode = #tpu.pipeline_mode<synchronous>, transform_indices = @transform_1, window_bounds = array<i64: 3, 3, 4, 8>}, {pipeline_mode = #tpu.pipeline_mode<synchronous>, transform_indices = @transform_2, window_bounds = array<i64: 2, 8>}, {pipeline_mode = #tpu.pipeline_mode<synchronous>, transform_indices = @transform_3, window_bounds = array<i64: 3, 3, 8, 128>}, {pipeline_mode = #tpu.pipeline_mode<synchronous>, transform_indices = @transform_4, window_bounds = array<i64: 2, 128>}, {transform_indices = @transform_5, window_bounds = array<i64: 1, 16, 16, 128>}]} {
    %cst = arith.constant 0.000000e+00 : f32
    %0 = vector.broadcast %cst : f32 to vector<576x8xf32>
    %c0 = arith.constant 0 : index
    %c0_0 = arith.constant 0 : index
    %c0_1 = arith.constant 0 : index
    %c0_2 = arith.constant 0 : index
    %c0_3 = arith.constant 0 : index
    %1 = vector.load %arg2[%c0, %c0_0, %c0_1, %c0_2, %c0_3] : memref<1x1x20x34x4xbf16, #tpu.memory_space<vmem>>, vector<1x1x18x32x4xbf16>
    %2 = vector.shape_cast %1 : vector<1x1x18x32x4xbf16> to vector<18x32x4xbf16>
    %3 = vector.shape_cast %2 : vector<18x32x4xbf16> to vector<576x4xbf16>
    %c0_4 = arith.constant 0 : index
    %c0_5 = arith.constant 0 : index
    %c0_6 = arith.constant 0 : index
    %c0_7 = arith.constant 0 : index
    %4 = vector.load %arg3[%c0_4, %c0_5, %c0_6, %c0_7] : memref<3x3x4x8xbf16, #tpu.memory_space<vmem>>, vector<1x1x4x8xbf16>
    %5 = vector.shape_cast %4 : vector<1x1x4x8xbf16> to vector<4x8xbf16>
    %cst_8 = arith.constant dense<0.000000e+00> : vector<576x8xf32>
    %6 = tpu.matmul %3, %5, %cst_8 {dimension_numbers = #tpu.dot_dimension_numbers<[1], [0], [0], [1], [0, 0, 1, 1], [], []>} : vector<576x4xbf16>, vector<4x8xbf16>, vector<576x8xf32> -> vector<576x8xf32>
    %7 = arith.addf %0, %6 : vector<576x8xf32>
    %c0_9 = arith.constant 0 : index
    %c0_10 = arith.constant 0 : index
    %c0_11 = arith.constant 0 : index
    %c1 = arith.constant 1 : index
    %c0_12 = arith.constant 0 : index
    %8 = vector.load %arg2[%c0_9, %c0_10, %c0_11, %c1, %c0_12] : memref<1x1x20x34x4xbf16, #tpu.memory_space<vmem>>, vector<1x1x18x32x4xbf16>
    %9 = vector.shape_cast %8 : vector<1x1x18x32x4xbf16> to vector<18x32x4xbf16>
    %10 = vector.shape_cast %9 : vector<18x32x4xbf16> to vector<576x4xbf16>
    %c0_13 = arith.constant 0 : index
    %c1_14 = arith.constant 1 : index
    %c0_15 = arith.constant 0 : index
    %c0_16 = arith.constant 0 : index
    %11 = vector.load %arg3[%c0_13, %c1_14, %c0_15, %c0_16] : memref<3x3x4x8xbf16, #tpu.memory_space<vmem>>, vector<1x1x4x8xbf16>
    %12 = vector.shape_cast %11 : vector<1x1x4x8xbf16> to vector<4x8xbf16>
    %cst_17 = arith.constant dense<0.000000e+00> : vector<576x8xf32>
    %13 = tpu.matmul %10, %12, %cst_17 {dimension_numbers = #tpu.dot_dimension_numbers<[1], [0], [0], [1], [0, 0, 1, 1], [], []>} : vector<576x4xbf16>, vector<4x8xbf16>, vector<576x8xf32> -> vector<576x8xf32>
    %14 = arith.addf %7, %13 : vector<576x8xf32>
    %c0_18 = arith.constant 0 : index
    %c0_19 = arith.constant 0 : index
    %c0_20 = arith.constant 0 : index
    %c2 = arith.constant 2 : index
    %c0_21 = arith.constant 0 : index
    %15 = vector.load %arg2[%c0_18, %c0_19, %c0_20, %c2, %c0_21] : memref<1x1x20x34x4xbf16, #tpu.memory_space<vmem>>, vector<1x1x18x32x4xbf16>
    %16 = vector.shape_cast %15 : vector<1x1x18x32x4xbf16> to vector<18x32x4xbf16>
    %17 = vector.shape_cast %16 : vector<18x32x4xbf16> to vector<576x4xbf16>
    %c0_22 = arith.constant 0 : index
    %c2_23 = arith.constant 2 : index
    %c0_24 = arith.constant 0 : index
    %c0_25 = arith.constant 0 : index
    %18 = vector.load %arg3[%c0_22, %c2_23, %c0_24, %c0_25] : memref<3x3x4x8xbf16, #tpu.memory_space<vmem>>, vector<1x1x4x8xbf16>
    %19 = vector.shape_cast %18 : vector<1x1x4x8xbf16> to vector<4x8xbf16>
    %cst_26 = arith.constant dense<0.000000e+00> : vector<576x8xf32>
    %20 = tpu.matmul %17, %19, %cst_26 {dimension_numbers = #tpu.dot_dimension_numbers<[1], [0], [0], [1], [0, 0, 1, 1], [], []>} : vector<576x4xbf16>, vector<4x8xbf16>, vector<576x8xf32> -> vector<576x8xf32>
    %21 = arith.addf %14, %20 : vector<576x8xf32>
    %c0_27 = arith.constant 0 : index
    %c0_28 = arith.constant 0 : index
    %c1_29 = arith.constant 1 : index
    %c0_30 = arith.constant 0 : index
    %c0_31 = arith.constant 0 : index
    %22 = vector.load %arg2[%c0_27, %c0_28, %c1_29, %c0_30, %c0_31] : memref<1x1x20x34x4xbf16, #tpu.memory_space<vmem>>, vector<1x1x18x32x4xbf16>
    %23 = vector.shape_cast %22 : vector<1x1x18x32x4xbf16> to vector<18x32x4xbf16>
    %24 = vector.shape_cast %23 : vector<18x32x4xbf16> to vector<576x4xbf16>
    %c1_32 = arith.constant 1 : index
    %c0_33 = arith.constant 0 : index
    %c0_34 = arith.constant 0 : index
    %c0_35 = arith.constant 0 : index
    %25 = vector.load %arg3[%c1_32, %c0_33, %c0_34, %c0_35] : memref<3x3x4x8xbf16, #tpu.memory_space<vmem>>, vector<1x1x4x8xbf16>
    %26 = vector.shape_cast %25 : vector<1x1x4x8xbf16> to vector<4x8xbf16>
    %cst_36 = arith.constant dense<0.000000e+00> : vector<576x8xf32>
    %27 = tpu.matmul %24, %26, %cst_36 {dimension_numbers = #tpu.dot_dimension_numbers<[1], [0], [0], [1], [0, 0, 1, 1], [], []>} : vector<576x4xbf16>, vector<4x8xbf16>, vector<576x8xf32> -> vector<576x8xf32>
    %28 = arith.addf %21, %27 : vector<576x8xf32>
    %c0_37 = arith.constant 0 : index
    %c0_38 = arith.constant 0 : index
    %c1_39 = arith.constant 1 : index
    %c1_40 = arith.constant 1 : index
    %c0_41 = arith.constant 0 : index
    %29 = vector.load %arg2[%c0_37, %c0_38, %c1_39, %c1_40, %c0_41] : memref<1x1x20x34x4xbf16, #tpu.memory_space<vmem>>, vector<1x1x18x32x4xbf16>
    %30 = vector.shape_cast %29 : vector<1x1x18x32x4xbf16> to vector<18x32x4xbf16>
    %31 = vector.shape_cast %30 : vector<18x32x4xbf16> to vector<576x4xbf16>
    %c1_42 = arith.constant 1 : index
    %c1_43 = arith.constant 1 : index
    %c0_44 = arith.constant 0 : index
    %c0_45 = arith.constant 0 : index
    %32 = vector.load %arg3[%c1_42, %c1_43, %c0_44, %c0_45] : memref<3x3x4x8xbf16, #tpu.memory_space<vmem>>, vector<1x1x4x8xbf16>
    %33 = vector.shape_cast %32 : vector<1x1x4x8xbf16> to vector<4x8xbf16>
    %cst_46 = arith.constant dense<0.000000e+00> : vector<576x8xf32>
    %34 = tpu.matmul %31, %33, %cst_46 {dimension_numbers = #tpu.dot_dimension_numbers<[1], [0], [0], [1], [0, 0, 1, 1], [], []>} : vector<576x4xbf16>, vector<4x8xbf16>, vector<576x8xf32> -> vector<576x8xf32>
    %35 = arith.addf %28, %34 : vector<576x8xf32>
    %c0_47 = arith.constant 0 : index
    %c0_48 = arith.constant 0 : index
    %c1_49 = arith.constant 1 : index
    %c2_50 = arith.constant 2 : index
    %c0_51 = arith.constant 0 : index
    %36 = vector.load %arg2[%c0_47, %c0_48, %c1_49, %c2_50, %c0_51] : memref<1x1x20x34x4xbf16, #tpu.memory_space<vmem>>, vector<1x1x18x32x4xbf16>
    %37 = vector.shape_cast %36 : vector<1x1x18x32x4xbf16> to vector<18x32x4xbf16>
    %38 = vector.shape_cast %37 : vector<18x32x4xbf16> to vector<576x4xbf16>
    %c1_52 = arith.constant 1 : index
    %c2_53 = arith.constant 2 : index
    %c0_54 = arith.constant 0 : index
    %c0_55 = arith.constant 0 : index
    %39 = vector.load %arg3[%c1_52, %c2_53, %c0_54, %c0_55] : memref<3x3x4x8xbf16, #tpu.memory_space<vmem>>, vector<1x1x4x8xbf16>
    %40 = vector.shape_cast %39 : vector<1x1x4x8xbf16> to vector<4x8xbf16>
    %cst_56 = arith.constant dense<0.000000e+00> : vector<576x8xf32>
    %41 = tpu.matmul %38, %40, %cst_56 {dimension_numbers = #tpu.dot_dimension_numbers<[1], [0], [0], [1], [0, 0, 1, 1], [], []>} : vector<576x4xbf16>, vector<4x8xbf16>, vector<576x8xf32> -> vector<576x8xf32>
    %42 = arith.addf %35, %41 : vector<576x8xf32>
    %c0_57 = arith.constant 0 : index
    %c0_58 = arith.constant 0 : index
    %c2_59 = arith.constant 2 : index
    %c0_60 = arith.constant 0 : index
    %c0_61 = arith.constant 0 : index
    %43 = vector.load %arg2[%c0_57, %c0_58, %c2_59, %c0_60, %c0_61] : memref<1x1x20x34x4xbf16, #tpu.memory_space<vmem>>, vector<1x1x18x32x4xbf16>
    %44 = vector.shape_cast %43 : vector<1x1x18x32x4xbf16> to vector<18x32x4xbf16>
    %45 = vector.shape_cast %44 : vector<18x32x4xbf16> to vector<576x4xbf16>
    %c2_62 = arith.constant 2 : index
    %c0_63 = arith.constant 0 : index
    %c0_64 = arith.constant 0 : index
    %c0_65 = arith.constant 0 : index
    %46 = vector.load %arg3[%c2_62, %c0_63, %c0_64, %c0_65] : memref<3x3x4x8xbf16, #tpu.memory_space<vmem>>, vector<1x1x4x8xbf16>
    %47 = vector.shape_cast %46 : vector<1x1x4x8xbf16> to vector<4x8xbf16>
    %cst_66 = arith.constant dense<0.000000e+00> : vector<576x8xf32>
    %48 = tpu.matmul %45, %47, %cst_66 {dimension_numbers = #tpu.dot_dimension_numbers<[1], [0], [0], [1], [0, 0, 1, 1], [], []>} : vector<576x4xbf16>, vector<4x8xbf16>, vector<576x8xf32> -> vector<576x8xf32>
    %49 = arith.addf %42, %48 : vector<576x8xf32>
    %c0_67 = arith.constant 0 : index
    %c0_68 = arith.constant 0 : index
    %c2_69 = arith.constant 2 : index
    %c1_70 = arith.constant 1 : index
    %c0_71 = arith.constant 0 : index
    %50 = vector.load %arg2[%c0_67, %c0_68, %c2_69, %c1_70, %c0_71] : memref<1x1x20x34x4xbf16, #tpu.memory_space<vmem>>, vector<1x1x18x32x4xbf16>
    %51 = vector.shape_cast %50 : vector<1x1x18x32x4xbf16> to vector<18x32x4xbf16>
    %52 = vector.shape_cast %51 : vector<18x32x4xbf16> to vector<576x4xbf16>
    %c2_72 = arith.constant 2 : index
    %c1_73 = arith.constant 1 : index
    %c0_74 = arith.constant 0 : index
    %c0_75 = arith.constant 0 : index
    %53 = vector.load %arg3[%c2_72, %c1_73, %c0_74, %c0_75] : memref<3x3x4x8xbf16, #tpu.memory_space<vmem>>, vector<1x1x4x8xbf16>
    %54 = vector.shape_cast %53 : vector<1x1x4x8xbf16> to vector<4x8xbf16>
    %cst_76 = arith.constant dense<0.000000e+00> : vector<576x8xf32>
    %55 = tpu.matmul %52, %54, %cst_76 {dimension_numbers = #tpu.dot_dimension_numbers<[1], [0], [0], [1], [0, 0, 1, 1], [], []>} : vector<576x4xbf16>, vector<4x8xbf16>, vector<576x8xf32> -> vector<576x8xf32>
    %56 = arith.addf %49, %55 : vector<576x8xf32>
    %c0_77 = arith.constant 0 : index
    %c0_78 = arith.constant 0 : index
    %c2_79 = arith.constant 2 : index
    %c2_80 = arith.constant 2 : index
    %c0_81 = arith.constant 0 : index
    %57 = vector.load %arg2[%c0_77, %c0_78, %c2_79, %c2_80, %c0_81] : memref<1x1x20x34x4xbf16, #tpu.memory_space<vmem>>, vector<1x1x18x32x4xbf16>
    %58 = vector.shape_cast %57 : vector<1x1x18x32x4xbf16> to vector<18x32x4xbf16>
    %59 = vector.shape_cast %58 : vector<18x32x4xbf16> to vector<576x4xbf16>
    %c2_82 = arith.constant 2 : index
    %c2_83 = arith.constant 2 : index
    %c0_84 = arith.constant 0 : index
    %c0_85 = arith.constant 0 : index
    %60 = vector.load %arg3[%c2_82, %c2_83, %c0_84, %c0_85] : memref<3x3x4x8xbf16, #tpu.memory_space<vmem>>, vector<1x1x4x8xbf16>
    %61 = vector.shape_cast %60 : vector<1x1x4x8xbf16> to vector<4x8xbf16>
    %cst_86 = arith.constant dense<0.000000e+00> : vector<576x8xf32>
    %62 = tpu.matmul %59, %61, %cst_86 {dimension_numbers = #tpu.dot_dimension_numbers<[1], [0], [0], [1], [0, 0, 1, 1], [], []>} : vector<576x4xbf16>, vector<4x8xbf16>, vector<576x8xf32> -> vector<576x8xf32>
    %63 = arith.addf %56, %62 : vector<576x8xf32>
    %64 = vector.shape_cast %63 : vector<576x8xf32> to vector<18x32x8xf32>
    %c0_87 = arith.constant 0 : index
    %c0_88 = arith.constant 0 : index
    %65 = vector.load %arg4[%c0_87, %c0_88] : memref<2x8xf32, #tpu.memory_space<vmem>>, vector<1x8xf32>
    %66 = vector.shape_cast %65 : vector<1x8xf32> to vector<1x1x8xf32>
    %67 = vector.broadcast %66 : vector<1x1x8xf32> to vector<18x32x8xf32>
    %68 = arith.mulf %64, %67 : vector<18x32x8xf32>
    %c1_89 = arith.constant 1 : index
    %c0_90 = arith.constant 0 : index
    %69 = vector.load %arg4[%c1_89, %c0_90] : memref<2x8xf32, #tpu.memory_space<vmem>>, vector<1x8xf32>
    %70 = vector.shape_cast %69 : vector<1x8xf32> to vector<1x1x8xf32>
    %71 = vector.broadcast %70 : vector<1x1x8xf32> to vector<18x32x8xf32>
    %72 = arith.addf %68, %71 : vector<18x32x8xf32>
    %cst_91 = arith.constant 0.000000e+00 : f32
    %73 = vector.broadcast %cst_91 : f32 to vector<18x32x8xf32>
    %74 = arith.maximumf %72, %73 : vector<18x32x8xf32>
    %75 = tpu.iota {dimensions = array<i32: 0>} : vector<18x32x1xi32>
    %76 = tpu.iota {dimensions = array<i32: 1>} : vector<18x32x1xi32>
    %c0_i32 = arith.constant 0 : i32
    %77 = arith.cmpi eq, %arg1, %c0_i32 : i32
    %c1_i32 = arith.constant 1 : i32
    %c0_i32_92 = arith.constant 0 : i32
    %78 = arith.select %77, %c1_i32, %c0_i32_92 : i32
    %c0_i32_93 = arith.constant 0 : i32
    %79 = arith.cmpi eq, %arg1, %c0_i32_93 : i32
    %c17_i32 = arith.constant 17 : i32
    %c18_i32 = arith.constant 18 : i32
    %80 = arith.select %79, %c17_i32, %c18_i32 : i32
    %81 = vector.broadcast %78 : i32 to vector<18x32x1xi32>
    %82 = arith.cmpi sge, %75, %81 : vector<18x32x1xi32>
    %83 = vector.broadcast %80 : i32 to vector<18x32x1xi32>
    %84 = arith.cmpi slt, %75, %83 : vector<18x32x1xi32>
    %85 = arith.andi %82, %84 : vector<18x32x1xi1>
    %c1_i32_94 = arith.constant 1 : i32
    %86 = vector.broadcast %c1_i32_94 : i32 to vector<18x32x1xi32>
    %87 = arith.cmpi sge, %76, %86 : vector<18x32x1xi32>
    %88 = arith.andi %85, %87 : vector<18x32x1xi1>
    %c16_i32 = arith.constant 16 : i32
    %89 = vector.broadcast %c16_i32 : i32 to vector<18x32x1xi32>
    %90 = arith.cmpi sle, %76, %89 : vector<18x32x1xi32>
    %91 = arith.andi %88, %90 : vector<18x32x1xi1>
    %cst_95 = arith.constant 0.000000e+00 : f32
    %92 = vector.shape_cast %91 : vector<18x32x1xi1> to vector<18x32x1xi1>
    %93 = vector.broadcast %92 : vector<18x32x1xi1> to vector<18x32x8xi1>
    %94 = vector.broadcast %cst_95 : f32 to vector<18x32x8xf32>
    %95 = arith.select %93, %74, %94 : vector<18x32x8xi1>, vector<18x32x8xf32>
    %96 = arith.truncf %95 : vector<18x32x8xf32> to vector<18x32x8xbf16>
    %c0_96 = arith.constant 0 : index
    %c0_97 = arith.constant 0 : index
    %c0_98 = arith.constant 0 : index
    %97 = vector.load %arg8[%c0_96, %c0_97, %c0_98] : memref<18x32x8xbf16, #tpu.memory_space<vmem>>, vector<18x32x8xbf16>
    tpu.vector_store %arg8[%c0_96, %c0_97, %c0_98], %96 {strides = array<i32>} : memref<18x32x8xbf16, #tpu.memory_space<vmem>>, vector<18x32x8xbf16>,
    %cst_99 = arith.constant 0.000000e+00 : f32
    %98 = vector.broadcast %cst_99 : f32 to vector<256x128xf32>
    %c0_100 = arith.constant 0 : index
    %c0_101 = arith.constant 0 : index
    %c0_102 = arith.constant 0 : index
    %99 = vector.load %arg8[%c0_100, %c0_101, %c0_102] : memref<18x32x8xbf16, #tpu.memory_space<vmem>>, vector<16x16x8xbf16>
    %100 = vector.shape_cast %99 : vector<16x16x8xbf16> to vector<256x8xbf16>
    %c0_103 = arith.constant 0 : index
    %c0_104 = arith.constant 0 : index
    %c0_105 = arith.constant 0 : index
    %c0_106 = arith.constant 0 : index
    %101 = vector.load %arg5[%c0_103, %c0_104, %c0_105, %c0_106] : memref<3x3x8x128xbf16, #tpu.memory_space<vmem>>, vector<1x1x8x128xbf16>
    %102 = vector.shape_cast %101 : vector<1x1x8x128xbf16> to vector<8x128xbf16>
    %cst_107 = arith.constant dense<0.000000e+00> : vector<256x128xf32>
    %103 = tpu.matmul %100, %102, %cst_107 {dimension_numbers = #tpu.dot_dimension_numbers<[1], [0], [0], [1], [0, 0, 1, 1], [], []>} : vector<256x8xbf16>, vector<8x128xbf16>, vector<256x128xf32> -> vector<256x128xf32>
    %104 = arith.addf %98, %103 : vector<256x128xf32>
    %c0_108 = arith.constant 0 : index
    %c1_109 = arith.constant 1 : index
    %c0_110 = arith.constant 0 : index
    %105 = vector.load %arg8[%c0_108, %c1_109, %c0_110] : memref<18x32x8xbf16, #tpu.memory_space<vmem>>, vector<16x16x8xbf16>
    %106 = vector.shape_cast %105 : vector<16x16x8xbf16> to vector<256x8xbf16>
    %c0_111 = arith.constant 0 : index
    %c1_112 = arith.constant 1 : index
    %c0_113 = arith.constant 0 : index
    %c0_114 = arith.constant 0 : index
    %107 = vector.load %arg5[%c0_111, %c1_112, %c0_113, %c0_114] : memref<3x3x8x128xbf16, #tpu.memory_space<vmem>>, vector<1x1x8x128xbf16>
    %108 = vector.shape_cast %107 : vector<1x1x8x128xbf16> to vector<8x128xbf16>
    %cst_115 = arith.constant dense<0.000000e+00> : vector<256x128xf32>
    %109 = tpu.matmul %106, %108, %cst_115 {dimension_numbers = #tpu.dot_dimension_numbers<[1], [0], [0], [1], [0, 0, 1, 1], [], []>} : vector<256x8xbf16>, vector<8x128xbf16>, vector<256x128xf32> -> vector<256x128xf32>
    %110 = arith.addf %104, %109 : vector<256x128xf32>
    %c0_116 = arith.constant 0 : index
    %c2_117 = arith.constant 2 : index
    %c0_118 = arith.constant 0 : index
    %111 = vector.load %arg8[%c0_116, %c2_117, %c0_118] : memref<18x32x8xbf16, #tpu.memory_space<vmem>>, vector<16x16x8xbf16>
    %112 = vector.shape_cast %111 : vector<16x16x8xbf16> to vector<256x8xbf16>
    %c0_119 = arith.constant 0 : index
    %c2_120 = arith.constant 2 : index
    %c0_121 = arith.constant 0 : index
    %c0_122 = arith.constant 0 : index
    %113 = vector.load %arg5[%c0_119, %c2_120, %c0_121, %c0_122] : memref<3x3x8x128xbf16, #tpu.memory_space<vmem>>, vector<1x1x8x128xbf16>
    %114 = vector.shape_cast %113 : vector<1x1x8x128xbf16> to vector<8x128xbf16>
    %cst_123 = arith.constant dense<0.000000e+00> : vector<256x128xf32>
    %115 = tpu.matmul %112, %114, %cst_123 {dimension_numbers = #tpu.dot_dimension_numbers<[1], [0], [0], [1], [0, 0, 1, 1], [], []>} : vector<256x8xbf16>, vector<8x128xbf16>, vector<256x128xf32> -> vector<256x128xf32>
    %116 = arith.addf %110, %115 : vector<256x128xf32>
    %c1_124 = arith.constant 1 : index
    %c0_125 = arith.constant 0 : index
    %c0_126 = arith.constant 0 : index
    %117 = vector.load %arg8[%c1_124, %c0_125, %c0_126] : memref<18x32x8xbf16, #tpu.memory_space<vmem>>, vector<16x16x8xbf16>
    %118 = vector.shape_cast %117 : vector<16x16x8xbf16> to vector<256x8xbf16>
    %c1_127 = arith.constant 1 : index
    %c0_128 = arith.constant 0 : index
    %c0_129 = arith.constant 0 : index
    %c0_130 = arith.constant 0 : index
    %119 = vector.load %arg5[%c1_127, %c0_128, %c0_129, %c0_130] : memref<3x3x8x128xbf16, #tpu.memory_space<vmem>>, vector<1x1x8x128xbf16>
    %120 = vector.shape_cast %119 : vector<1x1x8x128xbf16> to vector<8x128xbf16>
    %cst_131 = arith.constant dense<0.000000e+00> : vector<256x128xf32>
    %121 = tpu.matmul %118, %120, %cst_131 {dimension_numbers = #tpu.dot_dimension_numbers<[1], [0], [0], [1], [0, 0, 1, 1], [], []>} : vector<256x8xbf16>, vector<8x128xbf16>, vector<256x128xf32> -> vector<256x128xf32>
    %122 = arith.addf %116, %121 : vector<256x128xf32>
    %c1_132 = arith.constant 1 : index
    %c1_133 = arith.constant 1 : index
    %c0_134 = arith.constant 0 : index
    %123 = vector.load %arg8[%c1_132, %c1_133, %c0_134] : memref<18x32x8xbf16, #tpu.memory_space<vmem>>, vector<16x16x8xbf16>
    %124 = vector.shape_cast %123 : vector<16x16x8xbf16> to vector<256x8xbf16>
    %c1_135 = arith.constant 1 : index
    %c1_136 = arith.constant 1 : index
    %c0_137 = arith.constant 0 : index
    %c0_138 = arith.constant 0 : index
    %125 = vector.load %arg5[%c1_135, %c1_136, %c0_137, %c0_138] : memref<3x3x8x128xbf16, #tpu.memory_space<vmem>>, vector<1x1x8x128xbf16>
    %126 = vector.shape_cast %125 : vector<1x1x8x128xbf16> to vector<8x128xbf16>
    %cst_139 = arith.constant dense<0.000000e+00> : vector<256x128xf32>
    %127 = tpu.matmul %124, %126, %cst_139 {dimension_numbers = #tpu.dot_dimension_numbers<[1], [0], [0], [1], [0, 0, 1, 1], [], []>} : vector<256x8xbf16>, vector<8x128xbf16>, vector<256x128xf32> -> vector<256x128xf32>
    %128 = arith.addf %122, %127 : vector<256x128xf32>
    %c1_140 = arith.constant 1 : index
    %c2_141 = arith.constant 2 : index
    %c0_142 = arith.constant 0 : index
    %129 = vector.load %arg8[%c1_140, %c2_141, %c0_142] : memref<18x32x8xbf16, #tpu.memory_space<vmem>>, vector<16x16x8xbf16>
    %130 = vector.shape_cast %129 : vector<16x16x8xbf16> to vector<256x8xbf16>
    %c1_143 = arith.constant 1 : index
    %c2_144 = arith.constant 2 : index
    %c0_145 = arith.constant 0 : index
    %c0_146 = arith.constant 0 : index
    %131 = vector.load %arg5[%c1_143, %c2_144, %c0_145, %c0_146] : memref<3x3x8x128xbf16, #tpu.memory_space<vmem>>, vector<1x1x8x128xbf16>
    %132 = vector.shape_cast %131 : vector<1x1x8x128xbf16> to vector<8x128xbf16>
    %cst_147 = arith.constant dense<0.000000e+00> : vector<256x128xf32>
    %133 = tpu.matmul %130, %132, %cst_147 {dimension_numbers = #tpu.dot_dimension_numbers<[1], [0], [0], [1], [0, 0, 1, 1], [], []>} : vector<256x8xbf16>, vector<8x128xbf16>, vector<256x128xf32> -> vector<256x128xf32>
    %134 = arith.addf %128, %133 : vector<256x128xf32>
    %c2_148 = arith.constant 2 : index
    %c0_149 = arith.constant 0 : index
    %c0_150 = arith.constant 0 : index
    %135 = vector.load %arg8[%c2_148, %c0_149, %c0_150] : memref<18x32x8xbf16, #tpu.memory_space<vmem>>, vector<16x16x8xbf16>
    %136 = vector.shape_cast %135 : vector<16x16x8xbf16> to vector<256x8xbf16>
    %c2_151 = arith.constant 2 : index
    %c0_152 = arith.constant 0 : index
    %c0_153 = arith.constant 0 : index
    %c0_154 = arith.constant 0 : index
    %137 = vector.load %arg5[%c2_151, %c0_152, %c0_153, %c0_154] : memref<3x3x8x128xbf16, #tpu.memory_space<vmem>>, vector<1x1x8x128xbf16>
    %138 = vector.shape_cast %137 : vector<1x1x8x128xbf16> to vector<8x128xbf16>
    %cst_155 = arith.constant dense<0.000000e+00> : vector<256x128xf32>
    %139 = tpu.matmul %136, %138, %cst_155 {dimension_numbers = #tpu.dot_dimension_numbers<[1], [0], [0], [1], [0, 0, 1, 1], [], []>} : vector<256x8xbf16>, vector<8x128xbf16>, vector<256x128xf32> -> vector<256x128xf32>
    %140 = arith.addf %134, %139 : vector<256x128xf32>
    %c2_156 = arith.constant 2 : index
    %c1_157 = arith.constant 1 : index
    %c0_158 = arith.constant 0 : index
    %141 = vector.load %arg8[%c2_156, %c1_157, %c0_158] : memref<18x32x8xbf16, #tpu.memory_space<vmem>>, vector<16x16x8xbf16>
    %142 = vector.shape_cast %141 : vector<16x16x8xbf16> to vector<256x8xbf16>
    %c2_159 = arith.constant 2 : index
    %c1_160 = arith.constant 1 : index
    %c0_161 = arith.constant 0 : index
    %c0_162 = arith.constant 0 : index
    %143 = vector.load %arg5[%c2_159, %c1_160, %c0_161, %c0_162] : memref<3x3x8x128xbf16, #tpu.memory_space<vmem>>, vector<1x1x8x128xbf16>
    %144 = vector.shape_cast %143 : vector<1x1x8x128xbf16> to vector<8x128xbf16>
    %cst_163 = arith.constant dense<0.000000e+00> : vector<256x128xf32>
    %145 = tpu.matmul %142, %144, %cst_163 {dimension_numbers = #tpu.dot_dimension_numbers<[1], [0], [0], [1], [0, 0, 1, 1], [], []>} : vector<256x8xbf16>, vector<8x128xbf16>, vector<256x128xf32> -> vector<256x128xf32>
    %146 = arith.addf %140, %145 : vector<256x128xf32>
    %c2_164 = arith.constant 2 : index
    %c2_165 = arith.constant 2 : index
    %c0_166 = arith.constant 0 : index
    %147 = vector.load %arg8[%c2_164, %c2_165, %c0_166] : memref<18x32x8xbf16, #tpu.memory_space<vmem>>, vector<16x16x8xbf16>
    %148 = vector.shape_cast %147 : vector<16x16x8xbf16> to vector<256x8xbf16>
    %c2_167 = arith.constant 2 : index
    %c2_168 = arith.constant 2 : index
    %c0_169 = arith.constant 0 : index
    %c0_170 = arith.constant 0 : index
    %149 = vector.load %arg5[%c2_167, %c2_168, %c0_169, %c0_170] : memref<3x3x8x128xbf16, #tpu.memory_space<vmem>>, vector<1x1x8x128xbf16>
    %150 = vector.shape_cast %149 : vector<1x1x8x128xbf16> to vector<8x128xbf16>
    %cst_171 = arith.constant dense<0.000000e+00> : vector<256x128xf32>
    %151 = tpu.matmul %148, %150, %cst_171 {dimension_numbers = #tpu.dot_dimension_numbers<[1], [0], [0], [1], [0, 0, 1, 1], [], []>} : vector<256x8xbf16>, vector<8x128xbf16>, vector<256x128xf32> -> vector<256x128xf32>
    %152 = arith.addf %146, %151 : vector<256x128xf32>
    %c0_172 = arith.constant 0 : index
    %c0_173 = arith.constant 0 : index
    %153 = vector.load %arg6[%c0_172, %c0_173] : memref<2x128xf32, #tpu.memory_space<vmem>>, vector<1x128xf32>
    %154 = vector.broadcast %153 : vector<1x128xf32> to vector<256x128xf32>
    %155 = arith.mulf %152, %154 : vector<256x128xf32>
    %c1_174 = arith.constant 1 : index
    %c0_175 = arith.constant 0 : index
    %156 = vector.load %arg6[%c1_174, %c0_175] : memref<2x128xf32, #tpu.memory_space<vmem>>, vector<1x128xf32>
    %157 = vector.broadcast %156 : vector<1x128xf32> to vector<256x128xf32>
    %158 = arith.addf %155, %157 : vector<256x128xf32>
    %cst_176 = arith.constant 0.000000e+00 : f32
    %159 = vector.broadcast %cst_176 : f32 to vector<256x128xf32>
    %160 = arith.maximumf %158, %159 : vector<256x128xf32>
    %161 = vector.shape_cast %160 : vector<256x128xf32> to vector<16x16x128xf32>
    %c0_177 = arith.constant 0 : index
    %c0_178 = arith.constant 0 : index
    %c0_179 = arith.constant 0 : index
    %c0_180 = arith.constant 0 : index
    %162 = vector.load %arg7[%c0_177, %c0_178, %c0_179, %c0_180] : memref<1x16x16x128xf32, #tpu.memory_space<vmem>>, vector<1x16x16x128xf32>
    %163 = vector.shape_cast %162 : vector<1x16x16x128xf32> to vector<16x16x128xf32>
    %164 = vector.shape_cast %161 : vector<16x16x128xf32> to vector<1x16x16x128xf32>
    tpu.vector_store %arg7[%c0_177, %c0_178, %c0_179, %c0_180], %164 {strides = array<i32>} : memref<1x16x16x128xf32, #tpu.memory_space<vmem>>, vector<1x16x16x128xf32>,
    return
  }
  func.func @transform_0(%arg0: i32, %arg1: i32) -> (i32, i32, i32, i32, i32) {
    %c0_i32 = arith.constant 0 : i32
    %c0_i32_0 = arith.constant 0 : i32
    %c0_i32_1 = arith.constant 0 : i32
    %c0_i32_2 = arith.constant 0 : i32
    return %arg0, %arg1, %c0_i32, %c0_i32_0, %c0_i32_1 : i32, i32, i32, i32, i32
  }
  func.func @transform_1(%arg0: i32, %arg1: i32) -> (i32, i32, i32, i32) {
    %c0_i32 = arith.constant 0 : i32
    %c0_i32_0 = arith.constant 0 : i32
    %c0_i32_1 = arith.constant 0 : i32
    %c0_i32_2 = arith.constant 0 : i32
    %c0_i32_3 = arith.constant 0 : i32
    return %c0_i32, %c0_i32_0, %c0_i32_1, %c0_i32_2 : i32, i32, i32, i32
  }
  func.func @transform_2(%arg0: i32, %arg1: i32) -> (i32, i32) {
    %c0_i32 = arith.constant 0 : i32
    %c0_i32_0 = arith.constant 0 : i32
    %c0_i32_1 = arith.constant 0 : i32
    return %c0_i32, %c0_i32_0 : i32, i32
  }
  func.func @transform_3(%arg0: i32, %arg1: i32) -> (i32, i32, i32, i32) {
    %c0_i32 = arith.constant 0 : i32
    %c0_i32_0 = arith.constant 0 : i32
    %c0_i32_1 = arith.constant 0 : i32
    %c0_i32_2 = arith.constant 0 : i32
    %c0_i32_3 = arith.constant 0 : i32
    return %c0_i32, %c0_i32_0, %c0_i32_1, %c0_i32_2 : i32, i32, i32, i32
  }
  func.func @transform_4(%arg0: i32, %arg1: i32) -> (i32, i32) {
    %c0_i32 = arith.constant 0 : i32
    %c0_i32_0 = arith.constant 0 : i32
    %c0_i32_1 = arith.constant 0 : i32
    return %c0_i32, %c0_i32_0 : i32, i32
  }
  func.func @transform_5(%arg0: i32, %arg1: i32) -> (i32, i32, i32, i32) {
    %c0_i32 = arith.constant 0 : i32
    %c0_i32_0 = arith.constant 0 : i32
    %c0_i32_1 = arith.constant 0 : i32
    return %arg0, %arg1, %c0_i32, %c0_i32_0 : i32, i32, i32, i32
  }
}

</mosaic_0001>

<llo_original>
// kernel: unet_conv2_forward.1
$region0: #{unet_conv2_forward.1}
  #allocation0 [shape = 'u32[]', space=smem, size = 0x4, offset = 0x4, fixed_abs, tag = 'smem constant byte address 0x4 - core index']
  #allocation1 [shape = 'u32[144,128]{1,0:T(1,128)}', space=vmem, size = 0x12000, scoped, tag = 'internal scratch']
  #allocation2 [shape = 'bf16[18,32,8]{2,1,0:T(16,128)(2,1)}', space=vmem, size = 0x24000, scoped, tag = 'scratch operand']
  %s0 = inlined_call_operand.vmem [shape: bf16[2,1,20,34,4], index: 0, kind: input, shape index: {}]
  %s1 = inlined_call_operand.vmem [shape: bf16[3,3,4,8], index: 1, kind: input, shape index: {}]
  %s2 = inlined_call_operand.vmem [shape: f32[2,8], index: 2, kind: input, shape index: {}]
  %s3 = inlined_call_operand.vmem [shape: bf16[3,3,8,128], index: 3, kind: input, shape index: {}]
  %s4 = inlined_call_operand.vmem [shape: f32[2,128], index: 4, kind: input, shape index: {}]
  %s5 = inlined_call_operand.vmem [shape: f32[2,16,16,128], index: 5, kind: output, shape index: {}]
  %s6 = sld [smem:[#allocation0]]
  $region53: #{unet_conv2_forward.1} parent=0
    _
  %s8 = ssub.s32 1, %s6
  %s9 = scalar_select 0, %s8, %s6
  loop: start=0, step=1, limit=4
  $region2: #{unet_conv2_forward.1} parent=0 // loop_pre_header
    _
  $region3: #{unet_conv2_forward.1} parent=0 // loop_header
    %s11 = sphi 0, %s15
    %p12 = scmp.ge.s32.totalorder %s11, 4
    %s18 = sphi 0, %s30
    %s19 = sphi 0, %s26
    %s20 = sphi 0, %s18
    %s21 = sphi 0, %s19
    %s22 = sphi 0, %s20
    %s23 = sphi 0, %s21
    %s35 = sphi 0, %s37
    %s38 = sphi 0, %s35
    %s39 = sphi 0, %s38
    %s55 = sphi 0, %s39
    %s59 = sphi 0, %s59
    %s61 = sphi 0, %s59
    %s62 = sphi 0, %s61
    %s76 = sphi 0, %s62
    %s80 = sphi 0, %s80
    %s82 = sphi 0, %s80
    %s83 = sphi 0, %s82
    %s97 = sphi 0, %s83
    %s101 = sphi 0, %s101
    %s103 = sphi 0, %s101
    %s104 = sphi 0, %s103
    %s118 = sphi 0, %s104
    %s122 = sphi 0, %s122
    %s124 = sphi 0, %s122
    %s125 = sphi 0, %s124
    %s139 = sphi 0, %s125
    %s147 = sphi 0, %s149
    %s150 = sphi 0, %s147
    %s151 = sphi 0, %s150
    %s167 = sphi 0, %s151
  $region4: #{unet_conv2_forward.1} parent=0 // loop_header_branch
    %14 = sbr.rel (%p12) target = $region8
  $region5: #{unet_conv2_forward.1} parent=0 // loop_body
    %s16 = ssub.s32 %s11, 1
    %s17 = ssub.s32 %s11, 2
    %s24 = sadd.s32 1, %s19
    %p25 = scmp.ge.s32.totalorder %s24, 1
    %s26 = scalar_select %p25, 0, %s24
    %s27 = sadd.s32 1, %s18
    %s28 = scalar_select %p25, %s27, %s18
    %p29 = scmp.ge.s32.totalorder %s28, 2
    %s30 = scalar_select %p29, 0, %s28
    %s31 = ssub.s32 %s18, %s30
    %s32 = ssub.s32 %s19, %s26
    %s33 = sor.u32 %s31, %s32
    %p34 = scmp.eq.s32.totalorder %s33, 0
    %s36 = sadd.s32 %s35, 1
    %s37 = scalar_select %p34, %s35, %s36
    %p40 = pneg %p34
    %p41 = scmp.eq.s32.totalorder %s11, 1
    %p42 = por %p40, %p41
    %p43 = scmp.ne.s32.totalorder %s35, %s38
    %p44 = scmp.eq.s32.totalorder %s11, 0
    %p45 = por %p43, %p44
    %p46 = scmp.ne.s32.totalorder %s35, %s38
    %p47 = scmp.eq.s32.totalorder %s16, 1
    %p48 = por %p46, %p47
    %p49 = scmp.ne.s32.totalorder %s38, %s39
    %p50 = scmp.eq.s32.totalorder %s16, 0
    %p51 = por %p49, %p50
    %p52 = scmp.ne.s32.totalorder %s38, %s39
    %p53 = scmp.eq.s32.totalorder %s17, 1
    %p54 = por %p52, %p53
    %p56 = scmp.ne.s32.totalorder %s39, %s55
    %p57 = scmp.eq.s32.totalorder %s17, 0
    %p58 = por %p56, %p57
    %s60 = sadd.s32 %s59, 1
    %p63 = scmp.eq.s32.totalorder %s11, 1
    %p64 = scmp.ne.s32.totalorder %s59, %s61
    %p65 = scmp.eq.s32.totalorder %s11, 0
    %p66 = por %p64, %p65
    %p67 = scmp.ne.s32.totalorder %s59, %s61
    %p68 = scmp.eq.s32.totalorder %s16, 1
    %p69 = por %p67, %p68
    %p70 = scmp.ne.s32.totalorder %s61, %s62
    %p71 = scmp.eq.s32.totalorder %s16, 0
    %p72 = por %p70, %p71
    %p73 = scmp.ne.s32.totalorder %s61, %s62
    %p74 = scmp.eq.s32.totalorder %s17, 1
    %p75 = por %p73, %p74
    %p77 = scmp.ne.s32.totalorder %s62, %s76
    %p78 = scmp.eq.s32.totalorder %s17, 0
    %p79 = por %p77, %p78
    %s81 = sadd.s32 %s80, 1
    %p84 = scmp.eq.s32.totalorder %s11, 1
    %p85 = scmp.ne.s32.totalorder %s80, %s82
    %p86 = scmp.eq.s32.totalorder %s11, 0
    %p87 = por %p85, %p86
    %p88 = scmp.ne.s32.totalorder %s80, %s82
    %p89 = scmp.eq.s32.totalorder %s16, 1
    %p90 = por %p88, %p89
    %p91 = scmp.ne.s32.totalorder %s82, %s83
    %p92 = scmp.eq.s32.totalorder %s16, 0
    %p93 = por %p91, %p92
    %p94 = scmp.ne.s32.totalorder %s82, %s83
    %p95 = scmp.eq.s32.totalorder %s17, 1
    %p96 = por %p94, %p95
    %p98 = scmp.ne.s32.totalorder %s83, %s97
    %p99 = scmp.eq.s32.totalorder %s17, 0
    %p100 = por %p98, %p99
    %s102 = sadd.s32 %s101, 1
    %p105 = scmp.eq.s32.totalorder %s11, 1
    %p106 = scmp.ne.s32.totalorder %s101, %s103
    %p107 = scmp.eq.s32.totalorder %s11, 0
    %p108 = por %p106, %p107
    %p109 = scmp.ne.s32.totalorder %s101, %s103
    %p110 = scmp.eq.s32.totalorder %s16, 1
    %p111 = por %p109, %p110
    %p112 = scmp.ne.s32.totalorder %s103, %s104
    %p113 = scmp.eq.s32.totalorder %s16, 0
    %p114 = por %p112, %p113
    %p115 = scmp.ne.s32.totalorder %s103, %s104
    %p116 = scmp.eq.s32.totalorder %s17, 1
    %p117 = por %p115, %p116
    %p119 = scmp.ne.s32.totalorder %s104, %s118
    %p120 = scmp.eq.s32.totalorder %s17, 0
    %p121 = por %p119, %p120
    %s123 = sadd.s32 %s122, 1
    %p126 = scmp.eq.s32.totalorder %s11, 1
    %p127 = scmp.ne.s32.totalorder %s122, %s124
    %p128 = scmp.eq.s32.totalorder %s11, 0
    %p129 = por %p127, %p128
    %p130 = scmp.ne.s32.totalorder %s122, %s124
    %p131 = scmp.eq.s32.totalorder %s16, 1
    %p132 = por %p130, %p131
    %p133 = scmp.ne.s32.totalorder %s124, %s125
    %p134 = scmp.eq.s32.totalorder %s16, 0
    %p135 = por %p133, %p134
    %p136 = scmp.ne.s32.totalorder %s124, %s125
    %p137 = scmp.eq.s32.totalorder %s17, 1
    %p138 = por %p136, %p137
    %p140 = scmp.ne.s32.totalorder %s125, %s139
    %p141 = scmp.eq.s32.totalorder %s17, 0
    %p142 = por %p140, %p141
    %s143 = ssub.s32 %s18, %s30
    %s144 = ssub.s32 %s19, %s26
    %s145 = sor.u32 %s143, %s144
    %p146 = scmp.eq.s32.totalorder %s145, 0
    %s148 = sadd.s32 %s147, 1
    %s149 = scalar_select %p146, %s147, %s148
    %p152 = pneg %p146
    %p153 = scmp.eq.s32.totalorder %s11, 1
    %p154 = por %p152, %p153
    %p155 = scmp.ne.s32.totalorder %s147, %s150
    %p156 = scmp.eq.s32.totalorder %s11, 0
    %p157 = por %p155, %p156
    %p158 = scmp.ne.s32.totalorder %s147, %s150
    %p159 = scmp.eq.s32.totalorder %s16, 1
    %p160 = por %p158, %p159
    %p161 = scmp.ne.s32.totalorder %s150, %s151
    %p162 = scmp.eq.s32.totalorder %s16, 0
    %p163 = por %p161, %p162
    %p164 = scmp.ne.s32.totalorder %s150, %s151
    %p165 = scmp.eq.s32.totalorder %s17, 1
    %p166 = por %p164, %p165
    %p168 = scmp.ne.s32.totalorder %s151, %s167
    %p169 = scmp.eq.s32.totalorder %s17, 0
    %p170 = por %p168, %p169
    %p171 = scmp.le.s32.totalorder 1, %s11
    %p172 = scmp.lt.s32.totalorder %s11, 3
    %p173 = pnand %p171, %p172
    %p174 = pneg %p173
    // Predicated region
    $region9: #{unet_conv2_forward.1} parent=5 // pred_check
      _
    $region10: #{unet_conv2_forward.1} parent=5 // pred_check_branch
      %176 = sbr.rel (%p173) target = $region12
    $region11: #{unet_conv2_forward.1} parent=5 // pred_region
      %s177 = ssub.s32 %s11, 1
      // Predicated region
      $region13: #{unet_conv2_forward.1} parent=11 // pred_check
        %p178 = pneg %p72
      $region14: #{unet_conv2_forward.1} parent=11 // pred_check_branch
        %180 = sbr.rel (%p178) target = $region16
      $region15: #{unet_conv2_forward.1} parent=11 // pred_region
        _
      $region16: #{unet_conv2_forward.1} parent=11 // pred_fallthru
        _
      // Predicated region
      $region17: #{unet_conv2_forward.1} parent=11 // pred_check
        %p181 = pneg %p93
      $region18: #{unet_conv2_forward.1} parent=11 // pred_check_branch
        %183 = sbr.rel (%p181) target = $region20
      $region19: #{unet_conv2_forward.1} parent=11 // pred_region
        _
      $region20: #{unet_conv2_forward.1} parent=11 // pred_fallthru
        _
      // Predicated region
      $region21: #{unet_conv2_forward.1} parent=11 // pred_check
        %p184 = pneg %p114
      $region22: #{unet_conv2_forward.1} parent=11 // pred_check_branch
        %186 = sbr.rel (%p184) target = $region24
      $region23: #{unet_conv2_forward.1} parent=11 // pred_region
        _
      $region24: #{unet_conv2_forward.1} parent=11 // pred_fallthru
        _
      // Predicated region
      $region25: #{unet_conv2_forward.1} parent=11 // pred_check
        %p187 = pneg %p135
      $region26: #{unet_conv2_forward.1} parent=11 // pred_check_branch
        %189 = sbr.rel (%p187) target = $region28
      $region27: #{unet_conv2_forward.1} parent=11 // pred_region
        _
      $region28: #{unet_conv2_forward.1} parent=11 // pred_fallthru
        _
    $region12: #{unet_conv2_forward.1} parent=5 // pred_fallthru
      _
    %p190 = scmp.lt.s32.totalorder %s11, 2
    // Predicated region
    $region29: #{unet_conv2_forward.1} parent=5 // pred_check
      %p191 = pneg %p190
    $region30: #{unet_conv2_forward.1} parent=5 // pred_check_branch
      %193 = sbr.rel (%p191) target = $region32
    $region31: #{unet_conv2_forward.1} parent=5 // pred_region
      // Predicated region
      $region33: #{unet_conv2_forward.1} parent=31 // pred_check
        %p194 = pneg %p45
      $region34: #{unet_conv2_forward.1} parent=31 // pred_check_branch
        %196 = sbr.rel (%p194) target = $region36
      $region35: #{unet_conv2_forward.1} parent=31 // pred_region
        %p197 = scmp.lt.s32.totalorder %s18, 1
        %s198 = scalar_select %p197, %s18, 1
        %p199 = scmp.lt.s32.totalorder %s19, 0
        %s200 = scalar_select %p199, %s19, 0
        %s201 = smul.addr %s200, 100
        %s202 = smul.addr %s198, 100
        %s203 = sadd.s32 %s201, %s202
        %s204 = smul.addr %s203, 4
        %s205 = scalar_lea.vmem %s0, %s204
      $region36: #{unet_conv2_forward.1} parent=31 // pred_fallthru
        _
    $region32: #{unet_conv2_forward.1} parent=5 // pred_fallthru
      _
    %p206 = scmp.le.s32.totalorder 1, %s11
    %p207 = scmp.lt.s32.totalorder %s11, 3
    %p208 = pnand %p206, %p207
    %p209 = pneg %p208
    // Predicated region
    $region37: #{unet_conv2_forward.1} parent=5 // pred_check
      _
    $region38: #{unet_conv2_forward.1} parent=5 // pred_check_branch
      %211 = sbr.rel (%p208) target = $region40
    $region39: #{unet_conv2_forward.1} parent=5 // pred_region
      %s212 = ssub.s32 %s11, 1
      %p213 = scmp.lt.s32.totalorder %s20, 1
      %s214 = scalar_select %p213, %s20, 1
      %p215 = scmp.lt.s32.totalorder %s21, 0
      %s216 = scalar_select %p215, %s21, 0
      %s217 = smul.addr %s216, 100
      %s218 = smul.addr %s214, 100
      %s219 = sadd.s32 %s217, %s218
      %s220 = smul.addr %s219, 4
      %s221 = scalar_lea.vmem %s0, %s220
      %p222 = pneg %p51
      %p223 = pneg %p48
      %p224 = pneg %p72
      %p225 = pneg %p69
      %p226 = pneg %p93
      %p227 = pneg %p90
      %p228 = pneg %p114
      %p229 = pneg %p111
      %p230 = pneg %p135
      %p231 = pneg %p132
      %p232 = pneg %p163
      %p233 = pneg %p160
      %s234 = smul.u32 16, %s21
      %p235 = scmp.lt.s32.totalorder %s20, 1
      %s236 = scalar_select %p235, %s20, 1
      %p237 = scmp.lt.s32.totalorder %s234, 15
      %s238 = scalar_select %p237, %s234, 15
      %s239 = smul.addr %s238, 2
      %s240 = smul.addr %s236, 32
      %s241 = sadd.s32 %s239, %s240
      %s242 = smul.addr %s241, 8
      %s243 = scalar_lea.vmem %s5, %s242
      %p244 = scmp.lt.s32.totalorder %s20, 1
      %s245 = scalar_select %p244, %s20, 1
      %p246 = scmp.lt.s32.totalorder %s21, 0
      %s247 = scalar_select %p246, %s21, 0
      %s248 = smul.addr %s247, 100
      %s249 = smul.addr %s245, 100
      %s250 = sadd.s32 %s248, %s249
      %s251 = smul.addr %s250, 4
      %s252 = scalar_lea.vmem %s0, %s251
      %s253 = smul.u32 16, %s21
      %p254 = scmp.lt.s32.totalorder %s20, 1
      %s255 = scalar_select %p254, %s20, 1
      %p256 = scmp.lt.s32.totalorder %s253, 15
      %s257 = scalar_select %p256, %s253, 15
      %s258 = smul.addr %s257, 2
      %s259 = smul.addr %s255, 32
      %s260 = sadd.s32 %s258, %s259
      %s261 = smul.addr %s260, 8
      %s262 = scalar_lea.vmem %s5, %s261
      %s263 = smul.u32 16, %s21
      %v265 = vld [vmem:[%s252] sm:$0xf]
      %v266 = vld [vmem:[%s252 + $0x4] sm:$0xf]
      %v267 = vld [vmem:[%s252 + $0x8] sm:$0xf]
      %v268 = vld [vmem:[%s252 + $0xc] sm:$0xf]
      %v269 = vld [vmem:[%s252 + $0x14] sm:$0xf]
      %v270 = vld [vmem:[%s252 + $0x18] sm:$0xf]
      %v271 = vld [vmem:[%s252 + $0x1c] sm:$0xf]
      %v272 = vld [vmem:[%s252 + $0x20] sm:$0xf]
      %v273 = vld [vmem:[%s252 + $0x28] sm:$0xf]
      %v274 = vld [vmem:[%s252 + $0x2c] sm:$0xf]
      %v275 = vld [vmem:[%s252 + $0x30] sm:$0xf]
      %v276 = vld [vmem:[%s252 + $0x34] sm:$0xf]
      %v277 = vld [vmem:[%s252 + $0x3c] sm:$0xf]
      %v278 = vld [vmem:[%s252 + $0x40] sm:$0xf]
      %v279 = vld [vmem:[%s252 + $0x44] sm:$0xf]
      %v280 = vld [vmem:[%s252 + $0x48] sm:$0xf]
      %v281 = vld [vmem:[%s252 + $0x50] sm:$0xf]
      %v282 = vld [vmem:[%s252 + $0x54] sm:$0xf]
      %v283 = vld [vmem:[%s252 + $0x58] sm:$0xf]
      %v284 = vld [vmem:[%s252 + $0x5c] sm:$0xf]
      %v285 = vld [vmem:[%s252 + $0x64] sm:$0xf]
      %v286 = vld [vmem:[%s252 + $0x68] sm:$0xf]
      %v287 = vld [vmem:[%s252 + $0x6c] sm:$0xf]
      %v288 = vld [vmem:[%s252 + $0x70] sm:$0xf]
      %v289 = vld [vmem:[%s252 + $0x78] sm:$0xf]
      %v290 = vld [vmem:[%s252 + $0x7c] sm:$0xf]
      %v291 = vld [vmem:[%s252 + $0x80] sm:$0xf]
      %v292 = vld [vmem:[%s252 + $0x84] sm:$0xf]
      %v293 = vld [vmem:[%s252 + $0x8c] sm:$0xf]
      %v294 = vld [vmem:[%s252 + $0x90] sm:$0xf]
      %v295 = vld [vmem:[%s252 + $0x94] sm:$0xf]
      %v296 = vld [vmem:[%s252 + $0x98] sm:$0xf]
      %v297 = vld [vmem:[%s252 + $0xa0] sm:$0xf]
      %v298 = vld [vmem:[%s252 + $0xa4] sm:$0xf]
      %v299 = vld [vmem:[%s252 + $0xa8] sm:$0xf]
      %v300 = vld [vmem:[%s252 + $0xac] sm:$0xf]
      %v301 = vld [vmem:[%s252 + $0xb4] sm:$0xf]
      %v302 = vld [vmem:[%s252 + $0xb8] sm:$0xf]
      %v303 = vld [vmem:[%s252 + $0xbc] sm:$0xf]
      %v304 = vld [vmem:[%s252 + $0xc0] sm:$0xf]
      %v305 = vld [vmem:[%s252 + $0xc8] sm:$0xf]
      %v306 = vld [vmem:[%s252 + $0xcc] sm:$0xf]
      %v307 = vld [vmem:[%s252 + $0xd0] sm:$0xf]
      %v308 = vld [vmem:[%s252 + $0xd4] sm:$0xf]
      %v309 = vld [vmem:[%s252 + $0xdc] sm:$0xf]
      %v310 = vld [vmem:[%s252 + $0xe0] sm:$0xf]
      %v311 = vld [vmem:[%s252 + $0xe4] sm:$0xf]
      %v312 = vld [vmem:[%s252 + $0xe8] sm:$0xf]
      %v313 = vld [vmem:[%s252 + $0xf0] sm:$0xf]
      %v314 = vld [vmem:[%s252 + $0xf4] sm:$0xf]
      %v315 = vld [vmem:[%s252 + $0xf8] sm:$0xf]
      %v316 = vld [vmem:[%s252 + $0xfc] sm:$0xf]
      %v317 = vld [vmem:[%s252 + $0x104] sm:$0xf]
      %v318 = vld [vmem:[%s252 + $0x108] sm:$0xf]
      %v319 = vld [vmem:[%s252 + $0x10c] sm:$0xf]
      %v320 = vld [vmem:[%s252 + $0x110] sm:$0xf]
      %v321 = vld [vmem:[%s252 + $0x118] sm:$0xf]
      %v322 = vld [vmem:[%s252 + $0x11c] sm:$0xf]
      %v323 = vld [vmem:[%s252 + $0x120] sm:$0xf]
      %v324 = vld [vmem:[%s252 + $0x124] sm:$0xf]
      %v325 = vld [vmem:[%s252 + $0x12c] sm:$0xf]
      %v326 = vld [vmem:[%s252 + $0x130] sm:$0xf]
      %v327 = vld [vmem:[%s252 + $0x134] sm:$0xf]
      %v328 = vld [vmem:[%s252 + $0x138] sm:$0xf]
      %v329 = vld [vmem:[%s252 + $0x140] sm:$0xf]
      %v330 = vld [vmem:[%s252 + $0x144] sm:$0xf]
      %v331 = vld [vmem:[%s252 + $0x148] sm:$0xf]
      %v332 = vld [vmem:[%s252 + $0x14c] sm:$0xf]
      %v333 = vld [vmem:[%s252 + $0x154] sm:$0xf]
      %v334 = vld [vmem:[%s252 + $0x158] sm:$0xf]
      %v335 = vld [vmem:[%s252 + $0x15c] sm:$0xf]
      %v336 = vld [vmem:[%s252 + $0x160] sm:$0xf]
      %v337 = vld [vmem:[%s1] sm:$0x3]
      %v338 = vld [vmem:[%s252 + $0x10] sm:$0x1]
      %v339 = vld [vmem:[%s252 + $0x24] sm:$0x1]
      %v340 = vld [vmem:[%s252 + $0x38] sm:$0x1]
      %v341 = vld [vmem:[%s252 + $0x4c] sm:$0x1]
      %v342 = vld [vmem:[%s252 + $0x60] sm:$0x1]
      %v343 = vld [vmem:[%s252 + $0x74] sm:$0x1]
      %v344 = vld [vmem:[%s252 + $0x88] sm:$0x1]
      %v345 = vld [vmem:[%s252 + $0x9c] sm:$0x1]
      %v346 = vld [vmem:[%s252 + $0xb0] sm:$0x1]
      %v347 = vld [vmem:[%s252 + $0xc4] sm:$0x1]
      %v348 = vld [vmem:[%s252 + $0xd8] sm:$0x1]
      %v349 = vld [vmem:[%s252 + $0xec] sm:$0x1]
      %v350 = vld [vmem:[%s252 + $0x100] sm:$0x1]
      %v351 = vld [vmem:[%s252 + $0x114] sm:$0x1]
      %v352 = vld [vmem:[%s252 + $0x128] sm:$0x1]
      %v353 = vld [vmem:[%s252 + $0x13c] sm:$0x1]
      %v354 = vld [vmem:[%s252 + $0x150] sm:$0x1]
      %v355 = vld [vmem:[%s252 + $0x164] sm:$0x1]
      %vm356 = vsmask.f32 3328
      %vm357 = vsmask.f32 7440
      %vm358 = vmor %vm356, %vm357
      %v360 = vshrl.u32 %v265, 16
      %v362 = vrot.slane %v360, 4
      %v363 = vshll.u32 %v265, 16
      %v365 = vrot.slane %v363, 5
      %v366 = vor.u32 %v362, %v365
      %v367 = vrot.slane %v366, 4
      %v369 = vshll.u32 %v266, 16
      %v371 = vrot.slane %v369, 5
      %v372 = vsel %vm358, %v367, %v371
      %v373 = vshrl.u32 %v266, 16
      %v375 = vrot.slane %v373, 4
      %v376 = vor.u32 %v375, %v371
      %v377 = vrot.slane %v376, 4
      %v379 = vshll.u32 %v267, 16
      %v381 = vrot.slane %v379, 5
      %v382 = vsel %vm358, %v377, %v381
      %v383 = vshrl.u32 %v267, 16
      %v385 = vrot.slane %v383, 4
      %v386 = vor.u32 %v385, %v381
      %v387 = vrot.slane %v386, 4
      %v389 = vshll.u32 %v268, 16
      %v391 = vrot.slane %v389, 5
      %v392 = vsel %vm358, %v387, %v391
      %v393 = vshrl.u32 %v268, 16
      %v395 = vrot.slane %v393, 4
      %v396 = vor.u32 %v395, %v391
      %v397 = vrot.slane %v396, 4
      %v399 = vshll.u32 %v338, 16
      %v401 = vrot.slane %v399, 5
      %v402 = vsel %vm358, %v397, %v401
      %v404 = vshrl.u32 %v269, 16
      %v406 = vrot.slane %v404, 4
      %v407 = vshll.u32 %v269, 16
      %v409 = vrot.slane %v407, 5
      %v410 = vor.u32 %v406, %v409
      %v411 = vrot.slane %v410, 4
      %v413 = vshll.u32 %v270, 16
      %v415 = vrot.slane %v413, 5
      %v416 = vsel %vm358, %v411, %v415
      %v417 = vshrl.u32 %v270, 16
      %v419 = vrot.slane %v417, 4
      %v420 = vor.u32 %v419, %v415
      %v421 = vrot.slane %v420, 4
      %v423 = vshll.u32 %v271, 16
      %v425 = vrot.slane %v423, 5
      %v426 = vsel %vm358, %v421, %v425
      %v427 = vshrl.u32 %v271, 16
      %v429 = vrot.slane %v427, 4
      %v430 = vor.u32 %v429, %v425
      %v431 = vrot.slane %v430, 4
      %v433 = vshll.u32 %v272, 16
      %v435 = vrot.slane %v433, 5
      %v436 = vsel %vm358, %v431, %v435
      %v437 = vshrl.u32 %v272, 16
      %v439 = vrot.slane %v437, 4
      %v440 = vor.u32 %v439, %v435
      %v441 = vrot.slane %v440, 4
      %v443 = vshll.u32 %v339, 16
      %v445 = vrot.slane %v443, 5
      %v446 = vsel %vm358, %v441, %v445
      %v448 = vshrl.u32 %v273, 16
      %v450 = vrot.slane %v448, 4
      %v451 = vshll.u32 %v273, 16
      %v453 = vrot.slane %v451, 5
      %v454 = vor.u32 %v450, %v453
      %v455 = vrot.slane %v454, 4
      %v457 = vshll.u32 %v274, 16
      %v459 = vrot.slane %v457, 5
      %v460 = vsel %vm358, %v455, %v459
      %v461 = vshrl.u32 %v274, 16
      %v463 = vrot.slane %v461, 4
      %v464 = vor.u32 %v463, %v459
      %v465 = vrot.slane %v464, 4
      %v467 = vshll.u32 %v275, 16
      %v469 = vrot.slane %v467, 5
      %v470 = vsel %vm358, %v465, %v469
      %v471 = vshrl.u32 %v275, 16
      %v473 = vrot.slane %v471, 4
      %v474 = vor.u32 %v473, %v469
      %v475 = vrot.slane %v474, 4
      %v477 = vshll.u32 %v276, 16
      %v479 = vrot.slane %v477, 5
      %v480 = vsel %vm358, %v475, %v479
      %v481 = vshrl.u32 %v276, 16
      %v483 = vrot.slane %v481, 4
      %v484 = vor.u32 %v483, %v479
      %v485 = vrot.slane %v484, 4
      %v487 = vshll.u32 %v340, 16
      %v489 = vrot.slane %v487, 5
      %v490 = vsel %vm358, %v485, %v489
      %v492 = vshrl.u32 %v277, 16
      %v494 = vrot.slane %v492, 4
      %v495 = vshll.u32 %v277, 16
      %v497 = vrot.slane %v495, 5
      %v498 = vor.u32 %v494, %v497
      %v499 = vrot.slane %v498, 4
      %v501 = vshll.u32 %v278, 16
      %v503 = vrot.slane %v501, 5
      %v504 = vsel %vm358, %v499, %v503
      %v505 = vshrl.u32 %v278, 16
      %v507 = vrot.slane %v505, 4
      %v508 = vor.u32 %v507, %v503
      %v509 = vrot.slane %v508, 4
      %v511 = vshll.u32 %v279, 16
      %v513 = vrot.slane %v511, 5
      %v514 = vsel %vm358, %v509, %v513
      %v515 = vshrl.u32 %v279, 16
      %v517 = vrot.slane %v515, 4
      %v518 = vor.u32 %v517, %v513
      %v519 = vrot.slane %v518, 4
      %v521 = vshll.u32 %v280, 16
      %v523 = vrot.slane %v521, 5
      %v524 = vsel %vm358, %v519, %v523
      %v525 = vshrl.u32 %v280, 16
      %v527 = vrot.slane %v525, 4
      %v528 = vor.u32 %v527, %v523
      %v529 = vrot.slane %v528, 4
      %v531 = vshll.u32 %v341, 16
      %v533 = vrot.slane %v531, 5
      %v534 = vsel %vm358, %v529, %v533
      %v536 = vshrl.u32 %v281, 16
      %v538 = vrot.slane %v536, 4
      %v539 = vshll.u32 %v281, 16
      %v541 = vrot.slane %v539, 5
      %v542 = vor.u32 %v538, %v541
      %v543 = vrot.slane %v542, 4
      %v545 = vshll.u32 %v282, 16
      %v547 = vrot.slane %v545, 5
      %v548 = vsel %vm358, %v543, %v547
      %v549 = vshrl.u32 %v282, 16
      %v551 = vrot.slane %v549, 4
      %v552 = vor.u32 %v551, %v547
      %v553 = vrot.slane %v552, 4
      %v555 = vshll.u32 %v283, 16
      %v557 = vrot.slane %v555, 5
      %v558 = vsel %vm358, %v553, %v557
      %v559 = vshrl.u32 %v283, 16
      %v561 = vrot.slane %v559, 4
      %v562 = vor.u32 %v561, %v557
      %v563 = vrot.slane %v562, 4
      %v565 = vshll.u32 %v284, 16
      %v567 = vrot.slane %v565, 5
      %v568 = vsel %vm358, %v563, %v567
      %v569 = vshrl.u32 %v284, 16
      %v571 = vrot.slane %v569, 4
      %v572 = vor.u32 %v571, %v567
      %v573 = vrot.slane %v572, 4
      %v575 = vshll.u32 %v342, 16
      %v577 = vrot.slane %v575, 5
      %v578 = vsel %vm358, %v573, %v577
      %v580 = vshrl.u32 %v285, 16
      %v582 = vrot.slane %v580, 4
      %v583 = vshll.u32 %v285, 16
      %v585 = vrot.slane %v583, 5
      %v586 = vor.u32 %v582, %v585
      %v587 = vrot.slane %v586, 4
      %v589 = vshll.u32 %v286, 16
      %v591 = vrot.slane %v589, 5
      %v592 = vsel %vm358, %v587, %v591
      %v593 = vshrl.u32 %v286, 16
      %v595 = vrot.slane %v593, 4
      %v596 = vor.u32 %v595, %v591
      %v597 = vrot.slane %v596, 4
      %v599 = vshll.u32 %v287, 16
      %v601 = vrot.slane %v599, 5
      %v602 = vsel %vm358, %v597, %v601
      %v603 = vshrl.u32 %v287, 16
      %v605 = vrot.slane %v603, 4
      %v606 = vor.u32 %v605, %v601
      %v607 = vrot.slane %v606, 4
      %v609 = vshll.u32 %v288, 16
      %v611 = vrot.slane %v609, 5
      %v612 = vsel %vm358, %v607, %v611
      %v613 = vshrl.u32 %v288, 16
      %v615 = vrot.slane %v613, 4
      %v616 = vor.u32 %v615, %v611
      %v617 = vrot.slane %v616, 4
      %v619 = vshll.u32 %v343, 16
      %v621 = vrot.slane %v619, 5
      %v622 = vsel %vm358, %v617, %v621
      %v624 = vshrl.u32 %v289, 16
      %v626 = vrot.slane %v624, 4
      %v627 = vshll.u32 %v289, 16
      %v629 = vrot.slane %v627, 5
      %v630 = vor.u32 %v626, %v629
      %v631 = vrot.slane %v630, 4
      %v633 = vshll.u32 %v290, 16
      %v635 = vrot.slane %v633, 5
      %v636 = vsel %vm358, %v631, %v635
      %v637 = vshrl.u32 %v290, 16
      %v639 = vrot.slane %v637, 4
      %v640 = vor.u32 %v639, %v635
      %v641 = vrot.slane %v640, 4
      %v643 = vshll.u32 %v291, 16
      %v645 = vrot.slane %v643, 5
      %v646 = vsel %vm358, %v641, %v645
      %v647 = vshrl.u32 %v291, 16
      %v649 = vrot.slane %v647, 4
      %v650 = vor.u32 %v649, %v645
      %v651 = vrot.slane %v650, 4
      %v653 = vshll.u32 %v292, 16
      %v655 = vrot.slane %v653, 5
      %v656 = vsel %vm358, %v651, %v655
      %v657 = vshrl.u32 %v292, 16
      %v659 = vrot.slane %v657, 4
      %v660 = vor.u32 %v659, %v655
      %v661 = vrot.slane %v660, 4
      %v663 = vshll.u32 %v344, 16
      %v665 = vrot.slane %v663, 5
      %v666 = vsel %vm358, %v661, %v665
      %v668 = vshrl.u32 %v293, 16
      %v670 = vrot.slane %v668, 4
      %v671 = vshll.u32 %v293, 16
      %v673 = vrot.slane %v671, 5
      %v674 = vor.u32 %v670, %v673
      %v675 = vrot.slane %v674, 4
      %v677 = vshll.u32 %v294, 16
      %v679 = vrot.slane %v677, 5
      %v680 = vsel %vm358, %v675, %v679
      %v681 = vshrl.u32 %v294, 16
      %v683 = vrot.slane %v681, 4
      %v684 = vor.u32 %v683, %v679
      %v685 = vrot.slane %v684, 4
      %v687 = vshll.u32 %v295, 16
      %v689 = vrot.slane %v687, 5
      %v690 = vsel %vm358, %v685, %v689
      %v691 = vshrl.u32 %v295, 16
      %v693 = vrot.slane %v691, 4
      %v694 = vor.u32 %v693, %v689
      %v695 = vrot.slane %v694, 4
      %v697 = vshll.u32 %v296, 16
      %v699 = vrot.slane %v697, 5
      %v700 = vsel %vm358, %v695, %v699
      %v701 = vshrl.u32 %v296, 16
      %v703 = vrot.slane %v701, 4
      %v704 = vor.u32 %v703, %v699
      %v705 = vrot.slane %v704, 4
      %v707 = vshll.u32 %v345, 16
      %v709 = vrot.slane %v707, 5
      %v710 = vsel %vm358, %v705, %v709
      %v712 = vshrl.u32 %v297, 16
      %v714 = vrot.slane %v712, 4
      %v715 = vshll.u32 %v297, 16
      %v717 = vrot.slane %v715, 5
      %v718 = vor.u32 %v714, %v717
      %v719 = vrot.slane %v718, 4
      %v721 = vshll.u32 %v298, 16
      %v723 = vrot.slane %v721, 5
      %v724 = vsel %vm358, %v719, %v723
      %v725 = vshrl.u32 %v298, 16
      %v727 = vrot.slane %v725, 4
      %v728 = vor.u32 %v727, %v723
      %v729 = vrot.slane %v728, 4
      %v731 = vshll.u32 %v299, 16
      %v733 = vrot.slane %v731, 5
      %v734 = vsel %vm358, %v729, %v733
      %v735 = vshrl.u32 %v299, 16
      %v737 = vrot.slane %v735, 4
      %v738 = vor.u32 %v737, %v733
      %v739 = vrot.slane %v738, 4
      %v741 = vshll.u32 %v300, 16
      %v743 = vrot.slane %v741, 5
      %v744 = vsel %vm358, %v739, %v743
      %v745 = vshrl.u32 %v300, 16
      %v747 = vrot.slane %v745, 4
      %v748 = vor.u32 %v747, %v743
      %v749 = vrot.slane %v748, 4
      %v751 = vshll.u32 %v346, 16
      %v753 = vrot.slane %v751, 5
      %v754 = vsel %vm358, %v749, %v753
      %v756 = vshrl.u32 %v301, 16
      %v758 = vrot.slane %v756, 4
      %v759 = vshll.u32 %v301, 16
      %v761 = vrot.slane %v759, 5
      %v762 = vor.u32 %v758, %v761
      %v763 = vrot.slane %v762, 4
      %v765 = vshll.u32 %v302, 16
      %v767 = vrot.slane %v765, 5
      %v768 = vsel %vm358, %v763, %v767
      %v769 = vshrl.u32 %v302, 16
      %v771 = vrot.slane %v769, 4
      %v772 = vor.u32 %v771, %v767
      %v773 = vrot.slane %v772, 4
      %v775 = vshll.u32 %v303, 16
      %v777 = vrot.slane %v775, 5
      %v778 = vsel %vm358, %v773, %v777
      %v779 = vshrl.u32 %v303, 16
      %v781 = vrot.slane %v779, 4
      %v782 = vor.u32 %v781, %v777
      %v783 = vrot.slane %v782, 4
      %v785 = vshll.u32 %v304, 16
      %v787 = vrot.slane %v785, 5
      %v788 = vsel %vm358, %v783, %v787
      %v789 = vshrl.u32 %v304, 16
      %v791 = vrot.slane %v789, 4
      %v792 = vor.u32 %v791, %v787
      %v793 = vrot.slane %v792, 4
      %v795 = vshll.u32 %v347, 16
      %v797 = vrot.slane %v795, 5
      %v798 = vsel %vm358, %v793, %v797
      %v800 = vshrl.u32 %v305, 16
      %v802 = vrot.slane %v800, 4
      %v803 = vshll.u32 %v305, 16
      %v805 = vrot.slane %v803, 5
      %v806 = vor.u32 %v802, %v805
      %v807 = vrot.slane %v806, 4
      %v809 = vshll.u32 %v306, 16
      %v811 = vrot.slane %v809, 5
      %v812 = vsel %vm358, %v807, %v811
      %v813 = vshrl.u32 %v306, 16
      %v815 = vrot.slane %v813, 4
      %v816 = vor.u32 %v815, %v811
      %v817 = vrot.slane %v816, 4
      %v819 = vshll.u32 %v307, 16
      %v821 = vrot.slane %v819, 5
      %v822 = vsel %vm358, %v817, %v821
      %v823 = vshrl.u32 %v307, 16
      %v825 = vrot.slane %v823, 4
      %v826 = vor.u32 %v825, %v821
      %v827 = vrot.slane %v826, 4
      %v829 = vshll.u32 %v308, 16
      %v831 = vrot.slane %v829, 5
      %v832 = vsel %vm358, %v827, %v831
      %v833 = vshrl.u32 %v308, 16
      %v835 = vrot.slane %v833, 4
      %v836 = vor.u32 %v835, %v831
      %v837 = vrot.slane %v836, 4
      %v839 = vshll.u32 %v348, 16
      %v841 = vrot.slane %v839, 5
      %v842 = vsel %vm358, %v837, %v841
      %v844 = vshrl.u32 %v309, 16
      %v846 = vrot.slane %v844, 4
      %v847 = vshll.u32 %v309, 16
      %v849 = vrot.slane %v847, 5
      %v850 = vor.u32 %v846, %v849
      %v851 = vrot.slane %v850, 4
      %v853 = vshll.u32 %v310, 16
      %v855 = vrot.slane %v853, 5
      %v856 = vsel %vm358, %v851, %v855
      %v857 = vshrl.u32 %v310, 16
      %v859 = vrot.slane %v857, 4
      %v860 = vor.u32 %v859, %v855
      %v861 = vrot.slane %v860, 4
      %v863 = vshll.u32 %v311, 16
      %v865 = vrot.slane %v863, 5
      %v866 = vsel %vm358, %v861, %v865
      %v867 = vshrl.u32 %v311, 16
      %v869 = vrot.slane %v867, 4
      %v870 = vor.u32 %v869, %v865
      %v871 = vrot.slane %v870, 4
      %v873 = vshll.u32 %v312, 16
      %v875 = vrot.slane %v873, 5
      %v876 = vsel %vm358, %v871, %v875
      %v877 = vshrl.u32 %v312, 16
      %v879 = vrot.slane %v877, 4
      %v880 = vor.u32 %v879, %v875
      %v881 = vrot.slane %v880, 4
      %v883 = vshll.u32 %v349, 16
      %v885 = vrot.slane %v883, 5
      %v886 = vsel %vm358, %v881, %v885
      %v888 = vshrl.u32 %v313, 16
      %v890 = vrot.slane %v888, 4
      %v891 = vshll.u32 %v313, 16
      %v893 = vrot.slane %v891, 5
      %v894 = vor.u32 %v890, %v893
      %v895 = vrot.slane %v894, 4
      %v897 = vshll.u32 %v314, 16
      %v899 = vrot.slane %v897, 5
      %v900 = vsel %vm358, %v895, %v899
      %v901 = vshrl.u32 %v314, 16
      %v903 = vrot.slane %v901, 4
      %v904 = vor.u32 %v903, %v899
      %v905 = vrot.slane %v904, 4
      %v907 = vshll.u32 %v315, 16
      %v909 = vrot.slane %v907, 5
      %v910 = vsel %vm358, %v905, %v909
      %v911 = vshrl.u32 %v315, 16
      %v913 = vrot.slane %v911, 4
      %v914 = vor.u32 %v913, %v909
      %v915 = vrot.slane %v914, 4
      %v917 = vshll.u32 %v316, 16
      %v919 = vrot.slane %v917, 5
      %v920 = vsel %vm358, %v915, %v919
      %v921 = vshrl.u32 %v316, 16
      %v923 = vrot.slane %v921, 4
      %v924 = vor.u32 %v923, %v919
      %v925 = vrot.slane %v924, 4
      %v927 = vshll.u32 %v350, 16
      %v929 = vrot.slane %v927, 5
      %v930 = vsel %vm358, %v925, %v929
      %v932 = vshrl.u32 %v317, 16
      %v934 = vrot.slane %v932, 4
      %v935 = vshll.u32 %v317, 16
      %v937 = vrot.slane %v935, 5
      %v938 = vor.u32 %v934, %v937
      %v939 = vrot.slane %v938, 4
      %v941 = vshll.u32 %v318, 16
      %v943 = vrot.slane %v941, 5
      %v944 = vsel %vm358, %v939, %v943
      %v945 = vshrl.u32 %v318, 16
      %v947 = vrot.slane %v945, 4
      %v948 = vor.u32 %v947, %v943
      %v949 = vrot.slane %v948, 4
      %v951 = vshll.u32 %v319, 16
      %v953 = vrot.slane %v951, 5
      %v954 = vsel %vm358, %v949, %v953
      %v955 = vshrl.u32 %v319, 16
      %v957 = vrot.slane %v955, 4
      %v958 = vor.u32 %v957, %v953
      %v959 = vrot.slane %v958, 4
      %v961 = vshll.u32 %v320, 16
      %v963 = vrot.slane %v961, 5
      %v964 = vsel %vm358, %v959, %v963
      %v965 = vshrl.u32 %v320, 16
      %v967 = vrot.slane %v965, 4
      %v968 = vor.u32 %v967, %v963
      %v969 = vrot.slane %v968, 4
      %v971 = vshll.u32 %v351, 16
      %v973 = vrot.slane %v971, 5
      %v974 = vsel %vm358, %v969, %v973
      %v976 = vshrl.u32 %v321, 16
      %v978 = vrot.slane %v976, 4
      %v979 = vshll.u32 %v321, 16
      %v981 = vrot.slane %v979, 5
      %v982 = vor.u32 %v978, %v981
      %v983 = vrot.slane %v982, 4
      %v985 = vshll.u32 %v322, 16
      %v987 = vrot.slane %v985, 5
      %v988 = vsel %vm358, %v983, %v987
      %v989 = vshrl.u32 %v322, 16
      %v991 = vrot.slane %v989, 4
      %v992 = vor.u32 %v991, %v987
      %v993 = vrot.slane %v992, 4
      %v995 = vshll.u32 %v323, 16
      %v997 = vrot.slane %v995, 5
      %v998 = vsel %vm358, %v993, %v997
      %v999 = vshrl.u32 %v323, 16
      %v1001 = vrot.slane %v999, 4
      %v1002 = vor.u32 %v1001, %v997
      %v1003 = vrot.slane %v1002, 4
      %v1005 = vshll.u32 %v324, 16
      %v1007 = vrot.slane %v1005, 5
      %v1008 = vsel %vm358, %v1003, %v1007
      %v1009 = vshrl.u32 %v324, 16
      %v1011 = vrot.slane %v1009, 4
      %v1012 = vor.u32 %v1011, %v1007
      %v1013 = vrot.slane %v1012, 4
      %v1015 = vshll.u32 %v352, 16
      %v1017 = vrot.slane %v1015, 5
      %v1018 = vsel %vm358, %v1013, %v1017
      %v1020 = vshrl.u32 %v325, 16
      %v1022 = vrot.slane %v1020, 4
      %v1023 = vshll.u32 %v325, 16
      %v1025 = vrot.slane %v1023, 5
      %v1026 = vor.u32 %v1022, %v1025
      %v1027 = vrot.slane %v1026, 4
      %v1029 = vshll.u32 %v326, 16
      %v1031 = vrot.slane %v1029, 5
      %v1032 = vsel %vm358, %v1027, %v1031
      %v1033 = vshrl.u32 %v326, 16
      %v1035 = vrot.slane %v1033, 4
      %v1036 = vor.u32 %v1035, %v1031
      %v1037 = vrot.slane %v1036, 4
      %v1039 = vshll.u32 %v327, 16
      %v1041 = vrot.slane %v1039, 5
      %v1042 = vsel %vm358, %v1037, %v1041
      %v1043 = vshrl.u32 %v327, 16
      %v1045 = vrot.slane %v1043, 4
      %v1046 = vor.u32 %v1045, %v1041
      %v1047 = vrot.slane %v1046, 4
      %v1049 = vshll.u32 %v328, 16
      %v1051 = vrot.slane %v1049, 5
      %v1052 = vsel %vm358, %v1047, %v1051
      %v1053 = vshrl.u32 %v328, 16
      %v1055 = vrot.slane %v1053, 4
      %v1056 = vor.u32 %v1055, %v1051
      %v1057 = vrot.slane %v1056, 4
      %v1059 = vshll.u32 %v353, 16
      %v1061 = vrot.slane %v1059, 5
      %v1062 = vsel %vm358, %v1057, %v1061
      %v1064 = vshrl.u32 %v329, 16
      %v1066 = vrot.slane %v1064, 4
      %v1067 = vshll.u32 %v329, 16
      %v1069 = vrot.slane %v1067, 5
      %v1070 = vor.u32 %v1066, %v1069
      %v1071 = vrot.slane %v1070, 4
      %v1073 = vshll.u32 %v330, 16
      %v1075 = vrot.slane %v1073, 5
      %v1076 = vsel %vm358, %v1071, %v1075
      %v1077 = vshrl.u32 %v330, 16
      %v1079 = vrot.slane %v1077, 4
      %v1080 = vor.u32 %v1079, %v1075
      %v1081 = vrot.slane %v1080, 4
      %v1083 = vshll.u32 %v331, 16
      %v1085 = vrot.slane %v1083, 5
      %v1086 = vsel %vm358, %v1081, %v1085
      %v1087 = vshrl.u32 %v331, 16
      %v1089 = vrot.slane %v1087, 4
      %v1090 = vor.u32 %v1089, %v1085
      %v1091 = vrot.slane %v1090, 4
      %v1093 = vshll.u32 %v332, 16
      %v1095 = vrot.slane %v1093, 5
      %v1096 = vsel %vm358, %v1091, %v1095
      %v1097 = vshrl.u32 %v332, 16
      %v1099 = vrot.slane %v1097, 4
      %v1100 = vor.u32 %v1099, %v1095
      %v1101 = vrot.slane %v1100, 4
      %v1103 = vshll.u32 %v354, 16
      %v1105 = vrot.slane %v1103, 5
      %v1106 = vsel %vm358, %v1101, %v1105
      %v1108 = vshrl.u32 %v333, 16
      %v1110 = vrot.slane %v1108, 4
      %v1111 = vshll.u32 %v333, 16
      %v1113 = vrot.slane %v1111, 5
      %v1114 = vor.u32 %v1110, %v1113
      %v1115 = vrot.slane %v1114, 4
      %v1117 = vshll.u32 %v334, 16
      %v1119 = vrot.slane %v1117, 5
      %v1120 = vsel %vm358, %v1115, %v1119
      %v1121 = vshrl.u32 %v334, 16
      %v1123 = vrot.slane %v1121, 4
      %v1124 = vor.u32 %v1123, %v1119
      %v1125 = vrot.slane %v1124, 4
      %v1127 = vshll.u32 %v335, 16
      %v1129 = vrot.slane %v1127, 5
      %v1130 = vsel %vm358, %v1125, %v1129
      %v1131 = vshrl.u32 %v335, 16
      %v1133 = vrot.slane %v1131, 4
      %v1134 = vor.u32 %v1133, %v1129
      %v1135 = vrot.slane %v1134, 4
      %v1137 = vshll.u32 %v336, 16
      %v1139 = vrot.slane %v1137, 5
      %v1140 = vsel %vm358, %v1135, %v1139
      %v1141 = vshrl.u32 %v336, 16
      %v1143 = vrot.slane %v1141, 4
      %v1144 = vor.u32 %v1143, %v1139
      %v1145 = vrot.slane %v1144, 4
      %v1147 = vshll.u32 %v355, 16
      %v1149 = vrot.slane %v1147, 5
      %v1150 = vsel %vm358, %v1145, %v1149
      %s1151 = scalar_lea.vmem %s1, 2
      %v1152 = vld [vmem:[%s1151] sm:$0x3]
      %v1153 = vunpack.c.l.b16 %v372
      %v1154 = vunpack.c.l.b16 %v382
      %v1155 = vunpack.c.l.b16 %v392
      %v1156 = vunpack.c.l.b16 %v402
      %v1157 = vunpack.c.l.b16 %v416
      %v1158 = vunpack.c.l.b16 %v426
      %v1159 = vunpack.c.l.b16 %v436
      %v1160 = vunpack.c.l.b16 %v446
      %v1161 = vunpack.c.l.b16 %v460
      %v1162 = vunpack.c.l.b16 %v470
      %v1163 = vunpack.c.l.b16 %v480
      %v1164 = vunpack.c.l.b16 %v490
      %v1165 = vunpack.c.l.b16 %v504
      %v1166 = vunpack.c.l.b16 %v514
      %v1167 = vunpack.c.l.b16 %v524
      %v1168 = vunpack.c.l.b16 %v534
      %v1169 = vunpack.c.l.b16 %v548
      %v1170 = vunpack.c.l.b16 %v558
      %v1171 = vunpack.c.l.b16 %v568
      %v1172 = vunpack.c.l.b16 %v578
      %v1173 = vunpack.c.l.b16 %v592
      %v1174 = vunpack.c.l.b16 %v602
      %v1175 = vunpack.c.l.b16 %v612
      %v1176 = vunpack.c.l.b16 %v622
      %v1177 = vunpack.c.l.b16 %v636
      %v1178 = vunpack.c.l.b16 %v646
      %v1179 = vunpack.c.l.b16 %v656
      %v1180 = vunpack.c.l.b16 %v666
      %v1181 = vunpack.c.l.b16 %v680
      %v1182 = vunpack.c.l.b16 %v690
      %v1183 = vunpack.c.l.b16 %v700
      %v1184 = vunpack.c.l.b16 %v710
      %v1185 = vunpack.c.l.b16 %v724
      %v1186 = vunpack.c.l.b16 %v734
      %v1187 = vunpack.c.l.b16 %v744
      %v1188 = vunpack.c.l.b16 %v754
      %v1189 = vunpack.c.l.b16 %v768
      %v1190 = vunpack.c.l.b16 %v778
      %v1191 = vunpack.c.l.b16 %v788
      %v1192 = vunpack.c.l.b16 %v798
      %v1193 = vunpack.c.l.b16 %v812
      %v1194 = vunpack.c.l.b16 %v822
      %v1195 = vunpack.c.l.b16 %v832
      %v1196 = vunpack.c.l.b16 %v842
      %v1197 = vunpack.c.l.b16 %v856
      %v1198 = vunpack.c.l.b16 %v866
      %v1199 = vunpack.c.l.b16 %v876
      %v1200 = vunpack.c.l.b16 %v886
      %v1201 = vunpack.c.l.b16 %v900
      %v1202 = vunpack.c.l.b16 %v910
      %v1203 = vunpack.c.l.b16 %v920
      %v1204 = vunpack.c.l.b16 %v930
      %v1205 = vunpack.c.l.b16 %v944
      %v1206 = vunpack.c.l.b16 %v954
      %v1207 = vunpack.c.l.b16 %v964
      %v1208 = vunpack.c.l.b16 %v974
      %v1209 = vunpack.c.l.b16 %v988
      %v1210 = vunpack.c.l.b16 %v998
      %v1211 = vunpack.c.l.b16 %v1008
      %v1212 = vunpack.c.l.b16 %v1018
      %v1213 = vunpack.c.l.b16 %v1032
      %v1214 = vunpack.c.l.b16 %v1042
      %v1215 = vunpack.c.l.b16 %v1052
      %v1216 = vunpack.c.l.b16 %v1062
      %v1217 = vunpack.c.l.b16 %v1076
      %v1218 = vunpack.c.l.b16 %v1086
      %v1219 = vunpack.c.l.b16 %v1096
      %v1220 = vunpack.c.l.b16 %v1106
      %v1221 = vunpack.c.l.b16 %v1120
      %v1222 = vunpack.c.l.b16 %v1130
      %v1223 = vunpack.c.l.b16 %v1140
      %v1224 = vunpack.c.l.b16 %v1150
      %v1225 = vpack.c.b16 %v1154, %v1153
      %v1226 = vpack.c.b16 %v1156, %v1155
      %v1227 = vpack.c.b16 %v1158, %v1157
      %v1228 = vpack.c.b16 %v1160, %v1159
      %v1229 = vpack.c.b16 %v1162, %v1161
      %v1230 = vpack.c.b16 %v1164, %v1163
      %v1231 = vpack.c.b16 %v1166, %v1165
      %v1232 = vpack.c.b16 %v1168, %v1167
      %v1233 = vpack.c.b16 %v1170, %v1169
      %v1234 = vpack.c.b16 %v1172, %v1171
      %v1235 = vpack.c.b16 %v1174, %v1173
      %v1236 = vpack.c.b16 %v1176, %v1175
      %v1237 = vpack.c.b16 %v1178, %v1177
      %v1238 = vpack.c.b16 %v1180, %v1179
      %v1239 = vpack.c.b16 %v1182, %v1181
      %v1240 = vpack.c.b16 %v1184, %v1183
      %v1241 = vpack.c.b16 %v1186, %v1185
      %v1242 = vpack.c.b16 %v1188, %v1187
      %v1243 = vpack.c.b16 %v1190, %v1189
      %v1244 = vpack.c.b16 %v1192, %v1191
      %v1245 = vpack.c.b16 %v1194, %v1193
      %v1246 = vpack.c.b16 %v1196, %v1195
      %v1247 = vpack.c.b16 %v1198, %v1197
      %v1248 = vpack.c.b16 %v1200, %v1199
      %v1249 = vpack.c.b16 %v1202, %v1201
      %v1250 = vpack.c.b16 %v1204, %v1203
      %v1251 = vpack.c.b16 %v1206, %v1205
      %v1252 = vpack.c.b16 %v1208, %v1207
      %v1253 = vpack.c.b16 %v1210, %v1209
      %v1254 = vpack.c.b16 %v1212, %v1211
      %v1255 = vpack.c.b16 %v1214, %v1213
      %v1256 = vpack.c.b16 %v1216, %v1215
      %v1257 = vpack.c.b16 %v1218, %v1217
      %v1258 = vpack.c.b16 %v1220, %v1219
      %v1259 = vpack.c.b16 %v1222, %v1221
      %v1260 = vpack.c.b16 %v1224, %v1223
      %vm1261 = vcmask 31744
      %v1263 = vsel %vm1261, %v1225, 0
      %v1266 = vsel %vm1261, %v1226, 0
      %v1269 = vsel %vm1261, %v1227, 0
      %v1272 = vsel %vm1261, %v1228, 0
      %v1275 = vsel %vm1261, %v1229, 0
      %v1278 = vsel %vm1261, %v1230, 0
      %v1281 = vsel %vm1261, %v1231, 0
      %v1284 = vsel %vm1261, %v1232, 0
      %v1287 = vsel %vm1261, %v1233, 0
      %v1290 = vsel %vm1261, %v1234, 0
      %v1293 = vsel %vm1261, %v1235, 0
      %v1296 = vsel %vm1261, %v1236, 0
      %v1299 = vsel %vm1261, %v1237, 0
      %v1302 = vsel %vm1261, %v1238, 0
      %v1305 = vsel %vm1261, %v1239, 0
      %v1308 = vsel %vm1261, %v1240, 0
      %v1311 = vsel %vm1261, %v1241, 0
      %v1314 = vsel %vm1261, %v1242, 0
      %v1317 = vsel %vm1261, %v1243, 0
      %v1320 = vsel %vm1261, %v1244, 0
      %v1323 = vsel %vm1261, %v1245, 0
      %v1326 = vsel %vm1261, %v1246, 0
      %v1329 = vsel %vm1261, %v1247, 0
      %v1332 = vsel %vm1261, %v1248, 0
      %v1335 = vsel %vm1261, %v1249, 0
      %v1338 = vsel %vm1261, %v1250, 0
      %v1341 = vsel %vm1261, %v1251, 0
      %v1344 = vsel %vm1261, %v1252, 0
      %v1347 = vsel %vm1261, %v1253, 0
      %v1350 = vsel %vm1261, %v1254, 0
      %v1353 = vsel %vm1261, %v1255, 0
      %v1356 = vsel %vm1261, %v1256, 0
      %v1359 = vsel %vm1261, %v1257, 0
      %v1362 = vsel %vm1261, %v1258, 0
      %v1365 = vsel %vm1261, %v1259, 0
      %v1368 = vsel %vm1261, %v1260, 0
      %vm1370 = vcmask 1041408
      %v1372 = vsel %vm1370, %v1152, 0
      %1374 = vmatprep.subr.bf16.mxu0 0
      %1375 = vmatpush1.bf16.msra.mxu0 %v1372
      %1376 = vmatprep.subr.bf16.mxu0 0
      %1377 = vmatpush1.bf16.msra.mxu0 0
      %1378 = vmatprep.subr.bf16.mxu0 0
      %1379 = vmatpush1.bf16.msra.mxu0 0
      %1380 = vmatprep.subr.bf16.mxu0 0
      %1381 = vmatpush1.bf16.msra.mxu0 0
      %1382 = vmatprep.subr.bf16.mxu0 0
      %1383 = vmatpush1.bf16.msra.mxu0 0
      %1384 = vmatprep.subr.bf16.mxu0 0
      %1385 = vmatpush1.bf16.msra.mxu0 0
      %1386 = vmatprep.subr.bf16.mxu0 0
      %1387 = vmatpush1.bf16.msra.mxu0 0
      %1388 = vmatprep.subr.bf16.mxu0 0
      %1389 = vmatpush1.bf16.msra.mxu0 0
      %1390 = vmatprep.subr.bf16.mxu0 0
      %1391 = vmatpush1.bf16.msra.mxu0 0
      %1392 = vmatprep.subr.bf16.mxu0 0
      %1393 = vmatpush1.bf16.msra.mxu0 0
      %1394 = vmatprep.subr.bf16.mxu0 0
      %1395 = vmatpush1.bf16.msra.mxu0 0
      %1396 = vmatprep.subr.bf16.mxu0 0
      %1397 = vmatpush1.bf16.msra.mxu0 0
      %1398 = vmatprep.subr.bf16.mxu0 0
      %1399 = vmatpush1.bf16.msra.mxu0 0
      %1400 = vmatprep.subr.bf16.mxu0 0
      %1401 = vmatpush1.bf16.msra.mxu0 0
      %1402 = vmatprep.subr.bf16.mxu0 0
      %1403 = vmatpush1.bf16.msra.mxu0 0
      %1404 = vmatprep.subr.bf16.mxu0 0
      %1405 = vmatpush1.bf16.msra.mxu0 0
      %1406 = vmatprep.mubr.bf16.mxu0 0
      %1407 = vmatmul.mubr.bf16.gmra.mrb[0].mxu0 %v1263
      %v1408 = vpop.f32.mrb[0].mxu0
      %v1409 = vadd.f32 0.0, %v1408
      %v1410 = vpop.f32.mrb[0].mxu0
      %v1411 = vpop.f32.mrb[0].mxu0
      %v1412 = vadd.f32 0.0, %v1411
      %v1413 = vpop.f32.mrb[0].mxu0
      %1414 = vmatprep.mubr.bf16.mxu0 0
      %1415 = vmatmul.mubr.bf16.gmra.mrb[0].mxu0 %v1266
      %v1416 = vpop.f32.mrb[0].mxu0
      %v1417 = vadd.f32 0.0, %v1416
      %v1418 = vpop.f32.mrb[0].mxu0
      %v1419 = vpop.f32.mrb[0].mxu0
      %v1420 = vadd.f32 0.0, %v1419
      %v1421 = vpop.f32.mrb[0].mxu0
      %1422 = vmatprep.mubr.bf16.mxu0 0
      %1423 = vmatmul.mubr.bf16.gmra.mrb[0].mxu0 %v1269
      %v1424 = vpop.f32.mrb[0].mxu0
      %v1425 = vadd.f32 0.0, %v1424
      %v1426 = vpop.f32.mrb[0].mxu0
      %v1427 = vpop.f32.mrb[0].mxu0
      %v1428 = vadd.f32 0.0, %v1427
      %v1429 = vpop.f32.mrb[0].mxu0
      %1430 = vmatprep.mubr.bf16.mxu0 0
      %1431 = vmatmul.mubr.bf16.gmra.mrb[0].mxu0 %v1272
      %v1432 = vpop.f32.mrb[0].mxu0
      %v1433 = vadd.f32 0.0, %v1432
      %v1434 = vpop.f32.mrb[0].mxu0
      %v1435 = vpop.f32.mrb[0].mxu0
      %v1436 = vadd.f32 0.0, %v1435
      %v1437 = vpop.f32.mrb[0].mxu0
      %1438 = vmatprep.mubr.bf16.mxu0 0
      %1439 = vmatmul.mubr.bf16.gmra.mrb[0].mxu0 %v1275
      %v1440 = vpop.f32.mrb[0].mxu0
      %v1441 = vadd.f32 0.0, %v1440
      %v1442 = vpop.f32.mrb[0].mxu0
      %v1443 = vpop.f32.mrb[0].mxu0
      %v1444 = vadd.f32 0.0, %v1443
      %v1445 = vpop.f32.mrb[0].mxu0
      %1446 = vmatprep.mubr.bf16.mxu0 0
      %1447 = vmatmul.mubr.bf16.gmra.mrb[0].mxu0 %v1278
      %v1448 = vpop.f32.mrb[0].mxu0
      %v1449 = vadd.f32 0.0, %v1448
      %v1450 = vpop.f32.mrb[0].mxu0
      %v1451 = vpop.f32.mrb[0].mxu0
      %v1452 = vadd.f32 0.0, %v1451
      %v1453 = vpop.f32.mrb[0].mxu0
      %1454 = vmatprep.mubr.bf16.mxu0 0
      %1455 = vmatmul.mubr.bf16.gmra.mrb[0].mxu0 %v1281
      %v1456 = vpop.f32.mrb[0].mxu0
      %v1457 = vadd.f32 0.0, %v1456
      %v1458 = vpop.f32.mrb[0].mxu0
      %v1459 = vpop.f32.mrb[0].mxu0
      %v1460 = vadd.f32 0.0, %v1459
      %v1461 = vpop.f32.mrb[0].mxu0
      %1462 = vmatprep.mubr.bf16.mxu0 0
      %1463 = vmatmul.mubr.bf16.gmra.mrb[0].mxu0 %v1284
      %v1464 = vpop.f32.mrb[0].mxu0
      %v1465 = vadd.f32 0.0, %v1464
      %v1466 = vpop.f32.mrb[0].mxu0
      %v1467 = vpop.f32.mrb[0].mxu0
      %v1468 = vadd.f32 0.0, %v1467
      %v1469 = vpop.f32.mrb[0].mxu0
      %1470 = vmatprep.mubr.bf16.mxu0 0
      %1471 = vmatmul.mubr.bf16.gmra.mrb[0].mxu0 %v1287
      %v1472 = vpop.f32.mrb[0].mxu0
      %v1473 = vadd.f32 0.0, %v1472
      %v1474 = vpop.f32.mrb[0].mxu0
      %v1475 = vpop.f32.mrb[0].mxu0
      %v1476 = vadd.f32 0.0, %v1475
      %v1477 = vpop.f32.mrb[0].mxu0
      %1478 = vmatprep.mubr.bf16.mxu0 0
      %1479 = vmatmul.mubr.bf16.gmra.mrb[0].mxu0 %v1290
      %v1480 = vpop.f32.mrb[0].mxu0
      %v1481 = vadd.f32 0.0, %v1480
      %v1482 = vpop.f32.mrb[0].mxu0
      %v1483 = vpop.f32.mrb[0].mxu0
      %v1484 = vadd.f32 0.0, %v1483
      %v1485 = vpop.f32.mrb[0].mxu0
      %1486 = vmatprep.mubr.bf16.mxu0 0
      %1487 = vmatmul.mubr.bf16.gmra.mrb[0].mxu0 %v1293
      %v1488 = vpop.f32.mrb[0].mxu0
      %v1489 = vadd.f32 0.0, %v1488
      %v1490 = vpop.f32.mrb[0].mxu0
      %v1491 = vpop.f32.mrb[0].mxu0
      %v1492 = vadd.f32 0.0, %v1491
      %v1493 = vpop.f32.mrb[0].mxu0
      %1494 = vmatprep.mubr.bf16.mxu0 0
      %1495 = vmatmul.mubr.bf16.gmra.mrb[0].mxu0 %v1296
      %v1496 = vpop.f32.mrb[0].mxu0
      %v1497 = vadd.f32 0.0, %v1496
      %v1498 = vpop.f32.mrb[0].mxu0
      %v1499 = vpop.f32.mrb[0].mxu0
      %v1500 = vadd.f32 0.0, %v1499
      %v1501 = vpop.f32.mrb[0].mxu0
      %1502 = vmatprep.mubr.bf16.mxu0 0
      %1503 = vmatmul.mubr.bf16.gmra.mrb[0].mxu0 %v1299
      %v1504 = vpop.f32.mrb[0].mxu0
      %v1505 = vadd.f32 0.0, %v1504
      %v1506 = vpop.f32.mrb[0].mxu0
      %v1507 = vpop.f32.mrb[0].mxu0
      %v1508 = vadd.f32 0.0, %v1507
      %v1509 = vpop.f32.mrb[0].mxu0
      %1510 = vmatprep.mubr.bf16.mxu0 0
      %1511 = vmatmul.mubr.bf16.gmra.mrb[0].mxu0 %v1302
      %v1512 = vpop.f32.mrb[0].mxu0
      %v1513 = vadd.f32 0.0, %v1512
      %v1514 = vpop.f32.mrb[0].mxu0
      %v1515 = vpop.f32.mrb[0].mxu0
      %v1516 = vadd.f32 0.0, %v1515
      %v1517 = vpop.f32.mrb[0].mxu0
      %1518 = vmatprep.mubr.bf16.mxu0 0
      %1519 = vmatmul.mubr.bf16.gmra.mrb[0].mxu0 %v1305
      %v1520 = vpop.f32.mrb[0].mxu0
      %v1521 = vadd.f32 0.0, %v1520
      %v1522 = vpop.f32.mrb[0].mxu0
      %v1523 = vpop.f32.mrb[0].mxu0
      %v1524 = vadd.f32 0.0, %v1523
      %v1525 = vpop.f32.mrb[0].mxu0
      %1526 = vmatprep.mubr.bf16.mxu0 0
      %1527 = vmatmul.mubr.bf16.gmra.mrb[0].mxu0 %v1308
      %v1528 = vpop.f32.mrb[0].mxu0
      %v1529 = vadd.f32 0.0, %v1528
      %v1530 = vpop.f32.mrb[0].mxu0
      %v1531 = vpop.f32.mrb[0].mxu0
      %v1532 = vadd.f32 0.0, %v1531
      %v1533 = vpop.f32.mrb[0].mxu0
      %1534 = vmatprep.mubr.bf16.mxu0 0
      %1535 = vmatmul.mubr.bf16.gmra.mrb[0].mxu0 %v1311
      %v1536 = vpop.f32.mrb[0].mxu0
      %v1537 = vadd.f32 0.0, %v1536
      %v1538 = vpop.f32.mrb[0].mxu0
      %v1539 = vpop.f32.mrb[0].mxu0
      %v1540 = vadd.f32 0.0, %v1539
      %v1541 = vpop.f32.mrb[0].mxu0
      %1542 = vmatprep.mubr.bf16.mxu0 0
      %1543 = vmatmul.mubr.bf16.gmra.mrb[0].mxu0 %v1314
      %v1544 = vpop.f32.mrb[0].mxu0
      %v1545 = vadd.f32 0.0, %v1544
      %v1546 = vpop.f32.mrb[0].mxu0
      %v1547 = vpop.f32.mrb[0].mxu0
      %v1548 = vadd.f32 0.0, %v1547
      %v1549 = vpop.f32.mrb[0].mxu0
      %1550 = vmatprep.mubr.bf16.mxu0 0
      %1551 = vmatmul.mubr.bf16.gmra.mrb[0].mxu0 %v1317
      %v1552 = vpop.f32.mrb[0].mxu0
      %v1553 = vadd.f32 0.0, %v1552
      %v1554 = vpop.f32.mrb[0].mxu0
      %v1555 = vpop.f32.mrb[0].mxu0
      %v1556 = vadd.f32 0.0, %v1555
      %v1557 = vpop.f32.mrb[0].mxu0
      %1558 = vmatprep.mubr.bf16.mxu0 0
      %1559 = vmatmul.mubr.bf16.gmra.mrb[0].mxu0 %v1320
      %v1560 = vpop.f32.mrb[0].mxu0
      %v1561 = vadd.f32 0.0, %v1560
      %v1562 = vpop.f32.mrb[0].mxu0
      %v1563 = vpop.f32.mrb[0].mxu0
      %v1564 = vadd.f32 0.0, %v1563
      %v1565 = vpop.f32.mrb[0].mxu0
      %1566 = vmatprep.mubr.bf16.mxu0 0
      %1567 = vmatmul.mubr.bf16.gmra.mrb[0].mxu0 %v1323
      %v1568 = vpop.f32.mrb[0].mxu0
      %v1569 = vadd.f32 0.0, %v1568
      %v1570 = vpop.f32.mrb[0].mxu0
      %v1571 = vpop.f32.mrb[0].mxu0
      %v1572 = vadd.f32 0.0, %v1571
      %v1573 = vpop.f32.mrb[0].mxu0
      %1574 = vmatprep.mubr.bf16.mxu0 0
      %1575 = vmatmul.mubr.bf16.gmra.mrb[0].mxu0 %v1326
      %v1576 = vpop.f32.mrb[0].mxu0
      %v1577 = vadd.f32 0.0, %v1576
      %v1578 = vpop.f32.mrb[0].mxu0
      %v1579 = vpop.f32.mrb[0].mxu0
      %v1580 = vadd.f32 0.0, %v1579
      %v1581 = vpop.f32.mrb[0].mxu0
      %1582 = vmatprep.mubr.bf16.mxu0 0
      %1583 = vmatmul.mubr.bf16.gmra.mrb[0].mxu0 %v1329
      %v1584 = vpop.f32.mrb[0].mxu0
      %v1585 = vadd.f32 0.0, %v1584
      %v1586 = vpop.f32.mrb[0].mxu0
      %v1587 = vpop.f32.mrb[0].mxu0
      %v1588 = vadd.f32 0.0, %v1587
      %v1589 = vpop.f32.mrb[0].mxu0
      %1590 = vmatprep.mubr.bf16.mxu0 0
      %1591 = vmatmul.mubr.bf16.gmra.mrb[0].mxu0 %v1332
      %v1592 = vpop.f32.mrb[0].mxu0
      %v1593 = vadd.f32 0.0, %v1592
      %v1594 = vpop.f32.mrb[0].mxu0
      %v1595 = vpop.f32.mrb[0].mxu0
      %v1596 = vadd.f32 0.0, %v1595
      %v1597 = vpop.f32.mrb[0].mxu0
      %1598 = vmatprep.mubr.bf16.mxu0 0
      %1599 = vmatmul.mubr.bf16.gmra.mrb[0].mxu0 %v1335
      %v1600 = vpop.f32.mrb[0].mxu0
      %v1601 = vadd.f32 0.0, %v1600
      %v1602 = vpop.f32.mrb[0].mxu0
      %v1603 = vpop.f32.mrb[0].mxu0
      %v1604 = vadd.f32 0.0, %v1603
      %v1605 = vpop.f32.mrb[0].mxu0
      %1606 = vmatprep.mubr.bf16.mxu0 0
      %1607 = vmatmul.mubr.bf16.gmra.mrb[0].mxu0 %v1338
      %v1608 = vpop.f32.mrb[0].mxu0
      %v1609 = vadd.f32 0.0, %v1608
      %v1610 = vpop.f32.mrb[0].mxu0
      %v1611 = vpop.f32.mrb[0].mxu0
      %v1612 = vadd.f32 0.0, %v1611
      %v1613 = vpop.f32.mrb[0].mxu0
      %1614 = vmatprep.mubr.bf16.mxu0 0
      %1615 = vmatmul.mubr.bf16.gmra.mrb[0].mxu0 %v1341
      %v1616 = vpop.f32.mrb[0].mxu0
      %v1617 = vadd.f32 0.0, %v1616
      %v1618 = vpop.f32.mrb[0].mxu0
      %v1619 = vpop.f32.mrb[0].mxu0
      %v1620 = vadd.f32 0.0, %v1619
      %v1621 = vpop.f32.mrb[0].mxu0
      %1622 = vmatprep.mubr.bf16.mxu0 0
      %1623 = vmatmul.mubr.bf16.gmra.mrb[0].mxu0 %v1344
      %v1624 = vpop.f32.mrb[0].mxu0
      %v1625 = vadd.f32 0.0, %v1624
      %v1626 = vpop.f32.mrb[0].mxu0
      %v1627 = vpop.f32.mrb[0].mxu0
      %v1628 = vadd.f32 0.0, %v1627
      %v1629 = vpop.f32.mrb[0].mxu0
      %1630 = vmatprep.mubr.bf16.mxu0 0
      %1631 = vmatmul.mubr.bf16.gmra.mrb[0].mxu0 %v1347
      %v1632 = vpop.f32.mrb[0].mxu0
      %v1633 = vadd.f32 0.0, %v1632
      %v1634 = vpop.f32.mrb[0].mxu0
      %v1635 = vpop.f32.mrb[0].mxu0
      %v1636 = vadd.f32 0.0, %v1635
      %v1637 = vpop.f32.mrb[0].mxu0
      %1638 = vmatprep.mubr.bf16.mxu0 0
      %1639 = vmatmul.mubr.bf16.gmra.mrb[0].mxu0 %v1350
      %v1640 = vpop.f32.mrb[0].mxu0
      %v1641 = vadd.f32 0.0, %v1640
      %v1642 = vpop.f32.mrb[0].mxu0
      %v1643 = vpop.f32.mrb[0].mxu0
      %v1644 = vadd.f32 0.0, %v1643
      %v1645 = vpop.f32.mrb[0].mxu0
      %1646 = vmatprep.mubr.bf16.mxu0 0
      %1647 = vmatmul.mubr.bf16.gmra.mrb[0].mxu0 %v1353
      %v1648 = vpop.f32.mrb[0].mxu0
      %v1649 = vadd.f32 0.0, %v1648
      %v1650 = vpop.f32.mrb[0].mxu0
      %v1651 = vpop.f32.mrb[0].mxu0
      %v1652 = vadd.f32 0.0, %v1651
      %v1653 = vpop.f32.mrb[0].mxu0
      %1654 = vmatprep.mubr.bf16.mxu0 0
      %1655 = vmatmul.mubr.bf16.gmra.mrb[0].mxu0 %v1356
      %v1656 = vpop.f32.mrb[0].mxu0
      %v1657 = vadd.f32 0.0, %v1656
      %v1658 = vpop.f32.mrb[0].mxu0
      %v1659 = vpop.f32.mrb[0].mxu0
      %v1660 = vadd.f32 0.0, %v1659
      %v1661 = vpop.f32.mrb[0].mxu0
      %1662 = vmatprep.mubr.bf16.mxu0 0
      %1663 = vmatmul.mubr.bf16.gmra.mrb[0].mxu0 %v1359
      %v1664 = vpop.f32.mrb[0].mxu0
      %v1665 = vadd.f32 0.0, %v1664
      %v1666 = vpop.f32.mrb[0].mxu0
      %v1667 = vpop.f32.mrb[0].mxu0
      %v1668 = vadd.f32 0.0, %v1667
      %v1669 = vpop.f32.mrb[0].mxu0
      %1670 = vmatprep.mubr.bf16.mxu0 0
      %1671 = vmatmul.mubr.bf16.gmra.mrb[0].mxu0 %v1362
      %v1672 = vpop.f32.mrb[0].mxu0
      %v1673 = vadd.f32 0.0, %v1672
      %v1674 = vpop.f32.mrb[0].mxu0
      %v1675 = vpop.f32.mrb[0].mxu0
      %v1676 = vadd.f32 0.0, %v1675
      %v1677 = vpop.f32.mrb[0].mxu0
      %1678 = vmatprep.mubr.bf16.mxu0 0
      %1679 = vmatmul.mubr.bf16.gmra.mrb[0].mxu0 %v1365
      %v1680 = vpop.f32.mrb[0].mxu0
      %v1681 = vadd.f32 0.0, %v1680
      %v1682 = vpop.f32.mrb[0].mxu0
      %v1683 = vpop.f32.mrb[0].mxu0
      %v1684 = vadd.f32 0.0, %v1683
      %v1685 = vpop.f32.mrb[0].mxu0
      %1686 = vmatprep.mubr.bf16.mxu0 0
      %1687 = vmatmul.mubr.bf16.gmra.mrb[0].mxu0 %v1368
      %v1688 = vpop.f32.mrb[0].mxu0
      %v1689 = vadd.f32 0.0, %v1688
      %v1690 = vpop.f32.mrb[0].mxu0
      %v1691 = vpop.f32.mrb[0].mxu0
      %v1692 = vadd.f32 0.0, %v1691
      %v1693 = vpop.f32.mrb[0].mxu0
      %1694 = vdwg.mxu0
      %v1767 = vunpack.c.l.b16 %v265
      %v1768 = vunpack.c.l.b16 %v266
      %v1769 = vunpack.c.l.b16 %v267
      %v1770 = vunpack.c.l.b16 %v268
      %v1771 = vunpack.c.l.b16 %v269
      %v1772 = vunpack.c.l.b16 %v270
      %v1773 = vunpack.c.l.b16 %v271
      %v1774 = vunpack.c.l.b16 %v272
      %v1775 = vunpack.c.l.b16 %v273
      %v1776 = vunpack.c.l.b16 %v274
      %v1777 = vunpack.c.l.b16 %v275
      %v1778 = vunpack.c.l.b16 %v276
      %v1779 = vunpack.c.l.b16 %v277
      %v1780 = vunpack.c.l.b16 %v278
      %v1781 = vunpack.c.l.b16 %v279
      %v1782 = vunpack.c.l.b16 %v280
      %v1783 = vunpack.c.l.b16 %v281
      %v1784 = vunpack.c.l.b16 %v282
      %v1785 = vunpack.c.l.b16 %v283
      %v1786 = vunpack.c.l.b16 %v284
      %v1787 = vunpack.c.l.b16 %v285
      %v1788 = vunpack.c.l.b16 %v286
      %v1789 = vunpack.c.l.b16 %v287
      %v1790 = vunpack.c.l.b16 %v288
      %v1791 = vunpack.c.l.b16 %v289
      %v1792 = vunpack.c.l.b16 %v290
      %v1793 = vunpack.c.l.b16 %v291
      %v1794 = vunpack.c.l.b16 %v292
      %v1795 = vunpack.c.l.b16 %v293
      %v1796 = vunpack.c.l.b16 %v294
      %v1797 = vunpack.c.l.b16 %v295
      %v1798 = vunpack.c.l.b16 %v296
      %v1799 = vunpack.c.l.b16 %v297
      %v1800 = vunpack.c.l.b16 %v298
      %v1801 = vunpack.c.l.b16 %v299
      %v1802 = vunpack.c.l.b16 %v300
      %v1803 = vunpack.c.l.b16 %v301
      %v1804 = vunpack.c.l.b16 %v302
      %v1805 = vunpack.c.l.b16 %v303
      %v1806 = vunpack.c.l.b16 %v304
      %v1807 = vunpack.c.l.b16 %v305
      %v1808 = vunpack.c.l.b16 %v306
      %v1809 = vunpack.c.l.b16 %v307
      %v1810 = vunpack.c.l.b16 %v308
      %v1811 = vunpack.c.l.b16 %v309
      %v1812 = vunpack.c.l.b16 %v310
      %v1813 = vunpack.c.l.b16 %v311
      %v1814 = vunpack.c.l.b16 %v312
      %v1815 = vunpack.c.l.b16 %v313
      %v1816 = vunpack.c.l.b16 %v314
      %v1817 = vunpack.c.l.b16 %v315
      %v1818 = vunpack.c.l.b16 %v316
      %v1819 = vunpack.c.l.b16 %v317
      %v1820 = vunpack.c.l.b16 %v318
      %v1821 = vunpack.c.l.b16 %v319
      %v1822 = vunpack.c.l.b16 %v320
      %v1823 = vunpack.c.l.b16 %v321
      %v1824 = vunpack.c.l.b16 %v322
      %v1825 = vunpack.c.l.b16 %v323
      %v1826 = vunpack.c.l.b16 %v324
      %v1827 = vunpack.c.l.b16 %v325
      %v1828 = vunpack.c.l.b16 %v326
      %v1829 = vunpack.c.l.b16 %v327
      %v1830 = vunpack.c.l.b16 %v328
      %v1831 = vunpack.c.l.b16 %v329
      %v1832 = vunpack.c.l.b16 %v330
      %v1833 = vunpack.c.l.b16 %v331
      %v1834 = vunpack.c.l.b16 %v332
      %v1835 = vunpack.c.l.b16 %v333
      %v1836 = vunpack.c.l.b16 %v334
      %v1837 = vunpack.c.l.b16 %v335
      %v1838 = vunpack.c.l.b16 %v336
      %v1839 = vpack.c.b16 %v1768, %v1767
      %v1840 = vpack.c.b16 %v1770, %v1769
      %v1841 = vpack.c.b16 %v1772, %v1771
      %v1842 = vpack.c.b16 %v1774, %v1773
      %v1843 = vpack.c.b16 %v1776, %v1775
      %v1844 = vpack.c.b16 %v1778, %v1777
      %v1845 = vpack.c.b16 %v1780, %v1779
      %v1846 = vpack.c.b16 %v1782, %v1781
      %v1847 = vpack.c.b16 %v1784, %v1783
      %v1848 = vpack.c.b16 %v1786, %v1785
      %v1849 = vpack.c.b16 %v1788, %v1787
      %v1850 = vpack.c.b16 %v1790, %v1789
      %v1851 = vpack.c.b16 %v1792, %v1791
      %v1852 = vpack.c.b16 %v1794, %v1793
      %v1853 = vpack.c.b16 %v1796, %v1795
      %v1854 = vpack.c.b16 %v1798, %v1797
      %v1855 = vpack.c.b16 %v1800, %v1799
      %v1856 = vpack.c.b16 %v1802, %v1801
      %v1857 = vpack.c.b16 %v1804, %v1803
      %v1858 = vpack.c.b16 %v1806, %v1805
      %v1859 = vpack.c.b16 %v1808, %v1807
      %v1860 = vpack.c.b16 %v1810, %v1809
      %v1861 = vpack.c.b16 %v1812, %v1811
      %v1862 = vpack.c.b16 %v1814, %v1813
      %v1863 = vpack.c.b16 %v1816, %v1815
      %v1864 = vpack.c.b16 %v1818, %v1817
      %v1865 = vpack.c.b16 %v1820, %v1819
      %v1866 = vpack.c.b16 %v1822, %v1821
      %v1867 = vpack.c.b16 %v1824, %v1823
      %v1868 = vpack.c.b16 %v1826, %v1825
      %v1869 = vpack.c.b16 %v1828, %v1827
      %v1870 = vpack.c.b16 %v1830, %v1829
      %v1871 = vpack.c.b16 %v1832, %v1831
      %v1872 = vpack.c.b16 %v1834, %v1833
      %v1873 = vpack.c.b16 %v1836, %v1835
      %v1874 = vpack.c.b16 %v1838, %v1837
      %v1876 = vsel %vm1261, %v1839, 0
      %v1879 = vsel %vm1261, %v1840, 0
      %v1882 = vsel %vm1261, %v1841, 0
      %v1885 = vsel %vm1261, %v1842, 0
      %v1888 = vsel %vm1261, %v1843, 0
      %v1891 = vsel %vm1261, %v1844, 0
      %v1894 = vsel %vm1261, %v1845, 0
      %v1897 = vsel %vm1261, %v1846, 0
      %v1900 = vsel %vm1261, %v1847, 0
      %v1903 = vsel %vm1261, %v1848, 0
      %v1906 = vsel %vm1261, %v1849, 0
      %v1909 = vsel %vm1261, %v1850, 0
      %v1912 = vsel %vm1261, %v1851, 0
      %v1915 = vsel %vm1261, %v1852, 0
      %v1918 = vsel %vm1261, %v1853, 0
      %v1921 = vsel %vm1261, %v1854, 0
      %v1924 = vsel %vm1261, %v1855, 0
      %v1927 = vsel %vm1261, %v1856, 0
      %v1930 = vsel %vm1261, %v1857, 0
      %v1933 = vsel %vm1261, %v1858, 0
      %v1936 = vsel %vm1261, %v1859, 0
      %v1939 = vsel %vm1261, %v1860, 0
      %v1942 = vsel %vm1261, %v1861, 0
      %v1945 = vsel %vm1261, %v1862, 0
      %v1948 = vsel %vm1261, %v1863, 0
      %v1951 = vsel %vm1261, %v1864, 0
      %v1954 = vsel %vm1261, %v1865, 0
      %v1957 = vsel %vm1261, %v1866, 0
      %v1960 = vsel %vm1261, %v1867, 0
      %v1963 = vsel %vm1261, %v1868, 0
      %v1966 = vsel %vm1261, %v1869, 0
      %v1969 = vsel %vm1261, %v1870, 0
      %v1972 = vsel %vm1261, %v1871, 0
      %v1975 = vsel %vm1261, %v1872, 0
      %v1978 = vsel %vm1261, %v1873, 0
      %v1981 = vsel %vm1261, %v1874, 0
      %v1984 = vsel %vm1370, %v337, 0
      %1986 = vmatprep.subr.bf16.mxu0 0
      %1987 = vmatpush1.bf16.msra.mxu0 %v1984
      %1988 = vmatprep.subr.bf16.mxu0 0
      %1989 = vmatpush1.bf16.msra.mxu0 0
      %1990 = vmatprep.subr.bf16.mxu0 0
      %1991 = vmatpush1.bf16.msra.mxu0 0
      %1992 = vmatprep.subr.bf16.mxu0 0
      %1993 = vmatpush1.bf16.msra.mxu0 0
      %1994 = vmatprep.subr.bf16.mxu0 0
      %1995 = vmatpush1.bf16.msra.mxu0 0
      %1996 = vmatprep.subr.bf16.mxu0 0
      %1997 = vmatpush1.bf16.msra.mxu0 0
      %1998 = vmatprep.subr.bf16.mxu0 0
      %1999 = vmatpush1.bf16.msra.mxu0 0
      %2000 = vmatprep.subr.bf16.mxu0 0
      %2001 = vmatpush1.bf16.msra.mxu0 0
      %2002 = vmatprep.subr.bf16.mxu0 0
      %2003 = vmatpush1.bf16.msra.mxu0 0
      %2004 = vmatprep.subr.bf16.mxu0 0
      %2005 = vmatpush1.bf16.msra.mxu0 0
      %2006 = vmatprep.subr.bf16.mxu0 0
      %2007 = vmatpush1.bf16.msra.mxu0 0
      %2008 = vmatprep.subr.bf16.mxu0 0
      %2009 = vmatpush1.bf16.msra.mxu0 0
      %2010 = vmatprep.subr.bf16.mxu0 0
      %2011 = vmatpush1.bf16.msra.mxu0 0
      %2012 = vmatprep.subr.bf16.mxu0 0
      %2013 = vmatpush1.bf16.msra.mxu0 0
      %2014 = vmatprep.subr.bf16.mxu0 0
      %2015 = vmatpush1.bf16.msra.mxu0 0
      %2016 = vmatprep.subr.bf16.mxu0 0
      %2017 = vmatpush1.bf16.msra.mxu0 0
      %2018 = vmatprep.mubr.bf16.mxu0 0
      %2019 = vmatmul.mubr.bf16.gmra.mrb[0].mxu0 %v1876
      %v2020 = vpop.f32.mrb[0].mxu0
      %v2021 = vadd.f32 %v1409, %v2020
      %v2022 = vpop.f32.mrb[0].mxu0
      %v2023 = vpop.f32.mrb[0].mxu0
      %v2024 = vadd.f32 %v1412, %v2023
      %v2025 = vpop.f32.mrb[0].mxu0
      %2026 = vmatprep.mubr.bf16.mxu0 0
      %2027 = vmatmul.mubr.bf16.gmra.mrb[0].mxu0 %v1879
      %v2028 = vpop.f32.mrb[0].mxu0
      %v2029 = vadd.f32 %v1417, %v2028
      %v2030 = vpop.f32.mrb[0].mxu0
      %v2031 = vpop.f32.mrb[0].mxu0
      %v2032 = vadd.f32 %v1420, %v2031
      %v2033 = vpop.f32.mrb[0].mxu0
      %2034 = vmatprep.mubr.bf16.mxu0 0
      %2035 = vmatmul.mubr.bf16.gmra.mrb[0].mxu0 %v1882
      %v2036 = vpop.f32.mrb[0].mxu0
      %v2037 = vadd.f32 %v1425, %v2036
      %v2038 = vpop.f32.mrb[0].mxu0
      %v2039 = vpop.f32.mrb[0].mxu0
      %v2040 = vadd.f32 %v1428, %v2039
      %v2041 = vpop.f32.mrb[0].mxu0
      %2042 = vmatprep.mubr.bf16.mxu0 0
      %2043 = vmatmul.mubr.bf16.gmra.mrb[0].mxu0 %v1885
      %v2044 = vpop.f32.mrb[0].mxu0
      %v2045 = vadd.f32 %v1433, %v2044
      %v2046 = vpop.f32.mrb[0].mxu0
      %v2047 = vpop.f32.mrb[0].mxu0
      %v2048 = vadd.f32 %v1436, %v2047
      %v2049 = vpop.f32.mrb[0].mxu0
      %2050 = vmatprep.mubr.bf16.mxu0 0
      %2051 = vmatmul.mubr.bf16.gmra.mrb[0].mxu0 %v1888
      %v2052 = vpop.f32.mrb[0].mxu0
      %v2053 = vadd.f32 %v1441, %v2052
      %v2054 = vpop.f32.mrb[0].mxu0
      %v2055 = vpop.f32.mrb[0].mxu0
      %v2056 = vadd.f32 %v1444, %v2055
      %v2057 = vpop.f32.mrb[0].mxu0
      %2058 = vmatprep.mubr.bf16.mxu0 0
      %2059 = vmatmul.mubr.bf16.gmra.mrb[0].mxu0 %v1891
      %v2060 = vpop.f32.mrb[0].mxu0
      %v2061 = vadd.f32 %v1449, %v2060
      %v2062 = vpop.f32.mrb[0].mxu0
      %v2063 = vpop.f32.mrb[0].mxu0
      %v2064 = vadd.f32 %v1452, %v2063
      %v2065 = vpop.f32.mrb[0].mxu0
      %2066 = vmatprep.mubr.bf16.mxu0 0
      %2067 = vmatmul.mubr.bf16.gmra.mrb[0].mxu0 %v1894
      %v2068 = vpop.f32.mrb[0].mxu0
      %v2069 = vadd.f32 %v1457, %v2068
      %v2070 = vpop.f32.mrb[0].mxu0
      %v2071 = vpop.f32.mrb[0].mxu0
      %v2072 = vadd.f32 %v1460, %v2071
      %v2073 = vpop.f32.mrb[0].mxu0
      %2074 = vmatprep.mubr.bf16.mxu0 0
      %2075 = vmatmul.mubr.bf16.gmra.mrb[0].mxu0 %v1897
      %v2076 = vpop.f32.mrb[0].mxu0
      %v2077 = vadd.f32 %v1465, %v2076
      %v2078 = vpop.f32.mrb[0].mxu0
      %v2079 = vpop.f32.mrb[0].mxu0
      %v2080 = vadd.f32 %v1468, %v2079
      %v2081 = vpop.f32.mrb[0].mxu0
      %2082 = vmatprep.mubr.bf16.mxu0 0
      %2083 = vmatmul.mubr.bf16.gmra.mrb[0].mxu0 %v1900
      %v2084 = vpop.f32.mrb[0].mxu0
      %v2085 = vadd.f32 %v1473, %v2084
      %v2086 = vpop.f32.mrb[0].mxu0
      %v2087 = vpop.f32.mrb[0].mxu0
      %v2088 = vadd.f32 %v1476, %v2087
      %v2089 = vpop.f32.mrb[0].mxu0
      %2090 = vmatprep.mubr.bf16.mxu0 0
      %2091 = vmatmul.mubr.bf16.gmra.mrb[0].mxu0 %v1903
      %v2092 = vpop.f32.mrb[0].mxu0
      %v2093 = vadd.f32 %v1481, %v2092
      %v2094 = vpop.f32.mrb[0].mxu0
      %v2095 = vpop.f32.mrb[0].mxu0
      %v2096 = vadd.f32 %v1484, %v2095
      %v2097 = vpop.f32.mrb[0].mxu0
      %2098 = vmatprep.mubr.bf16.mxu0 0
      %2099 = vmatmul.mubr.bf16.gmra.mrb[0].mxu0 %v1906
      %v2100 = vpop.f32.mrb[0].mxu0
      %v2101 = vadd.f32 %v1489, %v2100
      %v2102 = vpop.f32.mrb[0].mxu0
      %v2103 = vpop.f32.mrb[0].mxu0
      %v2104 = vadd.f32 %v1492, %v2103
      %v2105 = vpop.f32.mrb[0].mxu0
      %2106 = vmatprep.mubr.bf16.mxu0 0
      %2107 = vmatmul.mubr.bf16.gmra.mrb[0].mxu0 %v1909
      %v2108 = vpop.f32.mrb[0].mxu0
      %v2109 = vadd.f32 %v1497, %v2108
      %v2110 = vpop.f32.mrb[0].mxu0
      %v2111 = vpop.f32.mrb[0].mxu0
      %v2112 = vadd.f32 %v1500, %v2111
      %v2113 = vpop.f32.mrb[0].mxu0
      %2114 = vmatprep.mubr.bf16.mxu0 0
      %2115 = vmatmul.mubr.bf16.gmra.mrb[0].mxu0 %v1912
      %v2116 = vpop.f32.mrb[0].mxu0
      %v2117 = vadd.f32 %v1505, %v2116
      %v2118 = vpop.f32.mrb[0].mxu0
      %v2119 = vpop.f32.mrb[0].mxu0
      %v2120 = vadd.f32 %v1508, %v2119
      %v2121 = vpop.f32.mrb[0].mxu0
      %2122 = vmatprep.mubr.bf16.mxu0 0
      %2123 = vmatmul.mubr.bf16.gmra.mrb[0].mxu0 %v1915
      %v2124 = vpop.f32.mrb[0].mxu0
      %v2125 = vadd.f32 %v1513, %v2124
      %v2126 = vpop.f32.mrb[0].mxu0
      %v2127 = vpop.f32.mrb[0].mxu0
      %v2128 = vadd.f32 %v1516, %v2127
      %v2129 = vpop.f32.mrb[0].mxu0
      %2130 = vmatprep.mubr.bf16.mxu0 0
      %2131 = vmatmul.mubr.bf16.gmra.mrb[0].mxu0 %v1918
      %v2132 = vpop.f32.mrb[0].mxu0
      %v2133 = vadd.f32 %v1521, %v2132
      %v2134 = vpop.f32.mrb[0].mxu0
      %v2135 = vpop.f32.mrb[0].mxu0
      %v2136 = vadd.f32 %v1524, %v2135
      %v2137 = vpop.f32.mrb[0].mxu0
      %2138 = vmatprep.mubr.bf16.mxu0 0
      %2139 = vmatmul.mubr.bf16.gmra.mrb[0].mxu0 %v1921
      %v2140 = vpop.f32.mrb[0].mxu0
      %v2141 = vadd.f32 %v1529, %v2140
      %v2142 = vpop.f32.mrb[0].mxu0
      %v2143 = vpop.f32.mrb[0].mxu0
      %v2144 = vadd.f32 %v1532, %v2143
      %v2145 = vpop.f32.mrb[0].mxu0
      %2146 = vmatprep.mubr.bf16.mxu0 0
      %2147 = vmatmul.mubr.bf16.gmra.mrb[0].mxu0 %v1924
      %v2148 = vpop.f32.mrb[0].mxu0
      %v2149 = vadd.f32 %v1537, %v2148
      %v2150 = vpop.f32.mrb[0].mxu0
      %v2151 = vpop.f32.mrb[0].mxu0
      %v2152 = vadd.f32 %v1540, %v2151
      %v2153 = vpop.f32.mrb[0].mxu0
      %2154 = vmatprep.mubr.bf16.mxu0 0
      %2155 = vmatmul.mubr.bf16.gmra.mrb[0].mxu0 %v1927
      %v2156 = vpop.f32.mrb[0].mxu0
      %v2157 = vadd.f32 %v1545, %v2156
      %v2158 = vpop.f32.mrb[0].mxu0
      %v2159 = vpop.f32.mrb[0].mxu0
      %v2160 = vadd.f32 %v1548, %v2159
      %v2161 = vpop.f32.mrb[0].mxu0
      %2162 = vmatprep.mubr.bf16.mxu0 0
      %2163 = vmatmul.mubr.bf16.gmra.mrb[0].mxu0 %v1930
      %v2164 = vpop.f32.mrb[0].mxu0
      %v2165 = vadd.f32 %v1553, %v2164
      %v2166 = vpop.f32.mrb[0].mxu0
      %v2167 = vpop.f32.mrb[0].mxu0
      %v2168 = vadd.f32 %v1556, %v2167
      %v2169 = vpop.f32.mrb[0].mxu0
      %2170 = vmatprep.mubr.bf16.mxu0 0
      %2171 = vmatmul.mubr.bf16.gmra.mrb[0].mxu0 %v1933
      %v2172 = vpop.f32.mrb[0].mxu0
      %v2173 = vadd.f32 %v1561, %v2172
      %v2174 = vpop.f32.mrb[0].mxu0
      %v2175 = vpop.f32.mrb[0].mxu0
      %v2176 = vadd.f32 %v1564, %v2175
      %v2177 = vpop.f32.mrb[0].mxu0
      %2178 = vmatprep.mubr.bf16.mxu0 0
      %2179 = vmatmul.mubr.bf16.gmra.mrb[0].mxu0 %v1936
      %v2180 = vpop.f32.mrb[0].mxu0
      %v2181 = vadd.f32 %v1569, %v2180
      %v2182 = vpop.f32.mrb[0].mxu0
      %v2183 = vpop.f32.mrb[0].mxu0
      %v2184 = vadd.f32 %v1572, %v2183
      %v2185 = vpop.f32.mrb[0].mxu0
      %2186 = vmatprep.mubr.bf16.mxu0 0
      %2187 = vmatmul.mubr.bf16.gmra.mrb[0].mxu0 %v1939
      %v2188 = vpop.f32.mrb[0].mxu0
      %v2189 = vadd.f32 %v1577, %v2188
      %v2190 = vpop.f32.mrb[0].mxu0
      %v2191 = vpop.f32.mrb[0].mxu0
      %v2192 = vadd.f32 %v1580, %v2191
      %v2193 = vpop.f32.mrb[0].mxu0
      %2194 = vmatprep.mubr.bf16.mxu0 0
      %2195 = vmatmul.mubr.bf16.gmra.mrb[0].mxu0 %v1942
      %v2196 = vpop.f32.mrb[0].mxu0
      %v2197 = vadd.f32 %v1585, %v2196
      %v2198 = vpop.f32.mrb[0].mxu0
      %v2199 = vpop.f32.mrb[0].mxu0
      %v2200 = vadd.f32 %v1588, %v2199
      %v2201 = vpop.f32.mrb[0].mxu0
      %2202 = vmatprep.mubr.bf16.mxu0 0
      %2203 = vmatmul.mubr.bf16.gmra.mrb[0].mxu0 %v1945
      %v2204 = vpop.f32.mrb[0].mxu0
      %v2205 = vadd.f32 %v1593, %v2204
      %v2206 = vpop.f32.mrb[0].mxu0
      %v2207 = vpop.f32.mrb[0].mxu0
      %v2208 = vadd.f32 %v1596, %v2207
      %v2209 = vpop.f32.mrb[0].mxu0
      %2210 = vmatprep.mubr.bf16.mxu0 0
      %2211 = vmatmul.mubr.bf16.gmra.mrb[0].mxu0 %v1948
      %v2212 = vpop.f32.mrb[0].mxu0
      %v2213 = vadd.f32 %v1601, %v2212
      %v2214 = vpop.f32.mrb[0].mxu0
      %v2215 = vpop.f32.mrb[0].mxu0
      %v2216 = vadd.f32 %v1604, %v2215
      %v2217 = vpop.f32.mrb[0].mxu0
      %2218 = vmatprep.mubr.bf16.mxu0 0
      %2219 = vmatmul.mubr.bf16.gmra.mrb[0].mxu0 %v1951
      %v2220 = vpop.f32.mrb[0].mxu0
      %v2221 = vadd.f32 %v1609, %v2220
      %v2222 = vpop.f32.mrb[0].mxu0
      %v2223 = vpop.f32.mrb[0].mxu0
      %v2224 = vadd.f32 %v1612, %v2223
      %v2225 = vpop.f32.mrb[0].mxu0
      %2226 = vmatprep.mubr.bf16.mxu0 0
      %2227 = vmatmul.mubr.bf16.gmra.mrb[0].mxu0 %v1954
      %v2228 = vpop.f32.mrb[0].mxu0
      %v2229 = vadd.f32 %v1617, %v2228
      %v2230 = vpop.f32.mrb[0].mxu0
      %v2231 = vpop.f32.mrb[0].mxu0
      %v2232 = vadd.f32 %v1620, %v2231
      %v2233 = vpop.f32.mrb[0].mxu0
      %2234 = vmatprep.mubr.bf16.mxu0 0
      %2235 = vmatmul.mubr.bf16.gmra.mrb[0].mxu0 %v1957
      %v2236 = vpop.f32.mrb[0].mxu0
      %v2237 = vadd.f32 %v1625, %v2236
      %v2238 = vpop.f32.mrb[0].mxu0
      %v2239 = vpop.f32.mrb[0].mxu0
      %v2240 = vadd.f32 %v1628, %v2239
      %v2241 = vpop.f32.mrb[0].mxu0
      %2242 = vmatprep.mubr.bf16.mxu0 0
      %2243 = vmatmul.mubr.bf16.gmra.mrb[0].mxu0 %v1960
      %v2244 = vpop.f32.mrb[0].mxu0
      %v2245 = vadd.f32 %v1633, %v2244
      %v2246 = vpop.f32.mrb[0].mxu0
      %v2247 = vpop.f32.mrb[0].mxu0
      %v2248 = vadd.f32 %v1636, %v2247
      %v2249 = vpop.f32.mrb[0].mxu0
      %2250 = vmatprep.mubr.bf16.mxu0 0
      %2251 = vmatmul.mubr.bf16.gmra.mrb[0].mxu0 %v1963
      %v2252 = vpop.f32.mrb[0].mxu0
      %v2253 = vadd.f32 %v1641, %v2252
      %v2254 = vpop.f32.mrb[0].mxu0
      %v2255 = vpop.f32.mrb[0].mxu0
      %v2256 = vadd.f32 %v1644, %v2255
      %v2257 = vpop.f32.mrb[0].mxu0
      %2258 = vmatprep.mubr.bf16.mxu0 0
      %2259 = vmatmul.mubr.bf16.gmra.mrb[0].mxu0 %v1966
      %v2260 = vpop.f32.mrb[0].mxu0
      %v2261 = vadd.f32 %v1649, %v2260
      %v2262 = vpop.f32.mrb[0].mxu0
      %v2263 = vpop.f32.mrb[0].mxu0
      %v2264 = vadd.f32 %v1652, %v2263
      %v2265 = vpop.f32.mrb[0].mxu0
      %2266 = vmatprep.mubr.bf16.mxu0 0
      %2267 = vmatmul.mubr.bf16.gmra.mrb[0].mxu0 %v1969
      %v2268 = vpop.f32.mrb[0].mxu0
      %v2269 = vadd.f32 %v1657, %v2268
      %v2270 = vpop.f32.mrb[0].mxu0
      %v2271 = vpop.f32.mrb[0].mxu0
      %v2272 = vadd.f32 %v1660, %v2271
      %v2273 = vpop.f32.mrb[0].mxu0
      %2274 = vmatprep.mubr.bf16.mxu0 0
      %2275 = vmatmul.mubr.bf16.gmra.mrb[0].mxu0 %v1972
      %v2276 = vpop.f32.mrb[0].mxu0
      %v2277 = vadd.f32 %v1665, %v2276
      %v2278 = vpop.f32.mrb[0].mxu0
      %v2279 = vpop.f32.mrb[0].mxu0
      %v2280 = vadd.f32 %v1668, %v2279
      %v2281 = vpop.f32.mrb[0].mxu0
      %2282 = vmatprep.mubr.bf16.mxu0 0
      %2283 = vmatmul.mubr.bf16.gmra.mrb[0].mxu0 %v1975
      %v2284 = vpop.f32.mrb[0].mxu0
      %v2285 = vadd.f32 %v1673, %v2284
      %v2286 = vpop.f32.mrb[0].mxu0
      %v2287 = vpop.f32.mrb[0].mxu0
      %v2288 = vadd.f32 %v1676, %v2287
      %v2289 = vpop.f32.mrb[0].mxu0
      %2290 = vmatprep.mubr.bf16.mxu0 0
      %2291 = vmatmul.mubr.bf16.gmra.mrb[0].mxu0 %v1978
      %v2292 = vpop.f32.mrb[0].mxu0
      %v2293 = vadd.f32 %v1681, %v2292
      %v2294 = vpop.f32.mrb[0].mxu0
      %v2295 = vpop.f32.mrb[0].mxu0
      %v2296 = vadd.f32 %v1684, %v2295
      %v2297 = vpop.f32.mrb[0].mxu0
      %2298 = vmatprep.mubr.bf16.mxu0 0
      %2299 = vmatmul.mubr.bf16.gmra.mrb[0].mxu0 %v1981
      %v2300 = vpop.f32.mrb[0].mxu0
      %v2301 = vadd.f32 %v1689, %v2300
      %v2302 = vpop.f32.mrb[0].mxu0
      %v2303 = vpop.f32.mrb[0].mxu0
      %v2304 = vadd.f32 %v1692, %v2303
      %v2305 = vpop.f32.mrb[0].mxu0
      %2306 = vdwg.mxu0
      %v2307 = vld [vmem:[%s252] sm:$0xe]
      %v2308 = vld [vmem:[%s252 + $0x14] sm:$0xe]
      %v2309 = vld [vmem:[%s252 + $0x28] sm:$0xe]
      %v2310 = vld [vmem:[%s252 + $0x3c] sm:$0xe]
      %v2311 = vld [vmem:[%s252 + $0x50] sm:$0xe]
      %v2312 = vld [vmem:[%s252 + $0x64] sm:$0xe]
      %v2313 = vld [vmem:[%s252 + $0x78] sm:$0xe]
      %v2314 = vld [vmem:[%s252 + $0x8c] sm:$0xe]
      %v2315 = vld [vmem:[%s252 + $0xa0] sm:$0xe]
      %v2316 = vld [vmem:[%s252 + $0xb4] sm:$0xe]
      %v2317 = vld [vmem:[%s252 + $0xc8] sm:$0xe]
      %v2318 = vld [vmem:[%s252 + $0xdc] sm:$0xe]
      %v2319 = vld [vmem:[%s252 + $0xf0] sm:$0xe]
      %v2320 = vld [vmem:[%s252 + $0x104] sm:$0xe]
      %v2321 = vld [vmem:[%s252 + $0x118] sm:$0xe]
      %v2322 = vld [vmem:[%s252 + $0x12c] sm:$0xe]
      %v2323 = vld [vmem:[%s252 + $0x140] sm:$0xe]
      %v2324 = vld [vmem:[%s252 + $0x154] sm:$0xe]
      %vm2361 = vcmask 1042432
      %vm2362 = vcmask 1046532
      %vm2363 = vmor %vm2361, %vm2362
      %v2364 = vrot.slane %v2307, 5
      %v2365 = vrot.slane %v2364, 4
      %v2366 = vrot.slane %v266, 5
      %v2367 = vsel %vm2363, %v2365, %v2366
      %v2368 = vrot.slane %v2366, 4
      %v2369 = vrot.slane %v267, 5
      %v2370 = vsel %vm2363, %v2368, %v2369
      %v2371 = vrot.slane %v2369, 4
      %v2372 = vrot.slane %v268, 5
      %v2373 = vsel %vm2363, %v2371, %v2372
      %v2374 = vrot.slane %v2372, 4
      %v2375 = vrot.slane %v338, 5
      %v2376 = vsel %vm2363, %v2374, %v2375
      %v2377 = vrot.slane %v2308, 5
      %v2378 = vrot.slane %v2377, 4
      %v2379 = vrot.slane %v270, 5
      %v2380 = vsel %vm2363, %v2378, %v2379
      %v2381 = vrot.slane %v2379, 4
      %v2382 = vrot.slane %v271, 5
      %v2383 = vsel %vm2363, %v2381, %v2382
      %v2384 = vrot.slane %v2382, 4
      %v2385 = vrot.slane %v272, 5
      %v2386 = vsel %vm2363, %v2384, %v2385
      %v2387 = vrot.slane %v2385, 4
      %v2388 = vrot.slane %v339, 5
      %v2389 = vsel %vm2363, %v2387, %v2388
      %v2390 = vrot.slane %v2309, 5
      %v2391 = vrot.slane %v2390, 4
      %v2392 = vrot.slane %v274, 5
      %v2393 = vsel %vm2363, %v2391, %v2392
      %v2394 = vrot.slane %v2392, 4
      %v2395 = vrot.slane %v275, 5
      %v2396 = vsel %vm2363, %v2394, %v2395
      %v2397 = vrot.slane %v2395, 4
      %v2398 = vrot.slane %v276, 5
      %v2399 = vsel %vm2363, %v2397, %v2398
      %v2400 = vrot.slane %v2398, 4
      %v2401 = vrot.slane %v340, 5
      %v2402 = vsel %vm2363, %v2400, %v2401
      %v2403 = vrot.slane %v2310, 5
      %v2404 = vrot.slane %v2403, 4
      %v2405 = vrot.slane %v278, 5
      %v2406 = vsel %vm2363, %v2404, %v2405
      %v2407 = vrot.slane %v2405, 4
      %v2408 = vrot.slane %v279, 5
      %v2409 = vsel %vm2363, %v2407, %v2408
      %v2410 = vrot.slane %v2408, 4
      %v2411 = vrot.slane %v280, 5
      %v2412 = vsel %vm2363, %v2410, %v2411
      %v2413 = vrot.slane %v2411, 4
      %v2414 = vrot.slane %v341, 5
      %v2415 = vsel %vm2363, %v2413, %v2414
      %v2416 = vrot.slane %v2311, 5
      %v2417 = vrot.slane %v2416, 4
      %v2418 = vrot.slane %v282, 5
      %v2419 = vsel %vm2363, %v2417, %v2418
      %v2420 = vrot.slane %v2418, 4
      %v2421 = vrot.slane %v283, 5
      %v2422 = vsel %vm2363, %v2420, %v2421
      %v2423 = vrot.slane %v2421, 4
      %v2424 = vrot.slane %v284, 5
      %v2425 = vsel %vm2363, %v2423, %v2424
      %v2426 = vrot.slane %v2424, 4
      %v2427 = vrot.slane %v342, 5
      %v2428 = vsel %vm2363, %v2426, %v2427
      %v2429 = vrot.slane %v2312, 5
      %v2430 = vrot.slane %v2429, 4
      %v2431 = vrot.slane %v286, 5
      %v2432 = vsel %vm2363, %v2430, %v2431
      %v2433 = vrot.slane %v2431, 4
      %v2434 = vrot.slane %v287, 5
      %v2435 = vsel %vm2363, %v2433, %v2434
      %v2436 = vrot.slane %v2434, 4
      %v2437 = vrot.slane %v288, 5
      %v2438 = vsel %vm2363, %v2436, %v2437
      %v2439 = vrot.slane %v2437, 4
      %v2440 = vrot.slane %v343, 5
      %v2441 = vsel %vm2363, %v2439, %v2440
      %v2442 = vrot.slane %v2313, 5
      %v2443 = vrot.slane %v2442, 4
      %v2444 = vrot.slane %v290, 5
      %v2445 = vsel %vm2363, %v2443, %v2444
      %v2446 = vrot.slane %v2444, 4
      %v2447 = vrot.slane %v291, 5
      %v2448 = vsel %vm2363, %v2446, %v2447
      %v2449 = vrot.slane %v2447, 4
      %v2450 = vrot.slane %v292, 5
      %v2451 = vsel %vm2363, %v2449, %v2450
      %v2452 = vrot.slane %v2450, 4
      %v2453 = vrot.slane %v344, 5
      %v2454 = vsel %vm2363, %v2452, %v2453
      %v2455 = vrot.slane %v2314, 5
      %v2456 = vrot.slane %v2455, 4
      %v2457 = vrot.slane %v294, 5
      %v2458 = vsel %vm2363, %v2456, %v2457
      %v2459 = vrot.slane %v2457, 4
      %v2460 = vrot.slane %v295, 5
      %v2461 = vsel %vm2363, %v2459, %v2460
      %v2462 = vrot.slane %v2460, 4
      %v2463 = vrot.slane %v296, 5
      %v2464 = vsel %vm2363, %v2462, %v2463
      %v2465 = vrot.slane %v2463, 4
      %v2466 = vrot.slane %v345, 5
      %v2467 = vsel %vm2363, %v2465, %v2466
      %v2468 = vrot.slane %v2315, 5
      %v2469 = vrot.slane %v2468, 4
      %v2470 = vrot.slane %v298, 5
      %v2471 = vsel %vm2363, %v2469, %v2470
      %v2472 = vrot.slane %v2470, 4
      %v2473 = vrot.slane %v299, 5
      %v2474 = vsel %vm2363, %v2472, %v2473
      %v2475 = vrot.slane %v2473, 4
      %v2476 = vrot.slane %v300, 5
      %v2477 = vsel %vm2363, %v2475, %v2476
      %v2478 = vrot.slane %v2476, 4
      %v2479 = vrot.slane %v346, 5
      %v2480 = vsel %vm2363, %v2478, %v2479
      %v2481 = vrot.slane %v2316, 5
      %v2482 = vrot.slane %v2481, 4
      %v2483 = vrot.slane %v302, 5
      %v2484 = vsel %vm2363, %v2482, %v2483
      %v2485 = vrot.slane %v2483, 4
      %v2486 = vrot.slane %v303, 5
      %v2487 = vsel %vm2363, %v2485, %v2486
      %v2488 = vrot.slane %v2486, 4
      %v2489 = vrot.slane %v304, 5
      %v2490 = vsel %vm2363, %v2488, %v2489
      %v2491 = vrot.slane %v2489, 4
      %v2492 = vrot.slane %v347, 5
      %v2493 = vsel %vm2363, %v2491, %v2492
      %v2494 = vrot.slane %v2317, 5
      %v2495 = vrot.slane %v2494, 4
      %v2496 = vrot.slane %v306, 5
      %v2497 = vsel %vm2363, %v2495, %v2496
      %v2498 = vrot.slane %v2496, 4
      %v2499 = vrot.slane %v307, 5
      %v2500 = vsel %vm2363, %v2498, %v2499
      %v2501 = vrot.slane %v2499, 4
      %v2502 = vrot.slane %v308, 5
      %v2503 = vsel %vm2363, %v2501, %v2502
      %v2504 = vrot.slane %v2502, 4
      %v2505 = vrot.slane %v348, 5
      %v2506 = vsel %vm2363, %v2504, %v2505
      %v2507 = vrot.slane %v2318, 5
      %v2508 = vrot.slane %v2507, 4
      %v2509 = vrot.slane %v310, 5
      %v2510 = vsel %vm2363, %v2508, %v2509
      %v2511 = vrot.slane %v2509, 4
      %v2512 = vrot.slane %v311, 5
      %v2513 = vsel %vm2363, %v2511, %v2512
      %v2514 = vrot.slane %v2512, 4
      %v2515 = vrot.slane %v312, 5
      %v2516 = vsel %vm2363, %v2514, %v2515
      %v2517 = vrot.slane %v2515, 4
      %v2518 = vrot.slane %v349, 5
      %v2519 = vsel %vm2363, %v2517, %v2518
      %v2520 = vrot.slane %v2319, 5
      %v2521 = vrot.slane %v2520, 4
      %v2522 = vrot.slane %v314, 5
      %v2523 = vsel %vm2363, %v2521, %v2522
      %v2524 = vrot.slane %v2522, 4
      %v2525 = vrot.slane %v315, 5
      %v2526 = vsel %vm2363, %v2524, %v2525
      %v2527 = vrot.slane %v2525, 4
      %v2528 = vrot.slane %v316, 5
      %v2529 = vsel %vm2363, %v2527, %v2528
      %v2530 = vrot.slane %v2528, 4
      %v2531 = vrot.slane %v350, 5
      %v2532 = vsel %vm2363, %v2530, %v2531
      %v2533 = vrot.slane %v2320, 5
      %v2534 = vrot.slane %v2533, 4
      %v2535 = vrot.slane %v318, 5
      %v2536 = vsel %vm2363, %v2534, %v2535
      %v2537 = vrot.slane %v2535, 4
      %v2538 = vrot.slane %v319, 5
      %v2539 = vsel %vm2363, %v2537, %v2538
      %v2540 = vrot.slane %v2538, 4
      %v2541 = vrot.slane %v320, 5
      %v2542 = vsel %vm2363, %v2540, %v2541
      %v2543 = vrot.slane %v2541, 4
      %v2544 = vrot.slane %v351, 5
      %v2545 = vsel %vm2363, %v2543, %v2544
      %v2546 = vrot.slane %v2321, 5
      %v2547 = vrot.slane %v2546, 4
      %v2548 = vrot.slane %v322, 5
      %v2549 = vsel %vm2363, %v2547, %v2548
      %v2550 = vrot.slane %v2548, 4
      %v2551 = vrot.slane %v323, 5
      %v2552 = vsel %vm2363, %v2550, %v2551
      %v2553 = vrot.slane %v2551, 4
      %v2554 = vrot.slane %v324, 5
      %v2555 = vsel %vm2363, %v2553, %v2554
      %v2556 = vrot.slane %v2554, 4
      %v2557 = vrot.slane %v352, 5
      %v2558 = vsel %vm2363, %v2556, %v2557
      %v2559 = vrot.slane %v2322, 5
      %v2560 = vrot.slane %v2559, 4
      %v2561 = vrot.slane %v326, 5
      %v2562 = vsel %vm2363, %v2560, %v2561
      %v2563 = vrot.slane %v2561, 4
      %v2564 = vrot.slane %v327, 5
      %v2565 = vsel %vm2363, %v2563, %v2564
      %v2566 = vrot.slane %v2564, 4
      %v2567 = vrot.slane %v328, 5
      %v2568 = vsel %vm2363, %v2566, %v2567
      %v2569 = vrot.slane %v2567, 4
      %v2570 = vrot.slane %v353, 5
      %v2571 = vsel %vm2363, %v2569, %v2570
      %v2572 = vrot.slane %v2323, 5
      %v2573 = vrot.slane %v2572, 4
      %v2574 = vrot.slane %v330, 5
      %v2575 = vsel %vm2363, %v2573, %v2574
      %v2576 = vrot.slane %v2574, 4
      %v2577 = vrot.slane %v331, 5
      %v2578 = vsel %vm2363, %v2576, %v2577
      %v2579 = vrot.slane %v2577, 4
      %v2580 = vrot.slane %v332, 5
      %v2581 = vsel %vm2363, %v2579, %v2580
      %v2582 = vrot.slane %v2580, 4
      %v2583 = vrot.slane %v354, 5
      %v2584 = vsel %vm2363, %v2582, %v2583
      %v2585 = vrot.slane %v2324, 5
      %v2586 = vrot.slane %v2585, 4
      %v2587 = vrot.slane %v334, 5
      %v2588 = vsel %vm2363, %v2586, %v2587
      %v2589 = vrot.slane %v2587, 4
      %v2590 = vrot.slane %v335, 5
      %v2591 = vsel %vm2363, %v2589, %v2590
      %v2592 = vrot.slane %v2590, 4
      %v2593 = vrot.slane %v336, 5
      %v2594 = vsel %vm2363, %v2592, %v2593
      %v2595 = vrot.slane %v2593, 4
      %v2596 = vrot.slane %v355, 5
      %v2597 = vsel %vm2363, %v2595, %v2596
      %s2598 = scalar_lea.vmem %s1, 4
      %v2599 = vld [vmem:[%s2598] sm:$0x3]
      %v2600 = vunpack.c.l.b16 %v2367
      %v2601 = vunpack.c.l.b16 %v2370
      %v2602 = vunpack.c.l.b16 %v2373
      %v2603 = vunpack.c.l.b16 %v2376
      %v2604 = vunpack.c.l.b16 %v2380
      %v2605 = vunpack.c.l.b16 %v2383
      %v2606 = vunpack.c.l.b16 %v2386
      %v2607 = vunpack.c.l.b16 %v2389
      %v2608 = vunpack.c.l.b16 %v2393
      %v2609 = vunpack.c.l.b16 %v2396
      %v2610 = vunpack.c.l.b16 %v2399
      %v2611 = vunpack.c.l.b16 %v2402
      %v2612 = vunpack.c.l.b16 %v2406
      %v2613 = vunpack.c.l.b16 %v2409
      %v2614 = vunpack.c.l.b16 %v2412
      %v2615 = vunpack.c.l.b16 %v2415
      %v2616 = vunpack.c.l.b16 %v2419
      %v2617 = vunpack.c.l.b16 %v2422
      %v2618 = vunpack.c.l.b16 %v2425
      %v2619 = vunpack.c.l.b16 %v2428
      %v2620 = vunpack.c.l.b16 %v2432
      %v2621 = vunpack.c.l.b16 %v2435
      %v2622 = vunpack.c.l.b16 %v2438
      %v2623 = vunpack.c.l.b16 %v2441
      %v2624 = vunpack.c.l.b16 %v2445
      %v2625 = vunpack.c.l.b16 %v2448
      %v2626 = vunpack.c.l.b16 %v2451
      %v2627 = vunpack.c.l.b16 %v2454
      %v2628 = vunpack.c.l.b16 %v2458
      %v2629 = vunpack.c.l.b16 %v2461
      %v2630 = vunpack.c.l.b16 %v2464
      %v2631 = vunpack.c.l.b16 %v2467
      %v2632 = vunpack.c.l.b16 %v2471
      %v2633 = vunpack.c.l.b16 %v2474
      %v2634 = vunpack.c.l.b16 %v2477
      %v2635 = vunpack.c.l.b16 %v2480
      %v2636 = vunpack.c.l.b16 %v2484
      %v2637 = vunpack.c.l.b16 %v2487
      %v2638 = vunpack.c.l.b16 %v2490
      %v2639 = vunpack.c.l.b16 %v2493
      %v2640 = vunpack.c.l.b16 %v2497
      %v2641 = vunpack.c.l.b16 %v2500
      %v2642 = vunpack.c.l.b16 %v2503
      %v2643 = vunpack.c.l.b16 %v2506
      %v2644 = vunpack.c.l.b16 %v2510
      %v2645 = vunpack.c.l.b16 %v2513
      %v2646 = vunpack.c.l.b16 %v2516
      %v2647 = vunpack.c.l.b16 %v2519
      %v2648 = vunpack.c.l.b16 %v2523
      %v2649 = vunpack.c.l.b16 %v2526
      %v2650 = vunpack.c.l.b16 %v2529
      %v2651 = vunpack.c.l.b16 %v2532
      %v2652 = vunpack.c.l.b16 %v2536
      %v2653 = vunpack.c.l.b16 %v2539
      %v2654 = vunpack.c.l.b16 %v2542
      %v2655 = vunpack.c.l.b16 %v2545
      %v2656 = vunpack.c.l.b16 %v2549
      %v2657 = vunpack.c.l.b16 %v2552
      %v2658 = vunpack.c.l.b16 %v2555
      %v2659 = vunpack.c.l.b16 %v2558
      %v2660 = vunpack.c.l.b16 %v2562
      %v2661 = vunpack.c.l.b16 %v2565
      %v2662 = vunpack.c.l.b16 %v2568
      %v2663 = vunpack.c.l.b16 %v2571
      %v2664 = vunpack.c.l.b16 %v2575
      %v2665 = vunpack.c.l.b16 %v2578
      %v2666 = vunpack.c.l.b16 %v2581
      %v2667 = vunpack.c.l.b16 %v2584
      %v2668 = vunpack.c.l.b16 %v2588
      %v2669 = vunpack.c.l.b16 %v2591
      %v2670 = vunpack.c.l.b16 %v2594
      %v2671 = vunpack.c.l.b16 %v2597
      %v2672 = vpack.c.b16 %v2601, %v2600
      %v2673 = vpack.c.b16 %v2603, %v2602
      %v2674 = vpack.c.b16 %v2605, %v2604
      %v2675 = vpack.c.b16 %v2607, %v2606
      %v2676 = vpack.c.b16 %v2609, %v2608
      %v2677 = vpack.c.b16 %v2611, %v2610
      %v2678 = vpack.c.b16 %v2613, %v2612
      %v2679 = vpack.c.b16 %v2615, %v2614
      %v2680 = vpack.c.b16 %v2617, %v2616
      %v2681 = vpack.c.b16 %v2619, %v2618
      %v2682 = vpack.c.b16 %v2621, %v2620
      %v2683 = vpack.c.b16 %v2623, %v2622
      %v2684 = vpack.c.b16 %v2625, %v2624
      %v2685 = vpack.c.b16 %v2627, %v2626
      %v2686 = vpack.c.b16 %v2629, %v2628
      %v2687 = vpack.c.b16 %v2631, %v2630
      %v2688 = vpack.c.b16 %v2633, %v2632
      %v2689 = vpack.c.b16 %v2635, %v2634
      %v2690 = vpack.c.b16 %v2637, %v2636
      %v2691 = vpack.c.b16 %v2639, %v2638
      %v2692 = vpack.c.b16 %v2641, %v2640
      %v2693 = vpack.c.b16 %v2643, %v2642
      %v2694 = vpack.c.b16 %v2645, %v2644
      %v2695 = vpack.c.b16 %v2647, %v2646
      %v2696 = vpack.c.b16 %v2649, %v2648
      %v2697 = vpack.c.b16 %v2651, %v2650
      %v2698 = vpack.c.b16 %v2653, %v2652
      %v2699 = vpack.c.b16 %v2655, %v2654
      %v2700 = vpack.c.b16 %v2657, %v2656
      %v2701 = vpack.c.b16 %v2659, %v2658
      %v2702 = vpack.c.b16 %v2661, %v2660
      %v2703 = vpack.c.b16 %v2663, %v2662
      %v2704 = vpack.c.b16 %v2665, %v2664
      %v2705 = vpack.c.b16 %v2667, %v2666
      %v2706 = vpack.c.b16 %v2669, %v2668
      %v2707 = vpack.c.b16 %v2671, %v2670
      %v2709 = vsel %vm1261, %v2672, 0
      %v2712 = vsel %vm1261, %v2673, 0
      %v2715 = vsel %vm1261, %v2674, 0
      %v2718 = vsel %vm1261, %v2675, 0
      %v2721 = vsel %vm1261, %v2676, 0
      %v2724 = vsel %vm1261, %v2677, 0
      %v2727 = vsel %vm1261, %v2678, 0
      %v2730 = vsel %vm1261, %v2679, 0
      %v2733 = vsel %vm1261, %v2680, 0
      %v2736 = vsel %vm1261, %v2681, 0
      %v2739 = vsel %vm1261, %v2682, 0
      %v2742 = vsel %vm1261, %v2683, 0
      %v2745 = vsel %vm1261, %v2684, 0
      %v2748 = vsel %vm1261, %v2685, 0
      %v2751 = vsel %vm1261, %v2686, 0
      %v2754 = vsel %vm1261, %v2687, 0
      %v2757 = vsel %vm1261, %v2688, 0
      %v2760 = vsel %vm1261, %v2689, 0
      %v2763 = vsel %vm1261, %v2690, 0
      %v2766 = vsel %vm1261, %v2691, 0
      %v2769 = vsel %vm1261, %v2692, 0
      %v2772 = vsel %vm1261, %v2693, 0
      %v2775 = vsel %vm1261, %v2694, 0
      %v2778 = vsel %vm1261, %v2695, 0
      %v2781 = vsel %vm1261, %v2696, 0
      %v2784 = vsel %vm1261, %v2697, 0
      %v2787 = vsel %vm1261, %v2698, 0
      %v2790 = vsel %vm1261, %v2699, 0
      %v2793 = vsel %vm1261, %v2700, 0
      %v2796 = vsel %vm1261, %v2701, 0
      %v2799 = vsel %vm1261, %v2702, 0
      %v2802 = vsel %vm1261, %v2703, 0
      %v2805 = vsel %vm1261, %v2704, 0
      %v2808 = vsel %vm1261, %v2705, 0
      %v2811 = vsel %vm1261, %v2706, 0
      %v2814 = vsel %vm1261, %v2707, 0
      %v2817 = vsel %vm1370, %v2599, 0
      %2819 = vmatprep.subr.bf16.mxu0 0
      %2820 = vmatpush1.bf16.msra.mxu0 %v2817
      %2821 = vmatprep.subr.bf16.mxu0 0
      %2822 = vmatpush1.bf16.msra.mxu0 0
      %2823 = vmatprep.subr.bf16.mxu0 0
      %2824 = vmatpush1.bf16.msra.mxu0 0
      %2825 = vmatprep.subr.bf16.mxu0 0
      %2826 = vmatpush1.bf16.msra.mxu0 0
      %2827 = vmatprep.subr.bf16.mxu0 0
      %2828 = vmatpush1.bf16.msra.mxu0 0
      %2829 = vmatprep.subr.bf16.mxu0 0
      %2830 = vmatpush1.bf16.msra.mxu0 0
      %2831 = vmatprep.subr.bf16.mxu0 0
      %2832 = vmatpush1.bf16.msra.mxu0 0
      %2833 = vmatprep.subr.bf16.mxu0 0
      %2834 = vmatpush1.bf16.msra.mxu0 0
      %2835 = vmatprep.subr.bf16.mxu0 0
      %2836 = vmatpush1.bf16.msra.mxu0 0
      %2837 = vmatprep.subr.bf16.mxu0 0
      %2838 = vmatpush1.bf16.msra.mxu0 0
      %2839 = vmatprep.subr.bf16.mxu0 0
      %2840 = vmatpush1.bf16.msra.mxu0 0
      %2841 = vmatprep.subr.bf16.mxu0 0
      %2842 = vmatpush1.bf16.msra.mxu0 0
      %2843 = vmatprep.subr.bf16.mxu0 0
      %2844 = vmatpush1.bf16.msra.mxu0 0
      %2845 = vmatprep.subr.bf16.mxu0 0
      %2846 = vmatpush1.bf16.msra.mxu0 0
      %2847 = vmatprep.subr.bf16.mxu0 0
      %2848 = vmatpush1.bf16.msra.mxu0 0
      %2849 = vmatprep.subr.bf16.mxu0 0
      %2850 = vmatpush1.bf16.msra.mxu0 0
      %2851 = vmatprep.mubr.bf16.mxu0 0
      %2852 = vmatmul.mubr.bf16.gmra.mrb[0].mxu0 %v2709
      %v2853 = vpop.f32.mrb[0].mxu0
      %v2854 = vadd.f32 0.0, %v2853
      %v2855 = vpop.f32.mrb[0].mxu0
      %v2856 = vpop.f32.mrb[0].mxu0
      %v2857 = vadd.f32 0.0, %v2856
      %v2858 = vpop.f32.mrb[0].mxu0
      %2859 = vmatprep.mubr.bf16.mxu0 0
      %2860 = vmatmul.mubr.bf16.gmra.mrb[0].mxu0 %v2712
      %v2861 = vpop.f32.mrb[0].mxu0
      %v2862 = vadd.f32 0.0, %v2861
      %v2863 = vpop.f32.mrb[0].mxu0
      %v2864 = vpop.f32.mrb[0].mxu0
      %v2865 = vadd.f32 0.0, %v2864
      %v2866 = vpop.f32.mrb[0].mxu0
      %2867 = vmatprep.mubr.bf16.mxu0 0
      %2868 = vmatmul.mubr.bf16.gmra.mrb[0].mxu0 %v2715
      %v2869 = vpop.f32.mrb[0].mxu0
      %v2870 = vadd.f32 0.0, %v2869
      %v2871 = vpop.f32.mrb[0].mxu0
      %v2872 = vpop.f32.mrb[0].mxu0
      %v2873 = vadd.f32 0.0, %v2872
      %v2874 = vpop.f32.mrb[0].mxu0
      %2875 = vmatprep.mubr.bf16.mxu0 0
      %2876 = vmatmul.mubr.bf16.gmra.mrb[0].mxu0 %v2718
      %v2877 = vpop.f32.mrb[0].mxu0
      %v2878 = vadd.f32 0.0, %v2877
      %v2879 = vpop.f32.mrb[0].mxu0
      %v2880 = vpop.f32.mrb[0].mxu0
      %v2881 = vadd.f32 0.0, %v2880
      %v2882 = vpop.f32.mrb[0].mxu0
      %2883 = vmatprep.mubr.bf16.mxu0 0
      %2884 = vmatmul.mubr.bf16.gmra.mrb[0].mxu0 %v2721
      %v2885 = vpop.f32.mrb[0].mxu0
      %v2886 = vadd.f32 0.0, %v2885
      %v2887 = vpop.f32.mrb[0].mxu0
      %v2888 = vpop.f32.mrb[0].mxu0
      %v2889 = vadd.f32 0.0, %v2888
      %v2890 = vpop.f32.mrb[0].mxu0
      %2891 = vmatprep.mubr.bf16.mxu0 0
      %2892 = vmatmul.mubr.bf16.gmra.mrb[0].mxu0 %v2724
      %v2893 = vpop.f32.mrb[0].mxu0
      %v2894 = vadd.f32 0.0, %v2893
      %v2895 = vpop.f32.mrb[0].mxu0
      %v2896 = vpop.f32.mrb[0].mxu0
      %v2897 = vadd.f32 0.0, %v2896
      %v2898 = vpop.f32.mrb[0].mxu0
      %2899 = vmatprep.mubr.bf16.mxu0 0
      %2900 = vmatmul.mubr.bf16.gmra.mrb[0].mxu0 %v2727
      %v2901 = vpop.f32.mrb[0].mxu0
      %v2902 = vadd.f32 0.0, %v2901
      %v2903 = vpop.f32.mrb[0].mxu0
      %v2904 = vpop.f32.mrb[0].mxu0
      %v2905 = vadd.f32 0.0, %v2904
      %v2906 = vpop.f32.mrb[0].mxu0
      %2907 = vmatprep.mubr.bf16.mxu0 0
      %2908 = vmatmul.mubr.bf16.gmra.mrb[0].mxu0 %v2730
      %v2909 = vpop.f32.mrb[0].mxu0
      %v2910 = vadd.f32 0.0, %v2909
      %v2911 = vpop.f32.mrb[0].mxu0
      %v2912 = vpop.f32.mrb[0].mxu0
      %v2913 = vadd.f32 0.0, %v2912
      %v2914 = vpop.f32.mrb[0].mxu0
      %2915 = vmatprep.mubr.bf16.mxu0 0
      %2916 = vmatmul.mubr.bf16.gmra.mrb[0].mxu0 %v2733
      %v2917 = vpop.f32.mrb[0].mxu0
      %v2918 = vadd.f32 0.0, %v2917
      %v2919 = vpop.f32.mrb[0].mxu0
      %v2920 = vpop.f32.mrb[0].mxu0
      %v2921 = vadd.f32 0.0, %v2920
      %v2922 = vpop.f32.mrb[0].mxu0
      %2923 = vmatprep.mubr.bf16.mxu0 0
      %2924 = vmatmul.mubr.bf16.gmra.mrb[0].mxu0 %v2736
      %v2925 = vpop.f32.mrb[0].mxu0
      %v2926 = vadd.f32 0.0, %v2925
      %v2927 = vpop.f32.mrb[0].mxu0
      %v2928 = vpop.f32.mrb[0].mxu0
      %v2929 = vadd.f32 0.0, %v2928
      %v2930 = vpop.f32.mrb[0].mxu0
      %2931 = vmatprep.mubr.bf16.mxu0 0
      %2932 = vmatmul.mubr.bf16.gmra.mrb[0].mxu0 %v2739
      %v2933 = vpop.f32.mrb[0].mxu0
      %v2934 = vadd.f32 0.0, %v2933
      %v2935 = vpop.f32.mrb[0].mxu0
      %v2936 = vpop.f32.mrb[0].mxu0
      %v2937 = vadd.f32 0.0, %v2936
      %v2938 = vpop.f32.mrb[0].mxu0
      %2939 = vmatprep.mubr.bf16.mxu0 0
      %2940 = vmatmul.mubr.bf16.gmra.mrb[0].mxu0 %v2742
      %v2941 = vpop.f32.mrb[0].mxu0
      %v2942 = vadd.f32 0.0, %v2941
      %v2943 = vpop.f32.mrb[0].mxu0
      %v2944 = vpop.f32.mrb[0].mxu0
      %v2945 = vadd.f32 0.0, %v2944
      %v2946 = vpop.f32.mrb[0].mxu0
      %2947 = vmatprep.mubr.bf16.mxu0 0
      %2948 = vmatmul.mubr.bf16.gmra.mrb[0].mxu0 %v2745
      %v2949 = vpop.f32.mrb[0].mxu0
      %v2950 = vadd.f32 0.0, %v2949
      %v2951 = vpop.f32.mrb[0].mxu0
      %v2952 = vpop.f32.mrb[0].mxu0
      %v2953 = vadd.f32 0.0, %v2952
      %v2954 = vpop.f32.mrb[0].mxu0
      %2955 = vmatprep.mubr.bf16.mxu0 0
      %2956 = vmatmul.mubr.bf16.gmra.mrb[0].mxu0 %v2748
      %v2957 = vpop.f32.mrb[0].mxu0
      %v2958 = vadd.f32 0.0, %v2957
      %v2959 = vpop.f32.mrb[0].mxu0
      %v2960 = vpop.f32.mrb[0].mxu0
      %v2961 = vadd.f32 0.0, %v2960
      %v2962 = vpop.f32.mrb[0].mxu0
      %2963 = vmatprep.mubr.bf16.mxu0 0
      %2964 = vmatmul.mubr.bf16.gmra.mrb[0].mxu0 %v2751
      %v2965 = vpop.f32.mrb[0].mxu0
      %v2966 = vadd.f32 0.0, %v2965
      %v2967 = vpop.f32.mrb[0].mxu0
      %v2968 = vpop.f32.mrb[0].mxu0
      %v2969 = vadd.f32 0.0, %v2968
      %v2970 = vpop.f32.mrb[0].mxu0
      %2971 = vmatprep.mubr.bf16.mxu0 0
      %2972 = vmatmul.mubr.bf16.gmra.mrb[0].mxu0 %v2754
      %v2973 = vpop.f32.mrb[0].mxu0
      %v2974 = vadd.f32 0.0, %v2973
      %v2975 = vpop.f32.mrb[0].mxu0
      %v2976 = vpop.f32.mrb[0].mxu0
      %v2977 = vadd.f32 0.0, %v2976
      %v2978 = vpop.f32.mrb[0].mxu0
      %2979 = vmatprep.mubr.bf16.mxu0 0
      %2980 = vmatmul.mubr.bf16.gmra.mrb[0].mxu0 %v2757
      %v2981 = vpop.f32.mrb[0].mxu0
      %v2982 = vadd.f32 0.0, %v2981
      %v2983 = vpop.f32.mrb[0].mxu0
      %v2984 = vpop.f32.mrb[0].mxu0
      %v2985 = vadd.f32 0.0, %v2984
      %v2986 = vpop.f32.mrb[0].mxu0
      %2987 = vmatprep.mubr.bf16.mxu0 0
      %2988 = vmatmul.mubr.bf16.gmra.mrb[0].mxu0 %v2760
      %v2989 = vpop.f32.mrb[0].mxu0
      %v2990 = vadd.f32 0.0, %v2989
      %v2991 = vpop.f32.mrb[0].mxu0
      %v2992 = vpop.f32.mrb[0].mxu0
      %v2993 = vadd.f32 0.0, %v2992
      %v2994 = vpop.f32.mrb[0].mxu0
      %2995 = vmatprep.mubr.bf16.mxu0 0
      %2996 = vmatmul.mubr.bf16.gmra.mrb[0].mxu0 %v2763
      %v2997 = vpop.f32.mrb[0].mxu0
      %v2998 = vadd.f32 0.0, %v2997
      %v2999 = vpop.f32.mrb[0].mxu0
      %v3000 = vpop.f32.mrb[0].mxu0
      %v3001 = vadd.f32 0.0, %v3000
      %v3002 = vpop.f32.mrb[0].mxu0
      %3003 = vmatprep.mubr.bf16.mxu0 0
      %3004 = vmatmul.mubr.bf16.gmra.mrb[0].mxu0 %v2766
      %v3005 = vpop.f32.mrb[0].mxu0
      %v3006 = vadd.f32 0.0, %v3005
      %v3007 = vpop.f32.mrb[0].mxu0
      %v3008 = vpop.f32.mrb[0].mxu0
      %v3009 = vadd.f32 0.0, %v3008
      %v3010 = vpop.f32.mrb[0].mxu0
      %3011 = vmatprep.mubr.bf16.mxu0 0
      %3012 = vmatmul.mubr.bf16.gmra.mrb[0].mxu0 %v2769
      %v3013 = vpop.f32.mrb[0].mxu0
      %v3014 = vadd.f32 0.0, %v3013
      %v3015 = vpop.f32.mrb[0].mxu0
      %v3016 = vpop.f32.mrb[0].mxu0
      %v3017 = vadd.f32 0.0, %v3016
      %v3018 = vpop.f32.mrb[0].mxu0
      %3019 = vmatprep.mubr.bf16.mxu0 0
      %3020 = vmatmul.mubr.bf16.gmra.mrb[0].mxu0 %v2772
      %v3021 = vpop.f32.mrb[0].mxu0
      %v3022 = vadd.f32 0.0, %v3021
      %v3023 = vpop.f32.mrb[0].mxu0
      %v3024 = vpop.f32.mrb[0].mxu0
      %v3025 = vadd.f32 0.0, %v3024
      %v3026 = vpop.f32.mrb[0].mxu0
      %3027 = vmatprep.mubr.bf16.mxu0 0
      %3028 = vmatmul.mubr.bf16.gmra.mrb[0].mxu0 %v2775
      %v3029 = vpop.f32.mrb[0].mxu0
      %v3030 = vadd.f32 0.0, %v3029
      %v3031 = vpop.f32.mrb[0].mxu0
      %v3032 = vpop.f32.mrb[0].mxu0
      %v3033 = vadd.f32 0.0, %v3032
      %v3034 = vpop.f32.mrb[0].mxu0
      %3035 = vmatprep.mubr.bf16.mxu0 0
      %3036 = vmatmul.mubr.bf16.gmra.mrb[0].mxu0 %v2778
      %v3037 = vpop.f32.mrb[0].mxu0
      %v3038 = vadd.f32 0.0, %v3037
      %v3039 = vpop.f32.mrb[0].mxu0
      %v3040 = vpop.f32.mrb[0].mxu0
      %v3041 = vadd.f32 0.0, %v3040
      %v3042 = vpop.f32.mrb[0].mxu0
      %3043 = vmatprep.mubr.bf16.mxu0 0
      %3044 = vmatmul.mubr.bf16.gmra.mrb[0].mxu0 %v2781
      %v3045 = vpop.f32.mrb[0].mxu0
      %v3046 = vadd.f32 0.0, %v3045
      %v3047 = vpop.f32.mrb[0].mxu0
      %v3048 = vpop.f32.mrb[0].mxu0
      %v3049 = vadd.f32 0.0, %v3048
      %v3050 = vpop.f32.mrb[0].mxu0
      %3051 = vmatprep.mubr.bf16.mxu0 0
      %3052 = vmatmul.mubr.bf16.gmra.mrb[0].mxu0 %v2784
      %v3053 = vpop.f32.mrb[0].mxu0
      %v3054 = vadd.f32 0.0, %v3053
      %v3055 = vpop.f32.mrb[0].mxu0
      %v3056 = vpop.f32.mrb[0].mxu0
      %v3057 = vadd.f32 0.0, %v3056
      %v3058 = vpop.f32.mrb[0].mxu0
      %3059 = vmatprep.mubr.bf16.mxu0 0
      %3060 = vmatmul.mubr.bf16.gmra.mrb[0].mxu0 %v2787
      %v3061 = vpop.f32.mrb[0].mxu0
      %v3062 = vadd.f32 0.0, %v3061
      %v3063 = vpop.f32.mrb[0].mxu0
      %v3064 = vpop.f32.mrb[0].mxu0
      %v3065 = vadd.f32 0.0, %v3064
      %v3066 = vpop.f32.mrb[0].mxu0
      %3067 = vmatprep.mubr.bf16.mxu0 0
      %3068 = vmatmul.mubr.bf16.gmra.mrb[0].mxu0 %v2790
      %v3069 = vpop.f32.mrb[0].mxu0
      %v3070 = vadd.f32 0.0, %v3069
      %v3071 = vpop.f32.mrb[0].mxu0
      %v3072 = vpop.f32.mrb[0].mxu0
      %v3073 = vadd.f32 0.0, %v3072
      %v3074 = vpop.f32.mrb[0].mxu0
      %3075 = vmatprep.mubr.bf16.mxu0 0
      %3076 = vmatmul.mubr.bf16.gmra.mrb[0].mxu0 %v2793
      %v3077 = vpop.f32.mrb[0].mxu0
      %v3078 = vadd.f32 0.0, %v3077
      %v3079 = vpop.f32.mrb[0].mxu0
      %v3080 = vpop.f32.mrb[0].mxu0
      %v3081 = vadd.f32 0.0, %v3080
      %v3082 = vpop.f32.mrb[0].mxu0
      %3083 = vmatprep.mubr.bf16.mxu0 0
      %3084 = vmatmul.mubr.bf16.gmra.mrb[0].mxu0 %v2796
      %v3085 = vpop.f32.mrb[0].mxu0
      %v3086 = vadd.f32 0.0, %v3085
      %v3087 = vpop.f32.mrb[0].mxu0
      %v3088 = vpop.f32.mrb[0].mxu0
      %v3089 = vadd.f32 0.0, %v3088
      %v3090 = vpop.f32.mrb[0].mxu0
      %3091 = vmatprep.mubr.bf16.mxu0 0
      %3092 = vmatmul.mubr.bf16.gmra.mrb[0].mxu0 %v2799
      %v3093 = vpop.f32.mrb[0].mxu0
      %v3094 = vadd.f32 0.0, %v3093
      %v3095 = vpop.f32.mrb[0].mxu0
      %v3096 = vpop.f32.mrb[0].mxu0
      %v3097 = vadd.f32 0.0, %v3096
      %v3098 = vpop.f32.mrb[0].mxu0
      %3099 = vmatprep.mubr.bf16.mxu0 0
      %3100 = vmatmul.mubr.bf16.gmra.mrb[0].mxu0 %v2802
      %v3101 = vpop.f32.mrb[0].mxu0
      %v3102 = vadd.f32 0.0, %v3101
      %v3103 = vpop.f32.mrb[0].mxu0
      %v3104 = vpop.f32.mrb[0].mxu0
      %v3105 = vadd.f32 0.0, %v3104
      %v3106 = vpop.f32.mrb[0].mxu0
      %3107 = vmatprep.mubr.bf16.mxu0 0
      %3108 = vmatmul.mubr.bf16.gmra.mrb[0].mxu0 %v2805
      %v3109 = vpop.f32.mrb[0].mxu0
      %v3110 = vadd.f32 0.0, %v3109
      %v3111 = vpop.f32.mrb[0].mxu0
      %v3112 = vpop.f32.mrb[0].mxu0
      %v3113 = vadd.f32 0.0, %v3112
      %v3114 = vpop.f32.mrb[0].mxu0
      %3115 = vmatprep.mubr.bf16.mxu0 0
      %3116 = vmatmul.mubr.bf16.gmra.mrb[0].mxu0 %v2808
      %v3117 = vpop.f32.mrb[0].mxu0
      %v3118 = vadd.f32 0.0, %v3117
      %v3119 = vpop.f32.mrb[0].mxu0
      %v3120 = vpop.f32.mrb[0].mxu0
      %v3121 = vadd.f32 0.0, %v3120
      %v3122 = vpop.f32.mrb[0].mxu0
      %3123 = vmatprep.mubr.bf16.mxu0 0
      %3124 = vmatmul.mubr.bf16.gmra.mrb[0].mxu0 %v2811
      %v3125 = vpop.f32.mrb[0].mxu0
      %v3126 = vadd.f32 0.0, %v3125
      %v3127 = vpop.f32.mrb[0].mxu0
      %v3128 = vpop.f32.mrb[0].mxu0
      %v3129 = vadd.f32 0.0, %v3128
      %v3130 = vpop.f32.mrb[0].mxu0
      %3131 = vmatprep.mubr.bf16.mxu0 0
      %3132 = vmatmul.mubr.bf16.gmra.mrb[0].mxu0 %v2814
      %v3133 = vpop.f32.mrb[0].mxu0
      %v3134 = vadd.f32 0.0, %v3133
      %v3135 = vpop.f32.mrb[0].mxu0
      %v3136 = vpop.f32.mrb[0].mxu0
      %v3137 = vadd.f32 0.0, %v3136
      %v3138 = vpop.f32.mrb[0].mxu0
      %3139 = vdwg.mxu0
      %v3140 = vadd.f32 %v2021, %v2854
      %v3141 = vadd.f32 %v2024, %v2857
      %v3142 = vadd.f32 %v2029, %v2862
      %v3143 = vadd.f32 %v2032, %v2865
      %v3144 = vadd.f32 %v2037, %v2870
      %v3145 = vadd.f32 %v2040, %v2873
      %v3146 = vadd.f32 %v2045, %v2878
      %v3147 = vadd.f32 %v2048, %v2881
      %v3148 = vadd.f32 %v2053, %v2886
      %v3149 = vadd.f32 %v2056, %v2889
      %v3150 = vadd.f32 %v2061, %v2894
      %v3151 = vadd.f32 %v2064, %v2897
      %v3152 = vadd.f32 %v2069, %v2902
      %v3153 = vadd.f32 %v2072, %v2905
      %v3154 = vadd.f32 %v2077, %v2910
      %v3155 = vadd.f32 %v2080, %v2913
      %v3156 = vadd.f32 %v2085, %v2918
      %v3157 = vadd.f32 %v2088, %v2921
      %v3158 = vadd.f32 %v2093, %v2926
      %v3159 = vadd.f32 %v2096, %v2929
      %v3160 = vadd.f32 %v2101, %v2934
      %v3161 = vadd.f32 %v2104, %v2937
      %v3162 = vadd.f32 %v2109, %v2942
      %v3163 = vadd.f32 %v2112, %v2945
      %v3164 = vadd.f32 %v2117, %v2950
      %v3165 = vadd.f32 %v2120, %v2953
      %v3166 = vadd.f32 %v2125, %v2958
      %v3167 = vadd.f32 %v2128, %v2961
      %v3168 = vadd.f32 %v2133, %v2966
      %v3169 = vadd.f32 %v2136, %v2969
      %v3170 = vadd.f32 %v2141, %v2974
      %v3171 = vadd.f32 %v2144, %v2977
      %v3172 = vadd.f32 %v2149, %v2982
      %v3173 = vadd.f32 %v2152, %v2985
      %v3174 = vadd.f32 %v2157, %v2990
      %v3175 = vadd.f32 %v2160, %v2993
      %v3176 = vadd.f32 %v2165, %v2998
      %v3177 = vadd.f32 %v2168, %v3001
      %v3178 = vadd.f32 %v2173, %v3006
      %v3179 = vadd.f32 %v2176, %v3009
      %v3180 = vadd.f32 %v2181, %v3014
      %v3181 = vadd.f32 %v2184, %v3017
      %v3182 = vadd.f32 %v2189, %v3022
      %v3183 = vadd.f32 %v2192, %v3025
      %v3184 = vadd.f32 %v2197, %v3030
      %v3185 = vadd.f32 %v2200, %v3033
      %v3186 = vadd.f32 %v2205, %v3038
      %v3187 = vadd.f32 %v2208, %v3041
      %v3188 = vadd.f32 %v2213, %v3046
      %v3189 = vadd.f32 %v2216, %v3049
      %v3190 = vadd.f32 %v2221, %v3054
      %v3191 = vadd.f32 %v2224, %v3057
      %v3192 = vadd.f32 %v2229, %v3062
      %v3193 = vadd.f32 %v2232, %v3065
      %v3194 = vadd.f32 %v2237, %v3070
      %v3195 = vadd.f32 %v2240, %v3073
      %v3196 = vadd.f32 %v2245, %v3078
      %v3197 = vadd.f32 %v2248, %v3081
      %v3198 = vadd.f32 %v2253, %v3086
      %v3199 = vadd.f32 %v2256, %v3089
      %v3200 = vadd.f32 %v2261, %v3094
      %v3201 = vadd.f32 %v2264, %v3097
      %v3202 = vadd.f32 %v2269, %v3102
      %v3203 = vadd.f32 %v2272, %v3105
      %v3204 = vadd.f32 %v2277, %v3110
      %v3205 = vadd.f32 %v2280, %v3113
      %v3206 = vadd.f32 %v2285, %v3118
      %v3207 = vadd.f32 %v2288, %v3121
      %v3208 = vadd.f32 %v2293, %v3126
      %v3209 = vadd.f32 %v2296, %v3129
      %v3210 = vadd.f32 %v2301, %v3134
      %v3211 = vadd.f32 %v2304, %v3137
      %s3212 = scalar_lea.vmem %s252, 20
      %v3213 = vld [vmem:[%s3212] sm:$0xf]
      %v3214 = vld [vmem:[%s3212 + $0x4] sm:$0xf]
      %v3215 = vld [vmem:[%s3212 + $0x8] sm:$0xf]
      %v3216 = vld [vmem:[%s3212 + $0xc] sm:$0xf]
      %v3217 = vld [vmem:[%s3212 + $0x14] sm:$0xf]
      %v3218 = vld [vmem:[%s3212 + $0x18] sm:$0xf]
      %v3219 = vld [vmem:[%s3212 + $0x1c] sm:$0xf]
      %v3220 = vld [vmem:[%s3212 + $0x20] sm:$0xf]
      %v3221 = vld [vmem:[%s3212 + $0x28] sm:$0xf]
      %v3222 = vld [vmem:[%s3212 + $0x2c] sm:$0xf]
      %v3223 = vld [vmem:[%s3212 + $0x30] sm:$0xf]
      %v3224 = vld [vmem:[%s3212 + $0x34] sm:$0xf]
      %v3225 = vld [vmem:[%s3212 + $0x3c] sm:$0xf]
      %v3226 = vld [vmem:[%s3212 + $0x40] sm:$0xf]
      %v3227 = vld [vmem:[%s3212 + $0x44] sm:$0xf]
      %v3228 = vld [vmem:[%s3212 + $0x48] sm:$0xf]
      %v3229 = vld [vmem:[%s3212 + $0x50] sm:$0xf]
      %v3230 = vld [vmem:[%s3212 + $0x54] sm:$0xf]
      %v3231 = vld [vmem:[%s3212 + $0x58] sm:$0xf]
      %v3232 = vld [vmem:[%s3212 + $0x5c] sm:$0xf]
      %v3233 = vld [vmem:[%s3212 + $0x64] sm:$0xf]
      %v3234 = vld [vmem:[%s3212 + $0x68] sm:$0xf]
      %v3235 = vld [vmem:[%s3212 + $0x6c] sm:$0xf]
      %v3236 = vld [vmem:[%s3212 + $0x70] sm:$0xf]
      %v3237 = vld [vmem:[%s3212 + $0x78] sm:$0xf]
      %v3238 = vld [vmem:[%s3212 + $0x7c] sm:$0xf]
      %v3239 = vld [vmem:[%s3212 + $0x80] sm:$0xf]
      %v3240 = vld [vmem:[%s3212 + $0x84] sm:$0xf]
      %v3241 = vld [vmem:[%s3212 + $0x8c] sm:$0xf]
      %v3242 = vld [vmem:[%s3212 + $0x90] sm:$0xf]
      %v3243 = vld [vmem:[%s3212 + $0x94] sm:$0xf]
      %v3244 = vld [vmem:[%s3212 + $0x98] sm:$0xf]
      %v3245 = vld [vmem:[%s3212 + $0xa0] sm:$0xf]
      %v3246 = vld [vmem:[%s3212 + $0xa4] sm:$0xf]
      %v3247 = vld [vmem:[%s3212 + $0xa8] sm:$0xf]
      %v3248 = vld [vmem:[%s3212 + $0xac] sm:$0xf]
      %v3249 = vld [vmem:[%s3212 + $0xb4] sm:$0xf]
      %v3250 = vld [vmem:[%s3212 + $0xb8] sm:$0xf]
      %v3251 = vld [vmem:[%s3212 + $0xbc] sm:$0xf]
      %v3252 = vld [vmem:[%s3212 + $0xc0] sm:$0xf]
      %v3253 = vld [vmem:[%s3212 + $0xc8] sm:$0xf]
      %v3254 = vld [vmem:[%s3212 + $0xcc] sm:$0xf]
      %v3255 = vld [vmem:[%s3212 + $0xd0] sm:$0xf]
      %v3256 = vld [vmem:[%s3212 + $0xd4] sm:$0xf]
      %v3257 = vld [vmem:[%s3212 + $0xdc] sm:$0xf]
      %v3258 = vld [vmem:[%s3212 + $0xe0] sm:$0xf]
      %v3259 = vld [vmem:[%s3212 + $0xe4] sm:$0xf]
      %v3260 = vld [vmem:[%s3212 + $0xe8] sm:$0xf]
      %v3261 = vld [vmem:[%s3212 + $0xf0] sm:$0xf]
      %v3262 = vld [vmem:[%s3212 + $0xf4] sm:$0xf]
      %v3263 = vld [vmem:[%s3212 + $0xf8] sm:$0xf]
      %v3264 = vld [vmem:[%s3212 + $0xfc] sm:$0xf]
      %v3265 = vld [vmem:[%s3212 + $0x104] sm:$0xf]
      %v3266 = vld [vmem:[%s3212 + $0x108] sm:$0xf]
      %v3267 = vld [vmem:[%s3212 + $0x10c] sm:$0xf]
      %v3268 = vld [vmem:[%s3212 + $0x110] sm:$0xf]
      %v3269 = vld [vmem:[%s3212 + $0x118] sm:$0xf]
      %v3270 = vld [vmem:[%s3212 + $0x11c] sm:$0xf]
      %v3271 = vld [vmem:[%s3212 + $0x120] sm:$0xf]
      %v3272 = vld [vmem:[%s3212 + $0x124] sm:$0xf]
      %v3273 = vld [vmem:[%s3212 + $0x12c] sm:$0xf]
      %v3274 = vld [vmem:[%s3212 + $0x130] sm:$0xf]
      %v3275 = vld [vmem:[%s3212 + $0x134] sm:$0xf]
      %v3276 = vld [vmem:[%s3212 + $0x138] sm:$0xf]
      %v3277 = vld [vmem:[%s3212 + $0x140] sm:$0xf]
      %v3278 = vld [vmem:[%s3212 + $0x144] sm:$0xf]
      %v3279 = vld [vmem:[%s3212 + $0x148] sm:$0xf]
      %v3280 = vld [vmem:[%s3212 + $0x14c] sm:$0xf]
      %v3281 = vld [vmem:[%s3212 + $0x154] sm:$0xf]
      %v3282 = vld [vmem:[%s3212 + $0x158] sm:$0xf]
      %v3283 = vld [vmem:[%s3212 + $0x15c] sm:$0xf]
      %v3284 = vld [vmem:[%s3212 + $0x160] sm:$0xf]
      %s3285 = scalar_lea.vmem %s1, 6
      %v3286 = vld [vmem:[%s3285] sm:$0x3]
      %v3359 = vunpack.c.l.b16 %v3213
      %v3360 = vunpack.c.l.b16 %v3214
      %v3361 = vunpack.c.l.b16 %v3215
      %v3362 = vunpack.c.l.b16 %v3216
      %v3363 = vunpack.c.l.b16 %v3217
      %v3364 = vunpack.c.l.b16 %v3218
      %v3365 = vunpack.c.l.b16 %v3219
      %v3366 = vunpack.c.l.b16 %v3220
      %v3367 = vunpack.c.l.b16 %v3221
      %v3368 = vunpack.c.l.b16 %v3222
      %v3369 = vunpack.c.l.b16 %v3223
      %v3370 = vunpack.c.l.b16 %v3224
      %v3371 = vunpack.c.l.b16 %v3225
      %v3372 = vunpack.c.l.b16 %v3226
      %v3373 = vunpack.c.l.b16 %v3227
      %v3374 = vunpack.c.l.b16 %v3228
      %v3375 = vunpack.c.l.b16 %v3229
      %v3376 = vunpack.c.l.b16 %v3230
      %v3377 = vunpack.c.l.b16 %v3231
      %v3378 = vunpack.c.l.b16 %v3232
      %v3379 = vunpack.c.l.b16 %v3233
      %v3380 = vunpack.c.l.b16 %v3234
      %v3381 = vunpack.c.l.b16 %v3235
      %v3382 = vunpack.c.l.b16 %v3236
      %v3383 = vunpack.c.l.b16 %v3237
      %v3384 = vunpack.c.l.b16 %v3238
      %v3385 = vunpack.c.l.b16 %v3239
      %v3386 = vunpack.c.l.b16 %v3240
      %v3387 = vunpack.c.l.b16 %v3241
      %v3388 = vunpack.c.l.b16 %v3242
      %v3389 = vunpack.c.l.b16 %v3243
      %v3390 = vunpack.c.l.b16 %v3244
      %v3391 = vunpack.c.l.b16 %v3245
      %v3392 = vunpack.c.l.b16 %v3246
      %v3393 = vunpack.c.l.b16 %v3247
      %v3394 = vunpack.c.l.b16 %v3248
      %v3395 = vunpack.c.l.b16 %v3249
      %v3396 = vunpack.c.l.b16 %v3250
      %v3397 = vunpack.c.l.b16 %v3251
      %v3398 = vunpack.c.l.b16 %v3252
      %v3399 = vunpack.c.l.b16 %v3253
      %v3400 = vunpack.c.l.b16 %v3254
      %v3401 = vunpack.c.l.b16 %v3255
      %v3402 = vunpack.c.l.b16 %v3256
      %v3403 = vunpack.c.l.b16 %v3257
      %v3404 = vunpack.c.l.b16 %v3258
      %v3405 = vunpack.c.l.b16 %v3259
      %v3406 = vunpack.c.l.b16 %v3260
      %v3407 = vunpack.c.l.b16 %v3261
      %v3408 = vunpack.c.l.b16 %v3262
      %v3409 = vunpack.c.l.b16 %v3263
      %v3410 = vunpack.c.l.b16 %v3264
      %v3411 = vunpack.c.l.b16 %v3265
      %v3412 = vunpack.c.l.b16 %v3266
      %v3413 = vunpack.c.l.b16 %v3267
      %v3414 = vunpack.c.l.b16 %v3268
      %v3415 = vunpack.c.l.b16 %v3269
      %v3416 = vunpack.c.l.b16 %v3270
      %v3417 = vunpack.c.l.b16 %v3271
      %v3418 = vunpack.c.l.b16 %v3272
      %v3419 = vunpack.c.l.b16 %v3273
      %v3420 = vunpack.c.l.b16 %v3274
      %v3421 = vunpack.c.l.b16 %v3275
      %v3422 = vunpack.c.l.b16 %v3276
      %v3423 = vunpack.c.l.b16 %v3277
      %v3424 = vunpack.c.l.b16 %v3278
      %v3425 = vunpack.c.l.b16 %v3279
      %v3426 = vunpack.c.l.b16 %v3280
      %v3427 = vunpack.c.l.b16 %v3281
      %v3428 = vunpack.c.l.b16 %v3282
      %v3429 = vunpack.c.l.b16 %v3283
      %v3430 = vunpack.c.l.b16 %v3284
      %v3431 = vpack.c.b16 %v3360, %v3359
      %v3432 = vpack.c.b16 %v3362, %v3361
      %v3433 = vpack.c.b16 %v3364, %v3363
      %v3434 = vpack.c.b16 %v3366, %v3365
      %v3435 = vpack.c.b16 %v3368, %v3367
      %v3436 = vpack.c.b16 %v3370, %v3369
      %v3437 = vpack.c.b16 %v3372, %v3371
      %v3438 = vpack.c.b16 %v3374, %v3373
      %v3439 = vpack.c.b16 %v3376, %v3375
      %v3440 = vpack.c.b16 %v3378, %v3377
      %v3441 = vpack.c.b16 %v3380, %v3379
      %v3442 = vpack.c.b16 %v3382, %v3381
      %v3443 = vpack.c.b16 %v3384, %v3383
      %v3444 = vpack.c.b16 %v3386, %v3385
      %v3445 = vpack.c.b16 %v3388, %v3387
      %v3446 = vpack.c.b16 %v3390, %v3389
      %v3447 = vpack.c.b16 %v3392, %v3391
      %v3448 = vpack.c.b16 %v3394, %v3393
      %v3449 = vpack.c.b16 %v3396, %v3395
      %v3450 = vpack.c.b16 %v3398, %v3397
      %v3451 = vpack.c.b16 %v3400, %v3399
      %v3452 = vpack.c.b16 %v3402, %v3401
      %v3453 = vpack.c.b16 %v3404, %v3403
      %v3454 = vpack.c.b16 %v3406, %v3405
      %v3455 = vpack.c.b16 %v3408, %v3407
      %v3456 = vpack.c.b16 %v3410, %v3409
      %v3457 = vpack.c.b16 %v3412, %v3411
      %v3458 = vpack.c.b16 %v3414, %v3413
      %v3459 = vpack.c.b16 %v3416, %v3415
      %v3460 = vpack.c.b16 %v3418, %v3417
      %v3461 = vpack.c.b16 %v3420, %v3419
      %v3462 = vpack.c.b16 %v3422, %v3421
      %v3463 = vpack.c.b16 %v3424, %v3423
      %v3464 = vpack.c.b16 %v3426, %v3425
      %v3465 = vpack.c.b16 %v3428, %v3427
      %v3466 = vpack.c.b16 %v3430, %v3429
      %v3468 = vsel %vm1261, %v3431, 0
      %v3471 = vsel %vm1261, %v3432, 0
      %v3474 = vsel %vm1261, %v3433, 0
      %v3477 = vsel %vm1261, %v3434, 0
      %v3480 = vsel %vm1261, %v3435, 0
      %v3483 = vsel %vm1261, %v3436, 0
      %v3486 = vsel %vm1261, %v3437, 0
      %v3489 = vsel %vm1261, %v3438, 0
      %v3492 = vsel %vm1261, %v3439, 0
      %v3495 = vsel %vm1261, %v3440, 0
      %v3498 = vsel %vm1261, %v3441, 0
      %v3501 = vsel %vm1261, %v3442, 0
      %v3504 = vsel %vm1261, %v3443, 0
      %v3507 = vsel %vm1261, %v3444, 0
      %v3510 = vsel %vm1261, %v3445, 0
      %v3513 = vsel %vm1261, %v3446, 0
      %v3516 = vsel %vm1261, %v3447, 0
      %v3519 = vsel %vm1261, %v3448, 0
      %v3522 = vsel %vm1261, %v3449, 0
      %v3525 = vsel %vm1261, %v3450, 0
      %v3528 = vsel %vm1261, %v3451, 0
      %v3531 = vsel %vm1261, %v3452, 0
      %v3534 = vsel %vm1261, %v3453, 0
      %v3537 = vsel %vm1261, %v3454, 0
      %v3540 = vsel %vm1261, %v3455, 0
      %v3543 = vsel %vm1261, %v3456, 0
      %v3546 = vsel %vm1261, %v3457, 0
      %v3549 = vsel %vm1261, %v3458, 0
      %v3552 = vsel %vm1261, %v3459, 0
      %v3555 = vsel %vm1261, %v3460, 0
      %v3558 = vsel %vm1261, %v3461, 0
      %v3561 = vsel %vm1261, %v3462, 0
      %v3564 = vsel %vm1261, %v3463, 0
      %v3567 = vsel %vm1261, %v3464, 0
      %v3570 = vsel %vm1261, %v3465, 0
      %v3573 = vsel %vm1261, %v3466, 0
      %v3576 = vsel %vm1370, %v3286, 0
      %3578 = vmatprep.subr.bf16.mxu0 0
      %3579 = vmatpush1.bf16.msra.mxu0 %v3576
      %3580 = vmatprep.subr.bf16.mxu0 0
      %3581 = vmatpush1.bf16.msra.mxu0 0
      %3582 = vmatprep.subr.bf16.mxu0 0
      %3583 = vmatpush1.bf16.msra.mxu0 0
      %3584 = vmatprep.subr.bf16.mxu0 0
      %3585 = vmatpush1.bf16.msra.mxu0 0
      %3586 = vmatprep.subr.bf16.mxu0 0
      %3587 = vmatpush1.bf16.msra.mxu0 0
      %3588 = vmatprep.subr.bf16.mxu0 0
      %3589 = vmatpush1.bf16.msra.mxu0 0
      %3590 = vmatprep.subr.bf16.mxu0 0
      %3591 = vmatpush1.bf16.msra.mxu0 0
      %3592 = vmatprep.subr.bf16.mxu0 0
      %3593 = vmatpush1.bf16.msra.mxu0 0
      %3594 = vmatprep.subr.bf16.mxu0 0
      %3595 = vmatpush1.bf16.msra.mxu0 0
      %3596 = vmatprep.subr.bf16.mxu0 0
      %3597 = vmatpush1.bf16.msra.mxu0 0
      %3598 = vmatprep.subr.bf16.mxu0 0
      %3599 = vmatpush1.bf16.msra.mxu0 0
      %3600 = vmatprep.subr.bf16.mxu0 0
      %3601 = vmatpush1.bf16.msra.mxu0 0
      %3602 = vmatprep.subr.bf16.mxu0 0
      %3603 = vmatpush1.bf16.msra.mxu0 0
      %3604 = vmatprep.subr.bf16.mxu0 0
      %3605 = vmatpush1.bf16.msra.mxu0 0
      %3606 = vmatprep.subr.bf16.mxu0 0
      %3607 = vmatpush1.bf16.msra.mxu0 0
      %3608 = vmatprep.subr.bf16.mxu0 0
      %3609 = vmatpush1.bf16.msra.mxu0 0
      %3610 = vmatprep.mubr.bf16.mxu0 0
      %3611 = vmatmul.mubr.bf16.gmra.mrb[0].mxu0 %v3468
      %v3612 = vpop.f32.mrb[0].mxu0
      %v3613 = vadd.f32 0.0, %v3612
      %v3614 = vpop.f32.mrb[0].mxu0
      %v3615 = vpop.f32.mrb[0].mxu0
      %v3616 = vadd.f32 0.0, %v3615
      %v3617 = vpop.f32.mrb[0].mxu0
      %3618 = vmatprep.mubr.bf16.mxu0 0
      %3619 = vmatmul.mubr.bf16.gmra.mrb[0].mxu0 %v3471
      %v3620 = vpop.f32.mrb[0].mxu0
      %v3621 = vadd.f32 0.0, %v3620
      %v3622 = vpop.f32.mrb[0].mxu0
      %v3623 = vpop.f32.mrb[0].mxu0
      %v3624 = vadd.f32 0.0, %v3623
      %v3625 = vpop.f32.mrb[0].mxu0
      %3626 = vmatprep.mubr.bf16.mxu0 0
      %3627 = vmatmul.mubr.bf16.gmra.mrb[0].mxu0 %v3474
      %v3628 = vpop.f32.mrb[0].mxu0
      %v3629 = vadd.f32 0.0, %v3628
      %v3630 = vpop.f32.mrb[0].mxu0
      %v3631 = vpop.f32.mrb[0].mxu0
      %v3632 = vadd.f32 0.0, %v3631
      %v3633 = vpop.f32.mrb[0].mxu0
      %3634 = vmatprep.mubr.bf16.mxu0 0
      %3635 = vmatmul.mubr.bf16.gmra.mrb[0].mxu0 %v3477
      %v3636 = vpop.f32.mrb[0].mxu0
      %v3637 = vadd.f32 0.0, %v3636
      %v3638 = vpop.f32.mrb[0].mxu0
      %v3639 = vpop.f32.mrb[0].mxu0
      %v3640 = vadd.f32 0.0, %v3639
      %v3641 = vpop.f32.mrb[0].mxu0
      %3642 = vmatprep.mubr.bf16.mxu0 0
      %3643 = vmatmul.mubr.bf16.gmra.mrb[0].mxu0 %v3480
      %v3644 = vpop.f32.mrb[0].mxu0
      %v3645 = vadd.f32 0.0, %v3644
      %v3646 = vpop.f32.mrb[0].mxu0
      %v3647 = vpop.f32.mrb[0].mxu0
      %v3648 = vadd.f32 0.0, %v3647
      %v3649 = vpop.f32.mrb[0].mxu0
      %3650 = vmatprep.mubr.bf16.mxu0 0
      %3651 = vmatmul.mubr.bf16.gmra.mrb[0].mxu0 %v3483
      %v3652 = vpop.f32.mrb[0].mxu0
      %v3653 = vadd.f32 0.0, %v3652
      %v3654 = vpop.f32.mrb[0].mxu0
      %v3655 = vpop.f32.mrb[0].mxu0
      %v3656 = vadd.f32 0.0, %v3655
      %v3657 = vpop.f32.mrb[0].mxu0
      %3658 = vmatprep.mubr.bf16.mxu0 0
      %3659 = vmatmul.mubr.bf16.gmra.mrb[0].mxu0 %v3486
      %v3660 = vpop.f32.mrb[0].mxu0
      %v3661 = vadd.f32 0.0, %v3660
      %v3662 = vpop.f32.mrb[0].mxu0
      %v3663 = vpop.f32.mrb[0].mxu0
      %v3664 = vadd.f32 0.0, %v3663
      %v3665 = vpop.f32.mrb[0].mxu0
      %3666 = vmatprep.mubr.bf16.mxu0 0
      %3667 = vmatmul.mubr.bf16.gmra.mrb[0].mxu0 %v3489
      %v3668 = vpop.f32.mrb[0].mxu0
      %v3669 = vadd.f32 0.0, %v3668
      %v3670 = vpop.f32.mrb[0].mxu0
      %v3671 = vpop.f32.mrb[0].mxu0
      %v3672 = vadd.f32 0.0, %v3671
      %v3673 = vpop.f32.mrb[0].mxu0
      %3674 = vmatprep.mubr.bf16.mxu0 0
      %3675 = vmatmul.mubr.bf16.gmra.mrb[0].mxu0 %v3492
      %v3676 = vpop.f32.mrb[0].mxu0
      %v3677 = vadd.f32 0.0, %v3676
      %v3678 = vpop.f32.mrb[0].mxu0
      %v3679 = vpop.f32.mrb[0].mxu0
      %v3680 = vadd.f32 0.0, %v3679
      %v3681 = vpop.f32.mrb[0].mxu0
      %3682 = vmatprep.mubr.bf16.mxu0 0
      %3683 = vmatmul.mubr.bf16.gmra.mrb[0].mxu0 %v3495
      %v3684 = vpop.f32.mrb[0].mxu0
      %v3685 = vadd.f32 0.0, %v3684
      %v3686 = vpop.f32.mrb[0].mxu0
      %v3687 = vpop.f32.mrb[0].mxu0
      %v3688 = vadd.f32 0.0, %v3687
      %v3689 = vpop.f32.mrb[0].mxu0
      %3690 = vmatprep.mubr.bf16.mxu0 0
      %3691 = vmatmul.mubr.bf16.gmra.mrb[0].mxu0 %v3498
      %v3692 = vpop.f32.mrb[0].mxu0
      %v3693 = vadd.f32 0.0, %v3692
      %v3694 = vpop.f32.mrb[0].mxu0
      %v3695 = vpop.f32.mrb[0].mxu0
      %v3696 = vadd.f32 0.0, %v3695
      %v3697 = vpop.f32.mrb[0].mxu0
      %3698 = vmatprep.mubr.bf16.mxu0 0
      %3699 = vmatmul.mubr.bf16.gmra.mrb[0].mxu0 %v3501
      %v3700 = vpop.f32.mrb[0].mxu0
      %v3701 = vadd.f32 0.0, %v3700
      %v3702 = vpop.f32.mrb[0].mxu0
      %v3703 = vpop.f32.mrb[0].mxu0
      %v3704 = vadd.f32 0.0, %v3703
      %v3705 = vpop.f32.mrb[0].mxu0
      %3706 = vmatprep.mubr.bf16.mxu0 0
      %3707 = vmatmul.mubr.bf16.gmra.mrb[0].mxu0 %v3504
      %v3708 = vpop.f32.mrb[0].mxu0
      %v3709 = vadd.f32 0.0, %v3708
      %v3710 = vpop.f32.mrb[0].mxu0
      %v3711 = vpop.f32.mrb[0].mxu0
      %v3712 = vadd.f32 0.0, %v3711
      %v3713 = vpop.f32.mrb[0].mxu0
      %3714 = vmatprep.mubr.bf16.mxu0 0
      %3715 = vmatmul.mubr.bf16.gmra.mrb[0].mxu0 %v3507
      %v3716 = vpop.f32.mrb[0].mxu0
      %v3717 = vadd.f32 0.0, %v3716
      %v3718 = vpop.f32.mrb[0].mxu0
      %v3719 = vpop.f32.mrb[0].mxu0
      %v3720 = vadd.f32 0.0, %v3719
      %v3721 = vpop.f32.mrb[0].mxu0
      %3722 = vmatprep.mubr.bf16.mxu0 0
      %3723 = vmatmul.mubr.bf16.gmra.mrb[0].mxu0 %v3510
      %v3724 = vpop.f32.mrb[0].mxu0
      %v3725 = vadd.f32 0.0, %v3724
      %v3726 = vpop.f32.mrb[0].mxu0
      %v3727 = vpop.f32.mrb[0].mxu0
      %v3728 = vadd.f32 0.0, %v3727
      %v3729 = vpop.f32.mrb[0].mxu0
      %3730 = vmatprep.mubr.bf16.mxu0 0
      %3731 = vmatmul.mubr.bf16.gmra.mrb[0].mxu0 %v3513
      %v3732 = vpop.f32.mrb[0].mxu0
      %v3733 = vadd.f32 0.0, %v3732
      %v3734 = vpop.f32.mrb[0].mxu0
      %v3735 = vpop.f32.mrb[0].mxu0
      %v3736 = vadd.f32 0.0, %v3735
      %v3737 = vpop.f32.mrb[0].mxu0
      %3738 = vmatprep.mubr.bf16.mxu0 0
      %3739 = vmatmul.mubr.bf16.gmra.mrb[0].mxu0 %v3516
      %v3740 = vpop.f32.mrb[0].mxu0
      %v3741 = vadd.f32 0.0, %v3740
      %v3742 = vpop.f32.mrb[0].mxu0
      %v3743 = vpop.f32.mrb[0].mxu0
      %v3744 = vadd.f32 0.0, %v3743
      %v3745 = vpop.f32.mrb[0].mxu0
      %3746 = vmatprep.mubr.bf16.mxu0 0
      %3747 = vmatmul.mubr.bf16.gmra.mrb[0].mxu0 %v3519
      %v3748 = vpop.f32.mrb[0].mxu0
      %v3749 = vadd.f32 0.0, %v3748
      %v3750 = vpop.f32.mrb[0].mxu0
      %v3751 = vpop.f32.mrb[0].mxu0
      %v3752 = vadd.f32 0.0, %v3751
      %v3753 = vpop.f32.mrb[0].mxu0
      %3754 = vmatprep.mubr.bf16.mxu0 0
      %3755 = vmatmul.mubr.bf16.gmra.mrb[0].mxu0 %v3522
      %v3756 = vpop.f32.mrb[0].mxu0
      %v3757 = vadd.f32 0.0, %v3756
      %v3758 = vpop.f32.mrb[0].mxu0
      %v3759 = vpop.f32.mrb[0].mxu0
      %v3760 = vadd.f32 0.0, %v3759
      %v3761 = vpop.f32.mrb[0].mxu0
      %3762 = vmatprep.mubr.bf16.mxu0 0
      %3763 = vmatmul.mubr.bf16.gmra.mrb[0].mxu0 %v3525
      %v3764 = vpop.f32.mrb[0].mxu0
      %v3765 = vadd.f32 0.0, %v3764
      %v3766 = vpop.f32.mrb[0].mxu0
      %v3767 = vpop.f32.mrb[0].mxu0
      %v3768 = vadd.f32 0.0, %v3767
      %v3769 = vpop.f32.mrb[0].mxu0
      %3770 = vmatprep.mubr.bf16.mxu0 0
      %3771 = vmatmul.mubr.bf16.gmra.mrb[0].mxu0 %v3528
      %v3772 = vpop.f32.mrb[0].mxu0
      %v3773 = vadd.f32 0.0, %v3772
      %v3774 = vpop.f32.mrb[0].mxu0
      %v3775 = vpop.f32.mrb[0].mxu0
      %v3776 = vadd.f32 0.0, %v3775
      %v3777 = vpop.f32.mrb[0].mxu0
      %3778 = vmatprep.mubr.bf16.mxu0 0
      %3779 = vmatmul.mubr.bf16.gmra.mrb[0].mxu0 %v3531
      %v3780 = vpop.f32.mrb[0].mxu0
      %v3781 = vadd.f32 0.0, %v3780
      %v3782 = vpop.f32.mrb[0].mxu0
      %v3783 = vpop.f32.mrb[0].mxu0
      %v3784 = vadd.f32 0.0, %v3783
      %v3785 = vpop.f32.mrb[0].mxu0
      %3786 = vmatprep.mubr.bf16.mxu0 0
      %3787 = vmatmul.mubr.bf16.gmra.mrb[0].mxu0 %v3534
      %v3788 = vpop.f32.mrb[0].mxu0
      %v3789 = vadd.f32 0.0, %v3788
      %v3790 = vpop.f32.mrb[0].mxu0
      %v3791 = vpop.f32.mrb[0].mxu0
      %v3792 = vadd.f32 0.0, %v3791
      %v3793 = vpop.f32.mrb[0].mxu0
      %3794 = vmatprep.mubr.bf16.mxu0 0
      %3795 = vmatmul.mubr.bf16.gmra.mrb[0].mxu0 %v3537
      %v3796 = vpop.f32.mrb[0].mxu0
      %v3797 = vadd.f32 0.0, %v3796
      %v3798 = vpop.f32.mrb[0].mxu0
      %v3799 = vpop.f32.mrb[0].mxu0
      %v3800 = vadd.f32 0.0, %v3799
      %v3801 = vpop.f32.mrb[0].mxu0
      %3802 = vmatprep.mubr.bf16.mxu0 0
      %3803 = vmatmul.mubr.bf16.gmra.mrb[0].mxu0 %v3540
      %v3804 = vpop.f32.mrb[0].mxu0
      %v3805 = vadd.f32 0.0, %v3804
      %v3806 = vpop.f32.mrb[0].mxu0
      %v3807 = vpop.f32.mrb[0].mxu0
      %v3808 = vadd.f32 0.0, %v3807
      %v3809 = vpop.f32.mrb[0].mxu0
      %3810 = vmatprep.mubr.bf16.mxu0 0
      %3811 = vmatmul.mubr.bf16.gmra.mrb[0].mxu0 %v3543
      %v3812 = vpop.f32.mrb[0].mxu0
      %v3813 = vadd.f32 0.0, %v3812
      %v3814 = vpop.f32.mrb[0].mxu0
      %v3815 = vpop.f32.mrb[0].mxu0
      %v3816 = vadd.f32 0.0, %v3815
      %v3817 = vpop.f32.mrb[0].mxu0
      %3818 = vmatprep.mubr.bf16.mxu0 0
      %3819 = vmatmul.mubr.bf16.gmra.mrb[0].mxu0 %v3546
      %v3820 = vpop.f32.mrb[0].mxu0
      %v3821 = vadd.f32 0.0, %v3820
      %v3822 = vpop.f32.mrb[0].mxu0
      %v3823 = vpop.f32.mrb[0].mxu0
      %v3824 = vadd.f32 0.0, %v3823
      %v3825 = vpop.f32.mrb[0].mxu0
      %3826 = vmatprep.mubr.bf16.mxu0 0
      %3827 = vmatmul.mubr.bf16.gmra.mrb[0].mxu0 %v3549
      %v3828 = vpop.f32.mrb[0].mxu0
      %v3829 = vadd.f32 0.0, %v3828
      %v3830 = vpop.f32.mrb[0].mxu0
      %v3831 = vpop.f32.mrb[0].mxu0
      %v3832 = vadd.f32 0.0, %v3831
      %v3833 = vpop.f32.mrb[0].mxu0
      %3834 = vmatprep.mubr.bf16.mxu0 0
      %3835 = vmatmul.mubr.bf16.gmra.mrb[0].mxu0 %v3552
      %v3836 = vpop.f32.mrb[0].mxu0
      %v3837 = vadd.f32 0.0, %v3836
      %v3838 = vpop.f32.mrb[0].mxu0
      %v3839 = vpop.f32.mrb[0].mxu0
      %v3840 = vadd.f32 0.0, %v3839
      %v3841 = vpop.f32.mrb[0].mxu0
      %3842 = vmatprep.mubr.bf16.mxu0 0
      %3843 = vmatmul.mubr.bf16.gmra.mrb[0].mxu0 %v3555
      %v3844 = vpop.f32.mrb[0].mxu0
      %v3845 = vadd.f32 0.0, %v3844
      %v3846 = vpop.f32.mrb[0].mxu0
      %v3847 = vpop.f32.mrb[0].mxu0
      %v3848 = vadd.f32 0.0, %v3847
      %v3849 = vpop.f32.mrb[0].mxu0
      %3850 = vmatprep.mubr.bf16.mxu0 0
      %3851 = vmatmul.mubr.bf16.gmra.mrb[0].mxu0 %v3558
      %v3852 = vpop.f32.mrb[0].mxu0
      %v3853 = vadd.f32 0.0, %v3852
      %v3854 = vpop.f32.mrb[0].mxu0
      %v3855 = vpop.f32.mrb[0].mxu0
      %v3856 = vadd.f32 0.0, %v3855
      %v3857 = vpop.f32.mrb[0].mxu0
      %3858 = vmatprep.mubr.bf16.mxu0 0
      %3859 = vmatmul.mubr.bf16.gmra.mrb[0].mxu0 %v3561
      %v3860 = vpop.f32.mrb[0].mxu0
      %v3861 = vadd.f32 0.0, %v3860
      %v3862 = vpop.f32.mrb[0].mxu0
      %v3863 = vpop.f32.mrb[0].mxu0
      %v3864 = vadd.f32 0.0, %v3863
      %v3865 = vpop.f32.mrb[0].mxu0
      %3866 = vmatprep.mubr.bf16.mxu0 0
      %3867 = vmatmul.mubr.bf16.gmra.mrb[0].mxu0 %v3564
      %v3868 = vpop.f32.mrb[0].mxu0
      %v3869 = vadd.f32 0.0, %v3868
      %v3870 = vpop.f32.mrb[0].mxu0
      %v3871 = vpop.f32.mrb[0].mxu0
      %v3872 = vadd.f32 0.0, %v3871
      %v3873 = vpop.f32.mrb[0].mxu0
      %3874 = vmatprep.mubr.bf16.mxu0 0
      %3875 = vmatmul.mubr.bf16.gmra.mrb[0].mxu0 %v3567
      %v3876 = vpop.f32.mrb[0].mxu0
      %v3877 = vadd.f32 0.0, %v3876
      %v3878 = vpop.f32.mrb[0].mxu0
      %v3879 = vpop.f32.mrb[0].mxu0
      %v3880 = vadd.f32 0.0, %v3879
      %v3881 = vpop.f32.mrb[0].mxu0
      %3882 = vmatprep.mubr.bf16.mxu0 0
      %3883 = vmatmul.mubr.bf16.gmra.mrb[0].mxu0 %v3570
      %v3884 = vpop.f32.mrb[0].mxu0
      %v3885 = vadd.f32 0.0, %v3884
      %v3886 = vpop.f32.mrb[0].mxu0
      %v3887 = vpop.f32.mrb[0].mxu0
      %v3888 = vadd.f32 0.0, %v3887
      %v3889 = vpop.f32.mrb[0].mxu0
      %3890 = vmatprep.mubr.bf16.mxu0 0
      %3891 = vmatmul.mubr.bf16.gmra.mrb[0].mxu0 %v3573
      %v3892 = vpop.f32.mrb[0].mxu0
      %v3893 = vadd.f32 0.0, %v3892
      %v3894 = vpop.f32.mrb[0].mxu0
      %v3895 = vpop.f32.mrb[0].mxu0
      %v3896 = vadd.f32 0.0, %v3895
      %v3897 = vpop.f32.mrb[0].mxu0
      %3898 = vdwg.mxu0
      %v3899 = vadd.f32 %v3140, %v3613
      %v3900 = vadd.f32 %v3141, %v3616
      %v3901 = vadd.f32 %v3142, %v3621
      %v3902 = vadd.f32 %v3143, %v3624
      %v3903 = vadd.f32 %v3144, %v3629
      %v3904 = vadd.f32 %v3145, %v3632
      %v3905 = vadd.f32 %v3146, %v3637
      %v3906 = vadd.f32 %v3147, %v3640
      %v3907 = vadd.f32 %v3148, %v3645
      %v3908 = vadd.f32 %v3149, %v3648
      %v3909 = vadd.f32 %v3150, %v3653
      %v3910 = vadd.f32 %v3151, %v3656
      %v3911 = vadd.f32 %v3152, %v3661
      %v3912 = vadd.f32 %v3153, %v3664
      %v3913 = vadd.f32 %v3154, %v3669
      %v3914 = vadd.f32 %v3155, %v3672
      %v3915 = vadd.f32 %v3156, %v3677
      %v3916 = vadd.f32 %v3157, %v3680
      %v3917 = vadd.f32 %v3158, %v3685
      %v3918 = vadd.f32 %v3159, %v3688
      %v3919 = vadd.f32 %v3160, %v3693
      %v3920 = vadd.f32 %v3161, %v3696
      %v3921 = vadd.f32 %v3162, %v3701
      %v3922 = vadd.f32 %v3163, %v3704
      %v3923 = vadd.f32 %v3164, %v3709
      %v3924 = vadd.f32 %v3165, %v3712
      %v3925 = vadd.f32 %v3166, %v3717
      %v3926 = vadd.f32 %v3167, %v3720
      %v3927 = vadd.f32 %v3168, %v3725
      %v3928 = vadd.f32 %v3169, %v3728
      %v3929 = vadd.f32 %v3170, %v3733
      %v3930 = vadd.f32 %v3171, %v3736
      %v3931 = vadd.f32 %v3172, %v3741
      %v3932 = vadd.f32 %v3173, %v3744
      %v3933 = vadd.f32 %v3174, %v3749
      %v3934 = vadd.f32 %v3175, %v3752
      %v3935 = vadd.f32 %v3176, %v3757
      %v3936 = vadd.f32 %v3177, %v3760
      %v3937 = vadd.f32 %v3178, %v3765
      %v3938 = vadd.f32 %v3179, %v3768
      %v3939 = vadd.f32 %v3180, %v3773
      %v3940 = vadd.f32 %v3181, %v3776
      %v3941 = vadd.f32 %v3182, %v3781
      %v3942 = vadd.f32 %v3183, %v3784
      %v3943 = vadd.f32 %v3184, %v3789
      %v3944 = vadd.f32 %v3185, %v3792
      %v3945 = vadd.f32 %v3186, %v3797
      %v3946 = vadd.f32 %v3187, %v3800
      %v3947 = vadd.f32 %v3188, %v3805
      %v3948 = vadd.f32 %v3189, %v3808
      %v3949 = vadd.f32 %v3190, %v3813
      %v3950 = vadd.f32 %v3191, %v3816
      %v3951 = vadd.f32 %v3192, %v3821
      %v3952 = vadd.f32 %v3193, %v3824
      %v3953 = vadd.f32 %v3194, %v3829
      %v3954 = vadd.f32 %v3195, %v3832
      %v3955 = vadd.f32 %v3196, %v3837
      %v3956 = vadd.f32 %v3197, %v3840
      %v3957 = vadd.f32 %v3198, %v3845
      %v3958 = vadd.f32 %v3199, %v3848
      %v3959 = vadd.f32 %v3200, %v3853
      %v3960 = vadd.f32 %v3201, %v3856
      %v3961 = vadd.f32 %v3202, %v3861
      %v3962 = vadd.f32 %v3203, %v3864
      %v3963 = vadd.f32 %v3204, %v3869
      %v3964 = vadd.f32 %v3205, %v3872
      %v3965 = vadd.f32 %v3206, %v3877
      %v3966 = vadd.f32 %v3207, %v3880
      %v3967 = vadd.f32 %v3208, %v3885
      %v3968 = vadd.f32 %v3209, %v3888
      %v3969 = vadd.f32 %v3210, %v3893
      %v3970 = vadd.f32 %v3211, %v3896
      %v3971 = vld [vmem:[%s3212] sm:$0xf]
      %v3972 = vld [vmem:[%s3212 + $0x4] sm:$0xf]
      %v3973 = vld [vmem:[%s3212 + $0x8] sm:$0xf]
      %v3974 = vld [vmem:[%s3212 + $0xc] sm:$0xf]
      %v3975 = vld [vmem:[%s3212 + $0x10] sm:$0x1]
      %v3976 = vld [vmem:[%s3212 + $0x14] sm:$0xf]
      %v3977 = vld [vmem:[%s3212 + $0x18] sm:$0xf]
      %v3978 = vld [vmem:[%s3212 + $0x1c] sm:$0xf]
      %v3979 = vld [vmem:[%s3212 + $0x20] sm:$0xf]
      %v3980 = vld [vmem:[%s3212 + $0x24] sm:$0x1]
      %v3981 = vld [vmem:[%s3212 + $0x28] sm:$0xf]
      %v3982 = vld [vmem:[%s3212 + $0x2c] sm:$0xf]
      %v3983 = vld [vmem:[%s3212 + $0x30] sm:$0xf]
      %v3984 = vld [vmem:[%s3212 + $0x34] sm:$0xf]
      %v3985 = vld [vmem:[%s3212 + $0x38] sm:$0x1]
      %v3986 = vld [vmem:[%s3212 + $0x3c] sm:$0xf]
      %v3987 = vld [vmem:[%s3212 + $0x40] sm:$0xf]
      %v3988 = vld [vmem:[%s3212 + $0x44] sm:$0xf]
      %v3989 = vld [vmem:[%s3212 + $0x48] sm:$0xf]
      %v3990 = vld [vmem:[%s3212 + $0x4c] sm:$0x1]
      %v3991 = vld [vmem:[%s3212 + $0x50] sm:$0xf]
      %v3992 = vld [vmem:[%s3212 + $0x54] sm:$0xf]
      %v3993 = vld [vmem:[%s3212 + $0x58] sm:$0xf]
      %v3994 = vld [vmem:[%s3212 + $0x5c] sm:$0xf]
      %v3995 = vld [vmem:[%s3212 + $0x60] sm:$0x1]
      %v3996 = vld [vmem:[%s3212 + $0x64] sm:$0xf]
      %v3997 = vld [vmem:[%s3212 + $0x68] sm:$0xf]
      %v3998 = vld [vmem:[%s3212 + $0x6c] sm:$0xf]
      %v3999 = vld [vmem:[%s3212 + $0x70] sm:$0xf]
      %v4000 = vld [vmem:[%s3212 + $0x74] sm:$0x1]
      %v4001 = vld [vmem:[%s3212 + $0x78] sm:$0xf]
      %v4002 = vld [vmem:[%s3212 + $0x7c] sm:$0xf]
      %v4003 = vld [vmem:[%s3212 + $0x80] sm:$0xf]
      %v4004 = vld [vmem:[%s3212 + $0x84] sm:$0xf]
      %v4005 = vld [vmem:[%s3212 + $0x88] sm:$0x1]
      %v4006 = vld [vmem:[%s3212 + $0x8c] sm:$0xf]
      %v4007 = vld [vmem:[%s3212 + $0x90] sm:$0xf]
      %v4008 = vld [vmem:[%s3212 + $0x94] sm:$0xf]
      %v4009 = vld [vmem:[%s3212 + $0x98] sm:$0xf]
      %v4010 = vld [vmem:[%s3212 + $0x9c] sm:$0x1]
      %v4011 = vld [vmem:[%s3212 + $0xa0] sm:$0xf]
      %v4012 = vld [vmem:[%s3212 + $0xa4] sm:$0xf]
      %v4013 = vld [vmem:[%s3212 + $0xa8] sm:$0xf]
      %v4014 = vld [vmem:[%s3212 + $0xac] sm:$0xf]
      %v4015 = vld [vmem:[%s3212 + $0xb0] sm:$0x1]
      %v4016 = vld [vmem:[%s3212 + $0xb4] sm:$0xf]
      %v4017 = vld [vmem:[%s3212 + $0xb8] sm:$0xf]
      %v4018 = vld [vmem:[%s3212 + $0xbc] sm:$0xf]
      %v4019 = vld [vmem:[%s3212 + $0xc0] sm:$0xf]
      %v4020 = vld [vmem:[%s3212 + $0xc4] sm:$0x1]
      %v4021 = vld [vmem:[%s3212 + $0xc8] sm:$0xf]
      %v4022 = vld [vmem:[%s3212 + $0xcc] sm:$0xf]
      %v4023 = vld [vmem:[%s3212 + $0xd0] sm:$0xf]
      %v4024 = vld [vmem:[%s3212 + $0xd4] sm:$0xf]
      %v4025 = vld [vmem:[%s3212 + $0xd8] sm:$0x1]
      %v4026 = vld [vmem:[%s3212 + $0xdc] sm:$0xf]
      %v4027 = vld [vmem:[%s3212 + $0xe0] sm:$0xf]
      %v4028 = vld [vmem:[%s3212 + $0xe4] sm:$0xf]
      %v4029 = vld [vmem:[%s3212 + $0xe8] sm:$0xf]
      %v4030 = vld [vmem:[%s3212 + $0xec] sm:$0x1]
      %v4031 = vld [vmem:[%s3212 + $0xf0] sm:$0xf]
      %v4032 = vld [vmem:[%s3212 + $0xf4] sm:$0xf]
      %v4033 = vld [vmem:[%s3212 + $0xf8] sm:$0xf]
      %v4034 = vld [vmem:[%s3212 + $0xfc] sm:$0xf]
      %v4035 = vld [vmem:[%s3212 + $0x100] sm:$0x1]
      %v4036 = vld [vmem:[%s3212 + $0x104] sm:$0xf]
      %v4037 = vld [vmem:[%s3212 + $0x108] sm:$0xf]
      %v4038 = vld [vmem:[%s3212 + $0x10c] sm:$0xf]
      %v4039 = vld [vmem:[%s3212 + $0x110] sm:$0xf]
      %v4040 = vld [vmem:[%s3212 + $0x114] sm:$0x1]
      %v4041 = vld [vmem:[%s3212 + $0x118] sm:$0xf]
      %v4042 = vld [vmem:[%s3212 + $0x11c] sm:$0xf]
      %v4043 = vld [vmem:[%s3212 + $0x120] sm:$0xf]
      %v4044 = vld [vmem:[%s3212 + $0x124] sm:$0xf]
      %v4045 = vld [vmem:[%s3212 + $0x128] sm:$0x1]
      %v4046 = vld [vmem:[%s3212 + $0x12c] sm:$0xf]
      %v4047 = vld [vmem:[%s3212 + $0x130] sm:$0xf]
      %v4048 = vld [vmem:[%s3212 + $0x134] sm:$0xf]
      %v4049 = vld [vmem:[%s3212 + $0x138] sm:$0xf]
      %v4050 = vld [vmem:[%s3212 + $0x13c] sm:$0x1]
      %v4051 = vld [vmem:[%s3212 + $0x140] sm:$0xf]
      %v4052 = vld [vmem:[%s3212 + $0x144] sm:$0xf]
      %v4053 = vld [vmem:[%s3212 + $0x148] sm:$0xf]
      %v4054 = vld [vmem:[%s3212 + $0x14c] sm:$0xf]
      %v4055 = vld [vmem:[%s3212 + $0x150] sm:$0x1]
      %v4056 = vld [vmem:[%s3212 + $0x154] sm:$0xf]
      %v4057 = vld [vmem:[%s3212 + $0x158] sm:$0xf]
      %v4058 = vld [vmem:[%s3212 + $0x15c] sm:$0xf]
      %v4059 = vld [vmem:[%s3212 + $0x160] sm:$0xf]
      %v4060 = vld [vmem:[%s3212 + $0x164] sm:$0x1]
      %v4062 = vshrl.u32 %v3971, 16
      %v4064 = vrot.slane %v4062, 4
      %v4065 = vshll.u32 %v3971, 16
      %v4067 = vrot.slane %v4065, 5
      %v4068 = vor.u32 %v4064, %v4067
      %v4069 = vrot.slane %v4068, 4
      %v4071 = vshll.u32 %v3972, 16
      %v4073 = vrot.slane %v4071, 5
      %v4074 = vsel %vm358, %v4069, %v4073
      %v4075 = vshrl.u32 %v3972, 16
      %v4077 = vrot.slane %v4075, 4
      %v4078 = vor.u32 %v4077, %v4073
      %v4079 = vrot.slane %v4078, 4
      %v4081 = vshll.u32 %v3973, 16
      %v4083 = vrot.slane %v4081, 5
      %v4084 = vsel %vm358, %v4079, %v4083
      %v4085 = vshrl.u32 %v3973, 16
      %v4087 = vrot.slane %v4085, 4
      %v4088 = vor.u32 %v4087, %v4083
      %v4089 = vrot.slane %v4088, 4
      %v4091 = vshll.u32 %v3974, 16
      %v4093 = vrot.slane %v4091, 5
      %v4094 = vsel %vm358, %v4089, %v4093
      %v4095 = vshrl.u32 %v3974, 16
      %v4097 = vrot.slane %v4095, 4
      %v4098 = vor.u32 %v4097, %v4093
      %v4099 = vrot.slane %v4098, 4
      %v4101 = vshll.u32 %v3975, 16
      %v4103 = vrot.slane %v4101, 5
      %v4104 = vsel %vm358, %v4099, %v4103
      %v4106 = vshrl.u32 %v3976, 16
      %v4108 = vrot.slane %v4106, 4
      %v4109 = vshll.u32 %v3976, 16
      %v4111 = vrot.slane %v4109, 5
      %v4112 = vor.u32 %v4108, %v4111
      %v4113 = vrot.slane %v4112, 4
      %v4115 = vshll.u32 %v3977, 16
      %v4117 = vrot.slane %v4115, 5
      %v4118 = vsel %vm358, %v4113, %v4117
      %v4119 = vshrl.u32 %v3977, 16
      %v4121 = vrot.slane %v4119, 4
      %v4122 = vor.u32 %v4121, %v4117
      %v4123 = vrot.slane %v4122, 4
      %v4125 = vshll.u32 %v3978, 16
      %v4127 = vrot.slane %v4125, 5
      %v4128 = vsel %vm358, %v4123, %v4127
      %v4129 = vshrl.u32 %v3978, 16
      %v4131 = vrot.slane %v4129, 4
      %v4132 = vor.u32 %v4131, %v4127
      %v4133 = vrot.slane %v4132, 4
      %v4135 = vshll.u32 %v3979, 16
      %v4137 = vrot.slane %v4135, 5
      %v4138 = vsel %vm358, %v4133, %v4137
      %v4139 = vshrl.u32 %v3979, 16
      %v4141 = vrot.slane %v4139, 4
      %v4142 = vor.u32 %v4141, %v4137
      %v4143 = vrot.slane %v4142, 4
      %v4145 = vshll.u32 %v3980, 16
      %v4147 = vrot.slane %v4145, 5
      %v4148 = vsel %vm358, %v4143, %v4147
      %v4150 = vshrl.u32 %v3981, 16
      %v4152 = vrot.slane %v4150, 4
      %v4153 = vshll.u32 %v3981, 16
      %v4155 = vrot.slane %v4153, 5
      %v4156 = vor.u32 %v4152, %v4155
      %v4157 = vrot.slane %v4156, 4
      %v4159 = vshll.u32 %v3982, 16
      %v4161 = vrot.slane %v4159, 5
      %v4162 = vsel %vm358, %v4157, %v4161
      %v4163 = vshrl.u32 %v3982, 16
      %v4165 = vrot.slane %v4163, 4
      %v4166 = vor.u32 %v4165, %v4161
      %v4167 = vrot.slane %v4166, 4
      %v4169 = vshll.u32 %v3983, 16
      %v4171 = vrot.slane %v4169, 5
      %v4172 = vsel %vm358, %v4167, %v4171
      %v4173 = vshrl.u32 %v3983, 16
      %v4175 = vrot.slane %v4173, 4
      %v4176 = vor.u32 %v4175, %v4171
      %v4177 = vrot.slane %v4176, 4
      %v4179 = vshll.u32 %v3984, 16
      %v4181 = vrot.slane %v4179, 5
      %v4182 = vsel %vm358, %v4177, %v4181
      %v4183 = vshrl.u32 %v3984, 16
      %v4185 = vrot.slane %v4183, 4
      %v4186 = vor.u32 %v4185, %v4181
      %v4187 = vrot.slane %v4186, 4
      %v4189 = vshll.u32 %v3985, 16
      %v4191 = vrot.slane %v4189, 5
      %v4192 = vsel %vm358, %v4187, %v4191
      %v4194 = vshrl.u32 %v3986, 16
      %v4196 = vrot.slane %v4194, 4
      %v4197 = vshll.u32 %v3986, 16
      %v4199 = vrot.slane %v4197, 5
      %v4200 = vor.u32 %v4196, %v4199
      %v4201 = vrot.slane %v4200, 4
      %v4203 = vshll.u32 %v3987, 16
      %v4205 = vrot.slane %v4203, 5
      %v4206 = vsel %vm358, %v4201, %v4205
      %v4207 = vshrl.u32 %v3987, 16
      %v4209 = vrot.slane %v4207, 4
      %v4210 = vor.u32 %v4209, %v4205
      %v4211 = vrot.slane %v4210, 4
      %v4213 = vshll.u32 %v3988, 16
      %v4215 = vrot.slane %v4213, 5
      %v4216 = vsel %vm358, %v4211, %v4215
      %v4217 = vshrl.u32 %v3988, 16
      %v4219 = vrot.slane %v4217, 4
      %v4220 = vor.u32 %v4219, %v4215
      %v4221 = vrot.slane %v4220, 4
      %v4223 = vshll.u32 %v3989, 16
      %v4225 = vrot.slane %v4223, 5
      %v4226 = vsel %vm358, %v4221, %v4225
      %v4227 = vshrl.u32 %v3989, 16
      %v4229 = vrot.slane %v4227, 4
      %v4230 = vor.u32 %v4229, %v4225
      %v4231 = vrot.slane %v4230, 4
      %v4233 = vshll.u32 %v3990, 16
      %v4235 = vrot.slane %v4233, 5
      %v4236 = vsel %vm358, %v4231, %v4235
      %v4238 = vshrl.u32 %v3991, 16
      %v4240 = vrot.slane %v4238, 4
      %v4241 = vshll.u32 %v3991, 16
      %v4243 = vrot.slane %v4241, 5
      %v4244 = vor.u32 %v4240, %v4243
      %v4245 = vrot.slane %v4244, 4
      %v4247 = vshll.u32 %v3992, 16
      %v4249 = vrot.slane %v4247, 5
      %v4250 = vsel %vm358, %v4245, %v4249
      %v4251 = vshrl.u32 %v3992, 16
      %v4253 = vrot.slane %v4251, 4
      %v4254 = vor.u32 %v4253, %v4249
      %v4255 = vrot.slane %v4254, 4
      %v4257 = vshll.u32 %v3993, 16
      %v4259 = vrot.slane %v4257, 5
      %v4260 = vsel %vm358, %v4255, %v4259
      %v4261 = vshrl.u32 %v3993, 16
      %v4263 = vrot.slane %v4261, 4
      %v4264 = vor.u32 %v4263, %v4259
      %v4265 = vrot.slane %v4264, 4
      %v4267 = vshll.u32 %v3994, 16
      %v4269 = vrot.slane %v4267, 5
      %v4270 = vsel %vm358, %v4265, %v4269
      %v4271 = vshrl.u32 %v3994, 16
      %v4273 = vrot.slane %v4271, 4
      %v4274 = vor.u32 %v4273, %v4269
      %v4275 = vrot.slane %v4274, 4
      %v4277 = vshll.u32 %v3995, 16
      %v4279 = vrot.slane %v4277, 5
      %v4280 = vsel %vm358, %v4275, %v4279
      %v4282 = vshrl.u32 %v3996, 16
      %v4284 = vrot.slane %v4282, 4
      %v4285 = vshll.u32 %v3996, 16
      %v4287 = vrot.slane %v4285, 5
      %v4288 = vor.u32 %v4284, %v4287
      %v4289 = vrot.slane %v4288, 4
      %v4291 = vshll.u32 %v3997, 16
      %v4293 = vrot.slane %v4291, 5
      %v4294 = vsel %vm358, %v4289, %v4293
      %v4295 = vshrl.u32 %v3997, 16
      %v4297 = vrot.slane %v4295, 4
      %v4298 = vor.u32 %v4297, %v4293
      %v4299 = vrot.slane %v4298, 4
      %v4301 = vshll.u32 %v3998, 16
      %v4303 = vrot.slane %v4301, 5
      %v4304 = vsel %vm358, %v4299, %v4303
      %v4305 = vshrl.u32 %v3998, 16
      %v4307 = vrot.slane %v4305, 4
      %v4308 = vor.u32 %v4307, %v4303
      %v4309 = vrot.slane %v4308, 4
      %v4311 = vshll.u32 %v3999, 16
      %v4313 = vrot.slane %v4311, 5
      %v4314 = vsel %vm358, %v4309, %v4313
      %v4315 = vshrl.u32 %v3999, 16
      %v4317 = vrot.slane %v4315, 4
      %v4318 = vor.u32 %v4317, %v4313
      %v4319 = vrot.slane %v4318, 4
      %v4321 = vshll.u32 %v4000, 16
      %v4323 = vrot.slane %v4321, 5
      %v4324 = vsel %vm358, %v4319, %v4323
      %v4326 = vshrl.u32 %v4001, 16
      %v4328 = vrot.slane %v4326, 4
      %v4329 = vshll.u32 %v4001, 16
      %v4331 = vrot.slane %v4329, 5
      %v4332 = vor.u32 %v4328, %v4331
      %v4333 = vrot.slane %v4332, 4
      %v4335 = vshll.u32 %v4002, 16
      %v4337 = vrot.slane %v4335, 5
      %v4338 = vsel %vm358, %v4333, %v4337
      %v4339 = vshrl.u32 %v4002, 16
      %v4341 = vrot.slane %v4339, 4
      %v4342 = vor.u32 %v4341, %v4337
      %v4343 = vrot.slane %v4342, 4
      %v4345 = vshll.u32 %v4003, 16
      %v4347 = vrot.slane %v4345, 5
      %v4348 = vsel %vm358, %v4343, %v4347
      %v4349 = vshrl.u32 %v4003, 16
      %v4351 = vrot.slane %v4349, 4
      %v4352 = vor.u32 %v4351, %v4347
      %v4353 = vrot.slane %v4352, 4
      %v4355 = vshll.u32 %v4004, 16
      %v4357 = vrot.slane %v4355, 5
      %v4358 = vsel %vm358, %v4353, %v4357
      %v4359 = vshrl.u32 %v4004, 16
      %v4361 = vrot.slane %v4359, 4
      %v4362 = vor.u32 %v4361, %v4357
      %v4363 = vrot.slane %v4362, 4
      %v4365 = vshll.u32 %v4005, 16
      %v4367 = vrot.slane %v4365, 5
      %v4368 = vsel %vm358, %v4363, %v4367
      %v4370 = vshrl.u32 %v4006, 16
      %v4372 = vrot.slane %v4370, 4
      %v4373 = vshll.u32 %v4006, 16
      %v4375 = vrot.slane %v4373, 5
      %v4376 = vor.u32 %v4372, %v4375
      %v4377 = vrot.slane %v4376, 4
      %v4379 = vshll.u32 %v4007, 16
      %v4381 = vrot.slane %v4379, 5
      %v4382 = vsel %vm358, %v4377, %v4381
      %v4383 = vshrl.u32 %v4007, 16
      %v4385 = vrot.slane %v4383, 4
      %v4386 = vor.u32 %v4385, %v4381
      %v4387 = vrot.slane %v4386, 4
      %v4389 = vshll.u32 %v4008, 16
      %v4391 = vrot.slane %v4389, 5
      %v4392 = vsel %vm358, %v4387, %v4391
      %v4393 = vshrl.u32 %v4008, 16
      %v4395 = vrot.slane %v4393, 4
      %v4396 = vor.u32 %v4395, %v4391
      %v4397 = vrot.slane %v4396, 4
      %v4399 = vshll.u32 %v4009, 16
      %v4401 = vrot.slane %v4399, 5
      %v4402 = vsel %vm358, %v4397, %v4401
      %v4403 = vshrl.u32 %v4009, 16
      %v4405 = vrot.slane %v4403, 4
      %v4406 = vor.u32 %v4405, %v4401
      %v4407 = vrot.slane %v4406, 4
      %v4409 = vshll.u32 %v4010, 16
      %v4411 = vrot.slane %v4409, 5
      %v4412 = vsel %vm358, %v4407, %v4411
      %v4414 = vshrl.u32 %v4011, 16
      %v4416 = vrot.slane %v4414, 4
      %v4417 = vshll.u32 %v4011, 16
      %v4419 = vrot.slane %v4417, 5
      %v4420 = vor.u32 %v4416, %v4419
      %v4421 = vrot.slane %v4420, 4
      %v4423 = vshll.u32 %v4012, 16
      %v4425 = vrot.slane %v4423, 5
      %v4426 = vsel %vm358, %v4421, %v4425
      %v4427 = vshrl.u32 %v4012, 16
      %v4429 = vrot.slane %v4427, 4
      %v4430 = vor.u32 %v4429, %v4425
      %v4431 = vrot.slane %v4430, 4
      %v4433 = vshll.u32 %v4013, 16
      %v4435 = vrot.slane %v4433, 5
      %v4436 = vsel %vm358, %v4431, %v4435
      %v4437 = vshrl.u32 %v4013, 16
      %v4439 = vrot.slane %v4437, 4
      %v4440 = vor.u32 %v4439, %v4435
      %v4441 = vrot.slane %v4440, 4
      %v4443 = vshll.u32 %v4014, 16
      %v4445 = vrot.slane %v4443, 5
      %v4446 = vsel %vm358, %v4441, %v4445
      %v4447 = vshrl.u32 %v4014, 16
      %v4449 = vrot.slane %v4447, 4
      %v4450 = vor.u32 %v4449, %v4445
      %v4451 = vrot.slane %v4450, 4
      %v4453 = vshll.u32 %v4015, 16
      %v4455 = vrot.slane %v4453, 5
      %v4456 = vsel %vm358, %v4451, %v4455
      %v4458 = vshrl.u32 %v4016, 16
      %v4460 = vrot.slane %v4458, 4
      %v4461 = vshll.u32 %v4016, 16
      %v4463 = vrot.slane %v4461, 5
      %v4464 = vor.u32 %v4460, %v4463
      %v4465 = vrot.slane %v4464, 4
      %v4467 = vshll.u32 %v4017, 16
      %v4469 = vrot.slane %v4467, 5
      %v4470 = vsel %vm358, %v4465, %v4469
      %v4471 = vshrl.u32 %v4017, 16
      %v4473 = vrot.slane %v4471, 4
      %v4474 = vor.u32 %v4473, %v4469
      %v4475 = vrot.slane %v4474, 4
      %v4477 = vshll.u32 %v4018, 16
      %v4479 = vrot.slane %v4477, 5
      %v4480 = vsel %vm358, %v4475, %v4479
      %v4481 = vshrl.u32 %v4018, 16
      %v4483 = vrot.slane %v4481, 4
      %v4484 = vor.u32 %v4483, %v4479
      %v4485 = vrot.slane %v4484, 4
      %v4487 = vshll.u32 %v4019, 16
      %v4489 = vrot.slane %v4487, 5
      %v4490 = vsel %vm358, %v4485, %v4489
      %v4491 = vshrl.u32 %v4019, 16
      %v4493 = vrot.slane %v4491, 4
      %v4494 = vor.u32 %v4493, %v4489
      %v4495 = vrot.slane %v4494, 4
      %v4497 = vshll.u32 %v4020, 16
      %v4499 = vrot.slane %v4497, 5
      %v4500 = vsel %vm358, %v4495, %v4499
      %v4502 = vshrl.u32 %v4021, 16
      %v4504 = vrot.slane %v4502, 4
      %v4505 = vshll.u32 %v4021, 16
      %v4507 = vrot.slane %v4505, 5
      %v4508 = vor.u32 %v4504, %v4507
      %v4509 = vrot.slane %v4508, 4
      %v4511 = vshll.u32 %v4022, 16
      %v4513 = vrot.slane %v4511, 5
      %v4514 = vsel %vm358, %v4509, %v4513
      %v4515 = vshrl.u32 %v4022, 16
      %v4517 = vrot.slane %v4515, 4
      %v4518 = vor.u32 %v4517, %v4513
      %v4519 = vrot.slane %v4518, 4
      %v4521 = vshll.u32 %v4023, 16
      %v4523 = vrot.slane %v4521, 5
      %v4524 = vsel %vm358, %v4519, %v4523
      %v4525 = vshrl.u32 %v4023, 16
      %v4527 = vrot.slane %v4525, 4
      %v4528 = vor.u32 %v4527, %v4523
      %v4529 = vrot.slane %v4528, 4
      %v4531 = vshll.u32 %v4024, 16
      %v4533 = vrot.slane %v4531, 5
      %v4534 = vsel %vm358, %v4529, %v4533
      %v4535 = vshrl.u32 %v4024, 16
      %v4537 = vrot.slane %v4535, 4
      %v4538 = vor.u32 %v4537, %v4533
      %v4539 = vrot.slane %v4538, 4
      %v4541 = vshll.u32 %v4025, 16
      %v4543 = vrot.slane %v4541, 5
      %v4544 = vsel %vm358, %v4539, %v4543
      %v4546 = vshrl.u32 %v4026, 16
      %v4548 = vrot.slane %v4546, 4
      %v4549 = vshll.u32 %v4026, 16
      %v4551 = vrot.slane %v4549, 5
      %v4552 = vor.u32 %v4548, %v4551
      %v4553 = vrot.slane %v4552, 4
      %v4555 = vshll.u32 %v4027, 16
      %v4557 = vrot.slane %v4555, 5
      %v4558 = vsel %vm358, %v4553, %v4557
      %v4559 = vshrl.u32 %v4027, 16
      %v4561 = vrot.slane %v4559, 4
      %v4562 = vor.u32 %v4561, %v4557
      %v4563 = vrot.slane %v4562, 4
      %v4565 = vshll.u32 %v4028, 16
      %v4567 = vrot.slane %v4565, 5
      %v4568 = vsel %vm358, %v4563, %v4567
      %v4569 = vshrl.u32 %v4028, 16
      %v4571 = vrot.slane %v4569, 4
      %v4572 = vor.u32 %v4571, %v4567
      %v4573 = vrot.slane %v4572, 4
      %v4575 = vshll.u32 %v4029, 16
      %v4577 = vrot.slane %v4575, 5
      %v4578 = vsel %vm358, %v4573, %v4577
      %v4579 = vshrl.u32 %v4029, 16
      %v4581 = vrot.slane %v4579, 4
      %v4582 = vor.u32 %v4581, %v4577
      %v4583 = vrot.slane %v4582, 4
      %v4585 = vshll.u32 %v4030, 16
      %v4587 = vrot.slane %v4585, 5
      %v4588 = vsel %vm358, %v4583, %v4587
      %v4590 = vshrl.u32 %v4031, 16
      %v4592 = vrot.slane %v4590, 4
      %v4593 = vshll.u32 %v4031, 16
      %v4595 = vrot.slane %v4593, 5
      %v4596 = vor.u32 %v4592, %v4595
      %v4597 = vrot.slane %v4596, 4
      %v4599 = vshll.u32 %v4032, 16
      %v4601 = vrot.slane %v4599, 5
      %v4602 = vsel %vm358, %v4597, %v4601
      %v4603 = vshrl.u32 %v4032, 16
      %v4605 = vrot.slane %v4603, 4
      %v4606 = vor.u32 %v4605, %v4601
      %v4607 = vrot.slane %v4606, 4
      %v4609 = vshll.u32 %v4033, 16
      %v4611 = vrot.slane %v4609, 5
      %v4612 = vsel %vm358, %v4607, %v4611
      %v4613 = vshrl.u32 %v4033, 16
      %v4615 = vrot.slane %v4613, 4
      %v4616 = vor.u32 %v4615, %v4611
      %v4617 = vrot.slane %v4616, 4
      %v4619 = vshll.u32 %v4034, 16
      %v4621 = vrot.slane %v4619, 5
      %v4622 = vsel %vm358, %v4617, %v4621
      %v4623 = vshrl.u32 %v4034, 16
      %v4625 = vrot.slane %v4623, 4
      %v4626 = vor.u32 %v4625, %v4621
      %v4627 = vrot.slane %v4626, 4
      %v4629 = vshll.u32 %v4035, 16
      %v4631 = vrot.slane %v4629, 5
      %v4632 = vsel %vm358, %v4627, %v4631
      %v4634 = vshrl.u32 %v4036, 16
      %v4636 = vrot.slane %v4634, 4
      %v4637 = vshll.u32 %v4036, 16
      %v4639 = vrot.slane %v4637, 5
      %v4640 = vor.u32 %v4636, %v4639
      %v4641 = vrot.slane %v4640, 4
      %v4643 = vshll.u32 %v4037, 16
      %v4645 = vrot.slane %v4643, 5
      %v4646 = vsel %vm358, %v4641, %v4645
      %v4647 = vshrl.u32 %v4037, 16
      %v4649 = vrot.slane %v4647, 4
      %v4650 = vor.u32 %v4649, %v4645
      %v4651 = vrot.slane %v4650, 4
      %v4653 = vshll.u32 %v4038, 16
      %v4655 = vrot.slane %v4653, 5
      %v4656 = vsel %vm358, %v4651, %v4655
      %v4657 = vshrl.u32 %v4038, 16
      %v4659 = vrot.slane %v4657, 4
      %v4660 = vor.u32 %v4659, %v4655
      %v4661 = vrot.slane %v4660, 4
      %v4663 = vshll.u32 %v4039, 16
      %v4665 = vrot.slane %v4663, 5
      %v4666 = vsel %vm358, %v4661, %v4665
      %v4667 = vshrl.u32 %v4039, 16
      %v4669 = vrot.slane %v4667, 4
      %v4670 = vor.u32 %v4669, %v4665
      %v4671 = vrot.slane %v4670, 4
      %v4673 = vshll.u32 %v4040, 16
      %v4675 = vrot.slane %v4673, 5
      %v4676 = vsel %vm358, %v4671, %v4675
      %v4678 = vshrl.u32 %v4041, 16
      %v4680 = vrot.slane %v4678, 4
      %v4681 = vshll.u32 %v4041, 16
      %v4683 = vrot.slane %v4681, 5
      %v4684 = vor.u32 %v4680, %v4683
      %v4685 = vrot.slane %v4684, 4
      %v4687 = vshll.u32 %v4042, 16
      %v4689 = vrot.slane %v4687, 5
      %v4690 = vsel %vm358, %v4685, %v4689
      %v4691 = vshrl.u32 %v4042, 16
      %v4693 = vrot.slane %v4691, 4
      %v4694 = vor.u32 %v4693, %v4689
      %v4695 = vrot.slane %v4694, 4
      %v4697 = vshll.u32 %v4043, 16
      %v4699 = vrot.slane %v4697, 5
      %v4700 = vsel %vm358, %v4695, %v4699
      %v4701 = vshrl.u32 %v4043, 16
      %v4703 = vrot.slane %v4701, 4
      %v4704 = vor.u32 %v4703, %v4699
      %v4705 = vrot.slane %v4704, 4
      %v4707 = vshll.u32 %v4044, 16
      %v4709 = vrot.slane %v4707, 5
      %v4710 = vsel %vm358, %v4705, %v4709
      %v4711 = vshrl.u32 %v4044, 16
      %v4713 = vrot.slane %v4711, 4
      %v4714 = vor.u32 %v4713, %v4709
      %v4715 = vrot.slane %v4714, 4
      %v4717 = vshll.u32 %v4045, 16
      %v4719 = vrot.slane %v4717, 5
      %v4720 = vsel %vm358, %v4715, %v4719
      %v4722 = vshrl.u32 %v4046, 16
      %v4724 = vrot.slane %v4722, 4
      %v4725 = vshll.u32 %v4046, 16
      %v4727 = vrot.slane %v4725, 5
      %v4728 = vor.u32 %v4724, %v4727
      %v4729 = vrot.slane %v4728, 4
      %v4731 = vshll.u32 %v4047, 16
      %v4733 = vrot.slane %v4731, 5
      %v4734 = vsel %vm358, %v4729, %v4733
      %v4735 = vshrl.u32 %v4047, 16
      %v4737 = vrot.slane %v4735, 4
      %v4738 = vor.u32 %v4737, %v4733
      %v4739 = vrot.slane %v4738, 4
      %v4741 = vshll.u32 %v4048, 16
      %v4743 = vrot.slane %v4741, 5
      %v4744 = vsel %vm358, %v4739, %v4743
      %v4745 = vshrl.u32 %v4048, 16
      %v4747 = vrot.slane %v4745, 4
      %v4748 = vor.u32 %v4747, %v4743
      %v4749 = vrot.slane %v4748, 4
      %v4751 = vshll.u32 %v4049, 16
      %v4753 = vrot.slane %v4751, 5
      %v4754 = vsel %vm358, %v4749, %v4753
      %v4755 = vshrl.u32 %v4049, 16
      %v4757 = vrot.slane %v4755, 4
      %v4758 = vor.u32 %v4757, %v4753
      %v4759 = vrot.slane %v4758, 4
      %v4761 = vshll.u32 %v4050, 16
      %v4763 = vrot.slane %v4761, 5
      %v4764 = vsel %vm358, %v4759, %v4763
      %v4766 = vshrl.u32 %v4051, 16
      %v4768 = vrot.slane %v4766, 4
      %v4769 = vshll.u32 %v4051, 16
      %v4771 = vrot.slane %v4769, 5
      %v4772 = vor.u32 %v4768, %v4771
      %v4773 = vrot.slane %v4772, 4
      %v4775 = vshll.u32 %v4052, 16
      %v4777 = vrot.slane %v4775, 5
      %v4778 = vsel %vm358, %v4773, %v4777
      %v4779 = vshrl.u32 %v4052, 16
      %v4781 = vrot.slane %v4779, 4
      %v4782 = vor.u32 %v4781, %v4777
      %v4783 = vrot.slane %v4782, 4
      %v4785 = vshll.u32 %v4053, 16
      %v4787 = vrot.slane %v4785, 5
      %v4788 = vsel %vm358, %v4783, %v4787
      %v4789 = vshrl.u32 %v4053, 16
      %v4791 = vrot.slane %v4789, 4
      %v4792 = vor.u32 %v4791, %v4787
      %v4793 = vrot.slane %v4792, 4
      %v4795 = vshll.u32 %v4054, 16
      %v4797 = vrot.slane %v4795, 5
      %v4798 = vsel %vm358, %v4793, %v4797
      %v4799 = vshrl.u32 %v4054, 16
      %v4801 = vrot.slane %v4799, 4
      %v4802 = vor.u32 %v4801, %v4797
      %v4803 = vrot.slane %v4802, 4
      %v4805 = vshll.u32 %v4055, 16
      %v4807 = vrot.slane %v4805, 5
      %v4808 = vsel %vm358, %v4803, %v4807
      %v4810 = vshrl.u32 %v4056, 16
      %v4812 = vrot.slane %v4810, 4
      %v4813 = vshll.u32 %v4056, 16
      %v4815 = vrot.slane %v4813, 5
      %v4816 = vor.u32 %v4812, %v4815
      %v4817 = vrot.slane %v4816, 4
      %v4819 = vshll.u32 %v4057, 16
      %v4821 = vrot.slane %v4819, 5
      %v4822 = vsel %vm358, %v4817, %v4821
      %v4823 = vshrl.u32 %v4057, 16
      %v4825 = vrot.slane %v4823, 4
      %v4826 = vor.u32 %v4825, %v4821
      %v4827 = vrot.slane %v4826, 4
      %v4829 = vshll.u32 %v4058, 16
      %v4831 = vrot.slane %v4829, 5
      %v4832 = vsel %vm358, %v4827, %v4831
      %v4833 = vshrl.u32 %v4058, 16
      %v4835 = vrot.slane %v4833, 4
      %v4836 = vor.u32 %v4835, %v4831
      %v4837 = vrot.slane %v4836, 4
      %v4839 = vshll.u32 %v4059, 16
      %v4841 = vrot.slane %v4839, 5
      %v4842 = vsel %vm358, %v4837, %v4841
      %v4843 = vshrl.u32 %v4059, 16
      %v4845 = vrot.slane %v4843, 4
      %v4846 = vor.u32 %v4845, %v4841
      %v4847 = vrot.slane %v4846, 4
      %v4849 = vshll.u32 %v4060, 16
      %v4851 = vrot.slane %v4849, 5
      %v4852 = vsel %vm358, %v4847, %v4851
      %s4853 = scalar_lea.vmem %s1, 8
      %v4854 = vld [vmem:[%s4853] sm:$0x3]
      %v4855 = vunpack.c.l.b16 %v4074
      %v4856 = vunpack.c.l.b16 %v4084
      %v4857 = vunpack.c.l.b16 %v4094
      %v4858 = vunpack.c.l.b16 %v4104
      %v4859 = vunpack.c.l.b16 %v4118
      %v4860 = vunpack.c.l.b16 %v4128
      %v4861 = vunpack.c.l.b16 %v4138
      %v4862 = vunpack.c.l.b16 %v4148
      %v4863 = vunpack.c.l.b16 %v4162
      %v4864 = vunpack.c.l.b16 %v4172
      %v4865 = vunpack.c.l.b16 %v4182
      %v4866 = vunpack.c.l.b16 %v4192
      %v4867 = vunpack.c.l.b16 %v4206
      %v4868 = vunpack.c.l.b16 %v4216
      %v4869 = vunpack.c.l.b16 %v4226
      %v4870 = vunpack.c.l.b16 %v4236
      %v4871 = vunpack.c.l.b16 %v4250
      %v4872 = vunpack.c.l.b16 %v4260
      %v4873 = vunpack.c.l.b16 %v4270
      %v4874 = vunpack.c.l.b16 %v4280
      %v4875 = vunpack.c.l.b16 %v4294
      %v4876 = vunpack.c.l.b16 %v4304
      %v4877 = vunpack.c.l.b16 %v4314
      %v4878 = vunpack.c.l.b16 %v4324
      %v4879 = vunpack.c.l.b16 %v4338
      %v4880 = vunpack.c.l.b16 %v4348
      %v4881 = vunpack.c.l.b16 %v4358
      %v4882 = vunpack.c.l.b16 %v4368
      %v4883 = vunpack.c.l.b16 %v4382
      %v4884 = vunpack.c.l.b16 %v4392
      %v4885 = vunpack.c.l.b16 %v4402
      %v4886 = vunpack.c.l.b16 %v4412
      %v4887 = vunpack.c.l.b16 %v4426
      %v4888 = vunpack.c.l.b16 %v4436
      %v4889 = vunpack.c.l.b16 %v4446
      %v4890 = vunpack.c.l.b16 %v4456
      %v4891 = vunpack.c.l.b16 %v4470
      %v4892 = vunpack.c.l.b16 %v4480
      %v4893 = vunpack.c.l.b16 %v4490
      %v4894 = vunpack.c.l.b16 %v4500
      %v4895 = vunpack.c.l.b16 %v4514
      %v4896 = vunpack.c.l.b16 %v4524
      %v4897 = vunpack.c.l.b16 %v4534
      %v4898 = vunpack.c.l.b16 %v4544
      %v4899 = vunpack.c.l.b16 %v4558
      %v4900 = vunpack.c.l.b16 %v4568
      %v4901 = vunpack.c.l.b16 %v4578
      %v4902 = vunpack.c.l.b16 %v4588
      %v4903 = vunpack.c.l.b16 %v4602
      %v4904 = vunpack.c.l.b16 %v4612
      %v4905 = vunpack.c.l.b16 %v4622
      %v4906 = vunpack.c.l.b16 %v4632
      %v4907 = vunpack.c.l.b16 %v4646
      %v4908 = vunpack.c.l.b16 %v4656
      %v4909 = vunpack.c.l.b16 %v4666
      %v4910 = vunpack.c.l.b16 %v4676
      %v4911 = vunpack.c.l.b16 %v4690
      %v4912 = vunpack.c.l.b16 %v4700
      %v4913 = vunpack.c.l.b16 %v4710
      %v4914 = vunpack.c.l.b16 %v4720
      %v4915 = vunpack.c.l.b16 %v4734
      %v4916 = vunpack.c.l.b16 %v4744
      %v4917 = vunpack.c.l.b16 %v4754
      %v4918 = vunpack.c.l.b16 %v4764
      %v4919 = vunpack.c.l.b16 %v4778
      %v4920 = vunpack.c.l.b16 %v4788
      %v4921 = vunpack.c.l.b16 %v4798
      %v4922 = vunpack.c.l.b16 %v4808
      %v4923 = vunpack.c.l.b16 %v4822
      %v4924 = vunpack.c.l.b16 %v4832
      %v4925 = vunpack.c.l.b16 %v4842
      %v4926 = vunpack.c.l.b16 %v4852
      %v4927 = vpack.c.b16 %v4856, %v4855
      %v4928 = vpack.c.b16 %v4858, %v4857
      %v4929 = vpack.c.b16 %v4860, %v4859
      %v4930 = vpack.c.b16 %v4862, %v4861
      %v4931 = vpack.c.b16 %v4864, %v4863
      %v4932 = vpack.c.b16 %v4866, %v4865
      %v4933 = vpack.c.b16 %v4868, %v4867
      %v4934 = vpack.c.b16 %v4870, %v4869
      %v4935 = vpack.c.b16 %v4872, %v4871
      %v4936 = vpack.c.b16 %v4874, %v4873
      %v4937 = vpack.c.b16 %v4876, %v4875
      %v4938 = vpack.c.b16 %v4878, %v4877
      %v4939 = vpack.c.b16 %v4880, %v4879
      %v4940 = vpack.c.b16 %v4882, %v4881
      %v4941 = vpack.c.b16 %v4884, %v4883
      %v4942 = vpack.c.b16 %v4886, %v4885
      %v4943 = vpack.c.b16 %v4888, %v4887
      %v4944 = vpack.c.b16 %v4890, %v4889
      %v4945 = vpack.c.b16 %v4892, %v4891
      %v4946 = vpack.c.b16 %v4894, %v4893
      %v4947 = vpack.c.b16 %v4896, %v4895
      %v4948 = vpack.c.b16 %v4898, %v4897
      %v4949 = vpack.c.b16 %v4900, %v4899
      %v4950 = vpack.c.b16 %v4902, %v4901
      %v4951 = vpack.c.b16 %v4904, %v4903
      %v4952 = vpack.c.b16 %v4906, %v4905
      %v4953 = vpack.c.b16 %v4908, %v4907
      %v4954 = vpack.c.b16 %v4910, %v4909
      %v4955 = vpack.c.b16 %v4912, %v4911
      %v4956 = vpack.c.b16 %v4914, %v4913
      %v4957 = vpack.c.b16 %v4916, %v4915
      %v4958 = vpack.c.b16 %v4918, %v4917
      %v4959 = vpack.c.b16 %v4920, %v4919
      %v4960 = vpack.c.b16 %v4922, %v4921
      %v4961 = vpack.c.b16 %v4924, %v4923
      %v4962 = vpack.c.b16 %v4926, %v4925
      %v4964 = vsel %vm1261, %v4927, 0
      %v4967 = vsel %vm1261, %v4928, 0
      %v4970 = vsel %vm1261, %v4929, 0
      %v4973 = vsel %vm1261, %v4930, 0
      %v4976 = vsel %vm1261, %v4931, 0
      %v4979 = vsel %vm1261, %v4932, 0
      %v4982 = vsel %vm1261, %v4933, 0
      %v4985 = vsel %vm1261, %v4934, 0
      %v4988 = vsel %vm1261, %v4935, 0
      %v4991 = vsel %vm1261, %v4936, 0
      %v4994 = vsel %vm1261, %v4937, 0
      %v4997 = vsel %vm1261, %v4938, 0
      %v5000 = vsel %vm1261, %v4939, 0
      %v5003 = vsel %vm1261, %v4940, 0
      %v5006 = vsel %vm1261, %v4941, 0
      %v5009 = vsel %vm1261, %v4942, 0
      %v5012 = vsel %vm1261, %v4943, 0
      %v5015 = vsel %vm1261, %v4944, 0
      %v5018 = vsel %vm1261, %v4945, 0
      %v5021 = vsel %vm1261, %v4946, 0
      %v5024 = vsel %vm1261, %v4947, 0
      %v5027 = vsel %vm1261, %v4948, 0
      %v5030 = vsel %vm1261, %v4949, 0
      %v5033 = vsel %vm1261, %v4950, 0
      %v5036 = vsel %vm1261, %v4951, 0
      %v5039 = vsel %vm1261, %v4952, 0
      %v5042 = vsel %vm1261, %v4953, 0
      %v5045 = vsel %vm1261, %v4954, 0
      %v5048 = vsel %vm1261, %v4955, 0
      %v5051 = vsel %vm1261, %v4956, 0
      %v5054 = vsel %vm1261, %v4957, 0
      %v5057 = vsel %vm1261, %v4958, 0
      %v5060 = vsel %vm1261, %v4959, 0
      %v5063 = vsel %vm1261, %v4960, 0
      %v5066 = vsel %vm1261, %v4961, 0
      %v5069 = vsel %vm1261, %v4962, 0
      %v5072 = vsel %vm1370, %v4854, 0
      %5074 = vmatprep.subr.bf16.mxu0 0
      %5075 = vmatpush1.bf16.msra.mxu0 %v5072
      %5076 = vmatprep.subr.bf16.mxu0 0
      %5077 = vmatpush1.bf16.msra.mxu0 0
      %5078 = vmatprep.subr.bf16.mxu0 0
      %5079 = vmatpush1.bf16.msra.mxu0 0
      %5080 = vmatprep.subr.bf16.mxu0 0
      %5081 = vmatpush1.bf16.msra.mxu0 0
      %5082 = vmatprep.subr.bf16.mxu0 0
      %5083 = vmatpush1.bf16.msra.mxu0 0
      %5084 = vmatprep.subr.bf16.mxu0 0
      %5085 = vmatpush1.bf16.msra.mxu0 0
      %5086 = vmatprep.subr.bf16.mxu0 0
      %5087 = vmatpush1.bf16.msra.mxu0 0
      %5088 = vmatprep.subr.bf16.mxu0 0
      %5089 = vmatpush1.bf16.msra.mxu0 0
      %5090 = vmatprep.subr.bf16.mxu0 0
      %5091 = vmatpush1.bf16.msra.mxu0 0
      %5092 = vmatprep.subr.bf16.mxu0 0
      %5093 = vmatpush1.bf16.msra.mxu0 0
      %5094 = vmatprep.subr.bf16.mxu0 0
      %5095 = vmatpush1.bf16.msra.mxu0 0
      %5096 = vmatprep.subr.bf16.mxu0 0
      %5097 = vmatpush1.bf16.msra.mxu0 0
      %5098 = vmatprep.subr.bf16.mxu0 0
      %5099 = vmatpush1.bf16.msra.mxu0 0
      %5100 = vmatprep.subr.bf16.mxu0 0
      %5101 = vmatpush1.bf16.msra.mxu0 0
      %5102 = vmatprep.subr.bf16.mxu0 0
      %5103 = vmatpush1.bf16.msra.mxu0 0
      %5104 = vmatprep.subr.bf16.mxu0 0
      %5105 = vmatpush1.bf16.msra.mxu0 0
      %5106 = vmatprep.mubr.bf16.mxu0 0
      %5107 = vmatmul.mubr.bf16.gmra.mrb[0].mxu0 %v4964
      %v5108 = vpop.f32.mrb[0].mxu0
      %v5109 = vadd.f32 0.0, %v5108
      %v5110 = vpop.f32.mrb[0].mxu0
      %v5111 = vpop.f32.mrb[0].mxu0
      %v5112 = vadd.f32 0.0, %v5111
      %v5113 = vpop.f32.mrb[0].mxu0
      %5114 = vmatprep.mubr.bf16.mxu0 0
      %5115 = vmatmul.mubr.bf16.gmra.mrb[0].mxu0 %v4967
      %v5116 = vpop.f32.mrb[0].mxu0
      %v5117 = vadd.f32 0.0, %v5116
      %v5118 = vpop.f32.mrb[0].mxu0
      %v5119 = vpop.f32.mrb[0].mxu0
      %v5120 = vadd.f32 0.0, %v5119
      %v5121 = vpop.f32.mrb[0].mxu0
      %5122 = vmatprep.mubr.bf16.mxu0 0
      %5123 = vmatmul.mubr.bf16.gmra.mrb[0].mxu0 %v4970
      %v5124 = vpop.f32.mrb[0].mxu0
      %v5125 = vadd.f32 0.0, %v5124
      %v5126 = vpop.f32.mrb[0].mxu0
      %v5127 = vpop.f32.mrb[0].mxu0
      %v5128 = vadd.f32 0.0, %v5127
      %v5129 = vpop.f32.mrb[0].mxu0
      %5130 = vmatprep.mubr.bf16.mxu0 0
      %5131 = vmatmul.mubr.bf16.gmra.mrb[0].mxu0 %v4973
      %v5132 = vpop.f32.mrb[0].mxu0
      %v5133 = vadd.f32 0.0, %v5132
      %v5134 = vpop.f32.mrb[0].mxu0
      %v5135 = vpop.f32.mrb[0].mxu0
      %v5136 = vadd.f32 0.0, %v5135
      %v5137 = vpop.f32.mrb[0].mxu0
      %5138 = vmatprep.mubr.bf16.mxu0 0
      %5139 = vmatmul.mubr.bf16.gmra.mrb[0].mxu0 %v4976
      %v5140 = vpop.f32.mrb[0].mxu0
      %v5141 = vadd.f32 0.0, %v5140
      %v5142 = vpop.f32.mrb[0].mxu0
      %v5143 = vpop.f32.mrb[0].mxu0
      %v5144 = vadd.f32 0.0, %v5143
      %v5145 = vpop.f32.mrb[0].mxu0
      %5146 = vmatprep.mubr.bf16.mxu0 0
      %5147 = vmatmul.mubr.bf16.gmra.mrb[0].mxu0 %v4979
      %v5148 = vpop.f32.mrb[0].mxu0
      %v5149 = vadd.f32 0.0, %v5148
      %v5150 = vpop.f32.mrb[0].mxu0
      %v5151 = vpop.f32.mrb[0].mxu0
      %v5152 = vadd.f32 0.0, %v5151
      %v5153 = vpop.f32.mrb[0].mxu0
      %5154 = vmatprep.mubr.bf16.mxu0 0
      %5155 = vmatmul.mubr.bf16.gmra.mrb[0].mxu0 %v4982
      %v5156 = vpop.f32.mrb[0].mxu0
      %v5157 = vadd.f32 0.0, %v5156
      %v5158 = vpop.f32.mrb[0].mxu0
      %v5159 = vpop.f32.mrb[0].mxu0
      %v5160 = vadd.f32 0.0, %v5159
      %v5161 = vpop.f32.mrb[0].mxu0
      %5162 = vmatprep.mubr.bf16.mxu0 0
      %5163 = vmatmul.mubr.bf16.gmra.mrb[0].mxu0 %v4985
      %v5164 = vpop.f32.mrb[0].mxu0
      %v5165 = vadd.f32 0.0, %v5164
      %v5166 = vpop.f32.mrb[0].mxu0
      %v5167 = vpop.f32.mrb[0].mxu0
      %v5168 = vadd.f32 0.0, %v5167
      %v5169 = vpop.f32.mrb[0].mxu0
      %5170 = vmatprep.mubr.bf16.mxu0 0
      %5171 = vmatmul.mubr.bf16.gmra.mrb[0].mxu0 %v4988
      %v5172 = vpop.f32.mrb[0].mxu0
      %v5173 = vadd.f32 0.0, %v5172
      %v5174 = vpop.f32.mrb[0].mxu0
      %v5175 = vpop.f32.mrb[0].mxu0
      %v5176 = vadd.f32 0.0, %v5175
      %v5177 = vpop.f32.mrb[0].mxu0
      %5178 = vmatprep.mubr.bf16.mxu0 0
      %5179 = vmatmul.mubr.bf16.gmra.mrb[0].mxu0 %v4991
      %v5180 = vpop.f32.mrb[0].mxu0
      %v5181 = vadd.f32 0.0, %v5180
      %v5182 = vpop.f32.mrb[0].mxu0
      %v5183 = vpop.f32.mrb[0].mxu0
      %v5184 = vadd.f32 0.0, %v5183
      %v5185 = vpop.f32.mrb[0].mxu0
      %5186 = vmatprep.mubr.bf16.mxu0 0
      %5187 = vmatmul.mubr.bf16.gmra.mrb[0].mxu0 %v4994
      %v5188 = vpop.f32.mrb[0].mxu0
      %v5189 = vadd.f32 0.0, %v5188
      %v5190 = vpop.f32.mrb[0].mxu0
      %v5191 = vpop.f32.mrb[0].mxu0
      %v5192 = vadd.f32 0.0, %v5191
      %v5193 = vpop.f32.mrb[0].mxu0
      %5194 = vmatprep.mubr.bf16.mxu0 0
      %5195 = vmatmul.mubr.bf16.gmra.mrb[0].mxu0 %v4997
      %v5196 = vpop.f32.mrb[0].mxu0
      %v5197 = vadd.f32 0.0, %v5196
      %v5198 = vpop.f32.mrb[0].mxu0
      %v5199 = vpop.f32.mrb[0].mxu0
      %v5200 = vadd.f32 0.0, %v5199
      %v5201 = vpop.f32.mrb[0].mxu0
      %5202 = vmatprep.mubr.bf16.mxu0 0
      %5203 = vmatmul.mubr.bf16.gmra.mrb[0].mxu0 %v5000
      %v5204 = vpop.f32.mrb[0].mxu0
      %v5205 = vadd.f32 0.0, %v5204
      %v5206 = vpop.f32.mrb[0].mxu0
      %v5207 = vpop.f32.mrb[0].mxu0
      %v5208 = vadd.f32 0.0, %v5207
      %v5209 = vpop.f32.mrb[0].mxu0
      %5210 = vmatprep.mubr.bf16.mxu0 0
      %5211 = vmatmul.mubr.bf16.gmra.mrb[0].mxu0 %v5003
      %v5212 = vpop.f32.mrb[0].mxu0
      %v5213 = vadd.f32 0.0, %v5212
      %v5214 = vpop.f32.mrb[0].mxu0
      %v5215 = vpop.f32.mrb[0].mxu0
      %v5216 = vadd.f32 0.0, %v5215
      %v5217 = vpop.f32.mrb[0].mxu0
      %5218 = vmatprep.mubr.bf16.mxu0 0
      %5219 = vmatmul.mubr.bf16.gmra.mrb[0].mxu0 %v5006
      %v5220 = vpop.f32.mrb[0].mxu0
      %v5221 = vadd.f32 0.0, %v5220
      %v5222 = vpop.f32.mrb[0].mxu0
      %v5223 = vpop.f32.mrb[0].mxu0
      %v5224 = vadd.f32 0.0, %v5223
      %v5225 = vpop.f32.mrb[0].mxu0
      %5226 = vmatprep.mubr.bf16.mxu0 0
      %5227 = vmatmul.mubr.bf16.gmra.mrb[0].mxu0 %v5009
      %v5228 = vpop.f32.mrb[0].mxu0
      %v5229 = vadd.f32 0.0, %v5228
      %v5230 = vpop.f32.mrb[0].mxu0
      %v5231 = vpop.f32.mrb[0].mxu0
      %v5232 = vadd.f32 0.0, %v5231
      %v5233 = vpop.f32.mrb[0].mxu0
      %5234 = vmatprep.mubr.bf16.mxu0 0
      %5235 = vmatmul.mubr.bf16.gmra.mrb[0].mxu0 %v5012
      %v5236 = vpop.f32.mrb[0].mxu0
      %v5237 = vadd.f32 0.0, %v5236
      %v5238 = vpop.f32.mrb[0].mxu0
      %v5239 = vpop.f32.mrb[0].mxu0
      %v5240 = vadd.f32 0.0, %v5239
      %v5241 = vpop.f32.mrb[0].mxu0
      %5242 = vmatprep.mubr.bf16.mxu0 0
      %5243 = vmatmul.mubr.bf16.gmra.mrb[0].mxu0 %v5015
      %v5244 = vpop.f32.mrb[0].mxu0
      %v5245 = vadd.f32 0.0, %v5244
      %v5246 = vpop.f32.mrb[0].mxu0
      %v5247 = vpop.f32.mrb[0].mxu0
      %v5248 = vadd.f32 0.0, %v5247
      %v5249 = vpop.f32.mrb[0].mxu0
      %5250 = vmatprep.mubr.bf16.mxu0 0
      %5251 = vmatmul.mubr.bf16.gmra.mrb[0].mxu0 %v5018
      %v5252 = vpop.f32.mrb[0].mxu0
      %v5253 = vadd.f32 0.0, %v5252
      %v5254 = vpop.f32.mrb[0].mxu0
      %v5255 = vpop.f32.mrb[0].mxu0
      %v5256 = vadd.f32 0.0, %v5255
      %v5257 = vpop.f32.mrb[0].mxu0
      %5258 = vmatprep.mubr.bf16.mxu0 0
      %5259 = vmatmul.mubr.bf16.gmra.mrb[0].mxu0 %v5021
      %v5260 = vpop.f32.mrb[0].mxu0
      %v5261 = vadd.f32 0.0, %v5260
      %v5262 = vpop.f32.mrb[0].mxu0
      %v5263 = vpop.f32.mrb[0].mxu0
      %v5264 = vadd.f32 0.0, %v5263
      %v5265 = vpop.f32.mrb[0].mxu0
      %5266 = vmatprep.mubr.bf16.mxu0 0
      %5267 = vmatmul.mubr.bf16.gmra.mrb[0].mxu0 %v5024
      %v5268 = vpop.f32.mrb[0].mxu0
      %v5269 = vadd.f32 0.0, %v5268
      %v5270 = vpop.f32.mrb[0].mxu0
      %v5271 = vpop.f32.mrb[0].mxu0
      %v5272 = vadd.f32 0.0, %v5271
      %v5273 = vpop.f32.mrb[0].mxu0
      %5274 = vmatprep.mubr.bf16.mxu0 0
      %5275 = vmatmul.mubr.bf16.gmra.mrb[0].mxu0 %v5027
      %v5276 = vpop.f32.mrb[0].mxu0
      %v5277 = vadd.f32 0.0, %v5276
      %v5278 = vpop.f32.mrb[0].mxu0
      %v5279 = vpop.f32.mrb[0].mxu0
      %v5280 = vadd.f32 0.0, %v5279
      %v5281 = vpop.f32.mrb[0].mxu0
      %5282 = vmatprep.mubr.bf16.mxu0 0
      %5283 = vmatmul.mubr.bf16.gmra.mrb[0].mxu0 %v5030
      %v5284 = vpop.f32.mrb[0].mxu0
      %v5285 = vadd.f32 0.0, %v5284
      %v5286 = vpop.f32.mrb[0].mxu0
      %v5287 = vpop.f32.mrb[0].mxu0
      %v5288 = vadd.f32 0.0, %v5287
      %v5289 = vpop.f32.mrb[0].mxu0
      %5290 = vmatprep.mubr.bf16.mxu0 0
      %5291 = vmatmul.mubr.bf16.gmra.mrb[0].mxu0 %v5033
      %v5292 = vpop.f32.mrb[0].mxu0
      %v5293 = vadd.f32 0.0, %v5292
      %v5294 = vpop.f32.mrb[0].mxu0
      %v5295 = vpop.f32.mrb[0].mxu0
      %v5296 = vadd.f32 0.0, %v5295
      %v5297 = vpop.f32.mrb[0].mxu0
      %5298 = vmatprep.mubr.bf16.mxu0 0
      %5299 = vmatmul.mubr.bf16.gmra.mrb[0].mxu0 %v5036
      %v5300 = vpop.f32.mrb[0].mxu0
      %v5301 = vadd.f32 0.0, %v5300
      %v5302 = vpop.f32.mrb[0].mxu0
      %v5303 = vpop.f32.mrb[0].mxu0
      %v5304 = vadd.f32 0.0, %v5303
      %v5305 = vpop.f32.mrb[0].mxu0
      %5306 = vmatprep.mubr.bf16.mxu0 0
      %5307 = vmatmul.mubr.bf16.gmra.mrb[0].mxu0 %v5039
      %v5308 = vpop.f32.mrb[0].mxu0
      %v5309 = vadd.f32 0.0, %v5308
      %v5310 = vpop.f32.mrb[0].mxu0
      %v5311 = vpop.f32.mrb[0].mxu0
      %v5312 = vadd.f32 0.0, %v5311
      %v5313 = vpop.f32.mrb[0].mxu0
      %5314 = vmatprep.mubr.bf16.mxu0 0
      %5315 = vmatmul.mubr.bf16.gmra.mrb[0].mxu0 %v5042
      %v5316 = vpop.f32.mrb[0].mxu0
      %v5317 = vadd.f32 0.0, %v5316
      %v5318 = vpop.f32.mrb[0].mxu0
      %v5319 = vpop.f32.mrb[0].mxu0
      %v5320 = vadd.f32 0.0, %v5319
      %v5321 = vpop.f32.mrb[0].mxu0
      %5322 = vmatprep.mubr.bf16.mxu0 0
      %5323 = vmatmul.mubr.bf16.gmra.mrb[0].mxu0 %v5045
      %v5324 = vpop.f32.mrb[0].mxu0
      %v5325 = vadd.f32 0.0, %v5324
      %v5326 = vpop.f32.mrb[0].mxu0
      %v5327 = vpop.f32.mrb[0].mxu0
      %v5328 = vadd.f32 0.0, %v5327
      %v5329 = vpop.f32.mrb[0].mxu0
      %5330 = vmatprep.mubr.bf16.mxu0 0
      %5331 = vmatmul.mubr.bf16.gmra.mrb[0].mxu0 %v5048
      %v5332 = vpop.f32.mrb[0].mxu0
      %v5333 = vadd.f32 0.0, %v5332
      %v5334 = vpop.f32.mrb[0].mxu0
      %v5335 = vpop.f32.mrb[0].mxu0
      %v5336 = vadd.f32 0.0, %v5335
      %v5337 = vpop.f32.mrb[0].mxu0
      %5338 = vmatprep.mubr.bf16.mxu0 0
      %5339 = vmatmul.mubr.bf16.gmra.mrb[0].mxu0 %v5051
      %v5340 = vpop.f32.mrb[0].mxu0
      %v5341 = vadd.f32 0.0, %v5340
      %v5342 = vpop.f32.mrb[0].mxu0
      %v5343 = vpop.f32.mrb[0].mxu0
      %v5344 = vadd.f32 0.0, %v5343
      %v5345 = vpop.f32.mrb[0].mxu0
      %5346 = vmatprep.mubr.bf16.mxu0 0
      %5347 = vmatmul.mubr.bf16.gmra.mrb[0].mxu0 %v5054
      %v5348 = vpop.f32.mrb[0].mxu0
      %v5349 = vadd.f32 0.0, %v5348
      %v5350 = vpop.f32.mrb[0].mxu0
      %v5351 = vpop.f32.mrb[0].mxu0
      %v5352 = vadd.f32 0.0, %v5351
      %v5353 = vpop.f32.mrb[0].mxu0
      %5354 = vmatprep.mubr.bf16.mxu0 0
      %5355 = vmatmul.mubr.bf16.gmra.mrb[0].mxu0 %v5057
      %v5356 = vpop.f32.mrb[0].mxu0
      %v5357 = vadd.f32 0.0, %v5356
      %v5358 = vpop.f32.mrb[0].mxu0
      %v5359 = vpop.f32.mrb[0].mxu0
      %v5360 = vadd.f32 0.0, %v5359
      %v5361 = vpop.f32.mrb[0].mxu0
      %5362 = vmatprep.mubr.bf16.mxu0 0
      %5363 = vmatmul.mubr.bf16.gmra.mrb[0].mxu0 %v5060
      %v5364 = vpop.f32.mrb[0].mxu0
      %v5365 = vadd.f32 0.0, %v5364
      %v5366 = vpop.f32.mrb[0].mxu0
      %v5367 = vpop.f32.mrb[0].mxu0
      %v5368 = vadd.f32 0.0, %v5367
      %v5369 = vpop.f32.mrb[0].mxu0
      %5370 = vmatprep.mubr.bf16.mxu0 0
      %5371 = vmatmul.mubr.bf16.gmra.mrb[0].mxu0 %v5063
      %v5372 = vpop.f32.mrb[0].mxu0
      %v5373 = vadd.f32 0.0, %v5372
      %v5374 = vpop.f32.mrb[0].mxu0
      %v5375 = vpop.f32.mrb[0].mxu0
      %v5376 = vadd.f32 0.0, %v5375
      %v5377 = vpop.f32.mrb[0].mxu0
      %5378 = vmatprep.mubr.bf16.mxu0 0
      %5379 = vmatmul.mubr.bf16.gmra.mrb[0].mxu0 %v5066
      %v5380 = vpop.f32.mrb[0].mxu0
      %v5381 = vadd.f32 0.0, %v5380
      %v5382 = vpop.f32.mrb[0].mxu0
      %v5383 = vpop.f32.mrb[0].mxu0
      %v5384 = vadd.f32 0.0, %v5383
      %v5385 = vpop.f32.mrb[0].mxu0
      %5386 = vmatprep.mubr.bf16.mxu0 0
      %5387 = vmatmul.mubr.bf16.gmra.mrb[0].mxu0 %v5069
      %v5388 = vpop.f32.mrb[0].mxu0
      %v5389 = vadd.f32 0.0, %v5388
      %v5390 = vpop.f32.mrb[0].mxu0
      %v5391 = vpop.f32.mrb[0].mxu0
      %v5392 = vadd.f32 0.0, %v5391
      %v5393 = vpop.f32.mrb[0].mxu0
      %5394 = vdwg.mxu0
      %v5395 = vadd.f32 %v3899, %v5109
      %v5396 = vadd.f32 %v3900, %v5112
      %v5397 = vadd.f32 %v3901, %v5117
      %v5398 = vadd.f32 %v3902, %v5120
      %v5399 = vadd.f32 %v3903, %v5125
      %v5400 = vadd.f32 %v3904, %v5128
      %v5401 = vadd.f32 %v3905, %v5133
      %v5402 = vadd.f32 %v3906, %v5136
      %v5403 = vadd.f32 %v3907, %v5141
      %v5404 = vadd.f32 %v3908, %v5144
      %v5405 = vadd.f32 %v3909, %v5149
      %v5406 = vadd.f32 %v3910, %v5152
      %v5407 = vadd.f32 %v3911, %v5157
      %v5408 = vadd.f32 %v3912, %v5160
      %v5409 = vadd.f32 %v3913, %v5165
      %v5410 = vadd.f32 %v3914, %v5168
      %v5411 = vadd.f32 %v3915, %v5173
      %v5412 = vadd.f32 %v3916, %v5176
      %v5413 = vadd.f32 %v3917, %v5181
      %v5414 = vadd.f32 %v3918, %v5184
      %v5415 = vadd.f32 %v3919, %v5189
      %v5416 = vadd.f32 %v3920, %v5192
      %v5417 = vadd.f32 %v3921, %v5197
      %v5418 = vadd.f32 %v3922, %v5200
      %v5419 = vadd.f32 %v3923, %v5205
      %v5420 = vadd.f32 %v3924, %v5208
      %v5421 = vadd.f32 %v3925, %v5213
      %v5422 = vadd.f32 %v3926, %v5216
      %v5423 = vadd.f32 %v3927, %v5221
      %v5424 = vadd.f32 %v3928, %v5224
      %v5425 = vadd.f32 %v3929, %v5229
      %v5426 = vadd.f32 %v3930, %v5232
      %v5427 = vadd.f32 %v3931, %v5237
      %v5428 = vadd.f32 %v3932, %v5240
      %v5429 = vadd.f32 %v3933, %v5245
      %v5430 = vadd.f32 %v3934, %v5248
      %v5431 = vadd.f32 %v3935, %v5253
      %v5432 = vadd.f32 %v3936, %v5256
      %v5433 = vadd.f32 %v3937, %v5261
      %v5434 = vadd.f32 %v3938, %v5264
      %v5435 = vadd.f32 %v3939, %v5269
      %v5436 = vadd.f32 %v3940, %v5272
      %v5437 = vadd.f32 %v3941, %v5277
      %v5438 = vadd.f32 %v3942, %v5280
      %v5439 = vadd.f32 %v3943, %v5285
      %v5440 = vadd.f32 %v3944, %v5288
      %v5441 = vadd.f32 %v3945, %v5293
      %v5442 = vadd.f32 %v3946, %v5296
      %v5443 = vadd.f32 %v3947, %v5301
      %v5444 = vadd.f32 %v3948, %v5304
      %v5445 = vadd.f32 %v3949, %v5309
      %v5446 = vadd.f32 %v3950, %v5312
      %v5447 = vadd.f32 %v3951, %v5317
      %v5448 = vadd.f32 %v3952, %v5320
      %v5449 = vadd.f32 %v3953, %v5325
      %v5450 = vadd.f32 %v3954, %v5328
      %v5451 = vadd.f32 %v3955, %v5333
      %v5452 = vadd.f32 %v3956, %v5336
      %v5453 = vadd.f32 %v3957, %v5341
      %v5454 = vadd.f32 %v3958, %v5344
      %v5455 = vadd.f32 %v3959, %v5349
      %v5456 = vadd.f32 %v3960, %v5352
      %v5457 = vadd.f32 %v3961, %v5357
      %v5458 = vadd.f32 %v3962, %v5360
      %v5459 = vadd.f32 %v3963, %v5365
      %v5460 = vadd.f32 %v3964, %v5368
      %v5461 = vadd.f32 %v3965, %v5373
      %v5462 = vadd.f32 %v3966, %v5376
      %v5463 = vadd.f32 %v3967, %v5381
      %v5464 = vadd.f32 %v3968, %v5384
      %v5465 = vadd.f32 %v3969, %v5389
      %v5466 = vadd.f32 %v3970, %v5392
      %v5467 = vld [vmem:[%s3212] sm:$0xe]
      %v5468 = vld [vmem:[%s3212 + $0x14] sm:$0xe]
      %v5469 = vld [vmem:[%s3212 + $0x28] sm:$0xe]
      %v5470 = vld [vmem:[%s3212 + $0x3c] sm:$0xe]
      %v5471 = vld [vmem:[%s3212 + $0x50] sm:$0xe]
      %v5472 = vld [vmem:[%s3212 + $0x64] sm:$0xe]
      %v5473 = vld [vmem:[%s3212 + $0x78] sm:$0xe]
      %v5474 = vld [vmem:[%s3212 + $0x8c] sm:$0xe]
      %v5475 = vld [vmem:[%s3212 + $0xa0] sm:$0xe]
      %v5476 = vld [vmem:[%s3212 + $0xb4] sm:$0xe]
      %v5477 = vld [vmem:[%s3212 + $0xc8] sm:$0xe]
      %v5478 = vld [vmem:[%s3212 + $0xdc] sm:$0xe]
      %v5479 = vld [vmem:[%s3212 + $0xf0] sm:$0xe]
      %v5480 = vld [vmem:[%s3212 + $0x104] sm:$0xe]
      %v5481 = vld [vmem:[%s3212 + $0x118] sm:$0xe]
      %v5482 = vld [vmem:[%s3212 + $0x12c] sm:$0xe]
      %v5483 = vld [vmem:[%s3212 + $0x140] sm:$0xe]
      %v5484 = vld [vmem:[%s3212 + $0x154] sm:$0xe]
      %v5575 = vrot.slane %v5467, 5
      %v5576 = vrot.slane %v5575, 4
      %v5577 = vrot.slane %v3972, 5
      %v5578 = vsel %vm2363, %v5576, %v5577
      %v5579 = vrot.slane %v5577, 4
      %v5580 = vrot.slane %v3973, 5
      %v5581 = vsel %vm2363, %v5579, %v5580
      %v5582 = vrot.slane %v5580, 4
      %v5583 = vrot.slane %v3974, 5
      %v5584 = vsel %vm2363, %v5582, %v5583
      %v5585 = vrot.slane %v5583, 4
      %v5586 = vrot.slane %v3975, 5
      %v5587 = vsel %vm2363, %v5585, %v5586
      %v5588 = vrot.slane %v5468, 5
      %v5589 = vrot.slane %v5588, 4
      %v5590 = vrot.slane %v3977, 5
      %v5591 = vsel %vm2363, %v5589, %v5590
      %v5592 = vrot.slane %v5590, 4
      %v5593 = vrot.slane %v3978, 5
      %v5594 = vsel %vm2363, %v5592, %v5593
      %v5595 = vrot.slane %v5593, 4
      %v5596 = vrot.slane %v3979, 5
      %v5597 = vsel %vm2363, %v5595, %v5596
      %v5598 = vrot.slane %v5596, 4
      %v5599 = vrot.slane %v3980, 5
      %v5600 = vsel %vm2363, %v5598, %v5599
      %v5601 = vrot.slane %v5469, 5
      %v5602 = vrot.slane %v5601, 4
      %v5603 = vrot.slane %v3982, 5
      %v5604 = vsel %vm2363, %v5602, %v5603
      %v5605 = vrot.slane %v5603, 4
      %v5606 = vrot.slane %v3983, 5
      %v5607 = vsel %vm2363, %v5605, %v5606
      %v5608 = vrot.slane %v5606, 4
      %v5609 = vrot.slane %v3984, 5
      %v5610 = vsel %vm2363, %v5608, %v5609
      %v5611 = vrot.slane %v5609, 4
      %v5612 = vrot.slane %v3985, 5
      %v5613 = vsel %vm2363, %v5611, %v5612
      %v5614 = vrot.slane %v5470, 5
      %v5615 = vrot.slane %v5614, 4
      %v5616 = vrot.slane %v3987, 5
      %v5617 = vsel %vm2363, %v5615, %v5616
      %v5618 = vrot.slane %v5616, 4
      %v5619 = vrot.slane %v3988, 5
      %v5620 = vsel %vm2363, %v5618, %v5619
      %v5621 = vrot.slane %v5619, 4
      %v5622 = vrot.slane %v3989, 5
      %v5623 = vsel %vm2363, %v5621, %v5622
      %v5624 = vrot.slane %v5622, 4
      %v5625 = vrot.slane %v3990, 5
      %v5626 = vsel %vm2363, %v5624, %v5625
      %v5627 = vrot.slane %v5471, 5
      %v5628 = vrot.slane %v5627, 4
      %v5629 = vrot.slane %v3992, 5
      %v5630 = vsel %vm2363, %v5628, %v5629
      %v5631 = vrot.slane %v5629, 4
      %v5632 = vrot.slane %v3993, 5
      %v5633 = vsel %vm2363, %v5631, %v5632
      %v5634 = vrot.slane %v5632, 4
      %v5635 = vrot.slane %v3994, 5
      %v5636 = vsel %vm2363, %v5634, %v5635
      %v5637 = vrot.slane %v5635, 4
      %v5638 = vrot.slane %v3995, 5
      %v5639 = vsel %vm2363, %v5637, %v5638
      %v5640 = vrot.slane %v5472, 5
      %v5641 = vrot.slane %v5640, 4
      %v5642 = vrot.slane %v3997, 5
      %v5643 = vsel %vm2363, %v5641, %v5642
      %v5644 = vrot.slane %v5642, 4
      %v5645 = vrot.slane %v3998, 5
      %v5646 = vsel %vm2363, %v5644, %v5645
      %v5647 = vrot.slane %v5645, 4
      %v5648 = vrot.slane %v3999, 5
      %v5649 = vsel %vm2363, %v5647, %v5648
      %v5650 = vrot.slane %v5648, 4
      %v5651 = vrot.slane %v4000, 5
      %v5652 = vsel %vm2363, %v5650, %v5651
      %v5653 = vrot.slane %v5473, 5
      %v5654 = vrot.slane %v5653, 4
      %v5655 = vrot.slane %v4002, 5
      %v5656 = vsel %vm2363, %v5654, %v5655
      %v5657 = vrot.slane %v5655, 4
      %v5658 = vrot.slane %v4003, 5
      %v5659 = vsel %vm2363, %v5657, %v5658
      %v5660 = vrot.slane %v5658, 4
      %v5661 = vrot.slane %v4004, 5
      %v5662 = vsel %vm2363, %v5660, %v5661
      %v5663 = vrot.slane %v5661, 4
      %v5664 = vrot.slane %v4005, 5
      %v5665 = vsel %vm2363, %v5663, %v5664
      %v5666 = vrot.slane %v5474, 5
      %v5667 = vrot.slane %v5666, 4
      %v5668 = vrot.slane %v4007, 5
      %v5669 = vsel %vm2363, %v5667, %v5668
      %v5670 = vrot.slane %v5668, 4
      %v5671 = vrot.slane %v4008, 5
      %v5672 = vsel %vm2363, %v5670, %v5671
      %v5673 = vrot.slane %v5671, 4
      %v5674 = vrot.slane %v4009, 5
      %v5675 = vsel %vm2363, %v5673, %v5674
      %v5676 = vrot.slane %v5674, 4
      %v5677 = vrot.slane %v4010, 5
      %v5678 = vsel %vm2363, %v5676, %v5677
      %v5679 = vrot.slane %v5475, 5
      %v5680 = vrot.slane %v5679, 4
      %v5681 = vrot.slane %v4012, 5
      %v5682 = vsel %vm2363, %v5680, %v5681
      %v5683 = vrot.slane %v5681, 4
      %v5684 = vrot.slane %v4013, 5
      %v5685 = vsel %vm2363, %v5683, %v5684
      %v5686 = vrot.slane %v5684, 4
      %v5687 = vrot.slane %v4014, 5
      %v5688 = vsel %vm2363, %v5686, %v5687
      %v5689 = vrot.slane %v5687, 4
      %v5690 = vrot.slane %v4015, 5
      %v5691 = vsel %vm2363, %v5689, %v5690
      %v5692 = vrot.slane %v5476, 5
      %v5693 = vrot.slane %v5692, 4
      %v5694 = vrot.slane %v4017, 5
      %v5695 = vsel %vm2363, %v5693, %v5694
      %v5696 = vrot.slane %v5694, 4
      %v5697 = vrot.slane %v4018, 5
      %v5698 = vsel %vm2363, %v5696, %v5697
      %v5699 = vrot.slane %v5697, 4
      %v5700 = vrot.slane %v4019, 5
      %v5701 = vsel %vm2363, %v5699, %v5700
      %v5702 = vrot.slane %v5700, 4
      %v5703 = vrot.slane %v4020, 5
      %v5704 = vsel %vm2363, %v5702, %v5703
      %v5705 = vrot.slane %v5477, 5
      %v5706 = vrot.slane %v5705, 4
      %v5707 = vrot.slane %v4022, 5
      %v5708 = vsel %vm2363, %v5706, %v5707
      %v5709 = vrot.slane %v5707, 4
      %v5710 = vrot.slane %v4023, 5
      %v5711 = vsel %vm2363, %v5709, %v5710
      %v5712 = vrot.slane %v5710, 4
      %v5713 = vrot.slane %v4024, 5
      %v5714 = vsel %vm2363, %v5712, %v5713
      %v5715 = vrot.slane %v5713, 4
      %v5716 = vrot.slane %v4025, 5
      %v5717 = vsel %vm2363, %v5715, %v5716
      %v5718 = vrot.slane %v5478, 5
      %v5719 = vrot.slane %v5718, 4
      %v5720 = vrot.slane %v4027, 5
      %v5721 = vsel %vm2363, %v5719, %v5720
      %v5722 = vrot.slane %v5720, 4
      %v5723 = vrot.slane %v4028, 5
      %v5724 = vsel %vm2363, %v5722, %v5723
      %v5725 = vrot.slane %v5723, 4
      %v5726 = vrot.slane %v4029, 5
      %v5727 = vsel %vm2363, %v5725, %v5726
      %v5728 = vrot.slane %v5726, 4
      %v5729 = vrot.slane %v4030, 5
      %v5730 = vsel %vm2363, %v5728, %v5729
      %v5731 = vrot.slane %v5479, 5
      %v5732 = vrot.slane %v5731, 4
      %v5733 = vrot.slane %v4032, 5
      %v5734 = vsel %vm2363, %v5732, %v5733
      %v5735 = vrot.slane %v5733, 4
      %v5736 = vrot.slane %v4033, 5
      %v5737 = vsel %vm2363, %v5735, %v5736
      %v5738 = vrot.slane %v5736, 4
      %v5739 = vrot.slane %v4034, 5
      %v5740 = vsel %vm2363, %v5738, %v5739
      %v5741 = vrot.slane %v5739, 4
      %v5742 = vrot.slane %v4035, 5
      %v5743 = vsel %vm2363, %v5741, %v5742
      %v5744 = vrot.slane %v5480, 5
      %v5745 = vrot.slane %v5744, 4
      %v5746 = vrot.slane %v4037, 5
      %v5747 = vsel %vm2363, %v5745, %v5746
      %v5748 = vrot.slane %v5746, 4
      %v5749 = vrot.slane %v4038, 5
      %v5750 = vsel %vm2363, %v5748, %v5749
      %v5751 = vrot.slane %v5749, 4
      %v5752 = vrot.slane %v4039, 5
      %v5753 = vsel %vm2363, %v5751, %v5752
      %v5754 = vrot.slane %v5752, 4
      %v5755 = vrot.slane %v4040, 5
      %v5756 = vsel %vm2363, %v5754, %v5755
      %v5757 = vrot.slane %v5481, 5
      %v5758 = vrot.slane %v5757, 4
      %v5759 = vrot.slane %v4042, 5
      %v5760 = vsel %vm2363, %v5758, %v5759
      %v5761 = vrot.slane %v5759, 4
      %v5762 = vrot.slane %v4043, 5
      %v5763 = vsel %vm2363, %v5761, %v5762
      %v5764 = vrot.slane %v5762, 4
      %v5765 = vrot.slane %v4044, 5
      %v5766 = vsel %vm2363, %v5764, %v5765
      %v5767 = vrot.slane %v5765, 4
      %v5768 = vrot.slane %v4045, 5
      %v5769 = vsel %vm2363, %v5767, %v5768
      %v5770 = vrot.slane %v5482, 5
      %v5771 = vrot.slane %v5770, 4
      %v5772 = vrot.slane %v4047, 5
      %v5773 = vsel %vm2363, %v5771, %v5772
      %v5774 = vrot.slane %v5772, 4
      %v5775 = vrot.slane %v4048, 5
      %v5776 = vsel %vm2363, %v5774, %v5775
      %v5777 = vrot.slane %v5775, 4
      %v5778 = vrot.slane %v4049, 5
      %v5779 = vsel %vm2363, %v5777, %v5778
      %v5780 = vrot.slane %v5778, 4
      %v5781 = vrot.slane %v4050, 5
      %v5782 = vsel %vm2363, %v5780, %v5781
      %v5783 = vrot.slane %v5483, 5
      %v5784 = vrot.slane %v5783, 4
      %v5785 = vrot.slane %v4052, 5
      %v5786 = vsel %vm2363, %v5784, %v5785
      %v5787 = vrot.slane %v5785, 4
      %v5788 = vrot.slane %v4053, 5
      %v5789 = vsel %vm2363, %v5787, %v5788
      %v5790 = vrot.slane %v5788, 4
      %v5791 = vrot.slane %v4054, 5
      %v5792 = vsel %vm2363, %v5790, %v5791
      %v5793 = vrot.slane %v5791, 4
      %v5794 = vrot.slane %v4055, 5
      %v5795 = vsel %vm2363, %v5793, %v5794
      %v5796 = vrot.slane %v5484, 5
      %v5797 = vrot.slane %v5796, 4
      %v5798 = vrot.slane %v4057, 5
      %v5799 = vsel %vm2363, %v5797, %v5798
      %v5800 = vrot.slane %v5798, 4
      %v5801 = vrot.slane %v4058, 5
      %v5802 = vsel %vm2363, %v5800, %v5801
      %v5803 = vrot.slane %v5801, 4
      %v5804 = vrot.slane %v4059, 5
      %v5805 = vsel %vm2363, %v5803, %v5804
      %v5806 = vrot.slane %v5804, 4
      %v5807 = vrot.slane %v4060, 5
      %v5808 = vsel %vm2363, %v5806, %v5807
      %s5809 = scalar_lea.vmem %s1, 10
      %v5810 = vld [vmem:[%s5809] sm:$0x3]
      %v5811 = vunpack.c.l.b16 %v5578
      %v5812 = vunpack.c.l.b16 %v5581
      %v5813 = vunpack.c.l.b16 %v5584
      %v5814 = vunpack.c.l.b16 %v5587
      %v5815 = vunpack.c.l.b16 %v5591
      %v5816 = vunpack.c.l.b16 %v5594
      %v5817 = vunpack.c.l.b16 %v5597
      %v5818 = vunpack.c.l.b16 %v5600
      %v5819 = vunpack.c.l.b16 %v5604
      %v5820 = vunpack.c.l.b16 %v5607
      %v5821 = vunpack.c.l.b16 %v5610
      %v5822 = vunpack.c.l.b16 %v5613
      %v5823 = vunpack.c.l.b16 %v5617
      %v5824 = vunpack.c.l.b16 %v5620
      %v5825 = vunpack.c.l.b16 %v5623
      %v5826 = vunpack.c.l.b16 %v5626
      %v5827 = vunpack.c.l.b16 %v5630
      %v5828 = vunpack.c.l.b16 %v5633
      %v5829 = vunpack.c.l.b16 %v5636
      %v5830 = vunpack.c.l.b16 %v5639
      %v5831 = vunpack.c.l.b16 %v5643
      %v5832 = vunpack.c.l.b16 %v5646
      %v5833 = vunpack.c.l.b16 %v5649
      %v5834 = vunpack.c.l.b16 %v5652
      %v5835 = vunpack.c.l.b16 %v5656
      %v5836 = vunpack.c.l.b16 %v5659
      %v5837 = vunpack.c.l.b16 %v5662
      %v5838 = vunpack.c.l.b16 %v5665
      %v5839 = vunpack.c.l.b16 %v5669
      %v5840 = vunpack.c.l.b16 %v5672
      %v5841 = vunpack.c.l.b16 %v5675
      %v5842 = vunpack.c.l.b16 %v5678
      %v5843 = vunpack.c.l.b16 %v5682
      %v5844 = vunpack.c.l.b16 %v5685
      %v5845 = vunpack.c.l.b16 %v5688
      %v5846 = vunpack.c.l.b16 %v5691
      %v5847 = vunpack.c.l.b16 %v5695
      %v5848 = vunpack.c.l.b16 %v5698
      %v5849 = vunpack.c.l.b16 %v5701
      %v5850 = vunpack.c.l.b16 %v5704
      %v5851 = vunpack.c.l.b16 %v5708
      %v5852 = vunpack.c.l.b16 %v5711
      %v5853 = vunpack.c.l.b16 %v5714
      %v5854 = vunpack.c.l.b16 %v5717
      %v5855 = vunpack.c.l.b16 %v5721
      %v5856 = vunpack.c.l.b16 %v5724
      %v5857 = vunpack.c.l.b16 %v5727
      %v5858 = vunpack.c.l.b16 %v5730
      %v5859 = vunpack.c.l.b16 %v5734
      %v5860 = vunpack.c.l.b16 %v5737
      %v5861 = vunpack.c.l.b16 %v5740
      %v5862 = vunpack.c.l.b16 %v5743
      %v5863 = vunpack.c.l.b16 %v5747
      %v5864 = vunpack.c.l.b16 %v5750
      %v5865 = vunpack.c.l.b16 %v5753
      %v5866 = vunpack.c.l.b16 %v5756
      %v5867 = vunpack.c.l.b16 %v5760
      %v5868 = vunpack.c.l.b16 %v5763
      %v5869 = vunpack.c.l.b16 %v5766
      %v5870 = vunpack.c.l.b16 %v5769
      %v5871 = vunpack.c.l.b16 %v5773
      %v5872 = vunpack.c.l.b16 %v5776
      %v5873 = vunpack.c.l.b16 %v5779
      %v5874 = vunpack.c.l.b16 %v5782
      %v5875 = vunpack.c.l.b16 %v5786
      %v5876 = vunpack.c.l.b16 %v5789
      %v5877 = vunpack.c.l.b16 %v5792
      %v5878 = vunpack.c.l.b16 %v5795
      %v5879 = vunpack.c.l.b16 %v5799
      %v5880 = vunpack.c.l.b16 %v5802
      %v5881 = vunpack.c.l.b16 %v5805
      %v5882 = vunpack.c.l.b16 %v5808
      %v5883 = vpack.c.b16 %v5812, %v5811
      %v5884 = vpack.c.b16 %v5814, %v5813
      %v5885 = vpack.c.b16 %v5816, %v5815
      %v5886 = vpack.c.b16 %v5818, %v5817
      %v5887 = vpack.c.b16 %v5820, %v5819
      %v5888 = vpack.c.b16 %v5822, %v5821
      %v5889 = vpack.c.b16 %v5824, %v5823
      %v5890 = vpack.c.b16 %v5826, %v5825
      %v5891 = vpack.c.b16 %v5828, %v5827
      %v5892 = vpack.c.b16 %v5830, %v5829
      %v5893 = vpack.c.b16 %v5832, %v5831
      %v5894 = vpack.c.b16 %v5834, %v5833
      %v5895 = vpack.c.b16 %v5836, %v5835
      %v5896 = vpack.c.b16 %v5838, %v5837
      %v5897 = vpack.c.b16 %v5840, %v5839
      %v5898 = vpack.c.b16 %v5842, %v5841
      %v5899 = vpack.c.b16 %v5844, %v5843
      %v5900 = vpack.c.b16 %v5846, %v5845
      %v5901 = vpack.c.b16 %v5848, %v5847
      %v5902 = vpack.c.b16 %v5850, %v5849
      %v5903 = vpack.c.b16 %v5852, %v5851
      %v5904 = vpack.c.b16 %v5854, %v5853
      %v5905 = vpack.c.b16 %v5856, %v5855
      %v5906 = vpack.c.b16 %v5858, %v5857
      %v5907 = vpack.c.b16 %v5860, %v5859
      %v5908 = vpack.c.b16 %v5862, %v5861
      %v5909 = vpack.c.b16 %v5864, %v5863
      %v5910 = vpack.c.b16 %v5866, %v5865
      %v5911 = vpack.c.b16 %v5868, %v5867
      %v5912 = vpack.c.b16 %v5870, %v5869
      %v5913 = vpack.c.b16 %v5872, %v5871
      %v5914 = vpack.c.b16 %v5874, %v5873
      %v5915 = vpack.c.b16 %v5876, %v5875
      %v5916 = vpack.c.b16 %v5878, %v5877
      %v5917 = vpack.c.b16 %v5880, %v5879
      %v5918 = vpack.c.b16 %v5882, %v5881
      %v5920 = vsel %vm1261, %v5883, 0
      %v5923 = vsel %vm1261, %v5884, 0
      %v5926 = vsel %vm1261, %v5885, 0
      %v5929 = vsel %vm1261, %v5886, 0
      %v5932 = vsel %vm1261, %v5887, 0
      %v5935 = vsel %vm1261, %v5888, 0
      %v5938 = vsel %vm1261, %v5889, 0
      %v5941 = vsel %vm1261, %v5890, 0
      %v5944 = vsel %vm1261, %v5891, 0
      %v5947 = vsel %vm1261, %v5892, 0
      %v5950 = vsel %vm1261, %v5893, 0
      %v5953 = vsel %vm1261, %v5894, 0
      %v5956 = vsel %vm1261, %v5895, 0
      %v5959 = vsel %vm1261, %v5896, 0
      %v5962 = vsel %vm1261, %v5897, 0
      %v5965 = vsel %vm1261, %v5898, 0
      %v5968 = vsel %vm1261, %v5899, 0
      %v5971 = vsel %vm1261, %v5900, 0
      %v5974 = vsel %vm1261, %v5901, 0
      %v5977 = vsel %vm1261, %v5902, 0
      %v5980 = vsel %vm1261, %v5903, 0
      %v5983 = vsel %vm1261, %v5904, 0
      %v5986 = vsel %vm1261, %v5905, 0
      %v5989 = vsel %vm1261, %v5906, 0
      %v5992 = vsel %vm1261, %v5907, 0
      %v5995 = vsel %vm1261, %v5908, 0
      %v5998 = vsel %vm1261, %v5909, 0
      %v6001 = vsel %vm1261, %v5910, 0
      %v6004 = vsel %vm1261, %v5911, 0
      %v6007 = vsel %vm1261, %v5912, 0
      %v6010 = vsel %vm1261, %v5913, 0
      %v6013 = vsel %vm1261, %v5914, 0
      %v6016 = vsel %vm1261, %v5915, 0
      %v6019 = vsel %vm1261, %v5916, 0
      %v6022 = vsel %vm1261, %v5917, 0
      %v6025 = vsel %vm1261, %v5918, 0
      %v6028 = vsel %vm1370, %v5810, 0
      %6030 = vmatprep.subr.bf16.mxu0 0
      %6031 = vmatpush1.bf16.msra.mxu0 %v6028
      %6032 = vmatprep.subr.bf16.mxu0 0
      %6033 = vmatpush1.bf16.msra.mxu0 0
      %6034 = vmatprep.subr.bf16.mxu0 0
      %6035 = vmatpush1.bf16.msra.mxu0 0
      %6036 = vmatprep.subr.bf16.mxu0 0
      %6037 = vmatpush1.bf16.msra.mxu0 0
      %6038 = vmatprep.subr.bf16.mxu0 0
      %6039 = vmatpush1.bf16.msra.mxu0 0
      %6040 = vmatprep.subr.bf16.mxu0 0
      %6041 = vmatpush1.bf16.msra.mxu0 0
      %6042 = vmatprep.subr.bf16.mxu0 0
      %6043 = vmatpush1.bf16.msra.mxu0 0
      %6044 = vmatprep.subr.bf16.mxu0 0
      %6045 = vmatpush1.bf16.msra.mxu0 0
      %6046 = vmatprep.subr.bf16.mxu0 0
      %6047 = vmatpush1.bf16.msra.mxu0 0
      %6048 = vmatprep.subr.bf16.mxu0 0
      %6049 = vmatpush1.bf16.msra.mxu0 0
      %6050 = vmatprep.subr.bf16.mxu0 0
      %6051 = vmatpush1.bf16.msra.mxu0 0
      %6052 = vmatprep.subr.bf16.mxu0 0
      %6053 = vmatpush1.bf16.msra.mxu0 0
      %6054 = vmatprep.subr.bf16.mxu0 0
      %6055 = vmatpush1.bf16.msra.mxu0 0
      %6056 = vmatprep.subr.bf16.mxu0 0
      %6057 = vmatpush1.bf16.msra.mxu0 0
      %6058 = vmatprep.subr.bf16.mxu0 0
      %6059 = vmatpush1.bf16.msra.mxu0 0
      %6060 = vmatprep.subr.bf16.mxu0 0
      %6061 = vmatpush1.bf16.msra.mxu0 0
      %6062 = vmatprep.mubr.bf16.mxu0 0
      %6063 = vmatmul.mubr.bf16.gmra.mrb[0].mxu0 %v5920
      %v6064 = vpop.f32.mrb[0].mxu0
      %v6065 = vadd.f32 0.0, %v6064
      %v6066 = vpop.f32.mrb[0].mxu0
      %v6067 = vpop.f32.mrb[0].mxu0
      %v6068 = vadd.f32 0.0, %v6067
      %v6069 = vpop.f32.mrb[0].mxu0
      %6070 = vmatprep.mubr.bf16.mxu0 0
      %6071 = vmatmul.mubr.bf16.gmra.mrb[0].mxu0 %v5923
      %v6072 = vpop.f32.mrb[0].mxu0
      %v6073 = vadd.f32 0.0, %v6072
      %v6074 = vpop.f32.mrb[0].mxu0
      %v6075 = vpop.f32.mrb[0].mxu0
      %v6076 = vadd.f32 0.0, %v6075
      %v6077 = vpop.f32.mrb[0].mxu0
      %6078 = vmatprep.mubr.bf16.mxu0 0
      %6079 = vmatmul.mubr.bf16.gmra.mrb[0].mxu0 %v5926
      %v6080 = vpop.f32.mrb[0].mxu0
      %v6081 = vadd.f32 0.0, %v6080
      %v6082 = vpop.f32.mrb[0].mxu0
      %v6083 = vpop.f32.mrb[0].mxu0
      %v6084 = vadd.f32 0.0, %v6083
      %v6085 = vpop.f32.mrb[0].mxu0
      %6086 = vmatprep.mubr.bf16.mxu0 0
      %6087 = vmatmul.mubr.bf16.gmra.mrb[0].mxu0 %v5929
      %v6088 = vpop.f32.mrb[0].mxu0
      %v6089 = vadd.f32 0.0, %v6088
      %v6090 = vpop.f32.mrb[0].mxu0
      %v6091 = vpop.f32.mrb[0].mxu0
      %v6092 = vadd.f32 0.0, %v6091
      %v6093 = vpop.f32.mrb[0].mxu0
      %6094 = vmatprep.mubr.bf16.mxu0 0
      %6095 = vmatmul.mubr.bf16.gmra.mrb[0].mxu0 %v5932
      %v6096 = vpop.f32.mrb[0].mxu0
      %v6097 = vadd.f32 0.0, %v6096
      %v6098 = vpop.f32.mrb[0].mxu0
      %v6099 = vpop.f32.mrb[0].mxu0
      %v6100 = vadd.f32 0.0, %v6099
      %v6101 = vpop.f32.mrb[0].mxu0
      %6102 = vmatprep.mubr.bf16.mxu0 0
      %6103 = vmatmul.mubr.bf16.gmra.mrb[0].mxu0 %v5935
      %v6104 = vpop.f32.mrb[0].mxu0
      %v6105 = vadd.f32 0.0, %v6104
      %v6106 = vpop.f32.mrb[0].mxu0
      %v6107 = vpop.f32.mrb[0].mxu0
      %v6108 = vadd.f32 0.0, %v6107
      %v6109 = vpop.f32.mrb[0].mxu0
      %6110 = vmatprep.mubr.bf16.mxu0 0
      %6111 = vmatmul.mubr.bf16.gmra.mrb[0].mxu0 %v5938
      %v6112 = vpop.f32.mrb[0].mxu0
      %v6113 = vadd.f32 0.0, %v6112
      %v6114 = vpop.f32.mrb[0].mxu0
      %v6115 = vpop.f32.mrb[0].mxu0
      %v6116 = vadd.f32 0.0, %v6115
      %v6117 = vpop.f32.mrb[0].mxu0
      %6118 = vmatprep.mubr.bf16.mxu0 0
      %6119 = vmatmul.mubr.bf16.gmra.mrb[0].mxu0 %v5941
      %v6120 = vpop.f32.mrb[0].mxu0
      %v6121 = vadd.f32 0.0, %v6120
      %v6122 = vpop.f32.mrb[0].mxu0
      %v6123 = vpop.f32.mrb[0].mxu0
      %v6124 = vadd.f32 0.0, %v6123
      %v6125 = vpop.f32.mrb[0].mxu0
      %6126 = vmatprep.mubr.bf16.mxu0 0
      %6127 = vmatmul.mubr.bf16.gmra.mrb[0].mxu0 %v5944
      %v6128 = vpop.f32.mrb[0].mxu0
      %v6129 = vadd.f32 0.0, %v6128
      %v6130 = vpop.f32.mrb[0].mxu0
      %v6131 = vpop.f32.mrb[0].mxu0
      %v6132 = vadd.f32 0.0, %v6131
      %v6133 = vpop.f32.mrb[0].mxu0
      %6134 = vmatprep.mubr.bf16.mxu0 0
      %6135 = vmatmul.mubr.bf16.gmra.mrb[0].mxu0 %v5947
      %v6136 = vpop.f32.mrb[0].mxu0
      %v6137 = vadd.f32 0.0, %v6136
      %v6138 = vpop.f32.mrb[0].mxu0
      %v6139 = vpop.f32.mrb[0].mxu0
      %v6140 = vadd.f32 0.0, %v6139
      %v6141 = vpop.f32.mrb[0].mxu0
      %6142 = vmatprep.mubr.bf16.mxu0 0
      %6143 = vmatmul.mubr.bf16.gmra.mrb[0].mxu0 %v5950
      %v6144 = vpop.f32.mrb[0].mxu0
      %v6145 = vadd.f32 0.0, %v6144
      %v6146 = vpop.f32.mrb[0].mxu0
      %v6147 = vpop.f32.mrb[0].mxu0
      %v6148 = vadd.f32 0.0, %v6147
      %v6149 = vpop.f32.mrb[0].mxu0
      %6150 = vmatprep.mubr.bf16.mxu0 0
      %6151 = vmatmul.mubr.bf16.gmra.mrb[0].mxu0 %v5953
      %v6152 = vpop.f32.mrb[0].mxu0
      %v6153 = vadd.f32 0.0, %v6152
      %v6154 = vpop.f32.mrb[0].mxu0
      %v6155 = vpop.f32.mrb[0].mxu0
      %v6156 = vadd.f32 0.0, %v6155
      %v6157 = vpop.f32.mrb[0].mxu0
      %6158 = vmatprep.mubr.bf16.mxu0 0
      %6159 = vmatmul.mubr.bf16.gmra.mrb[0].mxu0 %v5956
      %v6160 = vpop.f32.mrb[0].mxu0
      %v6161 = vadd.f32 0.0, %v6160
      %v6162 = vpop.f32.mrb[0].mxu0
      %v6163 = vpop.f32.mrb[0].mxu0
      %v6164 = vadd.f32 0.0, %v6163
      %v6165 = vpop.f32.mrb[0].mxu0
      %6166 = vmatprep.mubr.bf16.mxu0 0
      %6167 = vmatmul.mubr.bf16.gmra.mrb[0].mxu0 %v5959
      %v6168 = vpop.f32.mrb[0].mxu0
      %v6169 = vadd.f32 0.0, %v6168
      %v6170 = vpop.f32.mrb[0].mxu0
      %v6171 = vpop.f32.mrb[0].mxu0
      %v6172 = vadd.f32 0.0, %v6171
      %v6173 = vpop.f32.mrb[0].mxu0
      %6174 = vmatprep.mubr.bf16.mxu0 0
      %6175 = vmatmul.mubr.bf16.gmra.mrb[0].mxu0 %v5962
      %v6176 = vpop.f32.mrb[0].mxu0
      %v6177 = vadd.f32 0.0, %v6176
      %v6178 = vpop.f32.mrb[0].mxu0
      %v6179 = vpop.f32.mrb[0].mxu0
      %v6180 = vadd.f32 0.0, %v6179
      %v6181 = vpop.f32.mrb[0].mxu0
      %6182 = vmatprep.mubr.bf16.mxu0 0
      %6183 = vmatmul.mubr.bf16.gmra.mrb[0].mxu0 %v5965
      %v6184 = vpop.f32.mrb[0].mxu0
      %v6185 = vadd.f32 0.0, %v6184
      %v6186 = vpop.f32.mrb[0].mxu0
      %v6187 = vpop.f32.mrb[0].mxu0
      %v6188 = vadd.f32 0.0, %v6187
      %v6189 = vpop.f32.mrb[0].mxu0
      %6190 = vmatprep.mubr.bf16.mxu0 0
      %6191 = vmatmul.mubr.bf16.gmra.mrb[0].mxu0 %v5968
      %v6192 = vpop.f32.mrb[0].mxu0
      %v6193 = vadd.f32 0.0, %v6192
      %v6194 = vpop.f32.mrb[0].mxu0
      %v6195 = vpop.f32.mrb[0].mxu0
      %v6196 = vadd.f32 0.0, %v6195
      %v6197 = vpop.f32.mrb[0].mxu0
      %6198 = vmatprep.mubr.bf16.mxu0 0
      %6199 = vmatmul.mubr.bf16.gmra.mrb[0].mxu0 %v5971
      %v6200 = vpop.f32.mrb[0].mxu0
      %v6201 = vadd.f32 0.0, %v6200
      %v6202 = vpop.f32.mrb[0].mxu0
      %v6203 = vpop.f32.mrb[0].mxu0
      %v6204 = vadd.f32 0.0, %v6203
      %v6205 = vpop.f32.mrb[0].mxu0
      %6206 = vmatprep.mubr.bf16.mxu0 0
      %6207 = vmatmul.mubr.bf16.gmra.mrb[0].mxu0 %v5974
      %v6208 = vpop.f32.mrb[0].mxu0
      %v6209 = vadd.f32 0.0, %v6208
      %v6210 = vpop.f32.mrb[0].mxu0
      %v6211 = vpop.f32.mrb[0].mxu0
      %v6212 = vadd.f32 0.0, %v6211
      %v6213 = vpop.f32.mrb[0].mxu0
      %6214 = vmatprep.mubr.bf16.mxu0 0
      %6215 = vmatmul.mubr.bf16.gmra.mrb[0].mxu0 %v5977
      %v6216 = vpop.f32.mrb[0].mxu0
      %v6217 = vadd.f32 0.0, %v6216
      %v6218 = vpop.f32.mrb[0].mxu0
      %v6219 = vpop.f32.mrb[0].mxu0
      %v6220 = vadd.f32 0.0, %v6219
      %v6221 = vpop.f32.mrb[0].mxu0
      %6222 = vmatprep.mubr.bf16.mxu0 0
      %6223 = vmatmul.mubr.bf16.gmra.mrb[0].mxu0 %v5980
      %v6224 = vpop.f32.mrb[0].mxu0
      %v6225 = vadd.f32 0.0, %v6224
      %v6226 = vpop.f32.mrb[0].mxu0
      %v6227 = vpop.f32.mrb[0].mxu0
      %v6228 = vadd.f32 0.0, %v6227
      %v6229 = vpop.f32.mrb[0].mxu0
      %6230 = vmatprep.mubr.bf16.mxu0 0
      %6231 = vmatmul.mubr.bf16.gmra.mrb[0].mxu0 %v5983
      %v6232 = vpop.f32.mrb[0].mxu0
      %v6233 = vadd.f32 0.0, %v6232
      %v6234 = vpop.f32.mrb[0].mxu0
      %v6235 = vpop.f32.mrb[0].mxu0
      %v6236 = vadd.f32 0.0, %v6235
      %v6237 = vpop.f32.mrb[0].mxu0
      %6238 = vmatprep.mubr.bf16.mxu0 0
      %6239 = vmatmul.mubr.bf16.gmra.mrb[0].mxu0 %v5986
      %v6240 = vpop.f32.mrb[0].mxu0
      %v6241 = vadd.f32 0.0, %v6240
      %v6242 = vpop.f32.mrb[0].mxu0
      %v6243 = vpop.f32.mrb[0].mxu0
      %v6244 = vadd.f32 0.0, %v6243
      %v6245 = vpop.f32.mrb[0].mxu0
      %6246 = vmatprep.mubr.bf16.mxu0 0
      %6247 = vmatmul.mubr.bf16.gmra.mrb[0].mxu0 %v5989
      %v6248 = vpop.f32.mrb[0].mxu0
      %v6249 = vadd.f32 0.0, %v6248
      %v6250 = vpop.f32.mrb[0].mxu0
      %v6251 = vpop.f32.mrb[0].mxu0
      %v6252 = vadd.f32 0.0, %v6251
      %v6253 = vpop.f32.mrb[0].mxu0
      %6254 = vmatprep.mubr.bf16.mxu0 0
      %6255 = vmatmul.mubr.bf16.gmra.mrb[0].mxu0 %v5992
      %v6256 = vpop.f32.mrb[0].mxu0
      %v6257 = vadd.f32 0.0, %v6256
      %v6258 = vpop.f32.mrb[0].mxu0
      %v6259 = vpop.f32.mrb[0].mxu0
      %v6260 = vadd.f32 0.0, %v6259
      %v6261 = vpop.f32.mrb[0].mxu0
      %6262 = vmatprep.mubr.bf16.mxu0 0
      %6263 = vmatmul.mubr.bf16.gmra.mrb[0].mxu0 %v5995
      %v6264 = vpop.f32.mrb[0].mxu0
      %v6265 = vadd.f32 0.0, %v6264
      %v6266 = vpop.f32.mrb[0].mxu0
      %v6267 = vpop.f32.mrb[0].mxu0
      %v6268 = vadd.f32 0.0, %v6267
      %v6269 = vpop.f32.mrb[0].mxu0
      %6270 = vmatprep.mubr.bf16.mxu0 0
      %6271 = vmatmul.mubr.bf16.gmra.mrb[0].mxu0 %v5998
      %v6272 = vpop.f32.mrb[0].mxu0
      %v6273 = vadd.f32 0.0, %v6272
      %v6274 = vpop.f32.mrb[0].mxu0
      %v6275 = vpop.f32.mrb[0].mxu0
      %v6276 = vadd.f32 0.0, %v6275
      %v6277 = vpop.f32.mrb[0].mxu0
      %6278 = vmatprep.mubr.bf16.mxu0 0
      %6279 = vmatmul.mubr.bf16.gmra.mrb[0].mxu0 %v6001
      %v6280 = vpop.f32.mrb[0].mxu0
      %v6281 = vadd.f32 0.0, %v6280
      %v6282 = vpop.f32.mrb[0].mxu0
      %v6283 = vpop.f32.mrb[0].mxu0
      %v6284 = vadd.f32 0.0, %v6283
      %v6285 = vpop.f32.mrb[0].mxu0
      %6286 = vmatprep.mubr.bf16.mxu0 0
      %6287 = vmatmul.mubr.bf16.gmra.mrb[0].mxu0 %v6004
      %v6288 = vpop.f32.mrb[0].mxu0
      %v6289 = vadd.f32 0.0, %v6288
      %v6290 = vpop.f32.mrb[0].mxu0
      %v6291 = vpop.f32.mrb[0].mxu0
      %v6292 = vadd.f32 0.0, %v6291
      %v6293 = vpop.f32.mrb[0].mxu0
      %6294 = vmatprep.mubr.bf16.mxu0 0
      %6295 = vmatmul.mubr.bf16.gmra.mrb[0].mxu0 %v6007
      %v6296 = vpop.f32.mrb[0].mxu0
      %v6297 = vadd.f32 0.0, %v6296
      %v6298 = vpop.f32.mrb[0].mxu0
      %v6299 = vpop.f32.mrb[0].mxu0
      %v6300 = vadd.f32 0.0, %v6299
      %v6301 = vpop.f32.mrb[0].mxu0
      %6302 = vmatprep.mubr.bf16.mxu0 0
      %6303 = vmatmul.mubr.bf16.gmra.mrb[0].mxu0 %v6010
      %v6304 = vpop.f32.mrb[0].mxu0
      %v6305 = vadd.f32 0.0, %v6304
      %v6306 = vpop.f32.mrb[0].mxu0
      %v6307 = vpop.f32.mrb[0].mxu0
      %v6308 = vadd.f32 0.0, %v6307
      %v6309 = vpop.f32.mrb[0].mxu0
      %6310 = vmatprep.mubr.bf16.mxu0 0
      %6311 = vmatmul.mubr.bf16.gmra.mrb[0].mxu0 %v6013
      %v6312 = vpop.f32.mrb[0].mxu0
      %v6313 = vadd.f32 0.0, %v6312
      %v6314 = vpop.f32.mrb[0].mxu0
      %v6315 = vpop.f32.mrb[0].mxu0
      %v6316 = vadd.f32 0.0, %v6315
      %v6317 = vpop.f32.mrb[0].mxu0
      %6318 = vmatprep.mubr.bf16.mxu0 0
      %6319 = vmatmul.mubr.bf16.gmra.mrb[0].mxu0 %v6016
      %v6320 = vpop.f32.mrb[0].mxu0
      %v6321 = vadd.f32 0.0, %v6320
      %v6322 = vpop.f32.mrb[0].mxu0
      %v6323 = vpop.f32.mrb[0].mxu0
      %v6324 = vadd.f32 0.0, %v6323
      %v6325 = vpop.f32.mrb[0].mxu0
      %6326 = vmatprep.mubr.bf16.mxu0 0
      %6327 = vmatmul.mubr.bf16.gmra.mrb[0].mxu0 %v6019
      %v6328 = vpop.f32.mrb[0].mxu0
      %v6329 = vadd.f32 0.0, %v6328
      %v6330 = vpop.f32.mrb[0].mxu0
      %v6331 = vpop.f32.mrb[0].mxu0
      %v6332 = vadd.f32 0.0, %v6331
      %v6333 = vpop.f32.mrb[0].mxu0
      %6334 = vmatprep.mubr.bf16.mxu0 0
      %6335 = vmatmul.mubr.bf16.gmra.mrb[0].mxu0 %v6022
      %v6336 = vpop.f32.mrb[0].mxu0
      %v6337 = vadd.f32 0.0, %v6336
      %v6338 = vpop.f32.mrb[0].mxu0
      %v6339 = vpop.f32.mrb[0].mxu0
      %v6340 = vadd.f32 0.0, %v6339
      %v6341 = vpop.f32.mrb[0].mxu0
      %6342 = vmatprep.mubr.bf16.mxu0 0
      %6343 = vmatmul.mubr.bf16.gmra.mrb[0].mxu0 %v6025
      %v6344 = vpop.f32.mrb[0].mxu0
      %v6345 = vadd.f32 0.0, %v6344
      %v6346 = vpop.f32.mrb[0].mxu0
      %v6347 = vpop.f32.mrb[0].mxu0
      %v6348 = vadd.f32 0.0, %v6347
      %v6349 = vpop.f32.mrb[0].mxu0
      %6350 = vdwg.mxu0
      %v6351 = vadd.f32 %v5395, %v6065
      %v6352 = vadd.f32 %v5396, %v6068
      %v6353 = vadd.f32 %v5397, %v6073
      %v6354 = vadd.f32 %v5398, %v6076
      %v6355 = vadd.f32 %v5399, %v6081
      %v6356 = vadd.f32 %v5400, %v6084
      %v6357 = vadd.f32 %v5401, %v6089
      %v6358 = vadd.f32 %v5402, %v6092
      %v6359 = vadd.f32 %v5403, %v6097
      %v6360 = vadd.f32 %v5404, %v6100
      %v6361 = vadd.f32 %v5405, %v6105
      %v6362 = vadd.f32 %v5406, %v6108
      %v6363 = vadd.f32 %v5407, %v6113
      %v6364 = vadd.f32 %v5408, %v6116
      %v6365 = vadd.f32 %v5409, %v6121
      %v6366 = vadd.f32 %v5410, %v6124
      %v6367 = vadd.f32 %v5411, %v6129
      %v6368 = vadd.f32 %v5412, %v6132
      %v6369 = vadd.f32 %v5413, %v6137
      %v6370 = vadd.f32 %v5414, %v6140
      %v6371 = vadd.f32 %v5415, %v6145
      %v6372 = vadd.f32 %v5416, %v6148
      %v6373 = vadd.f32 %v5417, %v6153
      %v6374 = vadd.f32 %v5418, %v6156
      %v6375 = vadd.f32 %v5419, %v6161
      %v6376 = vadd.f32 %v5420, %v6164
      %v6377 = vadd.f32 %v5421, %v6169
      %v6378 = vadd.f32 %v5422, %v6172
      %v6379 = vadd.f32 %v5423, %v6177
      %v6380 = vadd.f32 %v5424, %v6180
      %v6381 = vadd.f32 %v5425, %v6185
      %v6382 = vadd.f32 %v5426, %v6188
      %v6383 = vadd.f32 %v5427, %v6193
      %v6384 = vadd.f32 %v5428, %v6196
      %v6385 = vadd.f32 %v5429, %v6201
      %v6386 = vadd.f32 %v5430, %v6204
      %v6387 = vadd.f32 %v5431, %v6209
      %v6388 = vadd.f32 %v5432, %v6212
      %v6389 = vadd.f32 %v5433, %v6217
      %v6390 = vadd.f32 %v5434, %v6220
      %v6391 = vadd.f32 %v5435, %v6225
      %v6392 = vadd.f32 %v5436, %v6228
      %v6393 = vadd.f32 %v5437, %v6233
      %v6394 = vadd.f32 %v5438, %v6236
      %v6395 = vadd.f32 %v5439, %v6241
      %v6396 = vadd.f32 %v5440, %v6244
      %v6397 = vadd.f32 %v5441, %v6249
      %v6398 = vadd.f32 %v5442, %v6252
      %v6399 = vadd.f32 %v5443, %v6257
      %v6400 = vadd.f32 %v5444, %v6260
      %v6401 = vadd.f32 %v5445, %v6265
      %v6402 = vadd.f32 %v5446, %v6268
      %v6403 = vadd.f32 %v5447, %v6273
      %v6404 = vadd.f32 %v5448, %v6276
      %v6405 = vadd.f32 %v5449, %v6281
      %v6406 = vadd.f32 %v5450, %v6284
      %v6407 = vadd.f32 %v5451, %v6289
      %v6408 = vadd.f32 %v5452, %v6292
      %v6409 = vadd.f32 %v5453, %v6297
      %v6410 = vadd.f32 %v5454, %v6300
      %v6411 = vadd.f32 %v5455, %v6305
      %v6412 = vadd.f32 %v5456, %v6308
      %v6413 = vadd.f32 %v5457, %v6313
      %v6414 = vadd.f32 %v5458, %v6316
      %v6415 = vadd.f32 %v5459, %v6321
      %v6416 = vadd.f32 %v5460, %v6324
      %v6417 = vadd.f32 %v5461, %v6329
      %v6418 = vadd.f32 %v5462, %v6332
      %v6419 = vadd.f32 %v5463, %v6337
      %v6420 = vadd.f32 %v5464, %v6340
      %v6421 = vadd.f32 %v5465, %v6345
      %v6422 = vadd.f32 %v5466, %v6348
      %s6423 = scalar_lea.vmem %s252, 40
      %v6424 = vld [vmem:[%s6423] sm:$0xf]
      %v6425 = vld [vmem:[%s6423 + $0x4] sm:$0xf]
      %v6426 = vld [vmem:[%s6423 + $0x8] sm:$0xf]
      %v6427 = vld [vmem:[%s6423 + $0xc] sm:$0xf]
      %v6428 = vld [vmem:[%s6423 + $0x14] sm:$0xf]
      %v6429 = vld [vmem:[%s6423 + $0x18] sm:$0xf]
      %v6430 = vld [vmem:[%s6423 + $0x1c] sm:$0xf]
      %v6431 = vld [vmem:[%s6423 + $0x20] sm:$0xf]
      %v6432 = vld [vmem:[%s6423 + $0x28] sm:$0xf]
      %v6433 = vld [vmem:[%s6423 + $0x2c] sm:$0xf]
      %v6434 = vld [vmem:[%s6423 + $0x30] sm:$0xf]
      %v6435 = vld [vmem:[%s6423 + $0x34] sm:$0xf]
      %v6436 = vld [vmem:[%s6423 + $0x3c] sm:$0xf]
      %v6437 = vld [vmem:[%s6423 + $0x40] sm:$0xf]
      %v6438 = vld [vmem:[%s6423 + $0x44] sm:$0xf]
      %v6439 = vld [vmem:[%s6423 + $0x48] sm:$0xf]
      %v6440 = vld [vmem:[%s6423 + $0x50] sm:$0xf]
      %v6441 = vld [vmem:[%s6423 + $0x54] sm:$0xf]
      %v6442 = vld [vmem:[%s6423 + $0x58] sm:$0xf]
      %v6443 = vld [vmem:[%s6423 + $0x5c] sm:$0xf]
      %v6444 = vld [vmem:[%s6423 + $0x64] sm:$0xf]
      %v6445 = vld [vmem:[%s6423 + $0x68] sm:$0xf]
      %v6446 = vld [vmem:[%s6423 + $0x6c] sm:$0xf]
      %v6447 = vld [vmem:[%s6423 + $0x70] sm:$0xf]
      %v6448 = vld [vmem:[%s6423 + $0x78] sm:$0xf]
      %v6449 = vld [vmem:[%s6423 + $0x7c] sm:$0xf]
      %v6450 = vld [vmem:[%s6423 + $0x80] sm:$0xf]
      %v6451 = vld [vmem:[%s6423 + $0x84] sm:$0xf]
      %v6452 = vld [vmem:[%s6423 + $0x8c] sm:$0xf]
      %v6453 = vld [vmem:[%s6423 + $0x90] sm:$0xf]
      %v6454 = vld [vmem:[%s6423 + $0x94] sm:$0xf]
      %v6455 = vld [vmem:[%s6423 + $0x98] sm:$0xf]
      %v6456 = vld [vmem:[%s6423 + $0xa0] sm:$0xf]
      %v6457 = vld [vmem:[%s6423 + $0xa4] sm:$0xf]
      %v6458 = vld [vmem:[%s6423 + $0xa8] sm:$0xf]
      %v6459 = vld [vmem:[%s6423 + $0xac] sm:$0xf]
      %v6460 = vld [vmem:[%s6423 + $0xb4] sm:$0xf]
      %v6461 = vld [vmem:[%s6423 + $0xb8] sm:$0xf]
      %v6462 = vld [vmem:[%s6423 + $0xbc] sm:$0xf]
      %v6463 = vld [vmem:[%s6423 + $0xc0] sm:$0xf]
      %v6464 = vld [vmem:[%s6423 + $0xc8] sm:$0xf]
      %v6465 = vld [vmem:[%s6423 + $0xcc] sm:$0xf]
      %v6466 = vld [vmem:[%s6423 + $0xd0] sm:$0xf]
      %v6467 = vld [vmem:[%s6423 + $0xd4] sm:$0xf]
      %v6468 = vld [vmem:[%s6423 + $0xdc] sm:$0xf]
      %v6469 = vld [vmem:[%s6423 + $0xe0] sm:$0xf]
      %v6470 = vld [vmem:[%s6423 + $0xe4] sm:$0xf]
      %v6471 = vld [vmem:[%s6423 + $0xe8] sm:$0xf]
      %v6472 = vld [vmem:[%s6423 + $0xf0] sm:$0xf]
      %v6473 = vld [vmem:[%s6423 + $0xf4] sm:$0xf]
      %v6474 = vld [vmem:[%s6423 + $0xf8] sm:$0xf]
      %v6475 = vld [vmem:[%s6423 + $0xfc] sm:$0xf]
      %v6476 = vld [vmem:[%s6423 + $0x104] sm:$0xf]
      %v6477 = vld [vmem:[%s6423 + $0x108] sm:$0xf]
      %v6478 = vld [vmem:[%s6423 + $0x10c] sm:$0xf]
      %v6479 = vld [vmem:[%s6423 + $0x110] sm:$0xf]
      %v6480 = vld [vmem:[%s6423 + $0x118] sm:$0xf]
      %v6481 = vld [vmem:[%s6423 + $0x11c] sm:$0xf]
      %v6482 = vld [vmem:[%s6423 + $0x120] sm:$0xf]
      %v6483 = vld [vmem:[%s6423 + $0x124] sm:$0xf]
      %v6484 = vld [vmem:[%s6423 + $0x12c] sm:$0xf]
      %v6485 = vld [vmem:[%s6423 + $0x130] sm:$0xf]
      %v6486 = vld [vmem:[%s6423 + $0x134] sm:$0xf]
      %v6487 = vld [vmem:[%s6423 + $0x138] sm:$0xf]
      %v6488 = vld [vmem:[%s6423 + $0x140] sm:$0xf]
      %v6489 = vld [vmem:[%s6423 + $0x144] sm:$0xf]
      %v6490 = vld [vmem:[%s6423 + $0x148] sm:$0xf]
      %v6491 = vld [vmem:[%s6423 + $0x14c] sm:$0xf]
      %v6492 = vld [vmem:[%s6423 + $0x154] sm:$0xf]
      %v6493 = vld [vmem:[%s6423 + $0x158] sm:$0xf]
      %v6494 = vld [vmem:[%s6423 + $0x15c] sm:$0xf]
      %v6495 = vld [vmem:[%s6423 + $0x160] sm:$0xf]
      %s6496 = scalar_lea.vmem %s1, 12
      %v6497 = vld [vmem:[%s6496] sm:$0x3]
      %v6570 = vunpack.c.l.b16 %v6424
      %v6571 = vunpack.c.l.b16 %v6425
      %v6572 = vunpack.c.l.b16 %v6426
      %v6573 = vunpack.c.l.b16 %v6427
      %v6574 = vunpack.c.l.b16 %v6428
      %v6575 = vunpack.c.l.b16 %v6429
      %v6576 = vunpack.c.l.b16 %v6430
      %v6577 = vunpack.c.l.b16 %v6431
      %v6578 = vunpack.c.l.b16 %v6432
      %v6579 = vunpack.c.l.b16 %v6433
      %v6580 = vunpack.c.l.b16 %v6434
      %v6581 = vunpack.c.l.b16 %v6435
      %v6582 = vunpack.c.l.b16 %v6436
      %v6583 = vunpack.c.l.b16 %v6437
      %v6584 = vunpack.c.l.b16 %v6438
      %v6585 = vunpack.c.l.b16 %v6439
      %v6586 = vunpack.c.l.b16 %v6440
      %v6587 = vunpack.c.l.b16 %v6441
      %v6588 = vunpack.c.l.b16 %v6442
      %v6589 = vunpack.c.l.b16 %v6443
      %v6590 = vunpack.c.l.b16 %v6444
      %v6591 = vunpack.c.l.b16 %v6445
      %v6592 = vunpack.c.l.b16 %v6446
      %v6593 = vunpack.c.l.b16 %v6447
      %v6594 = vunpack.c.l.b16 %v6448
      %v6595 = vunpack.c.l.b16 %v6449
      %v6596 = vunpack.c.l.b16 %v6450
      %v6597 = vunpack.c.l.b16 %v6451
      %v6598 = vunpack.c.l.b16 %v6452
      %v6599 = vunpack.c.l.b16 %v6453
      %v6600 = vunpack.c.l.b16 %v6454
      %v6601 = vunpack.c.l.b16 %v6455
      %v6602 = vunpack.c.l.b16 %v6456
      %v6603 = vunpack.c.l.b16 %v6457
      %v6604 = vunpack.c.l.b16 %v6458
      %v6605 = vunpack.c.l.b16 %v6459
      %v6606 = vunpack.c.l.b16 %v6460
      %v6607 = vunpack.c.l.b16 %v6461
      %v6608 = vunpack.c.l.b16 %v6462
      %v6609 = vunpack.c.l.b16 %v6463
      %v6610 = vunpack.c.l.b16 %v6464
      %v6611 = vunpack.c.l.b16 %v6465
      %v6612 = vunpack.c.l.b16 %v6466
      %v6613 = vunpack.c.l.b16 %v6467
      %v6614 = vunpack.c.l.b16 %v6468
      %v6615 = vunpack.c.l.b16 %v6469
      %v6616 = vunpack.c.l.b16 %v6470
      %v6617 = vunpack.c.l.b16 %v6471
      %v6618 = vunpack.c.l.b16 %v6472
      %v6619 = vunpack.c.l.b16 %v6473
      %v6620 = vunpack.c.l.b16 %v6474
      %v6621 = vunpack.c.l.b16 %v6475
      %v6622 = vunpack.c.l.b16 %v6476
      %v6623 = vunpack.c.l.b16 %v6477
      %v6624 = vunpack.c.l.b16 %v6478
      %v6625 = vunpack.c.l.b16 %v6479
      %v6626 = vunpack.c.l.b16 %v6480
      %v6627 = vunpack.c.l.b16 %v6481
      %v6628 = vunpack.c.l.b16 %v6482
      %v6629 = vunpack.c.l.b16 %v6483
      %v6630 = vunpack.c.l.b16 %v6484
      %v6631 = vunpack.c.l.b16 %v6485
      %v6632 = vunpack.c.l.b16 %v6486
      %v6633 = vunpack.c.l.b16 %v6487
      %v6634 = vunpack.c.l.b16 %v6488
      %v6635 = vunpack.c.l.b16 %v6489
      %v6636 = vunpack.c.l.b16 %v6490
      %v6637 = vunpack.c.l.b16 %v6491
      %v6638 = vunpack.c.l.b16 %v6492
      %v6639 = vunpack.c.l.b16 %v6493
      %v6640 = vunpack.c.l.b16 %v6494
      %v6641 = vunpack.c.l.b16 %v6495
      %v6642 = vpack.c.b16 %v6571, %v6570
      %v6643 = vpack.c.b16 %v6573, %v6572
      %v6644 = vpack.c.b16 %v6575, %v6574
      %v6645 = vpack.c.b16 %v6577, %v6576
      %v6646 = vpack.c.b16 %v6579, %v6578
      %v6647 = vpack.c.b16 %v6581, %v6580
      %v6648 = vpack.c.b16 %v6583, %v6582
      %v6649 = vpack.c.b16 %v6585, %v6584
      %v6650 = vpack.c.b16 %v6587, %v6586
      %v6651 = vpack.c.b16 %v6589, %v6588
      %v6652 = vpack.c.b16 %v6591, %v6590
      %v6653 = vpack.c.b16 %v6593, %v6592
      %v6654 = vpack.c.b16 %v6595, %v6594
      %v6655 = vpack.c.b16 %v6597, %v6596
      %v6656 = vpack.c.b16 %v6599, %v6598
      %v6657 = vpack.c.b16 %v6601, %v6600
      %v6658 = vpack.c.b16 %v6603, %v6602
      %v6659 = vpack.c.b16 %v6605, %v6604
      %v6660 = vpack.c.b16 %v6607, %v6606
      %v6661 = vpack.c.b16 %v6609, %v6608
      %v6662 = vpack.c.b16 %v6611, %v6610
      %v6663 = vpack.c.b16 %v6613, %v6612
      %v6664 = vpack.c.b16 %v6615, %v6614
      %v6665 = vpack.c.b16 %v6617, %v6616
      %v6666 = vpack.c.b16 %v6619, %v6618
      %v6667 = vpack.c.b16 %v6621, %v6620
      %v6668 = vpack.c.b16 %v6623, %v6622
      %v6669 = vpack.c.b16 %v6625, %v6624
      %v6670 = vpack.c.b16 %v6627, %v6626
      %v6671 = vpack.c.b16 %v6629, %v6628
      %v6672 = vpack.c.b16 %v6631, %v6630
      %v6673 = vpack.c.b16 %v6633, %v6632
      %v6674 = vpack.c.b16 %v6635, %v6634
      %v6675 = vpack.c.b16 %v6637, %v6636
      %v6676 = vpack.c.b16 %v6639, %v6638
      %v6677 = vpack.c.b16 %v6641, %v6640
      %v6679 = vsel %vm1261, %v6642, 0
      %v6682 = vsel %vm1261, %v6643, 0
      %v6685 = vsel %vm1261, %v6644, 0
      %v6688 = vsel %vm1261, %v6645, 0
      %v6691 = vsel %vm1261, %v6646, 0
      %v6694 = vsel %vm1261, %v6647, 0
      %v6697 = vsel %vm1261, %v6648, 0
      %v6700 = vsel %vm1261, %v6649, 0
      %v6703 = vsel %vm1261, %v6650, 0
      %v6706 = vsel %vm1261, %v6651, 0
      %v6709 = vsel %vm1261, %v6652, 0
      %v6712 = vsel %vm1261, %v6653, 0
      %v6715 = vsel %vm1261, %v6654, 0
      %v6718 = vsel %vm1261, %v6655, 0
      %v6721 = vsel %vm1261, %v6656, 0
      %v6724 = vsel %vm1261, %v6657, 0
      %v6727 = vsel %vm1261, %v6658, 0
      %v6730 = vsel %vm1261, %v6659, 0
      %v6733 = vsel %vm1261, %v6660, 0
      %v6736 = vsel %vm1261, %v6661, 0
      %v6739 = vsel %vm1261, %v6662, 0
      %v6742 = vsel %vm1261, %v6663, 0
      %v6745 = vsel %vm1261, %v6664, 0
      %v6748 = vsel %vm1261, %v6665, 0
      %v6751 = vsel %vm1261, %v6666, 0
      %v6754 = vsel %vm1261, %v6667, 0
      %v6757 = vsel %vm1261, %v6668, 0
      %v6760 = vsel %vm1261, %v6669, 0
      %v6763 = vsel %vm1261, %v6670, 0
      %v6766 = vsel %vm1261, %v6671, 0
      %v6769 = vsel %vm1261, %v6672, 0
      %v6772 = vsel %vm1261, %v6673, 0
      %v6775 = vsel %vm1261, %v6674, 0
      %v6778 = vsel %vm1261, %v6675, 0
      %v6781 = vsel %vm1261, %v6676, 0
      %v6784 = vsel %vm1261, %v6677, 0
      %v6787 = vsel %vm1370, %v6497, 0
      %6789 = vmatprep.subr.bf16.mxu0 0
      %6790 = vmatpush1.bf16.msra.mxu0 %v6787
      %6791 = vmatprep.subr.bf16.mxu0 0
      %6792 = vmatpush1.bf16.msra.mxu0 0
      %6793 = vmatprep.subr.bf16.mxu0 0
      %6794 = vmatpush1.bf16.msra.mxu0 0
      %6795 = vmatprep.subr.bf16.mxu0 0
      %6796 = vmatpush1.bf16.msra.mxu0 0
      %6797 = vmatprep.subr.bf16.mxu0 0
      %6798 = vmatpush1.bf16.msra.mxu0 0
      %6799 = vmatprep.subr.bf16.mxu0 0
      %6800 = vmatpush1.bf16.msra.mxu0 0
      %6801 = vmatprep.subr.bf16.mxu0 0
      %6802 = vmatpush1.bf16.msra.mxu0 0
      %6803 = vmatprep.subr.bf16.mxu0 0
      %6804 = vmatpush1.bf16.msra.mxu0 0
      %6805 = vmatprep.subr.bf16.mxu0 0
      %6806 = vmatpush1.bf16.msra.mxu0 0
      %6807 = vmatprep.subr.bf16.mxu0 0
      %6808 = vmatpush1.bf16.msra.mxu0 0
      %6809 = vmatprep.subr.bf16.mxu0 0
      %6810 = vmatpush1.bf16.msra.mxu0 0
      %6811 = vmatprep.subr.bf16.mxu0 0
      %6812 = vmatpush1.bf16.msra.mxu0 0
      %6813 = vmatprep.subr.bf16.mxu0 0
      %6814 = vmatpush1.bf16.msra.mxu0 0
      %6815 = vmatprep.subr.bf16.mxu0 0
      %6816 = vmatpush1.bf16.msra.mxu0 0
      %6817 = vmatprep.subr.bf16.mxu0 0
      %6818 = vmatpush1.bf16.msra.mxu0 0
      %6819 = vmatprep.subr.bf16.mxu0 0
      %6820 = vmatpush1.bf16.msra.mxu0 0
      %6821 = vmatprep.mubr.bf16.mxu0 0
      %6822 = vmatmul.mubr.bf16.gmra.mrb[0].mxu0 %v6679
      %v6823 = vpop.f32.mrb[0].mxu0
      %v6824 = vadd.f32 0.0, %v6823
      %v6825 = vpop.f32.mrb[0].mxu0
      %v6826 = vpop.f32.mrb[0].mxu0
      %v6827 = vadd.f32 0.0, %v6826
      %v6828 = vpop.f32.mrb[0].mxu0
      %6829 = vmatprep.mubr.bf16.mxu0 0
      %6830 = vmatmul.mubr.bf16.gmra.mrb[0].mxu0 %v6682
      %v6831 = vpop.f32.mrb[0].mxu0
      %v6832 = vadd.f32 0.0, %v6831
      %v6833 = vpop.f32.mrb[0].mxu0
      %v6834 = vpop.f32.mrb[0].mxu0
      %v6835 = vadd.f32 0.0, %v6834
      %v6836 = vpop.f32.mrb[0].mxu0
      %6837 = vmatprep.mubr.bf16.mxu0 0
      %6838 = vmatmul.mubr.bf16.gmra.mrb[0].mxu0 %v6685
      %v6839 = vpop.f32.mrb[0].mxu0
      %v6840 = vadd.f32 0.0, %v6839
      %v6841 = vpop.f32.mrb[0].mxu0
      %v6842 = vpop.f32.mrb[0].mxu0
      %v6843 = vadd.f32 0.0, %v6842
      %v6844 = vpop.f32.mrb[0].mxu0
      %6845 = vmatprep.mubr.bf16.mxu0 0
      %6846 = vmatmul.mubr.bf16.gmra.mrb[0].mxu0 %v6688
      %v6847 = vpop.f32.mrb[0].mxu0
      %v6848 = vadd.f32 0.0, %v6847
      %v6849 = vpop.f32.mrb[0].mxu0
      %v6850 = vpop.f32.mrb[0].mxu0
      %v6851 = vadd.f32 0.0, %v6850
      %v6852 = vpop.f32.mrb[0].mxu0
      %6853 = vmatprep.mubr.bf16.mxu0 0
      %6854 = vmatmul.mubr.bf16.gmra.mrb[0].mxu0 %v6691
      %v6855 = vpop.f32.mrb[0].mxu0
      %v6856 = vadd.f32 0.0, %v6855
      %v6857 = vpop.f32.mrb[0].mxu0
      %v6858 = vpop.f32.mrb[0].mxu0
      %v6859 = vadd.f32 0.0, %v6858
      %v6860 = vpop.f32.mrb[0].mxu0
      %6861 = vmatprep.mubr.bf16.mxu0 0
      %6862 = vmatmul.mubr.bf16.gmra.mrb[0].mxu0 %v6694
      %v6863 = vpop.f32.mrb[0].mxu0
      %v6864 = vadd.f32 0.0, %v6863
      %v6865 = vpop.f32.mrb[0].mxu0
      %v6866 = vpop.f32.mrb[0].mxu0
      %v6867 = vadd.f32 0.0, %v6866
      %v6868 = vpop.f32.mrb[0].mxu0
      %6869 = vmatprep.mubr.bf16.mxu0 0
      %6870 = vmatmul.mubr.bf16.gmra.mrb[0].mxu0 %v6697
      %v6871 = vpop.f32.mrb[0].mxu0
      %v6872 = vadd.f32 0.0, %v6871
      %v6873 = vpop.f32.mrb[0].mxu0
      %v6874 = vpop.f32.mrb[0].mxu0
      %v6875 = vadd.f32 0.0, %v6874
      %v6876 = vpop.f32.mrb[0].mxu0
      %6877 = vmatprep.mubr.bf16.mxu0 0
      %6878 = vmatmul.mubr.bf16.gmra.mrb[0].mxu0 %v6700
      %v6879 = vpop.f32.mrb[0].mxu0
      %v6880 = vadd.f32 0.0, %v6879
      %v6881 = vpop.f32.mrb[0].mxu0
      %v6882 = vpop.f32.mrb[0].mxu0
      %v6883 = vadd.f32 0.0, %v6882
      %v6884 = vpop.f32.mrb[0].mxu0
      %6885 = vmatprep.mubr.bf16.mxu0 0
      %6886 = vmatmul.mubr.bf16.gmra.mrb[0].mxu0 %v6703
      %v6887 = vpop.f32.mrb[0].mxu0
      %v6888 = vadd.f32 0.0, %v6887
      %v6889 = vpop.f32.mrb[0].mxu0
      %v6890 = vpop.f32.mrb[0].mxu0
      %v6891 = vadd.f32 0.0, %v6890
      %v6892 = vpop.f32.mrb[0].mxu0
      %6893 = vmatprep.mubr.bf16.mxu0 0
      %6894 = vmatmul.mubr.bf16.gmra.mrb[0].mxu0 %v6706
      %v6895 = vpop.f32.mrb[0].mxu0
      %v6896 = vadd.f32 0.0, %v6895
      %v6897 = vpop.f32.mrb[0].mxu0
      %v6898 = vpop.f32.mrb[0].mxu0
      %v6899 = vadd.f32 0.0, %v6898
      %v6900 = vpop.f32.mrb[0].mxu0
      %6901 = vmatprep.mubr.bf16.mxu0 0
      %6902 = vmatmul.mubr.bf16.gmra.mrb[0].mxu0 %v6709
      %v6903 = vpop.f32.mrb[0].mxu0
      %v6904 = vadd.f32 0.0, %v6903
      %v6905 = vpop.f32.mrb[0].mxu0
      %v6906 = vpop.f32.mrb[0].mxu0
      %v6907 = vadd.f32 0.0, %v6906
      %v6908 = vpop.f32.mrb[0].mxu0
      %6909 = vmatprep.mubr.bf16.mxu0 0
      %6910 = vmatmul.mubr.bf16.gmra.mrb[0].mxu0 %v6712
      %v6911 = vpop.f32.mrb[0].mxu0
      %v6912 = vadd.f32 0.0, %v6911
      %v6913 = vpop.f32.mrb[0].mxu0
      %v6914 = vpop.f32.mrb[0].mxu0
      %v6915 = vadd.f32 0.0, %v6914
      %v6916 = vpop.f32.mrb[0].mxu0
      %6917 = vmatprep.mubr.bf16.mxu0 0
      %6918 = vmatmul.mubr.bf16.gmra.mrb[0].mxu0 %v6715
      %v6919 = vpop.f32.mrb[0].mxu0
      %v6920 = vadd.f32 0.0, %v6919
      %v6921 = vpop.f32.mrb[0].mxu0
      %v6922 = vpop.f32.mrb[0].mxu0
      %v6923 = vadd.f32 0.0, %v6922
      %v6924 = vpop.f32.mrb[0].mxu0
      %6925 = vmatprep.mubr.bf16.mxu0 0
      %6926 = vmatmul.mubr.bf16.gmra.mrb[0].mxu0 %v6718
      %v6927 = vpop.f32.mrb[0].mxu0
      %v6928 = vadd.f32 0.0, %v6927
      %v6929 = vpop.f32.mrb[0].mxu0
      %v6930 = vpop.f32.mrb[0].mxu0
      %v6931 = vadd.f32 0.0, %v6930
      %v6932 = vpop.f32.mrb[0].mxu0
      %6933 = vmatprep.mubr.bf16.mxu0 0
      %6934 = vmatmul.mubr.bf16.gmra.mrb[0].mxu0 %v6721
      %v6935 = vpop.f32.mrb[0].mxu0
      %v6936 = vadd.f32 0.0, %v6935
      %v6937 = vpop.f32.mrb[0].mxu0
      %v6938 = vpop.f32.mrb[0].mxu0
      %v6939 = vadd.f32 0.0, %v6938
      %v6940 = vpop.f32.mrb[0].mxu0
      %6941 = vmatprep.mubr.bf16.mxu0 0
      %6942 = vmatmul.mubr.bf16.gmra.mrb[0].mxu0 %v6724
      %v6943 = vpop.f32.mrb[0].mxu0
      %v6944 = vadd.f32 0.0, %v6943
      %v6945 = vpop.f32.mrb[0].mxu0
      %v6946 = vpop.f32.mrb[0].mxu0
      %v6947 = vadd.f32 0.0, %v6946
      %v6948 = vpop.f32.mrb[0].mxu0
      %6949 = vmatprep.mubr.bf16.mxu0 0
      %6950 = vmatmul.mubr.bf16.gmra.mrb[0].mxu0 %v6727
      %v6951 = vpop.f32.mrb[0].mxu0
      %v6952 = vadd.f32 0.0, %v6951
      %v6953 = vpop.f32.mrb[0].mxu0
      %v6954 = vpop.f32.mrb[0].mxu0
      %v6955 = vadd.f32 0.0, %v6954
      %v6956 = vpop.f32.mrb[0].mxu0
      %6957 = vmatprep.mubr.bf16.mxu0 0
      %6958 = vmatmul.mubr.bf16.gmra.mrb[0].mxu0 %v6730
      %v6959 = vpop.f32.mrb[0].mxu0
      %v6960 = vadd.f32 0.0, %v6959
      %v6961 = vpop.f32.mrb[0].mxu0
      %v6962 = vpop.f32.mrb[0].mxu0
      %v6963 = vadd.f32 0.0, %v6962
      %v6964 = vpop.f32.mrb[0].mxu0
      %6965 = vmatprep.mubr.bf16.mxu0 0
      %6966 = vmatmul.mubr.bf16.gmra.mrb[0].mxu0 %v6733
      %v6967 = vpop.f32.mrb[0].mxu0
      %v6968 = vadd.f32 0.0, %v6967
      %v6969 = vpop.f32.mrb[0].mxu0
      %v6970 = vpop.f32.mrb[0].mxu0
      %v6971 = vadd.f32 0.0, %v6970
      %v6972 = vpop.f32.mrb[0].mxu0
      %6973 = vmatprep.mubr.bf16.mxu0 0
      %6974 = vmatmul.mubr.bf16.gmra.mrb[0].mxu0 %v6736
      %v6975 = vpop.f32.mrb[0].mxu0
      %v6976 = vadd.f32 0.0, %v6975
      %v6977 = vpop.f32.mrb[0].mxu0
      %v6978 = vpop.f32.mrb[0].mxu0
      %v6979 = vadd.f32 0.0, %v6978
      %v6980 = vpop.f32.mrb[0].mxu0
      %6981 = vmatprep.mubr.bf16.mxu0 0
      %6982 = vmatmul.mubr.bf16.gmra.mrb[0].mxu0 %v6739
      %v6983 = vpop.f32.mrb[0].mxu0
      %v6984 = vadd.f32 0.0, %v6983
      %v6985 = vpop.f32.mrb[0].mxu0
      %v6986 = vpop.f32.mrb[0].mxu0
      %v6987 = vadd.f32 0.0, %v6986
      %v6988 = vpop.f32.mrb[0].mxu0
      %6989 = vmatprep.mubr.bf16.mxu0 0
      %6990 = vmatmul.mubr.bf16.gmra.mrb[0].mxu0 %v6742
      %v6991 = vpop.f32.mrb[0].mxu0
      %v6992 = vadd.f32 0.0, %v6991
      %v6993 = vpop.f32.mrb[0].mxu0
      %v6994 = vpop.f32.mrb[0].mxu0
      %v6995 = vadd.f32 0.0, %v6994
      %v6996 = vpop.f32.mrb[0].mxu0
      %6997 = vmatprep.mubr.bf16.mxu0 0
      %6998 = vmatmul.mubr.bf16.gmra.mrb[0].mxu0 %v6745
      %v6999 = vpop.f32.mrb[0].mxu0
      %v7000 = vadd.f32 0.0, %v6999
      %v7001 = vpop.f32.mrb[0].mxu0
      %v7002 = vpop.f32.mrb[0].mxu0
      %v7003 = vadd.f32 0.0, %v7002
      %v7004 = vpop.f32.mrb[0].mxu0
      %7005 = vmatprep.mubr.bf16.mxu0 0
      %7006 = vmatmul.mubr.bf16.gmra.mrb[0].mxu0 %v6748
      %v7007 = vpop.f32.mrb[0].mxu0
      %v7008 = vadd.f32 0.0, %v7007
      %v7009 = vpop.f32.mrb[0].mxu0
      %v7010 = vpop.f32.mrb[0].mxu0
      %v7011 = vadd.f32 0.0, %v7010
      %v7012 = vpop.f32.mrb[0].mxu0
      %7013 = vmatprep.mubr.bf16.mxu0 0
      %7014 = vmatmul.mubr.bf16.gmra.mrb[0].mxu0 %v6751
      %v7015 = vpop.f32.mrb[0].mxu0
      %v7016 = vadd.f32 0.0, %v7015
      %v7017 = vpop.f32.mrb[0].mxu0
      %v7018 = vpop.f32.mrb[0].mxu0
      %v7019 = vadd.f32 0.0, %v7018
      %v7020 = vpop.f32.mrb[0].mxu0
      %7021 = vmatprep.mubr.bf16.mxu0 0
      %7022 = vmatmul.mubr.bf16.gmra.mrb[0].mxu0 %v6754
      %v7023 = vpop.f32.mrb[0].mxu0
      %v7024 = vadd.f32 0.0, %v7023
      %v7025 = vpop.f32.mrb[0].mxu0
      %v7026 = vpop.f32.mrb[0].mxu0
      %v7027 = vadd.f32 0.0, %v7026
      %v7028 = vpop.f32.mrb[0].mxu0
      %7029 = vmatprep.mubr.bf16.mxu0 0
      %7030 = vmatmul.mubr.bf16.gmra.mrb[0].mxu0 %v6757
      %v7031 = vpop.f32.mrb[0].mxu0
      %v7032 = vadd.f32 0.0, %v7031
      %v7033 = vpop.f32.mrb[0].mxu0
      %v7034 = vpop.f32.mrb[0].mxu0
      %v7035 = vadd.f32 0.0, %v7034
      %v7036 = vpop.f32.mrb[0].mxu0
      %7037 = vmatprep.mubr.bf16.mxu0 0
      %7038 = vmatmul.mubr.bf16.gmra.mrb[0].mxu0 %v6760
      %v7039 = vpop.f32.mrb[0].mxu0
      %v7040 = vadd.f32 0.0, %v7039
      %v7041 = vpop.f32.mrb[0].mxu0
      %v7042 = vpop.f32.mrb[0].mxu0
      %v7043 = vadd.f32 0.0, %v7042
      %v7044 = vpop.f32.mrb[0].mxu0
      %7045 = vmatprep.mubr.bf16.mxu0 0
      %7046 = vmatmul.mubr.bf16.gmra.mrb[0].mxu0 %v6763
      %v7047 = vpop.f32.mrb[0].mxu0
      %v7048 = vadd.f32 0.0, %v7047
      %v7049 = vpop.f32.mrb[0].mxu0
      %v7050 = vpop.f32.mrb[0].mxu0
      %v7051 = vadd.f32 0.0, %v7050
      %v7052 = vpop.f32.mrb[0].mxu0
      %7053 = vmatprep.mubr.bf16.mxu0 0
      %7054 = vmatmul.mubr.bf16.gmra.mrb[0].mxu0 %v6766
      %v7055 = vpop.f32.mrb[0].mxu0
      %v7056 = vadd.f32 0.0, %v7055
      %v7057 = vpop.f32.mrb[0].mxu0
      %v7058 = vpop.f32.mrb[0].mxu0
      %v7059 = vadd.f32 0.0, %v7058
      %v7060 = vpop.f32.mrb[0].mxu0
      %7061 = vmatprep.mubr.bf16.mxu0 0
      %7062 = vmatmul.mubr.bf16.gmra.mrb[0].mxu0 %v6769
      %v7063 = vpop.f32.mrb[0].mxu0
      %v7064 = vadd.f32 0.0, %v7063
      %v7065 = vpop.f32.mrb[0].mxu0
      %v7066 = vpop.f32.mrb[0].mxu0
      %v7067 = vadd.f32 0.0, %v7066
      %v7068 = vpop.f32.mrb[0].mxu0
      %7069 = vmatprep.mubr.bf16.mxu0 0
      %7070 = vmatmul.mubr.bf16.gmra.mrb[0].mxu0 %v6772
      %v7071 = vpop.f32.mrb[0].mxu0
      %v7072 = vadd.f32 0.0, %v7071
      %v7073 = vpop.f32.mrb[0].mxu0
      %v7074 = vpop.f32.mrb[0].mxu0
      %v7075 = vadd.f32 0.0, %v7074
      %v7076 = vpop.f32.mrb[0].mxu0
      %7077 = vmatprep.mubr.bf16.mxu0 0
      %7078 = vmatmul.mubr.bf16.gmra.mrb[0].mxu0 %v6775
      %v7079 = vpop.f32.mrb[0].mxu0
      %v7080 = vadd.f32 0.0, %v7079
      %v7081 = vpop.f32.mrb[0].mxu0
      %v7082 = vpop.f32.mrb[0].mxu0
      %v7083 = vadd.f32 0.0, %v7082
      %v7084 = vpop.f32.mrb[0].mxu0
      %7085 = vmatprep.mubr.bf16.mxu0 0
      %7086 = vmatmul.mubr.bf16.gmra.mrb[0].mxu0 %v6778
      %v7087 = vpop.f32.mrb[0].mxu0
      %v7088 = vadd.f32 0.0, %v7087
      %v7089 = vpop.f32.mrb[0].mxu0
      %v7090 = vpop.f32.mrb[0].mxu0
      %v7091 = vadd.f32 0.0, %v7090
      %v7092 = vpop.f32.mrb[0].mxu0
      %7093 = vmatprep.mubr.bf16.mxu0 0
      %7094 = vmatmul.mubr.bf16.gmra.mrb[0].mxu0 %v6781
      %v7095 = vpop.f32.mrb[0].mxu0
      %v7096 = vadd.f32 0.0, %v7095
      %v7097 = vpop.f32.mrb[0].mxu0
      %v7098 = vpop.f32.mrb[0].mxu0
      %v7099 = vadd.f32 0.0, %v7098
      %v7100 = vpop.f32.mrb[0].mxu0
      %7101 = vmatprep.mubr.bf16.mxu0 0
      %7102 = vmatmul.mubr.bf16.gmra.mrb[0].mxu0 %v6784
      %v7103 = vpop.f32.mrb[0].mxu0
      %v7104 = vadd.f32 0.0, %v7103
      %v7105 = vpop.f32.mrb[0].mxu0
      %v7106 = vpop.f32.mrb[0].mxu0
      %v7107 = vadd.f32 0.0, %v7106
      %v7108 = vpop.f32.mrb[0].mxu0
      %7109 = vdwg.mxu0
      %v7110 = vadd.f32 %v6351, %v6824
      %v7111 = vadd.f32 %v6352, %v6827
      %v7112 = vadd.f32 %v6353, %v6832
      %v7113 = vadd.f32 %v6354, %v6835
      %v7114 = vadd.f32 %v6355, %v6840
      %v7115 = vadd.f32 %v6356, %v6843
      %v7116 = vadd.f32 %v6357, %v6848
      %v7117 = vadd.f32 %v6358, %v6851
      %v7118 = vadd.f32 %v6359, %v6856
      %v7119 = vadd.f32 %v6360, %v6859
      %v7120 = vadd.f32 %v6361, %v6864
      %v7121 = vadd.f32 %v6362, %v6867
      %v7122 = vadd.f32 %v6363, %v6872
      %v7123 = vadd.f32 %v6364, %v6875
      %v7124 = vadd.f32 %v6365, %v6880
      %v7125 = vadd.f32 %v6366, %v6883
      %v7126 = vadd.f32 %v6367, %v6888
      %v7127 = vadd.f32 %v6368, %v6891
      %v7128 = vadd.f32 %v6369, %v6896
      %v7129 = vadd.f32 %v6370, %v6899
      %v7130 = vadd.f32 %v6371, %v6904
      %v7131 = vadd.f32 %v6372, %v6907
      %v7132 = vadd.f32 %v6373, %v6912
      %v7133 = vadd.f32 %v6374, %v6915
      %v7134 = vadd.f32 %v6375, %v6920
      %v7135 = vadd.f32 %v6376, %v6923
      %v7136 = vadd.f32 %v6377, %v6928
      %v7137 = vadd.f32 %v6378, %v6931
      %v7138 = vadd.f32 %v6379, %v6936
      %v7139 = vadd.f32 %v6380, %v6939
      %v7140 = vadd.f32 %v6381, %v6944
      %v7141 = vadd.f32 %v6382, %v6947
      %v7142 = vadd.f32 %v6383, %v6952
      %v7143 = vadd.f32 %v6384, %v6955
      %v7144 = vadd.f32 %v6385, %v6960
      %v7145 = vadd.f32 %v6386, %v6963
      %v7146 = vadd.f32 %v6387, %v6968
      %v7147 = vadd.f32 %v6388, %v6971
      %v7148 = vadd.f32 %v6389, %v6976
      %v7149 = vadd.f32 %v6390, %v6979
      %v7150 = vadd.f32 %v6391, %v6984
      %v7151 = vadd.f32 %v6392, %v6987
      %v7152 = vadd.f32 %v6393, %v6992
      %v7153 = vadd.f32 %v6394, %v6995
      %v7154 = vadd.f32 %v6395, %v7000
      %v7155 = vadd.f32 %v6396, %v7003
      %v7156 = vadd.f32 %v6397, %v7008
      %v7157 = vadd.f32 %v6398, %v7011
      %v7158 = vadd.f32 %v6399, %v7016
      %v7159 = vadd.f32 %v6400, %v7019
      %v7160 = vadd.f32 %v6401, %v7024
      %v7161 = vadd.f32 %v6402, %v7027
      %v7162 = vadd.f32 %v6403, %v7032
      %v7163 = vadd.f32 %v6404, %v7035
      %v7164 = vadd.f32 %v6405, %v7040
      %v7165 = vadd.f32 %v6406, %v7043
      %v7166 = vadd.f32 %v6407, %v7048
      %v7167 = vadd.f32 %v6408, %v7051
      %v7168 = vadd.f32 %v6409, %v7056
      %v7169 = vadd.f32 %v6410, %v7059
      %v7170 = vadd.f32 %v6411, %v7064
      %v7171 = vadd.f32 %v6412, %v7067
      %v7172 = vadd.f32 %v6413, %v7072
      %v7173 = vadd.f32 %v6414, %v7075
      %v7174 = vadd.f32 %v6415, %v7080
      %v7175 = vadd.f32 %v6416, %v7083
      %v7176 = vadd.f32 %v6417, %v7088
      %v7177 = vadd.f32 %v6418, %v7091
      %v7178 = vadd.f32 %v6419, %v7096
      %v7179 = vadd.f32 %v6420, %v7099
      %v7180 = vadd.f32 %v6421, %v7104
      %v7181 = vadd.f32 %v6422, %v7107
      %v7182 = vld [vmem:[%s6423] sm:$0xf]
      %v7183 = vld [vmem:[%s6423 + $0x4] sm:$0xf]
      %v7184 = vld [vmem:[%s6423 + $0x8] sm:$0xf]
      %v7185 = vld [vmem:[%s6423 + $0xc] sm:$0xf]
      %v7186 = vld [vmem:[%s6423 + $0x10] sm:$0x1]
      %v7187 = vld [vmem:[%s6423 + $0x14] sm:$0xf]
      %v7188 = vld [vmem:[%s6423 + $0x18] sm:$0xf]
      %v7189 = vld [vmem:[%s6423 + $0x1c] sm:$0xf]
      %v7190 = vld [vmem:[%s6423 + $0x20] sm:$0xf]
      %v7191 = vld [vmem:[%s6423 + $0x24] sm:$0x1]
      %v7192 = vld [vmem:[%s6423 + $0x28] sm:$0xf]
      %v7193 = vld [vmem:[%s6423 + $0x2c] sm:$0xf]
      %v7194 = vld [vmem:[%s6423 + $0x30] sm:$0xf]
      %v7195 = vld [vmem:[%s6423 + $0x34] sm:$0xf]
      %v7196 = vld [vmem:[%s6423 + $0x38] sm:$0x1]
      %v7197 = vld [vmem:[%s6423 + $0x3c] sm:$0xf]
      %v7198 = vld [vmem:[%s6423 + $0x40] sm:$0xf]
      %v7199 = vld [vmem:[%s6423 + $0x44] sm:$0xf]
      %v7200 = vld [vmem:[%s6423 + $0x48] sm:$0xf]
      %v7201 = vld [vmem:[%s6423 + $0x4c] sm:$0x1]
      %v7202 = vld [vmem:[%s6423 + $0x50] sm:$0xf]
      %v7203 = vld [vmem:[%s6423 + $0x54] sm:$0xf]
      %v7204 = vld [vmem:[%s6423 + $0x58] sm:$0xf]
      %v7205 = vld [vmem:[%s6423 + $0x5c] sm:$0xf]
      %v7206 = vld [vmem:[%s6423 + $0x60] sm:$0x1]
      %v7207 = vld [vmem:[%s6423 + $0x64] sm:$0xf]
      %v7208 = vld [vmem:[%s6423 + $0x68] sm:$0xf]
      %v7209 = vld [vmem:[%s6423 + $0x6c] sm:$0xf]
      %v7210 = vld [vmem:[%s6423 + $0x70] sm:$0xf]
      %v7211 = vld [vmem:[%s6423 + $0x74] sm:$0x1]
      %v7212 = vld [vmem:[%s6423 + $0x78] sm:$0xf]
      %v7213 = vld [vmem:[%s6423 + $0x7c] sm:$0xf]
      %v7214 = vld [vmem:[%s6423 + $0x80] sm:$0xf]
      %v7215 = vld [vmem:[%s6423 + $0x84] sm:$0xf]
      %v7216 = vld [vmem:[%s6423 + $0x88] sm:$0x1]
      %v7217 = vld [vmem:[%s6423 + $0x8c] sm:$0xf]
      %v7218 = vld [vmem:[%s6423 + $0x90] sm:$0xf]
      %v7219 = vld [vmem:[%s6423 + $0x94] sm:$0xf]
      %v7220 = vld [vmem:[%s6423 + $0x98] sm:$0xf]
      %v7221 = vld [vmem:[%s6423 + $0x9c] sm:$0x1]
      %v7222 = vld [vmem:[%s6423 + $0xa0] sm:$0xf]
      %v7223 = vld [vmem:[%s6423 + $0xa4] sm:$0xf]
      %v7224 = vld [vmem:[%s6423 + $0xa8] sm:$0xf]
      %v7225 = vld [vmem:[%s6423 + $0xac] sm:$0xf]
      %v7226 = vld [vmem:[%s6423 + $0xb0] sm:$0x1]
      %v7227 = vld [vmem:[%s6423 + $0xb4] sm:$0xf]
      %v7228 = vld [vmem:[%s6423 + $0xb8] sm:$0xf]
      %v7229 = vld [vmem:[%s6423 + $0xbc] sm:$0xf]
      %v7230 = vld [vmem:[%s6423 + $0xc0] sm:$0xf]
      %v7231 = vld [vmem:[%s6423 + $0xc4] sm:$0x1]
      %v7232 = vld [vmem:[%s6423 + $0xc8] sm:$0xf]
      %v7233 = vld [vmem:[%s6423 + $0xcc] sm:$0xf]
      %v7234 = vld [vmem:[%s6423 + $0xd0] sm:$0xf]
      %v7235 = vld [vmem:[%s6423 + $0xd4] sm:$0xf]
      %v7236 = vld [vmem:[%s6423 + $0xd8] sm:$0x1]
      %v7237 = vld [vmem:[%s6423 + $0xdc] sm:$0xf]
      %v7238 = vld [vmem:[%s6423 + $0xe0] sm:$0xf]
      %v7239 = vld [vmem:[%s6423 + $0xe4] sm:$0xf]
      %v7240 = vld [vmem:[%s6423 + $0xe8] sm:$0xf]
      %v7241 = vld [vmem:[%s6423 + $0xec] sm:$0x1]
      %v7242 = vld [vmem:[%s6423 + $0xf0] sm:$0xf]
      %v7243 = vld [vmem:[%s6423 + $0xf4] sm:$0xf]
      %v7244 = vld [vmem:[%s6423 + $0xf8] sm:$0xf]
      %v7245 = vld [vmem:[%s6423 + $0xfc] sm:$0xf]
      %v7246 = vld [vmem:[%s6423 + $0x100] sm:$0x1]
      %v7247 = vld [vmem:[%s6423 + $0x104] sm:$0xf]
      %v7248 = vld [vmem:[%s6423 + $0x108] sm:$0xf]
      %v7249 = vld [vmem:[%s6423 + $0x10c] sm:$0xf]
      %v7250 = vld [vmem:[%s6423 + $0x110] sm:$0xf]
      %v7251 = vld [vmem:[%s6423 + $0x114] sm:$0x1]
      %v7252 = vld [vmem:[%s6423 + $0x118] sm:$0xf]
      %v7253 = vld [vmem:[%s6423 + $0x11c] sm:$0xf]
      %v7254 = vld [vmem:[%s6423 + $0x120] sm:$0xf]
      %v7255 = vld [vmem:[%s6423 + $0x124] sm:$0xf]
      %v7256 = vld [vmem:[%s6423 + $0x128] sm:$0x1]
      %v7257 = vld [vmem:[%s6423 + $0x12c] sm:$0xf]
      %v7258 = vld [vmem:[%s6423 + $0x130] sm:$0xf]
      %v7259 = vld [vmem:[%s6423 + $0x134] sm:$0xf]
      %v7260 = vld [vmem:[%s6423 + $0x138] sm:$0xf]
      %v7261 = vld [vmem:[%s6423 + $0x13c] sm:$0x1]
      %v7262 = vld [vmem:[%s6423 + $0x140] sm:$0xf]
      %v7263 = vld [vmem:[%s6423 + $0x144] sm:$0xf]
      %v7264 = vld [vmem:[%s6423 + $0x148] sm:$0xf]
      %v7265 = vld [vmem:[%s6423 + $0x14c] sm:$0xf]
      %v7266 = vld [vmem:[%s6423 + $0x150] sm:$0x1]
      %v7267 = vld [vmem:[%s6423 + $0x154] sm:$0xf]
      %v7268 = vld [vmem:[%s6423 + $0x158] sm:$0xf]
      %v7269 = vld [vmem:[%s6423 + $0x15c] sm:$0xf]
      %v7270 = vld [vmem:[%s6423 + $0x160] sm:$0xf]
      %v7271 = vld [vmem:[%s6423 + $0x164] sm:$0x1]
      %v7273 = vshrl.u32 %v7182, 16
      %v7275 = vrot.slane %v7273, 4
      %v7276 = vshll.u32 %v7182, 16
      %v7278 = vrot.slane %v7276, 5
      %v7279 = vor.u32 %v7275, %v7278
      %v7280 = vrot.slane %v7279, 4
      %v7282 = vshll.u32 %v7183, 16
      %v7284 = vrot.slane %v7282, 5
      %v7285 = vsel %vm358, %v7280, %v7284
      %v7286 = vshrl.u32 %v7183, 16
      %v7288 = vrot.slane %v7286, 4
      %v7289 = vor.u32 %v7288, %v7284
      %v7290 = vrot.slane %v7289, 4
      %v7292 = vshll.u32 %v7184, 16
      %v7294 = vrot.slane %v7292, 5
      %v7295 = vsel %vm358, %v7290, %v7294
      %v7296 = vshrl.u32 %v7184, 16
      %v7298 = vrot.slane %v7296, 4
      %v7299 = vor.u32 %v7298, %v7294
      %v7300 = vrot.slane %v7299, 4
      %v7302 = vshll.u32 %v7185, 16
      %v7304 = vrot.slane %v7302, 5
      %v7305 = vsel %vm358, %v7300, %v7304
      %v7306 = vshrl.u32 %v7185, 16
      %v7308 = vrot.slane %v7306, 4
      %v7309 = vor.u32 %v7308, %v7304
      %v7310 = vrot.slane %v7309, 4
      %v7312 = vshll.u32 %v7186, 16
      %v7314 = vrot.slane %v7312, 5
      %v7315 = vsel %vm358, %v7310, %v7314
      %v7317 = vshrl.u32 %v7187, 16
      %v7319 = vrot.slane %v7317, 4
      %v7320 = vshll.u32 %v7187, 16
      %v7322 = vrot.slane %v7320, 5
      %v7323 = vor.u32 %v7319, %v7322
      %v7324 = vrot.slane %v7323, 4
      %v7326 = vshll.u32 %v7188, 16
      %v7328 = vrot.slane %v7326, 5
      %v7329 = vsel %vm358, %v7324, %v7328
      %v7330 = vshrl.u32 %v7188, 16
      %v7332 = vrot.slane %v7330, 4
      %v7333 = vor.u32 %v7332, %v7328
      %v7334 = vrot.slane %v7333, 4
      %v7336 = vshll.u32 %v7189, 16
      %v7338 = vrot.slane %v7336, 5
      %v7339 = vsel %vm358, %v7334, %v7338
      %v7340 = vshrl.u32 %v7189, 16
      %v7342 = vrot.slane %v7340, 4
      %v7343 = vor.u32 %v7342, %v7338
      %v7344 = vrot.slane %v7343, 4
      %v7346 = vshll.u32 %v7190, 16
      %v7348 = vrot.slane %v7346, 5
      %v7349 = vsel %vm358, %v7344, %v7348
      %v7350 = vshrl.u32 %v7190, 16
      %v7352 = vrot.slane %v7350, 4
      %v7353 = vor.u32 %v7352, %v7348
      %v7354 = vrot.slane %v7353, 4
      %v7356 = vshll.u32 %v7191, 16
      %v7358 = vrot.slane %v7356, 5
      %v7359 = vsel %vm358, %v7354, %v7358
      %v7361 = vshrl.u32 %v7192, 16
      %v7363 = vrot.slane %v7361, 4
      %v7364 = vshll.u32 %v7192, 16
      %v7366 = vrot.slane %v7364, 5
      %v7367 = vor.u32 %v7363, %v7366
      %v7368 = vrot.slane %v7367, 4
      %v7370 = vshll.u32 %v7193, 16
      %v7372 = vrot.slane %v7370, 5
      %v7373 = vsel %vm358, %v7368, %v7372
      %v7374 = vshrl.u32 %v7193, 16
      %v7376 = vrot.slane %v7374, 4
      %v7377 = vor.u32 %v7376, %v7372
      %v7378 = vrot.slane %v7377, 4
      %v7380 = vshll.u32 %v7194, 16
      %v7382 = vrot.slane %v7380, 5
      %v7383 = vsel %vm358, %v7378, %v7382
      %v7384 = vshrl.u32 %v7194, 16
      %v7386 = vrot.slane %v7384, 4
      %v7387 = vor.u32 %v7386, %v7382
      %v7388 = vrot.slane %v7387, 4
      %v7390 = vshll.u32 %v7195, 16
      %v7392 = vrot.slane %v7390, 5
      %v7393 = vsel %vm358, %v7388, %v7392
      %v7394 = vshrl.u32 %v7195, 16
      %v7396 = vrot.slane %v7394, 4
      %v7397 = vor.u32 %v7396, %v7392
      %v7398 = vrot.slane %v7397, 4
      %v7400 = vshll.u32 %v7196, 16
      %v7402 = vrot.slane %v7400, 5
      %v7403 = vsel %vm358, %v7398, %v7402
      %v7405 = vshrl.u32 %v7197, 16
      %v7407 = vrot.slane %v7405, 4
      %v7408 = vshll.u32 %v7197, 16
      %v7410 = vrot.slane %v7408, 5
      %v7411 = vor.u32 %v7407, %v7410
      %v7412 = vrot.slane %v7411, 4
      %v7414 = vshll.u32 %v7198, 16
      %v7416 = vrot.slane %v7414, 5
      %v7417 = vsel %vm358, %v7412, %v7416
      %v7418 = vshrl.u32 %v7198, 16
      %v7420 = vrot.slane %v7418, 4
      %v7421 = vor.u32 %v7420, %v7416
      %v7422 = vrot.slane %v7421, 4
      %v7424 = vshll.u32 %v7199, 16
      %v7426 = vrot.slane %v7424, 5
      %v7427 = vsel %vm358, %v7422, %v7426
      %v7428 = vshrl.u32 %v7199, 16
      %v7430 = vrot.slane %v7428, 4
      %v7431 = vor.u32 %v7430, %v7426
      %v7432 = vrot.slane %v7431, 4
      %v7434 = vshll.u32 %v7200, 16
      %v7436 = vrot.slane %v7434, 5
      %v7437 = vsel %vm358, %v7432, %v7436
      %v7438 = vshrl.u32 %v7200, 16
      %v7440 = vrot.slane %v7438, 4
      %v7441 = vor.u32 %v7440, %v7436
      %v7442 = vrot.slane %v7441, 4
      %v7444 = vshll.u32 %v7201, 16
      %v7446 = vrot.slane %v7444, 5
      %v7447 = vsel %vm358, %v7442, %v7446
      %v7449 = vshrl.u32 %v7202, 16
      %v7451 = vrot.slane %v7449, 4
      %v7452 = vshll.u32 %v7202, 16
      %v7454 = vrot.slane %v7452, 5
      %v7455 = vor.u32 %v7451, %v7454
      %v7456 = vrot.slane %v7455, 4
      %v7458 = vshll.u32 %v7203, 16
      %v7460 = vrot.slane %v7458, 5
      %v7461 = vsel %vm358, %v7456, %v7460
      %v7462 = vshrl.u32 %v7203, 16
      %v7464 = vrot.slane %v7462, 4
      %v7465 = vor.u32 %v7464, %v7460
      %v7466 = vrot.slane %v7465, 4
      %v7468 = vshll.u32 %v7204, 16
      %v7470 = vrot.slane %v7468, 5
      %v7471 = vsel %vm358, %v7466, %v7470
      %v7472 = vshrl.u32 %v7204, 16
      %v7474 = vrot.slane %v7472, 4
      %v7475 = vor.u32 %v7474, %v7470
      %v7476 = vrot.slane %v7475, 4
      %v7478 = vshll.u32 %v7205, 16
      %v7480 = vrot.slane %v7478, 5
      %v7481 = vsel %vm358, %v7476, %v7480
      %v7482 = vshrl.u32 %v7205, 16
      %v7484 = vrot.slane %v7482, 4
      %v7485 = vor.u32 %v7484, %v7480
      %v7486 = vrot.slane %v7485, 4
      %v7488 = vshll.u32 %v7206, 16
      %v7490 = vrot.slane %v7488, 5
      %v7491 = vsel %vm358, %v7486, %v7490
      %v7493 = vshrl.u32 %v7207, 16
      %v7495 = vrot.slane %v7493, 4
      %v7496 = vshll.u32 %v7207, 16
      %v7498 = vrot.slane %v7496, 5
      %v7499 = vor.u32 %v7495, %v7498
      %v7500 = vrot.slane %v7499, 4
      %v7502 = vshll.u32 %v7208, 16
      %v7504 = vrot.slane %v7502, 5
      %v7505 = vsel %vm358, %v7500, %v7504
      %v7506 = vshrl.u32 %v7208, 16
      %v7508 = vrot.slane %v7506, 4
      %v7509 = vor.u32 %v7508, %v7504
      %v7510 = vrot.slane %v7509, 4
      %v7512 = vshll.u32 %v7209, 16
      %v7514 = vrot.slane %v7512, 5
      %v7515 = vsel %vm358, %v7510, %v7514
      %v7516 = vshrl.u32 %v7209, 16
      %v7518 = vrot.slane %v7516, 4
      %v7519 = vor.u32 %v7518, %v7514
      %v7520 = vrot.slane %v7519, 4
      %v7522 = vshll.u32 %v7210, 16
      %v7524 = vrot.slane %v7522, 5
      %v7525 = vsel %vm358, %v7520, %v7524
      %v7526 = vshrl.u32 %v7210, 16
      %v7528 = vrot.slane %v7526, 4
      %v7529 = vor.u32 %v7528, %v7524
      %v7530 = vrot.slane %v7529, 4
      %v7532 = vshll.u32 %v7211, 16
      %v7534 = vrot.slane %v7532, 5
      %v7535 = vsel %vm358, %v7530, %v7534
      %v7537 = vshrl.u32 %v7212, 16
      %v7539 = vrot.slane %v7537, 4
      %v7540 = vshll.u32 %v7212, 16
      %v7542 = vrot.slane %v7540, 5
      %v7543 = vor.u32 %v7539, %v7542
      %v7544 = vrot.slane %v7543, 4
      %v7546 = vshll.u32 %v7213, 16
      %v7548 = vrot.slane %v7546, 5
      %v7549 = vsel %vm358, %v7544, %v7548
      %v7550 = vshrl.u32 %v7213, 16
      %v7552 = vrot.slane %v7550, 4
      %v7553 = vor.u32 %v7552, %v7548
      %v7554 = vrot.slane %v7553, 4
      %v7556 = vshll.u32 %v7214, 16
      %v7558 = vrot.slane %v7556, 5
      %v7559 = vsel %vm358, %v7554, %v7558
      %v7560 = vshrl.u32 %v7214, 16
      %v7562 = vrot.slane %v7560, 4
      %v7563 = vor.u32 %v7562, %v7558
      %v7564 = vrot.slane %v7563, 4
      %v7566 = vshll.u32 %v7215, 16
      %v7568 = vrot.slane %v7566, 5
      %v7569 = vsel %vm358, %v7564, %v7568
      %v7570 = vshrl.u32 %v7215, 16
      %v7572 = vrot.slane %v7570, 4
      %v7573 = vor.u32 %v7572, %v7568
      %v7574 = vrot.slane %v7573, 4
      %v7576 = vshll.u32 %v7216, 16
      %v7578 = vrot.slane %v7576, 5
      %v7579 = vsel %vm358, %v7574, %v7578
      %v7581 = vshrl.u32 %v7217, 16
      %v7583 = vrot.slane %v7581, 4
      %v7584 = vshll.u32 %v7217, 16
      %v7586 = vrot.slane %v7584, 5
      %v7587 = vor.u32 %v7583, %v7586
      %v7588 = vrot.slane %v7587, 4
      %v7590 = vshll.u32 %v7218, 16
      %v7592 = vrot.slane %v7590, 5
      %v7593 = vsel %vm358, %v7588, %v7592
      %v7594 = vshrl.u32 %v7218, 16
      %v7596 = vrot.slane %v7594, 4
      %v7597 = vor.u32 %v7596, %v7592
      %v7598 = vrot.slane %v7597, 4
      %v7600 = vshll.u32 %v7219, 16
      %v7602 = vrot.slane %v7600, 5
      %v7603 = vsel %vm358, %v7598, %v7602
      %v7604 = vshrl.u32 %v7219, 16
      %v7606 = vrot.slane %v7604, 4
      %v7607 = vor.u32 %v7606, %v7602
      %v7608 = vrot.slane %v7607, 4
      %v7610 = vshll.u32 %v7220, 16
      %v7612 = vrot.slane %v7610, 5
      %v7613 = vsel %vm358, %v7608, %v7612
      %v7614 = vshrl.u32 %v7220, 16
      %v7616 = vrot.slane %v7614, 4
      %v7617 = vor.u32 %v7616, %v7612
      %v7618 = vrot.slane %v7617, 4
      %v7620 = vshll.u32 %v7221, 16
      %v7622 = vrot.slane %v7620, 5
      %v7623 = vsel %vm358, %v7618, %v7622
      %v7625 = vshrl.u32 %v7222, 16
      %v7627 = vrot.slane %v7625, 4
      %v7628 = vshll.u32 %v7222, 16
      %v7630 = vrot.slane %v7628, 5
      %v7631 = vor.u32 %v7627, %v7630
      %v7632 = vrot.slane %v7631, 4
      %v7634 = vshll.u32 %v7223, 16
      %v7636 = vrot.slane %v7634, 5
      %v7637 = vsel %vm358, %v7632, %v7636
      %v7638 = vshrl.u32 %v7223, 16
      %v7640 = vrot.slane %v7638, 4
      %v7641 = vor.u32 %v7640, %v7636
      %v7642 = vrot.slane %v7641, 4
      %v7644 = vshll.u32 %v7224, 16
      %v7646 = vrot.slane %v7644, 5
      %v7647 = vsel %vm358, %v7642, %v7646
      %v7648 = vshrl.u32 %v7224, 16
      %v7650 = vrot.slane %v7648, 4
      %v7651 = vor.u32 %v7650, %v7646
      %v7652 = vrot.slane %v7651, 4
      %v7654 = vshll.u32 %v7225, 16
      %v7656 = vrot.slane %v7654, 5
      %v7657 = vsel %vm358, %v7652, %v7656
      %v7658 = vshrl.u32 %v7225, 16
      %v7660 = vrot.slane %v7658, 4
      %v7661 = vor.u32 %v7660, %v7656
      %v7662 = vrot.slane %v7661, 4
      %v7664 = vshll.u32 %v7226, 16
      %v7666 = vrot.slane %v7664, 5
      %v7667 = vsel %vm358, %v7662, %v7666
      %v7669 = vshrl.u32 %v7227, 16
      %v7671 = vrot.slane %v7669, 4
      %v7672 = vshll.u32 %v7227, 16
      %v7674 = vrot.slane %v7672, 5
      %v7675 = vor.u32 %v7671, %v7674
      %v7676 = vrot.slane %v7675, 4
      %v7678 = vshll.u32 %v7228, 16
      %v7680 = vrot.slane %v7678, 5
      %v7681 = vsel %vm358, %v7676, %v7680
      %v7682 = vshrl.u32 %v7228, 16
      %v7684 = vrot.slane %v7682, 4
      %v7685 = vor.u32 %v7684, %v7680
      %v7686 = vrot.slane %v7685, 4
      %v7688 = vshll.u32 %v7229, 16
      %v7690 = vrot.slane %v7688, 5
      %v7691 = vsel %vm358, %v7686, %v7690
      %v7692 = vshrl.u32 %v7229, 16
      %v7694 = vrot.slane %v7692, 4
      %v7695 = vor.u32 %v7694, %v7690
      %v7696 = vrot.slane %v7695, 4
      %v7698 = vshll.u32 %v7230, 16
      %v7700 = vrot.slane %v7698, 5
      %v7701 = vsel %vm358, %v7696, %v7700
      %v7702 = vshrl.u32 %v7230, 16
      %v7704 = vrot.slane %v7702, 4
      %v7705 = vor.u32 %v7704, %v7700
      %v7706 = vrot.slane %v7705, 4
      %v7708 = vshll.u32 %v7231, 16
      %v7710 = vrot.slane %v7708, 5
      %v7711 = vsel %vm358, %v7706, %v7710
      %v7713 = vshrl.u32 %v7232, 16
      %v7715 = vrot.slane %v7713, 4
      %v7716 = vshll.u32 %v7232, 16
      %v7718 = vrot.slane %v7716, 5
      %v7719 = vor.u32 %v7715, %v7718
      %v7720 = vrot.slane %v7719, 4
      %v7722 = vshll.u32 %v7233, 16
      %v7724 = vrot.slane %v7722, 5
      %v7725 = vsel %vm358, %v7720, %v7724
      %v7726 = vshrl.u32 %v7233, 16
      %v7728 = vrot.slane %v7726, 4
      %v7729 = vor.u32 %v7728, %v7724
      %v7730 = vrot.slane %v7729, 4
      %v7732 = vshll.u32 %v7234, 16
      %v7734 = vrot.slane %v7732, 5
      %v7735 = vsel %vm358, %v7730, %v7734
      %v7736 = vshrl.u32 %v7234, 16
      %v7738 = vrot.slane %v7736, 4
      %v7739 = vor.u32 %v7738, %v7734
      %v7740 = vrot.slane %v7739, 4
      %v7742 = vshll.u32 %v7235, 16
      %v7744 = vrot.slane %v7742, 5
      %v7745 = vsel %vm358, %v7740, %v7744
      %v7746 = vshrl.u32 %v7235, 16
      %v7748 = vrot.slane %v7746, 4
      %v7749 = vor.u32 %v7748, %v7744
      %v7750 = vrot.slane %v7749, 4
      %v7752 = vshll.u32 %v7236, 16
      %v7754 = vrot.slane %v7752, 5
      %v7755 = vsel %vm358, %v7750, %v7754
      %v7757 = vshrl.u32 %v7237, 16
      %v7759 = vrot.slane %v7757, 4
      %v7760 = vshll.u32 %v7237, 16
      %v7762 = vrot.slane %v7760, 5
      %v7763 = vor.u32 %v7759, %v7762
      %v7764 = vrot.slane %v7763, 4
      %v7766 = vshll.u32 %v7238, 16
      %v7768 = vrot.slane %v7766, 5
      %v7769 = vsel %vm358, %v7764, %v7768
      %v7770 = vshrl.u32 %v7238, 16
      %v7772 = vrot.slane %v7770, 4
      %v7773 = vor.u32 %v7772, %v7768
      %v7774 = vrot.slane %v7773, 4
      %v7776 = vshll.u32 %v7239, 16
      %v7778 = vrot.slane %v7776, 5
      %v7779 = vsel %vm358, %v7774, %v7778
      %v7780 = vshrl.u32 %v7239, 16
      %v7782 = vrot.slane %v7780, 4
      %v7783 = vor.u32 %v7782, %v7778
      %v7784 = vrot.slane %v7783, 4
      %v7786 = vshll.u32 %v7240, 16
      %v7788 = vrot.slane %v7786, 5
      %v7789 = vsel %vm358, %v7784, %v7788
      %v7790 = vshrl.u32 %v7240, 16
      %v7792 = vrot.slane %v7790, 4
      %v7793 = vor.u32 %v7792, %v7788
      %v7794 = vrot.slane %v7793, 4
      %v7796 = vshll.u32 %v7241, 16
      %v7798 = vrot.slane %v7796, 5
      %v7799 = vsel %vm358, %v7794, %v7798
      %v7801 = vshrl.u32 %v7242, 16
      %v7803 = vrot.slane %v7801, 4
      %v7804 = vshll.u32 %v7242, 16
      %v7806 = vrot.slane %v7804, 5
      %v7807 = vor.u32 %v7803, %v7806
      %v7808 = vrot.slane %v7807, 4
      %v7810 = vshll.u32 %v7243, 16
      %v7812 = vrot.slane %v7810, 5
      %v7813 = vsel %vm358, %v7808, %v7812
      %v7814 = vshrl.u32 %v7243, 16
      %v7816 = vrot.slane %v7814, 4
      %v7817 = vor.u32 %v7816, %v7812
      %v7818 = vrot.slane %v7817, 4
      %v7820 = vshll.u32 %v7244, 16
      %v7822 = vrot.slane %v7820, 5
      %v7823 = vsel %vm358, %v7818, %v7822
      %v7824 = vshrl.u32 %v7244, 16
      %v7826 = vrot.slane %v7824, 4
      %v7827 = vor.u32 %v7826, %v7822
      %v7828 = vrot.slane %v7827, 4
      %v7830 = vshll.u32 %v7245, 16
      %v7832 = vrot.slane %v7830, 5
      %v7833 = vsel %vm358, %v7828, %v7832
      %v7834 = vshrl.u32 %v7245, 16
      %v7836 = vrot.slane %v7834, 4
      %v7837 = vor.u32 %v7836, %v7832
      %v7838 = vrot.slane %v7837, 4
      %v7840 = vshll.u32 %v7246, 16
      %v7842 = vrot.slane %v7840, 5
      %v7843 = vsel %vm358, %v7838, %v7842
      %v7845 = vshrl.u32 %v7247, 16
      %v7847 = vrot.slane %v7845, 4
      %v7848 = vshll.u32 %v7247, 16
      %v7850 = vrot.slane %v7848, 5
      %v7851 = vor.u32 %v7847, %v7850
      %v7852 = vrot.slane %v7851, 4
      %v7854 = vshll.u32 %v7248, 16
      %v7856 = vrot.slane %v7854, 5
      %v7857 = vsel %vm358, %v7852, %v7856
      %v7858 = vshrl.u32 %v7248, 16
      %v7860 = vrot.slane %v7858, 4
      %v7861 = vor.u32 %v7860, %v7856
      %v7862 = vrot.slane %v7861, 4
      %v7864 = vshll.u32 %v7249, 16
      %v7866 = vrot.slane %v7864, 5
      %v7867 = vsel %vm358, %v7862, %v7866
      %v7868 = vshrl.u32 %v7249, 16
      %v7870 = vrot.slane %v7868, 4
      %v7871 = vor.u32 %v7870, %v7866
      %v7872 = vrot.slane %v7871, 4
      %v7874 = vshll.u32 %v7250, 16
      %v7876 = vrot.slane %v7874, 5
      %v7877 = vsel %vm358, %v7872, %v7876
      %v7878 = vshrl.u32 %v7250, 16
      %v7880 = vrot.slane %v7878, 4
      %v7881 = vor.u32 %v7880, %v7876
      %v7882 = vrot.slane %v7881, 4
      %v7884 = vshll.u32 %v7251, 16
      %v7886 = vrot.slane %v7884, 5
      %v7887 = vsel %vm358, %v7882, %v7886
      %v7889 = vshrl.u32 %v7252, 16
      %v7891 = vrot.slane %v7889, 4
      %v7892 = vshll.u32 %v7252, 16
      %v7894 = vrot.slane %v7892, 5
      %v7895 = vor.u32 %v7891, %v7894
      %v7896 = vrot.slane %v7895, 4
      %v7898 = vshll.u32 %v7253, 16
      %v7900 = vrot.slane %v7898, 5
      %v7901 = vsel %vm358, %v7896, %v7900
      %v7902 = vshrl.u32 %v7253, 16
      %v7904 = vrot.slane %v7902, 4
      %v7905 = vor.u32 %v7904, %v7900
      %v7906 = vrot.slane %v7905, 4
      %v7908 = vshll.u32 %v7254, 16
      %v7910 = vrot.slane %v7908, 5
      %v7911 = vsel %vm358, %v7906, %v7910
      %v7912 = vshrl.u32 %v7254, 16
      %v7914 = vrot.slane %v7912, 4
      %v7915 = vor.u32 %v7914, %v7910
      %v7916 = vrot.slane %v7915, 4
      %v7918 = vshll.u32 %v7255, 16
      %v7920 = vrot.slane %v7918, 5
      %v7921 = vsel %vm358, %v7916, %v7920
      %v7922 = vshrl.u32 %v7255, 16
      %v7924 = vrot.slane %v7922, 4
      %v7925 = vor.u32 %v7924, %v7920
      %v7926 = vrot.slane %v7925, 4
      %v7928 = vshll.u32 %v7256, 16
      %v7930 = vrot.slane %v7928, 5
      %v7931 = vsel %vm358, %v7926, %v7930
      %v7933 = vshrl.u32 %v7257, 16
      %v7935 = vrot.slane %v7933, 4
      %v7936 = vshll.u32 %v7257, 16
      %v7938 = vrot.slane %v7936, 5
      %v7939 = vor.u32 %v7935, %v7938
      %v7940 = vrot.slane %v7939, 4
      %v7942 = vshll.u32 %v7258, 16
      %v7944 = vrot.slane %v7942, 5
      %v7945 = vsel %vm358, %v7940, %v7944
      %v7946 = vshrl.u32 %v7258, 16
      %v7948 = vrot.slane %v7946, 4
      %v7949 = vor.u32 %v7948, %v7944
      %v7950 = vrot.slane %v7949, 4
      %v7952 = vshll.u32 %v7259, 16
      %v7954 = vrot.slane %v7952, 5
      %v7955 = vsel %vm358, %v7950, %v7954
      %v7956 = vshrl.u32 %v7259, 16
      %v7958 = vrot.slane %v7956, 4
      %v7959 = vor.u32 %v7958, %v7954
      %v7960 = vrot.slane %v7959, 4
      %v7962 = vshll.u32 %v7260, 16
      %v7964 = vrot.slane %v7962, 5
      %v7965 = vsel %vm358, %v7960, %v7964
      %v7966 = vshrl.u32 %v7260, 16
      %v7968 = vrot.slane %v7966, 4
      %v7969 = vor.u32 %v7968, %v7964
      %v7970 = vrot.slane %v7969, 4
      %v7972 = vshll.u32 %v7261, 16
      %v7974 = vrot.slane %v7972, 5
      %v7975 = vsel %vm358, %v7970, %v7974
      %v7977 = vshrl.u32 %v7262, 16
      %v7979 = vrot.slane %v7977, 4
      %v7980 = vshll.u32 %v7262, 16
      %v7982 = vrot.slane %v7980, 5
      %v7983 = vor.u32 %v7979, %v7982
      %v7984 = vrot.slane %v7983, 4
      %v7986 = vshll.u32 %v7263, 16
      %v7988 = vrot.slane %v7986, 5
      %v7989 = vsel %vm358, %v7984, %v7988
      %v7990 = vshrl.u32 %v7263, 16
      %v7992 = vrot.slane %v7990, 4
      %v7993 = vor.u32 %v7992, %v7988
      %v7994 = vrot.slane %v7993, 4
      %v7996 = vshll.u32 %v7264, 16
      %v7998 = vrot.slane %v7996, 5
      %v7999 = vsel %vm358, %v7994, %v7998
      %v8000 = vshrl.u32 %v7264, 16
      %v8002 = vrot.slane %v8000, 4
      %v8003 = vor.u32 %v8002, %v7998
      %v8004 = vrot.slane %v8003, 4
      %v8006 = vshll.u32 %v7265, 16
      %v8008 = vrot.slane %v8006, 5
      %v8009 = vsel %vm358, %v8004, %v8008
      %v8010 = vshrl.u32 %v7265, 16
      %v8012 = vrot.slane %v8010, 4
      %v8013 = vor.u32 %v8012, %v8008
      %v8014 = vrot.slane %v8013, 4
      %v8016 = vshll.u32 %v7266, 16
      %v8018 = vrot.slane %v8016, 5
      %v8019 = vsel %vm358, %v8014, %v8018
      %v8021 = vshrl.u32 %v7267, 16
      %v8023 = vrot.slane %v8021, 4
      %v8024 = vshll.u32 %v7267, 16
      %v8026 = vrot.slane %v8024, 5
      %v8027 = vor.u32 %v8023, %v8026
      %v8028 = vrot.slane %v8027, 4
      %v8030 = vshll.u32 %v7268, 16
      %v8032 = vrot.slane %v8030, 5
      %v8033 = vsel %vm358, %v8028, %v8032
      %v8034 = vshrl.u32 %v7268, 16
      %v8036 = vrot.slane %v8034, 4
      %v8037 = vor.u32 %v8036, %v8032
      %v8038 = vrot.slane %v8037, 4
      %v8040 = vshll.u32 %v7269, 16
      %v8042 = vrot.slane %v8040, 5
      %v8043 = vsel %vm358, %v8038, %v8042
      %v8044 = vshrl.u32 %v7269, 16
      %v8046 = vrot.slane %v8044, 4
      %v8047 = vor.u32 %v8046, %v8042
      %v8048 = vrot.slane %v8047, 4
      %v8050 = vshll.u32 %v7270, 16
      %v8052 = vrot.slane %v8050, 5
      %v8053 = vsel %vm358, %v8048, %v8052
      %v8054 = vshrl.u32 %v7270, 16
      %v8056 = vrot.slane %v8054, 4
      %v8057 = vor.u32 %v8056, %v8052
      %v8058 = vrot.slane %v8057, 4
      %v8060 = vshll.u32 %v7271, 16
      %v8062 = vrot.slane %v8060, 5
      %v8063 = vsel %vm358, %v8058, %v8062
      %s8064 = scalar_lea.vmem %s1, 14
      %v8065 = vld [vmem:[%s8064] sm:$0x3]
      %v8066 = vunpack.c.l.b16 %v7285
      %v8067 = vunpack.c.l.b16 %v7295
      %v8068 = vunpack.c.l.b16 %v7305
      %v8069 = vunpack.c.l.b16 %v7315
      %v8070 = vunpack.c.l.b16 %v7329
      %v8071 = vunpack.c.l.b16 %v7339
      %v8072 = vunpack.c.l.b16 %v7349
      %v8073 = vunpack.c.l.b16 %v7359
      %v8074 = vunpack.c.l.b16 %v7373
      %v8075 = vunpack.c.l.b16 %v7383
      %v8076 = vunpack.c.l.b16 %v7393
      %v8077 = vunpack.c.l.b16 %v7403
      %v8078 = vunpack.c.l.b16 %v7417
      %v8079 = vunpack.c.l.b16 %v7427
      %v8080 = vunpack.c.l.b16 %v7437
      %v8081 = vunpack.c.l.b16 %v7447
      %v8082 = vunpack.c.l.b16 %v7461
      %v8083 = vunpack.c.l.b16 %v7471
      %v8084 = vunpack.c.l.b16 %v7481
      %v8085 = vunpack.c.l.b16 %v7491
      %v8086 = vunpack.c.l.b16 %v7505
      %v8087 = vunpack.c.l.b16 %v7515
      %v8088 = vunpack.c.l.b16 %v7525
      %v8089 = vunpack.c.l.b16 %v7535
      %v8090 = vunpack.c.l.b16 %v7549
      %v8091 = vunpack.c.l.b16 %v7559
      %v8092 = vunpack.c.l.b16 %v7569
      %v8093 = vunpack.c.l.b16 %v7579
      %v8094 = vunpack.c.l.b16 %v7593
      %v8095 = vunpack.c.l.b16 %v7603
      %v8096 = vunpack.c.l.b16 %v7613
      %v8097 = vunpack.c.l.b16 %v7623
      %v8098 = vunpack.c.l.b16 %v7637
      %v8099 = vunpack.c.l.b16 %v7647
      %v8100 = vunpack.c.l.b16 %v7657
      %v8101 = vunpack.c.l.b16 %v7667
      %v8102 = vunpack.c.l.b16 %v7681
      %v8103 = vunpack.c.l.b16 %v7691
      %v8104 = vunpack.c.l.b16 %v7701
      %v8105 = vunpack.c.l.b16 %v7711
      %v8106 = vunpack.c.l.b16 %v7725
      %v8107 = vunpack.c.l.b16 %v7735
      %v8108 = vunpack.c.l.b16 %v7745
      %v8109 = vunpack.c.l.b16 %v7755
      %v8110 = vunpack.c.l.b16 %v7769
      %v8111 = vunpack.c.l.b16 %v7779
      %v8112 = vunpack.c.l.b16 %v7789
      %v8113 = vunpack.c.l.b16 %v7799
      %v8114 = vunpack.c.l.b16 %v7813
      %v8115 = vunpack.c.l.b16 %v7823
      %v8116 = vunpack.c.l.b16 %v7833
      %v8117 = vunpack.c.l.b16 %v7843
      %v8118 = vunpack.c.l.b16 %v7857
      %v8119 = vunpack.c.l.b16 %v7867
      %v8120 = vunpack.c.l.b16 %v7877
      %v8121 = vunpack.c.l.b16 %v7887
      %v8122 = vunpack.c.l.b16 %v7901
      %v8123 = vunpack.c.l.b16 %v7911
      %v8124 = vunpack.c.l.b16 %v7921
      %v8125 = vunpack.c.l.b16 %v7931
      %v8126 = vunpack.c.l.b16 %v7945
      %v8127 = vunpack.c.l.b16 %v7955
      %v8128 = vunpack.c.l.b16 %v7965
      %v8129 = vunpack.c.l.b16 %v7975
      %v8130 = vunpack.c.l.b16 %v7989
      %v8131 = vunpack.c.l.b16 %v7999
      %v8132 = vunpack.c.l.b16 %v8009
      %v8133 = vunpack.c.l.b16 %v8019
      %v8134 = vunpack.c.l.b16 %v8033
      %v8135 = vunpack.c.l.b16 %v8043
      %v8136 = vunpack.c.l.b16 %v8053
      %v8137 = vunpack.c.l.b16 %v8063
      %v8138 = vpack.c.b16 %v8067, %v8066
      %v8139 = vpack.c.b16 %v8069, %v8068
      %v8140 = vpack.c.b16 %v8071, %v8070
      %v8141 = vpack.c.b16 %v8073, %v8072
      %v8142 = vpack.c.b16 %v8075, %v8074
      %v8143 = vpack.c.b16 %v8077, %v8076
      %v8144 = vpack.c.b16 %v8079, %v8078
      %v8145 = vpack.c.b16 %v8081, %v8080
      %v8146 = vpack.c.b16 %v8083, %v8082
      %v8147 = vpack.c.b16 %v8085, %v8084
      %v8148 = vpack.c.b16 %v8087, %v8086
      %v8149 = vpack.c.b16 %v8089, %v8088
      %v8150 = vpack.c.b16 %v8091, %v8090
      %v8151 = vpack.c.b16 %v8093, %v8092
      %v8152 = vpack.c.b16 %v8095, %v8094
      %v8153 = vpack.c.b16 %v8097, %v8096
      %v8154 = vpack.c.b16 %v8099, %v8098
      %v8155 = vpack.c.b16 %v8101, %v8100
      %v8156 = vpack.c.b16 %v8103, %v8102
      %v8157 = vpack.c.b16 %v8105, %v8104
      %v8158 = vpack.c.b16 %v8107, %v8106
      %v8159 = vpack.c.b16 %v8109, %v8108
      %v8160 = vpack.c.b16 %v8111, %v8110
      %v8161 = vpack.c.b16 %v8113, %v8112
      %v8162 = vpack.c.b16 %v8115, %v8114
      %v8163 = vpack.c.b16 %v8117, %v8116
      %v8164 = vpack.c.b16 %v8119, %v8118
      %v8165 = vpack.c.b16 %v8121, %v8120
      %v8166 = vpack.c.b16 %v8123, %v8122
      %v8167 = vpack.c.b16 %v8125, %v8124
      %v8168 = vpack.c.b16 %v8127, %v8126
      %v8169 = vpack.c.b16 %v8129, %v8128
      %v8170 = vpack.c.b16 %v8131, %v8130
      %v8171 = vpack.c.b16 %v8133, %v8132
      %v8172 = vpack.c.b16 %v8135, %v8134
      %v8173 = vpack.c.b16 %v8137, %v8136
      %v8175 = vsel %vm1261, %v8138, 0
      %v8178 = vsel %vm1261, %v8139, 0
      %v8181 = vsel %vm1261, %v8140, 0
      %v8184 = vsel %vm1261, %v8141, 0
      %v8187 = vsel %vm1261, %v8142, 0
      %v8190 = vsel %vm1261, %v8143, 0
      %v8193 = vsel %vm1261, %v8144, 0
      %v8196 = vsel %vm1261, %v8145, 0
      %v8199 = vsel %vm1261, %v8146, 0
      %v8202 = vsel %vm1261, %v8147, 0
      %v8205 = vsel %vm1261, %v8148, 0
      %v8208 = vsel %vm1261, %v8149, 0
      %v8211 = vsel %vm1261, %v8150, 0
      %v8214 = vsel %vm1261, %v8151, 0
      %v8217 = vsel %vm1261, %v8152, 0
      %v8220 = vsel %vm1261, %v8153, 0
      %v8223 = vsel %vm1261, %v8154, 0
      %v8226 = vsel %vm1261, %v8155, 0
      %v8229 = vsel %vm1261, %v8156, 0
      %v8232 = vsel %vm1261, %v8157, 0
      %v8235 = vsel %vm1261, %v8158, 0
      %v8238 = vsel %vm1261, %v8159, 0
      %v8241 = vsel %vm1261, %v8160, 0
      %v8244 = vsel %vm1261, %v8161, 0
      %v8247 = vsel %vm1261, %v8162, 0
      %v8250 = vsel %vm1261, %v8163, 0
      %v8253 = vsel %vm1261, %v8164, 0
      %v8256 = vsel %vm1261, %v8165, 0
      %v8259 = vsel %vm1261, %v8166, 0
      %v8262 = vsel %vm1261, %v8167, 0
      %v8265 = vsel %vm1261, %v8168, 0
      %v8268 = vsel %vm1261, %v8169, 0
      %v8271 = vsel %vm1261, %v8170, 0
      %v8274 = vsel %vm1261, %v8171, 0
      %v8277 = vsel %vm1261, %v8172, 0
      %v8280 = vsel %vm1261, %v8173, 0
      %v8283 = vsel %vm1370, %v8065, 0
      %8285 = vmatprep.subr.bf16.mxu0 0
      %8286 = vmatpush1.bf16.msra.mxu0 %v8283
      %8287 = vmatprep.subr.bf16.mxu0 0
      %8288 = vmatpush1.bf16.msra.mxu0 0
      %8289 = vmatprep.subr.bf16.mxu0 0
      %8290 = vmatpush1.bf16.msra.mxu0 0
      %8291 = vmatprep.subr.bf16.mxu0 0
      %8292 = vmatpush1.bf16.msra.mxu0 0
      %8293 = vmatprep.subr.bf16.mxu0 0
      %8294 = vmatpush1.bf16.msra.mxu0 0
      %8295 = vmatprep.subr.bf16.mxu0 0
      %8296 = vmatpush1.bf16.msra.mxu0 0
      %8297 = vmatprep.subr.bf16.mxu0 0
      %8298 = vmatpush1.bf16.msra.mxu0 0
      %8299 = vmatprep.subr.bf16.mxu0 0
      %8300 = vmatpush1.bf16.msra.mxu0 0
      %8301 = vmatprep.subr.bf16.mxu0 0
      %8302 = vmatpush1.bf16.msra.mxu0 0
      %8303 = vmatprep.subr.bf16.mxu0 0
      %8304 = vmatpush1.bf16.msra.mxu0 0
      %8305 = vmatprep.subr.bf16.mxu0 0
      %8306 = vmatpush1.bf16.msra.mxu0 0
      %8307 = vmatprep.subr.bf16.mxu0 0
      %8308 = vmatpush1.bf16.msra.mxu0 0
      %8309 = vmatprep.subr.bf16.mxu0 0
      %8310 = vmatpush1.bf16.msra.mxu0 0
      %8311 = vmatprep.subr.bf16.mxu0 0
      %8312 = vmatpush1.bf16.msra.mxu0 0
      %8313 = vmatprep.subr.bf16.mxu0 0
      %8314 = vmatpush1.bf16.msra.mxu0 0
      %8315 = vmatprep.subr.bf16.mxu0 0
      %8316 = vmatpush1.bf16.msra.mxu0 0
      %8317 = vmatprep.mubr.bf16.mxu0 0
      %8318 = vmatmul.mubr.bf16.gmra.mrb[0].mxu0 %v8175
      %v8319 = vpop.f32.mrb[0].mxu0
      %v8320 = vadd.f32 0.0, %v8319
      %v8321 = vpop.f32.mrb[0].mxu0
      %v8322 = vpop.f32.mrb[0].mxu0
      %v8323 = vadd.f32 0.0, %v8322
      %v8324 = vpop.f32.mrb[0].mxu0
      %8325 = vmatprep.mubr.bf16.mxu0 0
      %8326 = vmatmul.mubr.bf16.gmra.mrb[0].mxu0 %v8178
      %v8327 = vpop.f32.mrb[0].mxu0
      %v8328 = vadd.f32 0.0, %v8327
      %v8329 = vpop.f32.mrb[0].mxu0
      %v8330 = vpop.f32.mrb[0].mxu0
      %v8331 = vadd.f32 0.0, %v8330
      %v8332 = vpop.f32.mrb[0].mxu0
      %8333 = vmatprep.mubr.bf16.mxu0 0
      %8334 = vmatmul.mubr.bf16.gmra.mrb[0].mxu0 %v8181
      %v8335 = vpop.f32.mrb[0].mxu0
      %v8336 = vadd.f32 0.0, %v8335
      %v8337 = vpop.f32.mrb[0].mxu0
      %v8338 = vpop.f32.mrb[0].mxu0
      %v8339 = vadd.f32 0.0, %v8338
      %v8340 = vpop.f32.mrb[0].mxu0
      %8341 = vmatprep.mubr.bf16.mxu0 0
      %8342 = vmatmul.mubr.bf16.gmra.mrb[0].mxu0 %v8184
      %v8343 = vpop.f32.mrb[0].mxu0
      %v8344 = vadd.f32 0.0, %v8343
      %v8345 = vpop.f32.mrb[0].mxu0
      %v8346 = vpop.f32.mrb[0].mxu0
      %v8347 = vadd.f32 0.0, %v8346
      %v8348 = vpop.f32.mrb[0].mxu0
      %8349 = vmatprep.mubr.bf16.mxu0 0
      %8350 = vmatmul.mubr.bf16.gmra.mrb[0].mxu0 %v8187
      %v8351 = vpop.f32.mrb[0].mxu0
      %v8352 = vadd.f32 0.0, %v8351
      %v8353 = vpop.f32.mrb[0].mxu0
      %v8354 = vpop.f32.mrb[0].mxu0
      %v8355 = vadd.f32 0.0, %v8354
      %v8356 = vpop.f32.mrb[0].mxu0
      %8357 = vmatprep.mubr.bf16.mxu0 0
      %8358 = vmatmul.mubr.bf16.gmra.mrb[0].mxu0 %v8190
      %v8359 = vpop.f32.mrb[0].mxu0
      %v8360 = vadd.f32 0.0, %v8359
      %v8361 = vpop.f32.mrb[0].mxu0
      %v8362 = vpop.f32.mrb[0].mxu0
      %v8363 = vadd.f32 0.0, %v8362
      %v8364 = vpop.f32.mrb[0].mxu0
      %8365 = vmatprep.mubr.bf16.mxu0 0
      %8366 = vmatmul.mubr.bf16.gmra.mrb[0].mxu0 %v8193
      %v8367 = vpop.f32.mrb[0].mxu0
      %v8368 = vadd.f32 0.0, %v8367
      %v8369 = vpop.f32.mrb[0].mxu0
      %v8370 = vpop.f32.mrb[0].mxu0
      %v8371 = vadd.f32 0.0, %v8370
      %v8372 = vpop.f32.mrb[0].mxu0
      %8373 = vmatprep.mubr.bf16.mxu0 0
      %8374 = vmatmul.mubr.bf16.gmra.mrb[0].mxu0 %v8196
      %v8375 = vpop.f32.mrb[0].mxu0
      %v8376 = vadd.f32 0.0, %v8375
      %v8377 = vpop.f32.mrb[0].mxu0
      %v8378 = vpop.f32.mrb[0].mxu0
      %v8379 = vadd.f32 0.0, %v8378
      %v8380 = vpop.f32.mrb[0].mxu0
      %8381 = vmatprep.mubr.bf16.mxu0 0
      %8382 = vmatmul.mubr.bf16.gmra.mrb[0].mxu0 %v8199
      %v8383 = vpop.f32.mrb[0].mxu0
      %v8384 = vadd.f32 0.0, %v8383
      %v8385 = vpop.f32.mrb[0].mxu0
      %v8386 = vpop.f32.mrb[0].mxu0
      %v8387 = vadd.f32 0.0, %v8386
      %v8388 = vpop.f32.mrb[0].mxu0
      %8389 = vmatprep.mubr.bf16.mxu0 0
      %8390 = vmatmul.mubr.bf16.gmra.mrb[0].mxu0 %v8202
      %v8391 = vpop.f32.mrb[0].mxu0
      %v8392 = vadd.f32 0.0, %v8391
      %v8393 = vpop.f32.mrb[0].mxu0
      %v8394 = vpop.f32.mrb[0].mxu0
      %v8395 = vadd.f32 0.0, %v8394
      %v8396 = vpop.f32.mrb[0].mxu0
      %8397 = vmatprep.mubr.bf16.mxu0 0
      %8398 = vmatmul.mubr.bf16.gmra.mrb[0].mxu0 %v8205
      %v8399 = vpop.f32.mrb[0].mxu0
      %v8400 = vadd.f32 0.0, %v8399
      %v8401 = vpop.f32.mrb[0].mxu0
      %v8402 = vpop.f32.mrb[0].mxu0
      %v8403 = vadd.f32 0.0, %v8402
      %v8404 = vpop.f32.mrb[0].mxu0
      %8405 = vmatprep.mubr.bf16.mxu0 0
      %8406 = vmatmul.mubr.bf16.gmra.mrb[0].mxu0 %v8208
      %v8407 = vpop.f32.mrb[0].mxu0
      %v8408 = vadd.f32 0.0, %v8407
      %v8409 = vpop.f32.mrb[0].mxu0
      %v8410 = vpop.f32.mrb[0].mxu0
      %v8411 = vadd.f32 0.0, %v8410
      %v8412 = vpop.f32.mrb[0].mxu0
      %8413 = vmatprep.mubr.bf16.mxu0 0
      %8414 = vmatmul.mubr.bf16.gmra.mrb[0].mxu0 %v8211
      %v8415 = vpop.f32.mrb[0].mxu0
      %v8416 = vadd.f32 0.0, %v8415
      %v8417 = vpop.f32.mrb[0].mxu0
      %v8418 = vpop.f32.mrb[0].mxu0
      %v8419 = vadd.f32 0.0, %v8418
      %v8420 = vpop.f32.mrb[0].mxu0
      %8421 = vmatprep.mubr.bf16.mxu0 0
      %8422 = vmatmul.mubr.bf16.gmra.mrb[0].mxu0 %v8214
      %v8423 = vpop.f32.mrb[0].mxu0
      %v8424 = vadd.f32 0.0, %v8423
      %v8425 = vpop.f32.mrb[0].mxu0
      %v8426 = vpop.f32.mrb[0].mxu0
      %v8427 = vadd.f32 0.0, %v8426
      %v8428 = vpop.f32.mrb[0].mxu0
      %8429 = vmatprep.mubr.bf16.mxu0 0
      %8430 = vmatmul.mubr.bf16.gmra.mrb[0].mxu0 %v8217
      %v8431 = vpop.f32.mrb[0].mxu0
      %v8432 = vadd.f32 0.0, %v8431
      %v8433 = vpop.f32.mrb[0].mxu0
      %v8434 = vpop.f32.mrb[0].mxu0
      %v8435 = vadd.f32 0.0, %v8434
      %v8436 = vpop.f32.mrb[0].mxu0
      %8437 = vmatprep.mubr.bf16.mxu0 0
      %8438 = vmatmul.mubr.bf16.gmra.mrb[0].mxu0 %v8220
      %v8439 = vpop.f32.mrb[0].mxu0
      %v8440 = vadd.f32 0.0, %v8439
      %v8441 = vpop.f32.mrb[0].mxu0
      %v8442 = vpop.f32.mrb[0].mxu0
      %v8443 = vadd.f32 0.0, %v8442
      %v8444 = vpop.f32.mrb[0].mxu0
      %8445 = vmatprep.mubr.bf16.mxu0 0
      %8446 = vmatmul.mubr.bf16.gmra.mrb[0].mxu0 %v8223
      %v8447 = vpop.f32.mrb[0].mxu0
      %v8448 = vadd.f32 0.0, %v8447
      %v8449 = vpop.f32.mrb[0].mxu0
      %v8450 = vpop.f32.mrb[0].mxu0
      %v8451 = vadd.f32 0.0, %v8450
      %v8452 = vpop.f32.mrb[0].mxu0
      %8453 = vmatprep.mubr.bf16.mxu0 0
      %8454 = vmatmul.mubr.bf16.gmra.mrb[0].mxu0 %v8226
      %v8455 = vpop.f32.mrb[0].mxu0
      %v8456 = vadd.f32 0.0, %v8455
      %v8457 = vpop.f32.mrb[0].mxu0
      %v8458 = vpop.f32.mrb[0].mxu0
      %v8459 = vadd.f32 0.0, %v8458
      %v8460 = vpop.f32.mrb[0].mxu0
      %8461 = vmatprep.mubr.bf16.mxu0 0
      %8462 = vmatmul.mubr.bf16.gmra.mrb[0].mxu0 %v8229
      %v8463 = vpop.f32.mrb[0].mxu0
      %v8464 = vadd.f32 0.0, %v8463
      %v8465 = vpop.f32.mrb[0].mxu0
      %v8466 = vpop.f32.mrb[0].mxu0
      %v8467 = vadd.f32 0.0, %v8466
      %v8468 = vpop.f32.mrb[0].mxu0
      %8469 = vmatprep.mubr.bf16.mxu0 0
      %8470 = vmatmul.mubr.bf16.gmra.mrb[0].mxu0 %v8232
      %v8471 = vpop.f32.mrb[0].mxu0
      %v8472 = vadd.f32 0.0, %v8471
      %v8473 = vpop.f32.mrb[0].mxu0
      %v8474 = vpop.f32.mrb[0].mxu0
      %v8475 = vadd.f32 0.0, %v8474
      %v8476 = vpop.f32.mrb[0].mxu0
      %8477 = vmatprep.mubr.bf16.mxu0 0
      %8478 = vmatmul.mubr.bf16.gmra.mrb[0].mxu0 %v8235
      %v8479 = vpop.f32.mrb[0].mxu0
      %v8480 = vadd.f32 0.0, %v8479
      %v8481 = vpop.f32.mrb[0].mxu0
      %v8482 = vpop.f32.mrb[0].mxu0
      %v8483 = vadd.f32 0.0, %v8482
      %v8484 = vpop.f32.mrb[0].mxu0
      %8485 = vmatprep.mubr.bf16.mxu0 0
      %8486 = vmatmul.mubr.bf16.gmra.mrb[0].mxu0 %v8238
      %v8487 = vpop.f32.mrb[0].mxu0
      %v8488 = vadd.f32 0.0, %v8487
      %v8489 = vpop.f32.mrb[0].mxu0
      %v8490 = vpop.f32.mrb[0].mxu0
      %v8491 = vadd.f32 0.0, %v8490
      %v8492 = vpop.f32.mrb[0].mxu0
      %8493 = vmatprep.mubr.bf16.mxu0 0
      %8494 = vmatmul.mubr.bf16.gmra.mrb[0].mxu0 %v8241
      %v8495 = vpop.f32.mrb[0].mxu0
      %v8496 = vadd.f32 0.0, %v8495
      %v8497 = vpop.f32.mrb[0].mxu0
      %v8498 = vpop.f32.mrb[0].mxu0
      %v8499 = vadd.f32 0.0, %v8498
      %v8500 = vpop.f32.mrb[0].mxu0
      %8501 = vmatprep.mubr.bf16.mxu0 0
      %8502 = vmatmul.mubr.bf16.gmra.mrb[0].mxu0 %v8244
      %v8503 = vpop.f32.mrb[0].mxu0
      %v8504 = vadd.f32 0.0, %v8503
      %v8505 = vpop.f32.mrb[0].mxu0
      %v8506 = vpop.f32.mrb[0].mxu0
      %v8507 = vadd.f32 0.0, %v8506
      %v8508 = vpop.f32.mrb[0].mxu0
      %8509 = vmatprep.mubr.bf16.mxu0 0
      %8510 = vmatmul.mubr.bf16.gmra.mrb[0].mxu0 %v8247
      %v8511 = vpop.f32.mrb[0].mxu0
      %v8512 = vadd.f32 0.0, %v8511
      %v8513 = vpop.f32.mrb[0].mxu0
      %v8514 = vpop.f32.mrb[0].mxu0
      %v8515 = vadd.f32 0.0, %v8514
      %v8516 = vpop.f32.mrb[0].mxu0
      %8517 = vmatprep.mubr.bf16.mxu0 0
      %8518 = vmatmul.mubr.bf16.gmra.mrb[0].mxu0 %v8250
      %v8519 = vpop.f32.mrb[0].mxu0
      %v8520 = vadd.f32 0.0, %v8519
      %v8521 = vpop.f32.mrb[0].mxu0
      %v8522 = vpop.f32.mrb[0].mxu0
      %v8523 = vadd.f32 0.0, %v8522
      %v8524 = vpop.f32.mrb[0].mxu0
      %8525 = vmatprep.mubr.bf16.mxu0 0
      %8526 = vmatmul.mubr.bf16.gmra.mrb[0].mxu0 %v8253
      %v8527 = vpop.f32.mrb[0].mxu0
      %v8528 = vadd.f32 0.0, %v8527
      %v8529 = vpop.f32.mrb[0].mxu0
      %v8530 = vpop.f32.mrb[0].mxu0
      %v8531 = vadd.f32 0.0, %v8530
      %v8532 = vpop.f32.mrb[0].mxu0
      %8533 = vmatprep.mubr.bf16.mxu0 0
      %8534 = vmatmul.mubr.bf16.gmra.mrb[0].mxu0 %v8256
      %v8535 = vpop.f32.mrb[0].mxu0
      %v8536 = vadd.f32 0.0, %v8535
      %v8537 = vpop.f32.mrb[0].mxu0
      %v8538 = vpop.f32.mrb[0].mxu0
      %v8539 = vadd.f32 0.0, %v8538
      %v8540 = vpop.f32.mrb[0].mxu0
      %8541 = vmatprep.mubr.bf16.mxu0 0
      %8542 = vmatmul.mubr.bf16.gmra.mrb[0].mxu0 %v8259
      %v8543 = vpop.f32.mrb[0].mxu0
      %v8544 = vadd.f32 0.0, %v8543
      %v8545 = vpop.f32.mrb[0].mxu0
      %v8546 = vpop.f32.mrb[0].mxu0
      %v8547 = vadd.f32 0.0, %v8546
      %v8548 = vpop.f32.mrb[0].mxu0
      %8549 = vmatprep.mubr.bf16.mxu0 0
      %8550 = vmatmul.mubr.bf16.gmra.mrb[0].mxu0 %v8262
      %v8551 = vpop.f32.mrb[0].mxu0
      %v8552 = vadd.f32 0.0, %v8551
      %v8553 = vpop.f32.mrb[0].mxu0
      %v8554 = vpop.f32.mrb[0].mxu0
      %v8555 = vadd.f32 0.0, %v8554
      %v8556 = vpop.f32.mrb[0].mxu0
      %8557 = vmatprep.mubr.bf16.mxu0 0
      %8558 = vmatmul.mubr.bf16.gmra.mrb[0].mxu0 %v8265
      %v8559 = vpop.f32.mrb[0].mxu0
      %v8560 = vadd.f32 0.0, %v8559
      %v8561 = vpop.f32.mrb[0].mxu0
      %v8562 = vpop.f32.mrb[0].mxu0
      %v8563 = vadd.f32 0.0, %v8562
      %v8564 = vpop.f32.mrb[0].mxu0
      %8565 = vmatprep.mubr.bf16.mxu0 0
      %8566 = vmatmul.mubr.bf16.gmra.mrb[0].mxu0 %v8268
      %v8567 = vpop.f32.mrb[0].mxu0
      %v8568 = vadd.f32 0.0, %v8567
      %v8569 = vpop.f32.mrb[0].mxu0
      %v8570 = vpop.f32.mrb[0].mxu0
      %v8571 = vadd.f32 0.0, %v8570
      %v8572 = vpop.f32.mrb[0].mxu0
      %8573 = vmatprep.mubr.bf16.mxu0 0
      %8574 = vmatmul.mubr.bf16.gmra.mrb[0].mxu0 %v8271
      %v8575 = vpop.f32.mrb[0].mxu0
      %v8576 = vadd.f32 0.0, %v8575
      %v8577 = vpop.f32.mrb[0].mxu0
      %v8578 = vpop.f32.mrb[0].mxu0
      %v8579 = vadd.f32 0.0, %v8578
      %v8580 = vpop.f32.mrb[0].mxu0
      %8581 = vmatprep.mubr.bf16.mxu0 0
      %8582 = vmatmul.mubr.bf16.gmra.mrb[0].mxu0 %v8274
      %v8583 = vpop.f32.mrb[0].mxu0
      %v8584 = vadd.f32 0.0, %v8583
      %v8585 = vpop.f32.mrb[0].mxu0
      %v8586 = vpop.f32.mrb[0].mxu0
      %v8587 = vadd.f32 0.0, %v8586
      %v8588 = vpop.f32.mrb[0].mxu0
      %8589 = vmatprep.mubr.bf16.mxu0 0
      %8590 = vmatmul.mubr.bf16.gmra.mrb[0].mxu0 %v8277
      %v8591 = vpop.f32.mrb[0].mxu0
      %v8592 = vadd.f32 0.0, %v8591
      %v8593 = vpop.f32.mrb[0].mxu0
      %v8594 = vpop.f32.mrb[0].mxu0
      %v8595 = vadd.f32 0.0, %v8594
      %v8596 = vpop.f32.mrb[0].mxu0
      %8597 = vmatprep.mubr.bf16.mxu0 0
      %8598 = vmatmul.mubr.bf16.gmra.mrb[0].mxu0 %v8280
      %v8599 = vpop.f32.mrb[0].mxu0
      %v8600 = vadd.f32 0.0, %v8599
      %v8601 = vpop.f32.mrb[0].mxu0
      %v8602 = vpop.f32.mrb[0].mxu0
      %v8603 = vadd.f32 0.0, %v8602
      %v8604 = vpop.f32.mrb[0].mxu0
      %8605 = vdwg.mxu0
      %v8606 = vadd.f32 %v7110, %v8320
      %v8607 = vadd.f32 %v7111, %v8323
      %v8608 = vadd.f32 %v7112, %v8328
      %v8609 = vadd.f32 %v7113, %v8331
      %v8610 = vadd.f32 %v7114, %v8336
      %v8611 = vadd.f32 %v7115, %v8339
      %v8612 = vadd.f32 %v7116, %v8344
      %v8613 = vadd.f32 %v7117, %v8347
      %v8614 = vadd.f32 %v7118, %v8352
      %v8615 = vadd.f32 %v7119, %v8355
      %v8616 = vadd.f32 %v7120, %v8360
      %v8617 = vadd.f32 %v7121, %v8363
      %v8618 = vadd.f32 %v7122, %v8368
      %v8619 = vadd.f32 %v7123, %v8371
      %v8620 = vadd.f32 %v7124, %v8376
      %v8621 = vadd.f32 %v7125, %v8379
      %v8622 = vadd.f32 %v7126, %v8384
      %v8623 = vadd.f32 %v7127, %v8387
      %v8624 = vadd.f32 %v7128, %v8392
      %v8625 = vadd.f32 %v7129, %v8395
      %v8626 = vadd.f32 %v7130, %v8400
      %v8627 = vadd.f32 %v7131, %v8403
      %v8628 = vadd.f32 %v7132, %v8408
      %v8629 = vadd.f32 %v7133, %v8411
      %v8630 = vadd.f32 %v7134, %v8416
      %v8631 = vadd.f32 %v7135, %v8419
      %v8632 = vadd.f32 %v7136, %v8424
      %v8633 = vadd.f32 %v7137, %v8427
      %v8634 = vadd.f32 %v7138, %v8432
      %v8635 = vadd.f32 %v7139, %v8435
      %v8636 = vadd.f32 %v7140, %v8440
      %v8637 = vadd.f32 %v7141, %v8443
      %v8638 = vadd.f32 %v7142, %v8448
      %v8639 = vadd.f32 %v7143, %v8451
      %v8640 = vadd.f32 %v7144, %v8456
      %v8641 = vadd.f32 %v7145, %v8459
      %v8642 = vadd.f32 %v7146, %v8464
      %v8643 = vadd.f32 %v7147, %v8467
      %v8644 = vadd.f32 %v7148, %v8472
      %v8645 = vadd.f32 %v7149, %v8475
      %v8646 = vadd.f32 %v7150, %v8480
      %v8647 = vadd.f32 %v7151, %v8483
      %v8648 = vadd.f32 %v7152, %v8488
      %v8649 = vadd.f32 %v7153, %v8491
      %v8650 = vadd.f32 %v7154, %v8496
      %v8651 = vadd.f32 %v7155, %v8499
      %v8652 = vadd.f32 %v7156, %v8504
      %v8653 = vadd.f32 %v7157, %v8507
      %v8654 = vadd.f32 %v7158, %v8512
      %v8655 = vadd.f32 %v7159, %v8515
      %v8656 = vadd.f32 %v7160, %v8520
      %v8657 = vadd.f32 %v7161, %v8523
      %v8658 = vadd.f32 %v7162, %v8528
      %v8659 = vadd.f32 %v7163, %v8531
      %v8660 = vadd.f32 %v7164, %v8536
      %v8661 = vadd.f32 %v7165, %v8539
      %v8662 = vadd.f32 %v7166, %v8544
      %v8663 = vadd.f32 %v7167, %v8547
      %v8664 = vadd.f32 %v7168, %v8552
      %v8665 = vadd.f32 %v7169, %v8555
      %v8666 = vadd.f32 %v7170, %v8560
      %v8667 = vadd.f32 %v7171, %v8563
      %v8668 = vadd.f32 %v7172, %v8568
      %v8669 = vadd.f32 %v7173, %v8571
      %v8670 = vadd.f32 %v7174, %v8576
      %v8671 = vadd.f32 %v7175, %v8579
      %v8672 = vadd.f32 %v7176, %v8584
      %v8673 = vadd.f32 %v7177, %v8587
      %v8674 = vadd.f32 %v7178, %v8592
      %v8675 = vadd.f32 %v7179, %v8595
      %v8676 = vadd.f32 %v7180, %v8600
      %v8677 = vadd.f32 %v7181, %v8603
      %v8678 = vld [vmem:[%s6423] sm:$0xe]
      %v8679 = vld [vmem:[%s6423 + $0x14] sm:$0xe]
      %v8680 = vld [vmem:[%s6423 + $0x28] sm:$0xe]
      %v8681 = vld [vmem:[%s6423 + $0x3c] sm:$0xe]
      %v8682 = vld [vmem:[%s6423 + $0x50] sm:$0xe]
      %v8683 = vld [vmem:[%s6423 + $0x64] sm:$0xe]
      %v8684 = vld [vmem:[%s6423 + $0x78] sm:$0xe]
      %v8685 = vld [vmem:[%s6423 + $0x8c] sm:$0xe]
      %v8686 = vld [vmem:[%s6423 + $0xa0] sm:$0xe]
      %v8687 = vld [vmem:[%s6423 + $0xb4] sm:$0xe]
      %v8688 = vld [vmem:[%s6423 + $0xc8] sm:$0xe]
      %v8689 = vld [vmem:[%s6423 + $0xdc] sm:$0xe]
      %v8690 = vld [vmem:[%s6423 + $0xf0] sm:$0xe]
      %v8691 = vld [vmem:[%s6423 + $0x104] sm:$0xe]
      %v8692 = vld [vmem:[%s6423 + $0x118] sm:$0xe]
      %v8693 = vld [vmem:[%s6423 + $0x12c] sm:$0xe]
      %v8694 = vld [vmem:[%s6423 + $0x140] sm:$0xe]
      %v8695 = vld [vmem:[%s6423 + $0x154] sm:$0xe]
      %v8786 = vrot.slane %v8678, 5
      %v8787 = vrot.slane %v8786, 4
      %v8788 = vrot.slane %v7183, 5
      %v8789 = vsel %vm2363, %v8787, %v8788
      %v8790 = vrot.slane %v8788, 4
      %v8791 = vrot.slane %v7184, 5
      %v8792 = vsel %vm2363, %v8790, %v8791
      %v8793 = vrot.slane %v8791, 4
      %v8794 = vrot.slane %v7185, 5
      %v8795 = vsel %vm2363, %v8793, %v8794
      %v8796 = vrot.slane %v8794, 4
      %v8797 = vrot.slane %v7186, 5
      %v8798 = vsel %vm2363, %v8796, %v8797
      %v8799 = vrot.slane %v8679, 5
      %v8800 = vrot.slane %v8799, 4
      %v8801 = vrot.slane %v7188, 5
      %v8802 = vsel %vm2363, %v8800, %v8801
      %v8803 = vrot.slane %v8801, 4
      %v8804 = vrot.slane %v7189, 5
      %v8805 = vsel %vm2363, %v8803, %v8804
      %v8806 = vrot.slane %v8804, 4
      %v8807 = vrot.slane %v7190, 5
      %v8808 = vsel %vm2363, %v8806, %v8807
      %v8809 = vrot.slane %v8807, 4
      %v8810 = vrot.slane %v7191, 5
      %v8811 = vsel %vm2363, %v8809, %v8810
      %v8812 = vrot.slane %v8680, 5
      %v8813 = vrot.slane %v8812, 4
      %v8814 = vrot.slane %v7193, 5
      %v8815 = vsel %vm2363, %v8813, %v8814
      %v8816 = vrot.slane %v8814, 4
      %v8817 = vrot.slane %v7194, 5
      %v8818 = vsel %vm2363, %v8816, %v8817
      %v8819 = vrot.slane %v8817, 4
      %v8820 = vrot.slane %v7195, 5
      %v8821 = vsel %vm2363, %v8819, %v8820
      %v8822 = vrot.slane %v8820, 4
      %v8823 = vrot.slane %v7196, 5
      %v8824 = vsel %vm2363, %v8822, %v8823
      %v8825 = vrot.slane %v8681, 5
      %v8826 = vrot.slane %v8825, 4
      %v8827 = vrot.slane %v7198, 5
      %v8828 = vsel %vm2363, %v8826, %v8827
      %v8829 = vrot.slane %v8827, 4
      %v8830 = vrot.slane %v7199, 5
      %v8831 = vsel %vm2363, %v8829, %v8830
      %v8832 = vrot.slane %v8830, 4
      %v8833 = vrot.slane %v7200, 5
      %v8834 = vsel %vm2363, %v8832, %v8833
      %v8835 = vrot.slane %v8833, 4
      %v8836 = vrot.slane %v7201, 5
      %v8837 = vsel %vm2363, %v8835, %v8836
      %v8838 = vrot.slane %v8682, 5
      %v8839 = vrot.slane %v8838, 4
      %v8840 = vrot.slane %v7203, 5
      %v8841 = vsel %vm2363, %v8839, %v8840
      %v8842 = vrot.slane %v8840, 4
      %v8843 = vrot.slane %v7204, 5
      %v8844 = vsel %vm2363, %v8842, %v8843
      %v8845 = vrot.slane %v8843, 4
      %v8846 = vrot.slane %v7205, 5
      %v8847 = vsel %vm2363, %v8845, %v8846
      %v8848 = vrot.slane %v8846, 4
      %v8849 = vrot.slane %v7206, 5
      %v8850 = vsel %vm2363, %v8848, %v8849
      %v8851 = vrot.slane %v8683, 5
      %v8852 = vrot.slane %v8851, 4
      %v8853 = vrot.slane %v7208, 5
      %v8854 = vsel %vm2363, %v8852, %v8853
      %v8855 = vrot.slane %v8853, 4
      %v8856 = vrot.slane %v7209, 5
      %v8857 = vsel %vm2363, %v8855, %v8856
      %v8858 = vrot.slane %v8856, 4
      %v8859 = vrot.slane %v7210, 5
      %v8860 = vsel %vm2363, %v8858, %v8859
      %v8861 = vrot.slane %v8859, 4
      %v8862 = vrot.slane %v7211, 5
      %v8863 = vsel %vm2363, %v8861, %v8862
      %v8864 = vrot.slane %v8684, 5
      %v8865 = vrot.slane %v8864, 4
      %v8866 = vrot.slane %v7213, 5
      %v8867 = vsel %vm2363, %v8865, %v8866
      %v8868 = vrot.slane %v8866, 4
      %v8869 = vrot.slane %v7214, 5
      %v8870 = vsel %vm2363, %v8868, %v8869
      %v8871 = vrot.slane %v8869, 4
      %v8872 = vrot.slane %v7215, 5
      %v8873 = vsel %vm2363, %v8871, %v8872
      %v8874 = vrot.slane %v8872, 4
      %v8875 = vrot.slane %v7216, 5
      %v8876 = vsel %vm2363, %v8874, %v8875
      %v8877 = vrot.slane %v8685, 5
      %v8878 = vrot.slane %v8877, 4
      %v8879 = vrot.slane %v7218, 5
      %v8880 = vsel %vm2363, %v8878, %v8879
      %v8881 = vrot.slane %v8879, 4
      %v8882 = vrot.slane %v7219, 5
      %v8883 = vsel %vm2363, %v8881, %v8882
      %v8884 = vrot.slane %v8882, 4
      %v8885 = vrot.slane %v7220, 5
      %v8886 = vsel %vm2363, %v8884, %v8885
      %v8887 = vrot.slane %v8885, 4
      %v8888 = vrot.slane %v7221, 5
      %v8889 = vsel %vm2363, %v8887, %v8888
      %v8890 = vrot.slane %v8686, 5
      %v8891 = vrot.slane %v8890, 4
      %v8892 = vrot.slane %v7223, 5
      %v8893 = vsel %vm2363, %v8891, %v8892
      %v8894 = vrot.slane %v8892, 4
      %v8895 = vrot.slane %v7224, 5
      %v8896 = vsel %vm2363, %v8894, %v8895
      %v8897 = vrot.slane %v8895, 4
      %v8898 = vrot.slane %v7225, 5
      %v8899 = vsel %vm2363, %v8897, %v8898
      %v8900 = vrot.slane %v8898, 4
      %v8901 = vrot.slane %v7226, 5
      %v8902 = vsel %vm2363, %v8900, %v8901
      %v8903 = vrot.slane %v8687, 5
      %v8904 = vrot.slane %v8903, 4
      %v8905 = vrot.slane %v7228, 5
      %v8906 = vsel %vm2363, %v8904, %v8905
      %v8907 = vrot.slane %v8905, 4
      %v8908 = vrot.slane %v7229, 5
      %v8909 = vsel %vm2363, %v8907, %v8908
      %v8910 = vrot.slane %v8908, 4
      %v8911 = vrot.slane %v7230, 5
      %v8912 = vsel %vm2363, %v8910, %v8911
      %v8913 = vrot.slane %v8911, 4
      %v8914 = vrot.slane %v7231, 5
      %v8915 = vsel %vm2363, %v8913, %v8914
      %v8916 = vrot.slane %v8688, 5
      %v8917 = vrot.slane %v8916, 4
      %v8918 = vrot.slane %v7233, 5
      %v8919 = vsel %vm2363, %v8917, %v8918
      %v8920 = vrot.slane %v8918, 4
      %v8921 = vrot.slane %v7234, 5
      %v8922 = vsel %vm2363, %v8920, %v8921
      %v8923 = vrot.slane %v8921, 4
      %v8924 = vrot.slane %v7235, 5
      %v8925 = vsel %vm2363, %v8923, %v8924
      %v8926 = vrot.slane %v8924, 4
      %v8927 = vrot.slane %v7236, 5
      %v8928 = vsel %vm2363, %v8926, %v8927
      %v8929 = vrot.slane %v8689, 5
      %v8930 = vrot.slane %v8929, 4
      %v8931 = vrot.slane %v7238, 5
      %v8932 = vsel %vm2363, %v8930, %v8931
      %v8933 = vrot.slane %v8931, 4
      %v8934 = vrot.slane %v7239, 5
      %v8935 = vsel %vm2363, %v8933, %v8934
      %v8936 = vrot.slane %v8934, 4
      %v8937 = vrot.slane %v7240, 5
      %v8938 = vsel %vm2363, %v8936, %v8937
      %v8939 = vrot.slane %v8937, 4
      %v8940 = vrot.slane %v7241, 5
      %v8941 = vsel %vm2363, %v8939, %v8940
      %v8942 = vrot.slane %v8690, 5
      %v8943 = vrot.slane %v8942, 4
      %v8944 = vrot.slane %v7243, 5
      %v8945 = vsel %vm2363, %v8943, %v8944
      %v8946 = vrot.slane %v8944, 4
      %v8947 = vrot.slane %v7244, 5
      %v8948 = vsel %vm2363, %v8946, %v8947
      %v8949 = vrot.slane %v8947, 4
      %v8950 = vrot.slane %v7245, 5
      %v8951 = vsel %vm2363, %v8949, %v8950
      %v8952 = vrot.slane %v8950, 4
      %v8953 = vrot.slane %v7246, 5
      %v8954 = vsel %vm2363, %v8952, %v8953
      %v8955 = vrot.slane %v8691, 5
      %v8956 = vrot.slane %v8955, 4
      %v8957 = vrot.slane %v7248, 5
      %v8958 = vsel %vm2363, %v8956, %v8957
      %v8959 = vrot.slane %v8957, 4
      %v8960 = vrot.slane %v7249, 5
      %v8961 = vsel %vm2363, %v8959, %v8960
      %v8962 = vrot.slane %v8960, 4
      %v8963 = vrot.slane %v7250, 5
      %v8964 = vsel %vm2363, %v8962, %v8963
      %v8965 = vrot.slane %v8963, 4
      %v8966 = vrot.slane %v7251, 5
      %v8967 = vsel %vm2363, %v8965, %v8966
      %v8968 = vrot.slane %v8692, 5
      %v8969 = vrot.slane %v8968, 4
      %v8970 = vrot.slane %v7253, 5
      %v8971 = vsel %vm2363, %v8969, %v8970
      %v8972 = vrot.slane %v8970, 4
      %v8973 = vrot.slane %v7254, 5
      %v8974 = vsel %vm2363, %v8972, %v8973
      %v8975 = vrot.slane %v8973, 4
      %v8976 = vrot.slane %v7255, 5
      %v8977 = vsel %vm2363, %v8975, %v8976
      %v8978 = vrot.slane %v8976, 4
      %v8979 = vrot.slane %v7256, 5
      %v8980 = vsel %vm2363, %v8978, %v8979
      %v8981 = vrot.slane %v8693, 5
      %v8982 = vrot.slane %v8981, 4
      %v8983 = vrot.slane %v7258, 5
      %v8984 = vsel %vm2363, %v8982, %v8983
      %v8985 = vrot.slane %v8983, 4
      %v8986 = vrot.slane %v7259, 5
      %v8987 = vsel %vm2363, %v8985, %v8986
      %v8988 = vrot.slane %v8986, 4
      %v8989 = vrot.slane %v7260, 5
      %v8990 = vsel %vm2363, %v8988, %v8989
      %v8991 = vrot.slane %v8989, 4
      %v8992 = vrot.slane %v7261, 5
      %v8993 = vsel %vm2363, %v8991, %v8992
      %v8994 = vrot.slane %v8694, 5
      %v8995 = vrot.slane %v8994, 4
      %v8996 = vrot.slane %v7263, 5
      %v8997 = vsel %vm2363, %v8995, %v8996
      %v8998 = vrot.slane %v8996, 4
      %v8999 = vrot.slane %v7264, 5
      %v9000 = vsel %vm2363, %v8998, %v8999
      %v9001 = vrot.slane %v8999, 4
      %v9002 = vrot.slane %v7265, 5
      %v9003 = vsel %vm2363, %v9001, %v9002
      %v9004 = vrot.slane %v9002, 4
      %v9005 = vrot.slane %v7266, 5
      %v9006 = vsel %vm2363, %v9004, %v9005
      %v9007 = vrot.slane %v8695, 5
      %v9008 = vrot.slane %v9007, 4
      %v9009 = vrot.slane %v7268, 5
      %v9010 = vsel %vm2363, %v9008, %v9009
      %v9011 = vrot.slane %v9009, 4
      %v9012 = vrot.slane %v7269, 5
      %v9013 = vsel %vm2363, %v9011, %v9012
      %v9014 = vrot.slane %v9012, 4
      %v9015 = vrot.slane %v7270, 5
      %v9016 = vsel %vm2363, %v9014, %v9015
      %v9017 = vrot.slane %v9015, 4
      %v9018 = vrot.slane %v7271, 5
      %v9019 = vsel %vm2363, %v9017, %v9018
      %s9020 = scalar_lea.vmem %s1, 16
      %v9021 = vld [vmem:[%s9020] sm:$0x3]
      %v9022 = vunpack.c.l.b16 %v8789
      %v9023 = vunpack.c.l.b16 %v8792
      %v9024 = vunpack.c.l.b16 %v8795
      %v9025 = vunpack.c.l.b16 %v8798
      %v9026 = vunpack.c.l.b16 %v8802
      %v9027 = vunpack.c.l.b16 %v8805
      %v9028 = vunpack.c.l.b16 %v8808
      %v9029 = vunpack.c.l.b16 %v8811
      %v9030 = vunpack.c.l.b16 %v8815
      %v9031 = vunpack.c.l.b16 %v8818
      %v9032 = vunpack.c.l.b16 %v8821
      %v9033 = vunpack.c.l.b16 %v8824
      %v9034 = vunpack.c.l.b16 %v8828
      %v9035 = vunpack.c.l.b16 %v8831
      %v9036 = vunpack.c.l.b16 %v8834
      %v9037 = vunpack.c.l.b16 %v8837
      %v9038 = vunpack.c.l.b16 %v8841
      %v9039 = vunpack.c.l.b16 %v8844
      %v9040 = vunpack.c.l.b16 %v8847
      %v9041 = vunpack.c.l.b16 %v8850
      %v9042 = vunpack.c.l.b16 %v8854
      %v9043 = vunpack.c.l.b16 %v8857
      %v9044 = vunpack.c.l.b16 %v8860
      %v9045 = vunpack.c.l.b16 %v8863
      %v9046 = vunpack.c.l.b16 %v8867
      %v9047 = vunpack.c.l.b16 %v8870
      %v9048 = vunpack.c.l.b16 %v8873
      %v9049 = vunpack.c.l.b16 %v8876
      %v9050 = vunpack.c.l.b16 %v8880
      %v9051 = vunpack.c.l.b16 %v8883
      %v9052 = vunpack.c.l.b16 %v8886
      %v9053 = vunpack.c.l.b16 %v8889
      %v9054 = vunpack.c.l.b16 %v8893
      %v9055 = vunpack.c.l.b16 %v8896
      %v9056 = vunpack.c.l.b16 %v8899
      %v9057 = vunpack.c.l.b16 %v8902
      %v9058 = vunpack.c.l.b16 %v8906
      %v9059 = vunpack.c.l.b16 %v8909
      %v9060 = vunpack.c.l.b16 %v8912
      %v9061 = vunpack.c.l.b16 %v8915
      %v9062 = vunpack.c.l.b16 %v8919
      %v9063 = vunpack.c.l.b16 %v8922
      %v9064 = vunpack.c.l.b16 %v8925
      %v9065 = vunpack.c.l.b16 %v8928
      %v9066 = vunpack.c.l.b16 %v8932
      %v9067 = vunpack.c.l.b16 %v8935
      %v9068 = vunpack.c.l.b16 %v8938
      %v9069 = vunpack.c.l.b16 %v8941
      %v9070 = vunpack.c.l.b16 %v8945
      %v9071 = vunpack.c.l.b16 %v8948
      %v9072 = vunpack.c.l.b16 %v8951
      %v9073 = vunpack.c.l.b16 %v8954
      %v9074 = vunpack.c.l.b16 %v8958
      %v9075 = vunpack.c.l.b16 %v8961
      %v9076 = vunpack.c.l.b16 %v8964
      %v9077 = vunpack.c.l.b16 %v8967
      %v9078 = vunpack.c.l.b16 %v8971
      %v9079 = vunpack.c.l.b16 %v8974
      %v9080 = vunpack.c.l.b16 %v8977
      %v9081 = vunpack.c.l.b16 %v8980
      %v9082 = vunpack.c.l.b16 %v8984
      %v9083 = vunpack.c.l.b16 %v8987
      %v9084 = vunpack.c.l.b16 %v8990
      %v9085 = vunpack.c.l.b16 %v8993
      %v9086 = vunpack.c.l.b16 %v8997
      %v9087 = vunpack.c.l.b16 %v9000
      %v9088 = vunpack.c.l.b16 %v9003
      %v9089 = vunpack.c.l.b16 %v9006
      %v9090 = vunpack.c.l.b16 %v9010
      %v9091 = vunpack.c.l.b16 %v9013
      %v9092 = vunpack.c.l.b16 %v9016
      %v9093 = vunpack.c.l.b16 %v9019
      %v9094 = vpack.c.b16 %v9023, %v9022
      %v9095 = vpack.c.b16 %v9025, %v9024
      %v9096 = vpack.c.b16 %v9027, %v9026
      %v9097 = vpack.c.b16 %v9029, %v9028
      %v9098 = vpack.c.b16 %v9031, %v9030
      %v9099 = vpack.c.b16 %v9033, %v9032
      %v9100 = vpack.c.b16 %v9035, %v9034
      %v9101 = vpack.c.b16 %v9037, %v9036
      %v9102 = vpack.c.b16 %v9039, %v9038
      %v9103 = vpack.c.b16 %v9041, %v9040
      %v9104 = vpack.c.b16 %v9043, %v9042
      %v9105 = vpack.c.b16 %v9045, %v9044
      %v9106 = vpack.c.b16 %v9047, %v9046
      %v9107 = vpack.c.b16 %v9049, %v9048
      %v9108 = vpack.c.b16 %v9051, %v9050
      %v9109 = vpack.c.b16 %v9053, %v9052
      %v9110 = vpack.c.b16 %v9055, %v9054
      %v9111 = vpack.c.b16 %v9057, %v9056
      %v9112 = vpack.c.b16 %v9059, %v9058
      %v9113 = vpack.c.b16 %v9061, %v9060
      %v9114 = vpack.c.b16 %v9063, %v9062
      %v9115 = vpack.c.b16 %v9065, %v9064
      %v9116 = vpack.c.b16 %v9067, %v9066
      %v9117 = vpack.c.b16 %v9069, %v9068
      %v9118 = vpack.c.b16 %v9071, %v9070
      %v9119 = vpack.c.b16 %v9073, %v9072
      %v9120 = vpack.c.b16 %v9075, %v9074
      %v9121 = vpack.c.b16 %v9077, %v9076
      %v9122 = vpack.c.b16 %v9079, %v9078
      %v9123 = vpack.c.b16 %v9081, %v9080
      %v9124 = vpack.c.b16 %v9083, %v9082
      %v9125 = vpack.c.b16 %v9085, %v9084
      %v9126 = vpack.c.b16 %v9087, %v9086
      %v9127 = vpack.c.b16 %v9089, %v9088
      %v9128 = vpack.c.b16 %v9091, %v9090
      %v9129 = vpack.c.b16 %v9093, %v9092
      %v9131 = vsel %vm1261, %v9094, 0
      %v9134 = vsel %vm1261, %v9095, 0
      %v9137 = vsel %vm1261, %v9096, 0
      %v9140 = vsel %vm1261, %v9097, 0
      %v9143 = vsel %vm1261, %v9098, 0
      %v9146 = vsel %vm1261, %v9099, 0
      %v9149 = vsel %vm1261, %v9100, 0
      %v9152 = vsel %vm1261, %v9101, 0
      %v9155 = vsel %vm1261, %v9102, 0
      %v9158 = vsel %vm1261, %v9103, 0
      %v9161 = vsel %vm1261, %v9104, 0
      %v9164 = vsel %vm1261, %v9105, 0
      %v9167 = vsel %vm1261, %v9106, 0
      %v9170 = vsel %vm1261, %v9107, 0
      %v9173 = vsel %vm1261, %v9108, 0
      %v9176 = vsel %vm1261, %v9109, 0
      %v9179 = vsel %vm1261, %v9110, 0
      %v9182 = vsel %vm1261, %v9111, 0
      %v9185 = vsel %vm1261, %v9112, 0
      %v9188 = vsel %vm1261, %v9113, 0
      %v9191 = vsel %vm1261, %v9114, 0
      %v9194 = vsel %vm1261, %v9115, 0
      %v9197 = vsel %vm1261, %v9116, 0
      %v9200 = vsel %vm1261, %v9117, 0
      %v9203 = vsel %vm1261, %v9118, 0
      %v9206 = vsel %vm1261, %v9119, 0
      %v9209 = vsel %vm1261, %v9120, 0
      %v9212 = vsel %vm1261, %v9121, 0
      %v9215 = vsel %vm1261, %v9122, 0
      %v9218 = vsel %vm1261, %v9123, 0
      %v9221 = vsel %vm1261, %v9124, 0
      %v9224 = vsel %vm1261, %v9125, 0
      %v9227 = vsel %vm1261, %v9126, 0
      %v9230 = vsel %vm1261, %v9127, 0
      %v9233 = vsel %vm1261, %v9128, 0
      %v9236 = vsel %vm1261, %v9129, 0
      %v9239 = vsel %vm1370, %v9021, 0
      %9241 = vmatprep.subr.bf16.mxu0 0
      %9242 = vmatpush1.bf16.msra.mxu0 %v9239
      %9243 = vmatprep.subr.bf16.mxu0 0
      %9244 = vmatpush1.bf16.msra.mxu0 0
      %9245 = vmatprep.subr.bf16.mxu0 0
      %9246 = vmatpush1.bf16.msra.mxu0 0
      %9247 = vmatprep.subr.bf16.mxu0 0
      %9248 = vmatpush1.bf16.msra.mxu0 0
      %9249 = vmatprep.subr.bf16.mxu0 0
      %9250 = vmatpush1.bf16.msra.mxu0 0
      %9251 = vmatprep.subr.bf16.mxu0 0
      %9252 = vmatpush1.bf16.msra.mxu0 0
      %9253 = vmatprep.subr.bf16.mxu0 0
      %9254 = vmatpush1.bf16.msra.mxu0 0
      %9255 = vmatprep.subr.bf16.mxu0 0
      %9256 = vmatpush1.bf16.msra.mxu0 0
      %9257 = vmatprep.subr.bf16.mxu0 0
      %9258 = vmatpush1.bf16.msra.mxu0 0
      %9259 = vmatprep.subr.bf16.mxu0 0
      %9260 = vmatpush1.bf16.msra.mxu0 0
      %9261 = vmatprep.subr.bf16.mxu0 0
      %9262 = vmatpush1.bf16.msra.mxu0 0
      %9263 = vmatprep.subr.bf16.mxu0 0
      %9264 = vmatpush1.bf16.msra.mxu0 0
      %9265 = vmatprep.subr.bf16.mxu0 0
      %9266 = vmatpush1.bf16.msra.mxu0 0
      %9267 = vmatprep.subr.bf16.mxu0 0
      %9268 = vmatpush1.bf16.msra.mxu0 0
      %9269 = vmatprep.subr.bf16.mxu0 0
      %9270 = vmatpush1.bf16.msra.mxu0 0
      %9271 = vmatprep.subr.bf16.mxu0 0
      %9272 = vmatpush1.bf16.msra.mxu0 0
      %9273 = vmatprep.mubr.bf16.mxu0 0
      %9274 = vmatmul.mubr.bf16.gmra.mrb[0].mxu0 %v9131
      %v9275 = vpop.f32.mrb[0].mxu0
      %v9276 = vadd.f32 0.0, %v9275
      %v9277 = vpop.f32.mrb[0].mxu0
      %v9278 = vpop.f32.mrb[0].mxu0
      %v9279 = vadd.f32 0.0, %v9278
      %v9280 = vpop.f32.mrb[0].mxu0
      %9281 = vmatprep.mubr.bf16.mxu0 0
      %9282 = vmatmul.mubr.bf16.gmra.mrb[0].mxu0 %v9134
      %v9283 = vpop.f32.mrb[0].mxu0
      %v9284 = vadd.f32 0.0, %v9283
      %v9285 = vpop.f32.mrb[0].mxu0
      %v9286 = vpop.f32.mrb[0].mxu0
      %v9287 = vadd.f32 0.0, %v9286
      %v9288 = vpop.f32.mrb[0].mxu0
      %9289 = vmatprep.mubr.bf16.mxu0 0
      %9290 = vmatmul.mubr.bf16.gmra.mrb[0].mxu0 %v9137
      %v9291 = vpop.f32.mrb[0].mxu0
      %v9292 = vadd.f32 0.0, %v9291
      %v9293 = vpop.f32.mrb[0].mxu0
      %v9294 = vpop.f32.mrb[0].mxu0
      %v9295 = vadd.f32 0.0, %v9294
      %v9296 = vpop.f32.mrb[0].mxu0
      %9297 = vmatprep.mubr.bf16.mxu0 0
      %9298 = vmatmul.mubr.bf16.gmra.mrb[0].mxu0 %v9140
      %v9299 = vpop.f32.mrb[0].mxu0
      %v9300 = vadd.f32 0.0, %v9299
      %v9301 = vpop.f32.mrb[0].mxu0
      %v9302 = vpop.f32.mrb[0].mxu0
      %v9303 = vadd.f32 0.0, %v9302
      %v9304 = vpop.f32.mrb[0].mxu0
      %9305 = vmatprep.mubr.bf16.mxu0 0
      %9306 = vmatmul.mubr.bf16.gmra.mrb[0].mxu0 %v9143
      %v9307 = vpop.f32.mrb[0].mxu0
      %v9308 = vadd.f32 0.0, %v9307
      %v9309 = vpop.f32.mrb[0].mxu0
      %v9310 = vpop.f32.mrb[0].mxu0
      %v9311 = vadd.f32 0.0, %v9310
      %v9312 = vpop.f32.mrb[0].mxu0
      %9313 = vmatprep.mubr.bf16.mxu0 0
      %9314 = vmatmul.mubr.bf16.gmra.mrb[0].mxu0 %v9146
      %v9315 = vpop.f32.mrb[0].mxu0
      %v9316 = vadd.f32 0.0, %v9315
      %v9317 = vpop.f32.mrb[0].mxu0
      %v9318 = vpop.f32.mrb[0].mxu0
      %v9319 = vadd.f32 0.0, %v9318
      %v9320 = vpop.f32.mrb[0].mxu0
      %9321 = vmatprep.mubr.bf16.mxu0 0
      %9322 = vmatmul.mubr.bf16.gmra.mrb[0].mxu0 %v9149
      %v9323 = vpop.f32.mrb[0].mxu0
      %v9324 = vadd.f32 0.0, %v9323
      %v9325 = vpop.f32.mrb[0].mxu0
      %v9326 = vpop.f32.mrb[0].mxu0
      %v9327 = vadd.f32 0.0, %v9326
      %v9328 = vpop.f32.mrb[0].mxu0
      %9329 = vmatprep.mubr.bf16.mxu0 0
      %9330 = vmatmul.mubr.bf16.gmra.mrb[0].mxu0 %v9152
      %v9331 = vpop.f32.mrb[0].mxu0
      %v9332 = vadd.f32 0.0, %v9331
      %v9333 = vpop.f32.mrb[0].mxu0
      %v9334 = vpop.f32.mrb[0].mxu0
      %v9335 = vadd.f32 0.0, %v9334
      %v9336 = vpop.f32.mrb[0].mxu0
      %9337 = vmatprep.mubr.bf16.mxu0 0
      %9338 = vmatmul.mubr.bf16.gmra.mrb[0].mxu0 %v9155
      %v9339 = vpop.f32.mrb[0].mxu0
      %v9340 = vadd.f32 0.0, %v9339
      %v9341 = vpop.f32.mrb[0].mxu0
      %v9342 = vpop.f32.mrb[0].mxu0
      %v9343 = vadd.f32 0.0, %v9342
      %v9344 = vpop.f32.mrb[0].mxu0
      %9345 = vmatprep.mubr.bf16.mxu0 0
      %9346 = vmatmul.mubr.bf16.gmra.mrb[0].mxu0 %v9158
      %v9347 = vpop.f32.mrb[0].mxu0
      %v9348 = vadd.f32 0.0, %v9347
      %v9349 = vpop.f32.mrb[0].mxu0
      %v9350 = vpop.f32.mrb[0].mxu0
      %v9351 = vadd.f32 0.0, %v9350
      %v9352 = vpop.f32.mrb[0].mxu0
      %9353 = vmatprep.mubr.bf16.mxu0 0
      %9354 = vmatmul.mubr.bf16.gmra.mrb[0].mxu0 %v9161
      %v9355 = vpop.f32.mrb[0].mxu0
      %v9356 = vadd.f32 0.0, %v9355
      %v9357 = vpop.f32.mrb[0].mxu0
      %v9358 = vpop.f32.mrb[0].mxu0
      %v9359 = vadd.f32 0.0, %v9358
      %v9360 = vpop.f32.mrb[0].mxu0
      %9361 = vmatprep.mubr.bf16.mxu0 0
      %9362 = vmatmul.mubr.bf16.gmra.mrb[0].mxu0 %v9164
      %v9363 = vpop.f32.mrb[0].mxu0
      %v9364 = vadd.f32 0.0, %v9363
      %v9365 = vpop.f32.mrb[0].mxu0
      %v9366 = vpop.f32.mrb[0].mxu0
      %v9367 = vadd.f32 0.0, %v9366
      %v9368 = vpop.f32.mrb[0].mxu0
      %9369 = vmatprep.mubr.bf16.mxu0 0
      %9370 = vmatmul.mubr.bf16.gmra.mrb[0].mxu0 %v9167
      %v9371 = vpop.f32.mrb[0].mxu0
      %v9372 = vadd.f32 0.0, %v9371
      %v9373 = vpop.f32.mrb[0].mxu0
      %v9374 = vpop.f32.mrb[0].mxu0
      %v9375 = vadd.f32 0.0, %v9374
      %v9376 = vpop.f32.mrb[0].mxu0
      %9377 = vmatprep.mubr.bf16.mxu0 0
      %9378 = vmatmul.mubr.bf16.gmra.mrb[0].mxu0 %v9170
      %v9379 = vpop.f32.mrb[0].mxu0
      %v9380 = vadd.f32 0.0, %v9379
      %v9381 = vpop.f32.mrb[0].mxu0
      %v9382 = vpop.f32.mrb[0].mxu0
      %v9383 = vadd.f32 0.0, %v9382
      %v9384 = vpop.f32.mrb[0].mxu0
      %9385 = vmatprep.mubr.bf16.mxu0 0
      %9386 = vmatmul.mubr.bf16.gmra.mrb[0].mxu0 %v9173
      %v9387 = vpop.f32.mrb[0].mxu0
      %v9388 = vadd.f32 0.0, %v9387
      %v9389 = vpop.f32.mrb[0].mxu0
      %v9390 = vpop.f32.mrb[0].mxu0
      %v9391 = vadd.f32 0.0, %v9390
      %v9392 = vpop.f32.mrb[0].mxu0
      %9393 = vmatprep.mubr.bf16.mxu0 0
      %9394 = vmatmul.mubr.bf16.gmra.mrb[0].mxu0 %v9176
      %v9395 = vpop.f32.mrb[0].mxu0
      %v9396 = vadd.f32 0.0, %v9395
      %v9397 = vpop.f32.mrb[0].mxu0
      %v9398 = vpop.f32.mrb[0].mxu0
      %v9399 = vadd.f32 0.0, %v9398
      %v9400 = vpop.f32.mrb[0].mxu0
      %9401 = vmatprep.mubr.bf16.mxu0 0
      %9402 = vmatmul.mubr.bf16.gmra.mrb[0].mxu0 %v9179
      %v9403 = vpop.f32.mrb[0].mxu0
      %v9404 = vadd.f32 0.0, %v9403
      %v9405 = vpop.f32.mrb[0].mxu0
      %v9406 = vpop.f32.mrb[0].mxu0
      %v9407 = vadd.f32 0.0, %v9406
      %v9408 = vpop.f32.mrb[0].mxu0
      %9409 = vmatprep.mubr.bf16.mxu0 0
      %9410 = vmatmul.mubr.bf16.gmra.mrb[0].mxu0 %v9182
      %v9411 = vpop.f32.mrb[0].mxu0
      %v9412 = vadd.f32 0.0, %v9411
      %v9413 = vpop.f32.mrb[0].mxu0
      %v9414 = vpop.f32.mrb[0].mxu0
      %v9415 = vadd.f32 0.0, %v9414
      %v9416 = vpop.f32.mrb[0].mxu0
      %9417 = vmatprep.mubr.bf16.mxu0 0
      %9418 = vmatmul.mubr.bf16.gmra.mrb[0].mxu0 %v9185
      %v9419 = vpop.f32.mrb[0].mxu0
      %v9420 = vadd.f32 0.0, %v9419
      %v9421 = vpop.f32.mrb[0].mxu0
      %v9422 = vpop.f32.mrb[0].mxu0
      %v9423 = vadd.f32 0.0, %v9422
      %v9424 = vpop.f32.mrb[0].mxu0
      %9425 = vmatprep.mubr.bf16.mxu0 0
      %9426 = vmatmul.mubr.bf16.gmra.mrb[0].mxu0 %v9188
      %v9427 = vpop.f32.mrb[0].mxu0
      %v9428 = vadd.f32 0.0, %v9427
      %v9429 = vpop.f32.mrb[0].mxu0
      %v9430 = vpop.f32.mrb[0].mxu0
      %v9431 = vadd.f32 0.0, %v9430
      %v9432 = vpop.f32.mrb[0].mxu0
      %9433 = vmatprep.mubr.bf16.mxu0 0
      %9434 = vmatmul.mubr.bf16.gmra.mrb[0].mxu0 %v9191
      %v9435 = vpop.f32.mrb[0].mxu0
      %v9436 = vadd.f32 0.0, %v9435
      %v9437 = vpop.f32.mrb[0].mxu0
      %v9438 = vpop.f32.mrb[0].mxu0
      %v9439 = vadd.f32 0.0, %v9438
      %v9440 = vpop.f32.mrb[0].mxu0
      %9441 = vmatprep.mubr.bf16.mxu0 0
      %9442 = vmatmul.mubr.bf16.gmra.mrb[0].mxu0 %v9194
      %v9443 = vpop.f32.mrb[0].mxu0
      %v9444 = vadd.f32 0.0, %v9443
      %v9445 = vpop.f32.mrb[0].mxu0
      %v9446 = vpop.f32.mrb[0].mxu0
      %v9447 = vadd.f32 0.0, %v9446
      %v9448 = vpop.f32.mrb[0].mxu0
      %9449 = vmatprep.mubr.bf16.mxu0 0
      %9450 = vmatmul.mubr.bf16.gmra.mrb[0].mxu0 %v9197
      %v9451 = vpop.f32.mrb[0].mxu0
      %v9452 = vadd.f32 0.0, %v9451
      %v9453 = vpop.f32.mrb[0].mxu0
      %v9454 = vpop.f32.mrb[0].mxu0
      %v9455 = vadd.f32 0.0, %v9454
      %v9456 = vpop.f32.mrb[0].mxu0
      %9457 = vmatprep.mubr.bf16.mxu0 0
      %9458 = vmatmul.mubr.bf16.gmra.mrb[0].mxu0 %v9200
      %v9459 = vpop.f32.mrb[0].mxu0
      %v9460 = vadd.f32 0.0, %v9459
      %v9461 = vpop.f32.mrb[0].mxu0
      %v9462 = vpop.f32.mrb[0].mxu0
      %v9463 = vadd.f32 0.0, %v9462
      %v9464 = vpop.f32.mrb[0].mxu0
      %9465 = vmatprep.mubr.bf16.mxu0 0
      %9466 = vmatmul.mubr.bf16.gmra.mrb[0].mxu0 %v9203
      %v9467 = vpop.f32.mrb[0].mxu0
      %v9468 = vadd.f32 0.0, %v9467
      %v9469 = vpop.f32.mrb[0].mxu0
      %v9470 = vpop.f32.mrb[0].mxu0
      %v9471 = vadd.f32 0.0, %v9470
      %v9472 = vpop.f32.mrb[0].mxu0
      %9473 = vmatprep.mubr.bf16.mxu0 0
      %9474 = vmatmul.mubr.bf16.gmra.mrb[0].mxu0 %v9206
      %v9475 = vpop.f32.mrb[0].mxu0
      %v9476 = vadd.f32 0.0, %v9475
      %v9477 = vpop.f32.mrb[0].mxu0
      %v9478 = vpop.f32.mrb[0].mxu0
      %v9479 = vadd.f32 0.0, %v9478
      %v9480 = vpop.f32.mrb[0].mxu0
      %9481 = vmatprep.mubr.bf16.mxu0 0
      %9482 = vmatmul.mubr.bf16.gmra.mrb[0].mxu0 %v9209
      %v9483 = vpop.f32.mrb[0].mxu0
      %v9484 = vadd.f32 0.0, %v9483
      %v9485 = vpop.f32.mrb[0].mxu0
      %v9486 = vpop.f32.mrb[0].mxu0
      %v9487 = vadd.f32 0.0, %v9486
      %v9488 = vpop.f32.mrb[0].mxu0
      %9489 = vmatprep.mubr.bf16.mxu0 0
      %9490 = vmatmul.mubr.bf16.gmra.mrb[0].mxu0 %v9212
      %v9491 = vpop.f32.mrb[0].mxu0
      %v9492 = vadd.f32 0.0, %v9491
      %v9493 = vpop.f32.mrb[0].mxu0
      %v9494 = vpop.f32.mrb[0].mxu0
      %v9495 = vadd.f32 0.0, %v9494
      %v9496 = vpop.f32.mrb[0].mxu0
      %9497 = vmatprep.mubr.bf16.mxu0 0
      %9498 = vmatmul.mubr.bf16.gmra.mrb[0].mxu0 %v9215
      %v9499 = vpop.f32.mrb[0].mxu0
      %v9500 = vadd.f32 0.0, %v9499
      %v9501 = vpop.f32.mrb[0].mxu0
      %v9502 = vpop.f32.mrb[0].mxu0
      %v9503 = vadd.f32 0.0, %v9502
      %v9504 = vpop.f32.mrb[0].mxu0
      %9505 = vmatprep.mubr.bf16.mxu0 0
      %9506 = vmatmul.mubr.bf16.gmra.mrb[0].mxu0 %v9218
      %v9507 = vpop.f32.mrb[0].mxu0
      %v9508 = vadd.f32 0.0, %v9507
      %v9509 = vpop.f32.mrb[0].mxu0
      %v9510 = vpop.f32.mrb[0].mxu0
      %v9511 = vadd.f32 0.0, %v9510
      %v9512 = vpop.f32.mrb[0].mxu0
      %9513 = vmatprep.mubr.bf16.mxu0 0
      %9514 = vmatmul.mubr.bf16.gmra.mrb[0].mxu0 %v9221
      %v9515 = vpop.f32.mrb[0].mxu0
      %v9516 = vadd.f32 0.0, %v9515
      %v9517 = vpop.f32.mrb[0].mxu0
      %v9518 = vpop.f32.mrb[0].mxu0
      %v9519 = vadd.f32 0.0, %v9518
      %v9520 = vpop.f32.mrb[0].mxu0
      %9521 = vmatprep.mubr.bf16.mxu0 0
      %9522 = vmatmul.mubr.bf16.gmra.mrb[0].mxu0 %v9224
      %v9523 = vpop.f32.mrb[0].mxu0
      %v9524 = vadd.f32 0.0, %v9523
      %v9525 = vpop.f32.mrb[0].mxu0
      %v9526 = vpop.f32.mrb[0].mxu0
      %v9527 = vadd.f32 0.0, %v9526
      %v9528 = vpop.f32.mrb[0].mxu0
      %9529 = vmatprep.mubr.bf16.mxu0 0
      %9530 = vmatmul.mubr.bf16.gmra.mrb[0].mxu0 %v9227
      %v9531 = vpop.f32.mrb[0].mxu0
      %v9532 = vadd.f32 0.0, %v9531
      %v9533 = vpop.f32.mrb[0].mxu0
      %v9534 = vpop.f32.mrb[0].mxu0
      %v9535 = vadd.f32 0.0, %v9534
      %v9536 = vpop.f32.mrb[0].mxu0
      %9537 = vmatprep.mubr.bf16.mxu0 0
      %9538 = vmatmul.mubr.bf16.gmra.mrb[0].mxu0 %v9230
      %v9539 = vpop.f32.mrb[0].mxu0
      %v9540 = vadd.f32 0.0, %v9539
      %v9541 = vpop.f32.mrb[0].mxu0
      %v9542 = vpop.f32.mrb[0].mxu0
      %v9543 = vadd.f32 0.0, %v9542
      %v9544 = vpop.f32.mrb[0].mxu0
      %9545 = vmatprep.mubr.bf16.mxu0 0
      %9546 = vmatmul.mubr.bf16.gmra.mrb[0].mxu0 %v9233
      %v9547 = vpop.f32.mrb[0].mxu0
      %v9548 = vadd.f32 0.0, %v9547
      %v9549 = vpop.f32.mrb[0].mxu0
      %v9550 = vpop.f32.mrb[0].mxu0
      %v9551 = vadd.f32 0.0, %v9550
      %v9552 = vpop.f32.mrb[0].mxu0
      %9553 = vmatprep.mubr.bf16.mxu0 0
      %9554 = vmatmul.mubr.bf16.gmra.mrb[0].mxu0 %v9236
      %v9555 = vpop.f32.mrb[0].mxu0
      %v9556 = vadd.f32 0.0, %v9555
      %v9557 = vpop.f32.mrb[0].mxu0
      %v9558 = vpop.f32.mrb[0].mxu0
      %v9559 = vadd.f32 0.0, %v9558
      %v9560 = vpop.f32.mrb[0].mxu0
      %9561 = vdwg.mxu0
      %v9562 = vadd.f32 %v8606, %v9276
      %v9563 = vadd.f32 %v8607, %v9279
      %v9564 = vadd.f32 %v8608, %v9284
      %v9565 = vadd.f32 %v8609, %v9287
      %v9566 = vadd.f32 %v8610, %v9292
      %v9567 = vadd.f32 %v8611, %v9295
      %v9568 = vadd.f32 %v8612, %v9300
      %v9569 = vadd.f32 %v8613, %v9303
      %v9570 = vadd.f32 %v8614, %v9308
      %v9571 = vadd.f32 %v8615, %v9311
      %v9572 = vadd.f32 %v8616, %v9316
      %v9573 = vadd.f32 %v8617, %v9319
      %v9574 = vadd.f32 %v8618, %v9324
      %v9575 = vadd.f32 %v8619, %v9327
      %v9576 = vadd.f32 %v8620, %v9332
      %v9577 = vadd.f32 %v8621, %v9335
      %v9578 = vadd.f32 %v8622, %v9340
      %v9579 = vadd.f32 %v8623, %v9343
      %v9580 = vadd.f32 %v8624, %v9348
      %v9581 = vadd.f32 %v8625, %v9351
      %v9582 = vadd.f32 %v8626, %v9356
      %v9583 = vadd.f32 %v8627, %v9359
      %v9584 = vadd.f32 %v8628, %v9364
      %v9585 = vadd.f32 %v8629, %v9367
      %v9586 = vadd.f32 %v8630, %v9372
      %v9587 = vadd.f32 %v8631, %v9375
      %v9588 = vadd.f32 %v8632, %v9380
      %v9589 = vadd.f32 %v8633, %v9383
      %v9590 = vadd.f32 %v8634, %v9388
      %v9591 = vadd.f32 %v8635, %v9391
      %v9592 = vadd.f32 %v8636, %v9396
      %v9593 = vadd.f32 %v8637, %v9399
      %v9594 = vadd.f32 %v8638, %v9404
      %v9595 = vadd.f32 %v8639, %v9407
      %v9596 = vadd.f32 %v8640, %v9412
      %v9597 = vadd.f32 %v8641, %v9415
      %v9598 = vadd.f32 %v8642, %v9420
      %v9599 = vadd.f32 %v8643, %v9423
      %v9600 = vadd.f32 %v8644, %v9428
      %v9601 = vadd.f32 %v8645, %v9431
      %v9602 = vadd.f32 %v8646, %v9436
      %v9603 = vadd.f32 %v8647, %v9439
      %v9604 = vadd.f32 %v8648, %v9444
      %v9605 = vadd.f32 %v8649, %v9447
      %v9606 = vadd.f32 %v8650, %v9452
      %v9607 = vadd.f32 %v8651, %v9455
      %v9608 = vadd.f32 %v8652, %v9460
      %v9609 = vadd.f32 %v8653, %v9463
      %v9610 = vadd.f32 %v8654, %v9468
      %v9611 = vadd.f32 %v8655, %v9471
      %v9612 = vadd.f32 %v8656, %v9476
      %v9613 = vadd.f32 %v8657, %v9479
      %v9614 = vadd.f32 %v8658, %v9484
      %v9615 = vadd.f32 %v8659, %v9487
      %v9616 = vadd.f32 %v8660, %v9492
      %v9617 = vadd.f32 %v8661, %v9495
      %v9618 = vadd.f32 %v8662, %v9500
      %v9619 = vadd.f32 %v8663, %v9503
      %v9620 = vadd.f32 %v8664, %v9508
      %v9621 = vadd.f32 %v8665, %v9511
      %v9622 = vadd.f32 %v8666, %v9516
      %v9623 = vadd.f32 %v8667, %v9519
      %v9624 = vadd.f32 %v8668, %v9524
      %v9625 = vadd.f32 %v8669, %v9527
      %v9626 = vadd.f32 %v8670, %v9532
      %v9627 = vadd.f32 %v8671, %v9535
      %v9628 = vadd.f32 %v8672, %v9540
      %v9629 = vadd.f32 %v8673, %v9543
      %v9630 = vadd.f32 %v8674, %v9548
      %v9631 = vadd.f32 %v8675, %v9551
      %v9632 = vadd.f32 %v8676, %v9556
      %v9633 = vadd.f32 %v8677, %v9559
      %v9634 = vld [vmem:[%s2] sm:$0x1]
      %v9635 = vlaneseq
      %v9636 = vshrl.u32 %v9635, 7
      %v9637 = vsub.s32 0, %v9636
      %v9638 = vrot.slane %v9634, %v9637
      %v9639 = vmul.f32 %v9562, %v9638
      %v9640 = vmul.f32 %v9563, %v9638
      %v9641 = vmul.f32 %v9564, %v9638
      %v9642 = vmul.f32 %v9565, %v9638
      %v9643 = vmul.f32 %v9566, %v9638
      %v9644 = vmul.f32 %v9567, %v9638
      %v9645 = vmul.f32 %v9568, %v9638
      %v9646 = vmul.f32 %v9569, %v9638
      %v9647 = vmul.f32 %v9570, %v9638
      %v9648 = vmul.f32 %v9571, %v9638
      %v9649 = vmul.f32 %v9572, %v9638
      %v9650 = vmul.f32 %v9573, %v9638
      %v9651 = vmul.f32 %v9574, %v9638
      %v9652 = vmul.f32 %v9575, %v9638
      %v9653 = vmul.f32 %v9576, %v9638
      %v9654 = vmul.f32 %v9577, %v9638
      %v9655 = vmul.f32 %v9578, %v9638
      %v9656 = vmul.f32 %v9579, %v9638
      %v9657 = vmul.f32 %v9580, %v9638
      %v9658 = vmul.f32 %v9581, %v9638
      %v9659 = vmul.f32 %v9582, %v9638
      %v9660 = vmul.f32 %v9583, %v9638
      %v9661 = vmul.f32 %v9584, %v9638
      %v9662 = vmul.f32 %v9585, %v9638
      %v9663 = vmul.f32 %v9586, %v9638
      %v9664 = vmul.f32 %v9587, %v9638
      %v9665 = vmul.f32 %v9588, %v9638
      %v9666 = vmul.f32 %v9589, %v9638
      %v9667 = vmul.f32 %v9590, %v9638
      %v9668 = vmul.f32 %v9591, %v9638
      %v9669 = vmul.f32 %v9592, %v9638
      %v9670 = vmul.f32 %v9593, %v9638
      %v9671 = vmul.f32 %v9594, %v9638
      %v9672 = vmul.f32 %v9595, %v9638
      %v9673 = vmul.f32 %v9596, %v9638
      %v9674 = vmul.f32 %v9597, %v9638
      %v9675 = vmul.f32 %v9598, %v9638
      %v9676 = vmul.f32 %v9599, %v9638
      %v9677 = vmul.f32 %v9600, %v9638
      %v9678 = vmul.f32 %v9601, %v9638
      %v9679 = vmul.f32 %v9602, %v9638
      %v9680 = vmul.f32 %v9603, %v9638
      %v9681 = vmul.f32 %v9604, %v9638
      %v9682 = vmul.f32 %v9605, %v9638
      %v9683 = vmul.f32 %v9606, %v9638
      %v9684 = vmul.f32 %v9607, %v9638
      %v9685 = vmul.f32 %v9608, %v9638
      %v9686 = vmul.f32 %v9609, %v9638
      %v9687 = vmul.f32 %v9610, %v9638
      %v9688 = vmul.f32 %v9611, %v9638
      %v9689 = vmul.f32 %v9612, %v9638
      %v9690 = vmul.f32 %v9613, %v9638
      %v9691 = vmul.f32 %v9614, %v9638
      %v9692 = vmul.f32 %v9615, %v9638
      %v9693 = vmul.f32 %v9616, %v9638
      %v9694 = vmul.f32 %v9617, %v9638
      %v9695 = vmul.f32 %v9618, %v9638
      %v9696 = vmul.f32 %v9619, %v9638
      %v9697 = vmul.f32 %v9620, %v9638
      %v9698 = vmul.f32 %v9621, %v9638
      %v9699 = vmul.f32 %v9622, %v9638
      %v9700 = vmul.f32 %v9623, %v9638
      %v9701 = vmul.f32 %v9624, %v9638
      %v9702 = vmul.f32 %v9625, %v9638
      %v9703 = vmul.f32 %v9626, %v9638
      %v9704 = vmul.f32 %v9627, %v9638
      %v9705 = vmul.f32 %v9628, %v9638
      %v9706 = vmul.f32 %v9629, %v9638
      %v9707 = vmul.f32 %v9630, %v9638
      %v9708 = vmul.f32 %v9631, %v9638
      %v9709 = vmul.f32 %v9632, %v9638
      %v9710 = vmul.f32 %v9633, %v9638
      %v9711 = vld [vmem:[%s2 + $0x1] sm:$0x1]
      %v9712 = vlaneseq
      %v9713 = vshrl.u32 %v9712, 7
      %v9714 = vsub.s32 0, %v9713
      %v9715 = vrot.slane %v9711, %v9714
      %v9716 = vadd.f32 %v9639, %v9715
      %v9717 = vadd.f32 %v9640, %v9715
      %v9718 = vadd.f32 %v9641, %v9715
      %v9719 = vadd.f32 %v9642, %v9715
      %v9720 = vadd.f32 %v9643, %v9715
      %v9721 = vadd.f32 %v9644, %v9715
      %v9722 = vadd.f32 %v9645, %v9715
      %v9723 = vadd.f32 %v9646, %v9715
      %v9724 = vadd.f32 %v9647, %v9715
      %v9725 = vadd.f32 %v9648, %v9715
      %v9726 = vadd.f32 %v9649, %v9715
      %v9727 = vadd.f32 %v9650, %v9715
      %v9728 = vadd.f32 %v9651, %v9715
      %v9729 = vadd.f32 %v9652, %v9715
      %v9730 = vadd.f32 %v9653, %v9715
      %v9731 = vadd.f32 %v9654, %v9715
      %v9732 = vadd.f32 %v9655, %v9715
      %v9733 = vadd.f32 %v9656, %v9715
      %v9734 = vadd.f32 %v9657, %v9715
      %v9735 = vadd.f32 %v9658, %v9715
      %v9736 = vadd.f32 %v9659, %v9715
      %v9737 = vadd.f32 %v9660, %v9715
      %v9738 = vadd.f32 %v9661, %v9715
      %v9739 = vadd.f32 %v9662, %v9715
      %v9740 = vadd.f32 %v9663, %v9715
      %v9741 = vadd.f32 %v9664, %v9715
      %v9742 = vadd.f32 %v9665, %v9715
      %v9743 = vadd.f32 %v9666, %v9715
      %v9744 = vadd.f32 %v9667, %v9715
      %v9745 = vadd.f32 %v9668, %v9715
      %v9746 = vadd.f32 %v9669, %v9715
      %v9747 = vadd.f32 %v9670, %v9715
      %v9748 = vadd.f32 %v9671, %v9715
      %v9749 = vadd.f32 %v9672, %v9715
      %v9750 = vadd.f32 %v9673, %v9715
      %v9751 = vadd.f32 %v9674, %v9715
      %v9752 = vadd.f32 %v9675, %v9715
      %v9753 = vadd.f32 %v9676, %v9715
      %v9754 = vadd.f32 %v9677, %v9715
      %v9755 = vadd.f32 %v9678, %v9715
      %v9756 = vadd.f32 %v9679, %v9715
      %v9757 = vadd.f32 %v9680, %v9715
      %v9758 = vadd.f32 %v9681, %v9715
      %v9759 = vadd.f32 %v9682, %v9715
      %v9760 = vadd.f32 %v9683, %v9715
      %v9761 = vadd.f32 %v9684, %v9715
      %v9762 = vadd.f32 %v9685, %v9715
      %v9763 = vadd.f32 %v9686, %v9715
      %v9764 = vadd.f32 %v9687, %v9715
      %v9765 = vadd.f32 %v9688, %v9715
      %v9766 = vadd.f32 %v9689, %v9715
      %v9767 = vadd.f32 %v9690, %v9715
      %v9768 = vadd.f32 %v9691, %v9715
      %v9769 = vadd.f32 %v9692, %v9715
      %v9770 = vadd.f32 %v9693, %v9715
      %v9771 = vadd.f32 %v9694, %v9715
      %v9772 = vadd.f32 %v9695, %v9715
      %v9773 = vadd.f32 %v9696, %v9715
      %v9774 = vadd.f32 %v9697, %v9715
      %v9775 = vadd.f32 %v9698, %v9715
      %v9776 = vadd.f32 %v9699, %v9715
      %v9777 = vadd.f32 %v9700, %v9715
      %v9778 = vadd.f32 %v9701, %v9715
      %v9779 = vadd.f32 %v9702, %v9715
      %v9780 = vadd.f32 %v9703, %v9715
      %v9781 = vadd.f32 %v9704, %v9715
      %v9782 = vadd.f32 %v9705, %v9715
      %v9783 = vadd.f32 %v9706, %v9715
      %v9784 = vadd.f32 %v9707, %v9715
      %v9785 = vadd.f32 %v9708, %v9715
      %v9786 = vadd.f32 %v9709, %v9715
      %v9787 = vadd.f32 %v9710, %v9715
      %v9788 = vmax.f32 %v9716, 0.0
      %v9789 = vmax.f32 %v9717, 0.0
      %v9790 = vmax.f32 %v9718, 0.0
      %v9791 = vmax.f32 %v9719, 0.0
      %v9792 = vmax.f32 %v9720, 0.0
      %v9793 = vmax.f32 %v9721, 0.0
      %v9794 = vmax.f32 %v9722, 0.0
      %v9795 = vmax.f32 %v9723, 0.0
      %v9796 = vmax.f32 %v9724, 0.0
      %v9797 = vmax.f32 %v9725, 0.0
      %v9798 = vmax.f32 %v9726, 0.0
      %v9799 = vmax.f32 %v9727, 0.0
      %v9800 = vmax.f32 %v9728, 0.0
      %v9801 = vmax.f32 %v9729, 0.0
      %v9802 = vmax.f32 %v9730, 0.0
      %v9803 = vmax.f32 %v9731, 0.0
      %v9804 = vmax.f32 %v9732, 0.0
      %v9805 = vmax.f32 %v9733, 0.0
      %v9806 = vmax.f32 %v9734, 0.0
      %v9807 = vmax.f32 %v9735, 0.0
      %v9808 = vmax.f32 %v9736, 0.0
      %v9809 = vmax.f32 %v9737, 0.0
      %v9810 = vmax.f32 %v9738, 0.0
      %v9811 = vmax.f32 %v9739, 0.0
      %v9812 = vmax.f32 %v9740, 0.0
      %v9813 = vmax.f32 %v9741, 0.0
      %v9814 = vmax.f32 %v9742, 0.0
      %v9815 = vmax.f32 %v9743, 0.0
      %v9816 = vmax.f32 %v9744, 0.0
      %v9817 = vmax.f32 %v9745, 0.0
      %v9818 = vmax.f32 %v9746, 0.0
      %v9819 = vmax.f32 %v9747, 0.0
      %v9820 = vmax.f32 %v9748, 0.0
      %v9821 = vmax.f32 %v9749, 0.0
      %v9822 = vmax.f32 %v9750, 0.0
      %v9823 = vmax.f32 %v9751, 0.0
      %v9824 = vmax.f32 %v9752, 0.0
      %v9825 = vmax.f32 %v9753, 0.0
      %v9826 = vmax.f32 %v9754, 0.0
      %v9827 = vmax.f32 %v9755, 0.0
      %v9828 = vmax.f32 %v9756, 0.0
      %v9829 = vmax.f32 %v9757, 0.0
      %v9830 = vmax.f32 %v9758, 0.0
      %v9831 = vmax.f32 %v9759, 0.0
      %v9832 = vmax.f32 %v9760, 0.0
      %v9833 = vmax.f32 %v9761, 0.0
      %v9834 = vmax.f32 %v9762, 0.0
      %v9835 = vmax.f32 %v9763, 0.0
      %v9836 = vmax.f32 %v9764, 0.0
      %v9837 = vmax.f32 %v9765, 0.0
      %v9838 = vmax.f32 %v9766, 0.0
      %v9839 = vmax.f32 %v9767, 0.0
      %v9840 = vmax.f32 %v9768, 0.0
      %v9841 = vmax.f32 %v9769, 0.0
      %v9842 = vmax.f32 %v9770, 0.0
      %v9843 = vmax.f32 %v9771, 0.0
      %v9844 = vmax.f32 %v9772, 0.0
      %v9845 = vmax.f32 %v9773, 0.0
      %v9846 = vmax.f32 %v9774, 0.0
      %v9847 = vmax.f32 %v9775, 0.0
      %v9848 = vmax.f32 %v9776, 0.0
      %v9849 = vmax.f32 %v9777, 0.0
      %v9850 = vmax.f32 %v9778, 0.0
      %v9851 = vmax.f32 %v9779, 0.0
      %v9852 = vmax.f32 %v9780, 0.0
      %v9853 = vmax.f32 %v9781, 0.0
      %v9854 = vmax.f32 %v9782, 0.0
      %v9855 = vmax.f32 %v9783, 0.0
      %v9856 = vmax.f32 %v9784, 0.0
      %v9857 = vmax.f32 %v9785, 0.0
      %v9858 = vmax.f32 %v9786, 0.0
      %v9859 = vmax.f32 %v9787, 0.0
      %v9860 = vlaneseq
      %v9861 = vshrl.u32 %v9860, 7
      %v9862 = vadd.s32 %v9861, 8
      %v9863 = vadd.s32 %v9861, 16
      %v9864 = vadd.s32 %v9861, 24
      %p9865 = scmp.eq.s32.totalorder %s21, 0
      %s9866 = scalar_select %p9865, 1, 0
      %s9867 = scalar_select %p9865, 17, 18
      %v9868 = vstv %s9866
      %vm9869 = vcmp.le.s32.totalorder %v9868, 0
      %vm9870 = vcmp.le.s32.totalorder %v9868, 1
      %vm9871 = vcmp.le.s32.totalorder %v9868, 2
      %vm9872 = vcmp.le.s32.totalorder %v9868, 3
      %vm9873 = vcmp.le.s32.totalorder %v9868, 4
      %vm9874 = vcmp.le.s32.totalorder %v9868, 5
      %vm9875 = vcmp.le.s32.totalorder %v9868, 6
      %vm9876 = vcmp.le.s32.totalorder %v9868, 7
      %vm9877 = vcmp.le.s32.totalorder %v9868, 8
      %vm9878 = vcmp.le.s32.totalorder %v9868, 9
      %vm9879 = vcmp.le.s32.totalorder %v9868, 10
      %vm9880 = vcmp.le.s32.totalorder %v9868, 11
      %vm9881 = vcmp.le.s32.totalorder %v9868, 12
      %vm9882 = vcmp.le.s32.totalorder %v9868, 13
      %vm9883 = vcmp.le.s32.totalorder %v9868, 14
      %vm9884 = vcmp.le.s32.totalorder %v9868, 15
      %vm9885 = vcmp.le.s32.totalorder %v9868, 16
      %vm9886 = vcmp.le.s32.totalorder %v9868, 17
      %v9887 = vstv %s9867
      %vm9888 = vcmp.gt.s32.totalorder %v9887, 0
      %vm9889 = vcmp.gt.s32.totalorder %v9887, 1
      %vm9890 = vcmp.gt.s32.totalorder %v9887, 2
      %vm9891 = vcmp.gt.s32.totalorder %v9887, 3
      %vm9892 = vcmp.gt.s32.totalorder %v9887, 4
      %vm9893 = vcmp.gt.s32.totalorder %v9887, 5
      %vm9894 = vcmp.gt.s32.totalorder %v9887, 6
      %vm9895 = vcmp.gt.s32.totalorder %v9887, 7
      %vm9896 = vcmp.gt.s32.totalorder %v9887, 8
      %vm9897 = vcmp.gt.s32.totalorder %v9887, 9
      %vm9898 = vcmp.gt.s32.totalorder %v9887, 10
      %vm9899 = vcmp.gt.s32.totalorder %v9887, 11
      %vm9900 = vcmp.gt.s32.totalorder %v9887, 12
      %vm9901 = vcmp.gt.s32.totalorder %v9887, 13
      %vm9902 = vcmp.gt.s32.totalorder %v9887, 14
      %vm9903 = vcmp.gt.s32.totalorder %v9887, 15
      %vm9904 = vcmp.gt.s32.totalorder %v9887, 16
      %vm9905 = vcmp.gt.s32.totalorder %v9887, 17
      %vm9906 = vmand %vm9869, %vm9888
      %vm9907 = vmand %vm9870, %vm9889
      %vm9908 = vmand %vm9871, %vm9890
      %vm9909 = vmand %vm9872, %vm9891
      %vm9910 = vmand %vm9873, %vm9892
      %vm9911 = vmand %vm9874, %vm9893
      %vm9912 = vmand %vm9875, %vm9894
      %vm9913 = vmand %vm9876, %vm9895
      %vm9914 = vmand %vm9877, %vm9896
      %vm9915 = vmand %vm9878, %vm9897
      %vm9916 = vmand %vm9879, %vm9898
      %vm9917 = vmand %vm9880, %vm9899
      %vm9918 = vmand %vm9881, %vm9900
      %vm9919 = vmand %vm9882, %vm9901
      %vm9920 = vmand %vm9883, %vm9902
      %vm9921 = vmand %vm9884, %vm9903
      %vm9922 = vmand %vm9885, %vm9904
      %vm9923 = vmand %vm9886, %vm9905
      %vm9924 = vcmp.ge.s32.totalorder %v9861, 1
      %vm9925 = vcmp.ge.s32.totalorder %v9862, 1
      %vm9926 = vcmp.ge.s32.totalorder %v9863, 1
      %vm9927 = vcmp.ge.s32.totalorder %v9864, 1
      %vm9928 = vmand %vm9906, %vm9924
      %vm9929 = vmand %vm9906, %vm9925
      %vm9930 = vmand %vm9906, %vm9926
      %vm9931 = vmand %vm9906, %vm9927
      %vm9932 = vmand %vm9907, %vm9924
      %vm9933 = vmand %vm9907, %vm9925
      %vm9934 = vmand %vm9907, %vm9926
      %vm9935 = vmand %vm9907, %vm9927
      %vm9936 = vmand %vm9908, %vm9924
      %vm9937 = vmand %vm9908, %vm9925
      %vm9938 = vmand %vm9908, %vm9926
      %vm9939 = vmand %vm9908, %vm9927
      %vm9940 = vmand %vm9909, %vm9924
      %vm9941 = vmand %vm9909, %vm9925
      %vm9942 = vmand %vm9909, %vm9926
      %vm9943 = vmand %vm9909, %vm9927
      %vm9944 = vmand %vm9910, %vm9924
      %vm9945 = vmand %vm9910, %vm9925
      %vm9946 = vmand %vm9910, %vm9926
      %vm9947 = vmand %vm9910, %vm9927
      %vm9948 = vmand %vm9911, %vm9924
      %vm9949 = vmand %vm9911, %vm9925
      %vm9950 = vmand %vm9911, %vm9926
      %vm9951 = vmand %vm9911, %vm9927
      %vm9952 = vmand %vm9912, %vm9924
      %vm9953 = vmand %vm9912, %vm9925
      %vm9954 = vmand %vm9912, %vm9926
      %vm9955 = vmand %vm9912, %vm9927
      %vm9956 = vmand %vm9913, %vm9924
      %vm9957 = vmand %vm9913, %vm9925
      %vm9958 = vmand %vm9913, %vm9926
      %vm9959 = vmand %vm9913, %vm9927
      %vm9960 = vmand %vm9914, %vm9924
      %vm9961 = vmand %vm9914, %vm9925
      %vm9962 = vmand %vm9914, %vm9926
      %vm9963 = vmand %vm9914, %vm9927
      %vm9964 = vmand %vm9915, %vm9924
      %vm9965 = vmand %vm9915, %vm9925
      %vm9966 = vmand %vm9915, %vm9926
      %vm9967 = vmand %vm9915, %vm9927
      %vm9968 = vmand %vm9916, %vm9924
      %vm9969 = vmand %vm9916, %vm9925
      %vm9970 = vmand %vm9916, %vm9926
      %vm9971 = vmand %vm9916, %vm9927
      %vm9972 = vmand %vm9917, %vm9924
      %vm9973 = vmand %vm9917, %vm9925
      %vm9974 = vmand %vm9917, %vm9926
      %vm9975 = vmand %vm9917, %vm9927
      %vm9976 = vmand %vm9918, %vm9924
      %vm9977 = vmand %vm9918, %vm9925
      %vm9978 = vmand %vm9918, %vm9926
      %vm9979 = vmand %vm9918, %vm9927
      %vm9980 = vmand %vm9919, %vm9924
      %vm9981 = vmand %vm9919, %vm9925
      %vm9982 = vmand %vm9919, %vm9926
      %vm9983 = vmand %vm9919, %vm9927
      %vm9984 = vmand %vm9920, %vm9924
      %vm9985 = vmand %vm9920, %vm9925
      %vm9986 = vmand %vm9920, %vm9926
      %vm9987 = vmand %vm9920, %vm9927
      %vm9988 = vmand %vm9921, %vm9924
      %vm9989 = vmand %vm9921, %vm9925
      %vm9990 = vmand %vm9921, %vm9926
      %vm9991 = vmand %vm9921, %vm9927
      %vm9992 = vmand %vm9922, %vm9924
      %vm9993 = vmand %vm9922, %vm9925
      %vm9994 = vmand %vm9922, %vm9926
      %vm9995 = vmand %vm9922, %vm9927
      %vm9996 = vmand %vm9923, %vm9924
      %vm9997 = vmand %vm9923, %vm9925
      %vm9998 = vmand %vm9923, %vm9926
      %vm9999 = vmand %vm9923, %vm9927
      %vm10000 = vcmp.le.s32.totalorder %v9861, 16
      %vm10001 = vcmp.le.s32.totalorder %v9862, 16
      %vm10002 = vcmp.le.s32.totalorder %v9863, 16
      %vm10003 = vcmp.le.s32.totalorder %v9864, 16
      %vm10004 = vmand %vm9928, %vm10000
      %vm10005 = vmand %vm9929, %vm10001
      %vm10006 = vmand %vm9930, %vm10002
      %vm10007 = vmand %vm9931, %vm10003
      %vm10008 = vmand %vm9932, %vm10000
      %vm10009 = vmand %vm9933, %vm10001
      %vm10010 = vmand %vm9934, %vm10002
      %vm10011 = vmand %vm9935, %vm10003
      %vm10012 = vmand %vm9936, %vm10000
      %vm10013 = vmand %vm9937, %vm10001
      %vm10014 = vmand %vm9938, %vm10002
      %vm10015 = vmand %vm9939, %vm10003
      %vm10016 = vmand %vm9940, %vm10000
      %vm10017 = vmand %vm9941, %vm10001
      %vm10018 = vmand %vm9942, %vm10002
      %vm10019 = vmand %vm9943, %vm10003
      %vm10020 = vmand %vm9944, %vm10000
      %vm10021 = vmand %vm9945, %vm10001
      %vm10022 = vmand %vm9946, %vm10002
      %vm10023 = vmand %vm9947, %vm10003
      %vm10024 = vmand %vm9948, %vm10000
      %vm10025 = vmand %vm9949, %vm10001
      %vm10026 = vmand %vm9950, %vm10002
      %vm10027 = vmand %vm9951, %vm10003
      %vm10028 = vmand %vm9952, %vm10000
      %vm10029 = vmand %vm9953, %vm10001
      %vm10030 = vmand %vm9954, %vm10002
      %vm10031 = vmand %vm9955, %vm10003
      %vm10032 = vmand %vm9956, %vm10000
      %vm10033 = vmand %vm9957, %vm10001
      %vm10034 = vmand %vm9958, %vm10002
      %vm10035 = vmand %vm9959, %vm10003
      %vm10036 = vmand %vm9960, %vm10000
      %vm10037 = vmand %vm9961, %vm10001
      %vm10038 = vmand %vm9962, %vm10002
      %vm10039 = vmand %vm9963, %vm10003
      %vm10040 = vmand %vm9964, %vm10000
      %vm10041 = vmand %vm9965, %vm10001
      %vm10042 = vmand %vm9966, %vm10002
      %vm10043 = vmand %vm9967, %vm10003
      %vm10044 = vmand %vm9968, %vm10000
      %vm10045 = vmand %vm9969, %vm10001
      %vm10046 = vmand %vm9970, %vm10002
      %vm10047 = vmand %vm9971, %vm10003
      %vm10048 = vmand %vm9972, %vm10000
      %vm10049 = vmand %vm9973, %vm10001
      %vm10050 = vmand %vm9974, %vm10002
      %vm10051 = vmand %vm9975, %vm10003
      %vm10052 = vmand %vm9976, %vm10000
      %vm10053 = vmand %vm9977, %vm10001
      %vm10054 = vmand %vm9978, %vm10002
      %vm10055 = vmand %vm9979, %vm10003
      %vm10056 = vmand %vm9980, %vm10000
      %vm10057 = vmand %vm9981, %vm10001
      %vm10058 = vmand %vm9982, %vm10002
      %vm10059 = vmand %vm9983, %vm10003
      %vm10060 = vmand %vm9984, %vm10000
      %vm10061 = vmand %vm9985, %vm10001
      %vm10062 = vmand %vm9986, %vm10002
      %vm10063 = vmand %vm9987, %vm10003
      %vm10064 = vmand %vm9988, %vm10000
      %vm10065 = vmand %vm9989, %vm10001
      %vm10066 = vmand %vm9990, %vm10002
      %vm10067 = vmand %vm9991, %vm10003
      %vm10068 = vmand %vm9992, %vm10000
      %vm10069 = vmand %vm9993, %vm10001
      %vm10070 = vmand %vm9994, %vm10002
      %vm10071 = vmand %vm9995, %vm10003
      %vm10072 = vmand %vm9996, %vm10000
      %vm10073 = vmand %vm9997, %vm10001
      %vm10074 = vmand %vm9998, %vm10002
      %vm10075 = vmand %vm9999, %vm10003
      %v10076 = vsel %vm10004, 1, 0
      %v10077 = vsel %vm10005, 1, 0
      %v10078 = vsel %vm10006, 1, 0
      %v10079 = vsel %vm10007, 1, 0
      %v10080 = vsel %vm10008, 1, 0
      %v10081 = vsel %vm10009, 1, 0
      %v10082 = vsel %vm10010, 1, 0
      %v10083 = vsel %vm10011, 1, 0
      %v10084 = vsel %vm10012, 1, 0
      %v10085 = vsel %vm10013, 1, 0
      %v10086 = vsel %vm10014, 1, 0
      %v10087 = vsel %vm10015, 1, 0
      %v10088 = vsel %vm10016, 1, 0
      %v10089 = vsel %vm10017, 1, 0
      %v10090 = vsel %vm10018, 1, 0
      %v10091 = vsel %vm10019, 1, 0
      %v10092 = vsel %vm10020, 1, 0
      %v10093 = vsel %vm10021, 1, 0
      %v10094 = vsel %vm10022, 1, 0
      %v10095 = vsel %vm10023, 1, 0
      %v10096 = vsel %vm10024, 1, 0
      %v10097 = vsel %vm10025, 1, 0
      %v10098 = vsel %vm10026, 1, 0
      %v10099 = vsel %vm10027, 1, 0
      %v10100 = vsel %vm10028, 1, 0
      %v10101 = vsel %vm10029, 1, 0
      %v10102 = vsel %vm10030, 1, 0
      %v10103 = vsel %vm10031, 1, 0
      %v10104 = vsel %vm10032, 1, 0
      %v10105 = vsel %vm10033, 1, 0
      %v10106 = vsel %vm10034, 1, 0
      %v10107 = vsel %vm10035, 1, 0
      %v10108 = vsel %vm10036, 1, 0
      %v10109 = vsel %vm10037, 1, 0
      %v10110 = vsel %vm10038, 1, 0
      %v10111 = vsel %vm10039, 1, 0
      %v10112 = vsel %vm10040, 1, 0
      %v10113 = vsel %vm10041, 1, 0
      %v10114 = vsel %vm10042, 1, 0
      %v10115 = vsel %vm10043, 1, 0
      %v10116 = vsel %vm10044, 1, 0
      %v10117 = vsel %vm10045, 1, 0
      %v10118 = vsel %vm10046, 1, 0
      %v10119 = vsel %vm10047, 1, 0
      %v10120 = vsel %vm10048, 1, 0
      %v10121 = vsel %vm10049, 1, 0
      %v10122 = vsel %vm10050, 1, 0
      %v10123 = vsel %vm10051, 1, 0
      %v10124 = vsel %vm10052, 1, 0
      %v10125 = vsel %vm10053, 1, 0
      %v10126 = vsel %vm10054, 1, 0
      %v10127 = vsel %vm10055, 1, 0
      %v10128 = vsel %vm10056, 1, 0
      %v10129 = vsel %vm10057, 1, 0
      %v10130 = vsel %vm10058, 1, 0
      %v10131 = vsel %vm10059, 1, 0
      %v10132 = vsel %vm10060, 1, 0
      %v10133 = vsel %vm10061, 1, 0
      %v10134 = vsel %vm10062, 1, 0
      %v10135 = vsel %vm10063, 1, 0
      %v10136 = vsel %vm10064, 1, 0
      %v10137 = vsel %vm10065, 1, 0
      %v10138 = vsel %vm10066, 1, 0
      %v10139 = vsel %vm10067, 1, 0
      %v10140 = vsel %vm10068, 1, 0
      %v10141 = vsel %vm10069, 1, 0
      %v10142 = vsel %vm10070, 1, 0
      %v10143 = vsel %vm10071, 1, 0
      %v10144 = vsel %vm10072, 1, 0
      %v10145 = vsel %vm10073, 1, 0
      %v10146 = vsel %vm10074, 1, 0
      %v10147 = vsel %vm10075, 1, 0
      %vm10148 = vcmp.eq.s32.totalorder %v10076, 1
      %vm10149 = vcmp.eq.s32.totalorder %v10077, 1
      %vm10150 = vcmp.eq.s32.totalorder %v10078, 1
      %vm10151 = vcmp.eq.s32.totalorder %v10079, 1
      %vm10152 = vcmp.eq.s32.totalorder %v10080, 1
      %vm10153 = vcmp.eq.s32.totalorder %v10081, 1
      %vm10154 = vcmp.eq.s32.totalorder %v10082, 1
      %vm10155 = vcmp.eq.s32.totalorder %v10083, 1
      %vm10156 = vcmp.eq.s32.totalorder %v10084, 1
      %vm10157 = vcmp.eq.s32.totalorder %v10085, 1
      %vm10158 = vcmp.eq.s32.totalorder %v10086, 1
      %vm10159 = vcmp.eq.s32.totalorder %v10087, 1
      %vm10160 = vcmp.eq.s32.totalorder %v10088, 1
      %vm10161 = vcmp.eq.s32.totalorder %v10089, 1
      %vm10162 = vcmp.eq.s32.totalorder %v10090, 1
      %vm10163 = vcmp.eq.s32.totalorder %v10091, 1
      %vm10164 = vcmp.eq.s32.totalorder %v10092, 1
      %vm10165 = vcmp.eq.s32.totalorder %v10093, 1
      %vm10166 = vcmp.eq.s32.totalorder %v10094, 1
      %vm10167 = vcmp.eq.s32.totalorder %v10095, 1
      %vm10168 = vcmp.eq.s32.totalorder %v10096, 1
      %vm10169 = vcmp.eq.s32.totalorder %v10097, 1
      %vm10170 = vcmp.eq.s32.totalorder %v10098, 1
      %vm10171 = vcmp.eq.s32.totalorder %v10099, 1
      %vm10172 = vcmp.eq.s32.totalorder %v10100, 1
      %vm10173 = vcmp.eq.s32.totalorder %v10101, 1
      %vm10174 = vcmp.eq.s32.totalorder %v10102, 1
      %vm10175 = vcmp.eq.s32.totalorder %v10103, 1
      %vm10176 = vcmp.eq.s32.totalorder %v10104, 1
      %vm10177 = vcmp.eq.s32.totalorder %v10105, 1
      %vm10178 = vcmp.eq.s32.totalorder %v10106, 1
      %vm10179 = vcmp.eq.s32.totalorder %v10107, 1
      %vm10180 = vcmp.eq.s32.totalorder %v10108, 1
      %vm10181 = vcmp.eq.s32.totalorder %v10109, 1
      %vm10182 = vcmp.eq.s32.totalorder %v10110, 1
      %vm10183 = vcmp.eq.s32.totalorder %v10111, 1
      %vm10184 = vcmp.eq.s32.totalorder %v10112, 1
      %vm10185 = vcmp.eq.s32.totalorder %v10113, 1
      %vm10186 = vcmp.eq.s32.totalorder %v10114, 1
      %vm10187 = vcmp.eq.s32.totalorder %v10115, 1
      %vm10188 = vcmp.eq.s32.totalorder %v10116, 1
      %vm10189 = vcmp.eq.s32.totalorder %v10117, 1
      %vm10190 = vcmp.eq.s32.totalorder %v10118, 1
      %vm10191 = vcmp.eq.s32.totalorder %v10119, 1
      %vm10192 = vcmp.eq.s32.totalorder %v10120, 1
      %vm10193 = vcmp.eq.s32.totalorder %v10121, 1
      %vm10194 = vcmp.eq.s32.totalorder %v10122, 1
      %vm10195 = vcmp.eq.s32.totalorder %v10123, 1
      %vm10196 = vcmp.eq.s32.totalorder %v10124, 1
      %vm10197 = vcmp.eq.s32.totalorder %v10125, 1
      %vm10198 = vcmp.eq.s32.totalorder %v10126, 1
      %vm10199 = vcmp.eq.s32.totalorder %v10127, 1
      %vm10200 = vcmp.eq.s32.totalorder %v10128, 1
      %vm10201 = vcmp.eq.s32.totalorder %v10129, 1
      %vm10202 = vcmp.eq.s32.totalorder %v10130, 1
      %vm10203 = vcmp.eq.s32.totalorder %v10131, 1
      %vm10204 = vcmp.eq.s32.totalorder %v10132, 1
      %vm10205 = vcmp.eq.s32.totalorder %v10133, 1
      %vm10206 = vcmp.eq.s32.totalorder %v10134, 1
      %vm10207 = vcmp.eq.s32.totalorder %v10135, 1
      %vm10208 = vcmp.eq.s32.totalorder %v10136, 1
      %vm10209 = vcmp.eq.s32.totalorder %v10137, 1
      %vm10210 = vcmp.eq.s32.totalorder %v10138, 1
      %vm10211 = vcmp.eq.s32.totalorder %v10139, 1
      %vm10212 = vcmp.eq.s32.totalorder %v10140, 1
      %vm10213 = vcmp.eq.s32.totalorder %v10141, 1
      %vm10214 = vcmp.eq.s32.totalorder %v10142, 1
      %vm10215 = vcmp.eq.s32.totalorder %v10143, 1
      %vm10216 = vcmp.eq.s32.totalorder %v10144, 1
      %vm10217 = vcmp.eq.s32.totalorder %v10145, 1
      %vm10218 = vcmp.eq.s32.totalorder %v10146, 1
      %vm10219 = vcmp.eq.s32.totalorder %v10147, 1
      %v10220 = vsel %vm10148, %v9788, 0.0
      %v10221 = vsel %vm10149, %v9789, 0.0
      %v10222 = vsel %vm10150, %v9790, 0.0
      %v10223 = vsel %vm10151, %v9791, 0.0
      %v10224 = vsel %vm10152, %v9792, 0.0
      %v10225 = vsel %vm10153, %v9793, 0.0
      %v10226 = vsel %vm10154, %v9794, 0.0
      %v10227 = vsel %vm10155, %v9795, 0.0
      %v10228 = vsel %vm10156, %v9796, 0.0
      %v10229 = vsel %vm10157, %v9797, 0.0
      %v10230 = vsel %vm10158, %v9798, 0.0
      %v10231 = vsel %vm10159, %v9799, 0.0
      %v10232 = vsel %vm10160, %v9800, 0.0
      %v10233 = vsel %vm10161, %v9801, 0.0
      %v10234 = vsel %vm10162, %v9802, 0.0
      %v10235 = vsel %vm10163, %v9803, 0.0
      %v10236 = vsel %vm10164, %v9804, 0.0
      %v10237 = vsel %vm10165, %v9805, 0.0
      %v10238 = vsel %vm10166, %v9806, 0.0
      %v10239 = vsel %vm10167, %v9807, 0.0
      %v10240 = vsel %vm10168, %v9808, 0.0
      %v10241 = vsel %vm10169, %v9809, 0.0
      %v10242 = vsel %vm10170, %v9810, 0.0
      %v10243 = vsel %vm10171, %v9811, 0.0
      %v10244 = vsel %vm10172, %v9812, 0.0
      %v10245 = vsel %vm10173, %v9813, 0.0
      %v10246 = vsel %vm10174, %v9814, 0.0
      %v10247 = vsel %vm10175, %v9815, 0.0
      %v10248 = vsel %vm10176, %v9816, 0.0
      %v10249 = vsel %vm10177, %v9817, 0.0
      %v10250 = vsel %vm10178, %v9818, 0.0
      %v10251 = vsel %vm10179, %v9819, 0.0
      %v10252 = vsel %vm10180, %v9820, 0.0
      %v10253 = vsel %vm10181, %v9821, 0.0
      %v10254 = vsel %vm10182, %v9822, 0.0
      %v10255 = vsel %vm10183, %v9823, 0.0
      %v10256 = vsel %vm10184, %v9824, 0.0
      %v10257 = vsel %vm10185, %v9825, 0.0
      %v10258 = vsel %vm10186, %v9826, 0.0
      %v10259 = vsel %vm10187, %v9827, 0.0
      %v10260 = vsel %vm10188, %v9828, 0.0
      %v10261 = vsel %vm10189, %v9829, 0.0
      %v10262 = vsel %vm10190, %v9830, 0.0
      %v10263 = vsel %vm10191, %v9831, 0.0
      %v10264 = vsel %vm10192, %v9832, 0.0
      %v10265 = vsel %vm10193, %v9833, 0.0
      %v10266 = vsel %vm10194, %v9834, 0.0
      %v10267 = vsel %vm10195, %v9835, 0.0
      %v10268 = vsel %vm10196, %v9836, 0.0
      %v10269 = vsel %vm10197, %v9837, 0.0
      %v10270 = vsel %vm10198, %v9838, 0.0
      %v10271 = vsel %vm10199, %v9839, 0.0
      %v10272 = vsel %vm10200, %v9840, 0.0
      %v10273 = vsel %vm10201, %v9841, 0.0
      %v10274 = vsel %vm10202, %v9842, 0.0
      %v10275 = vsel %vm10203, %v9843, 0.0
      %v10276 = vsel %vm10204, %v9844, 0.0
      %v10277 = vsel %vm10205, %v9845, 0.0
      %v10278 = vsel %vm10206, %v9846, 0.0
      %v10279 = vsel %vm10207, %v9847, 0.0
      %v10280 = vsel %vm10208, %v9848, 0.0
      %v10281 = vsel %vm10209, %v9849, 0.0
      %v10282 = vsel %vm10210, %v9850, 0.0
      %v10283 = vsel %vm10211, %v9851, 0.0
      %v10284 = vsel %vm10212, %v9852, 0.0
      %v10285 = vsel %vm10213, %v9853, 0.0
      %v10286 = vsel %vm10214, %v9854, 0.0
      %v10287 = vsel %vm10215, %v9855, 0.0
      %v10288 = vsel %vm10216, %v9856, 0.0
      %v10289 = vsel %vm10217, %v9857, 0.0
      %v10290 = vsel %vm10218, %v9858, 0.0
      %v10291 = vsel %vm10219, %v9859, 0.0
      %v10292 = vpack.c.bf16 %v10221, %v10220
      %v10293 = vpack.c.bf16 %v10223, %v10222
      %v10294 = vpack.c.bf16 %v10225, %v10224
      %v10295 = vpack.c.bf16 %v10227, %v10226
      %v10296 = vpack.c.bf16 %v10229, %v10228
      %v10297 = vpack.c.bf16 %v10231, %v10230
      %v10298 = vpack.c.bf16 %v10233, %v10232
      %v10299 = vpack.c.bf16 %v10235, %v10234
      %v10300 = vpack.c.bf16 %v10237, %v10236
      %v10301 = vpack.c.bf16 %v10239, %v10238
      %v10302 = vpack.c.bf16 %v10241, %v10240
      %v10303 = vpack.c.bf16 %v10243, %v10242
      %v10304 = vpack.c.bf16 %v10245, %v10244
      %v10305 = vpack.c.bf16 %v10247, %v10246
      %v10306 = vpack.c.bf16 %v10249, %v10248
      %v10307 = vpack.c.bf16 %v10251, %v10250
      %v10308 = vpack.c.bf16 %v10253, %v10252
      %v10309 = vpack.c.bf16 %v10255, %v10254
      %v10310 = vpack.c.bf16 %v10257, %v10256
      %v10311 = vpack.c.bf16 %v10259, %v10258
      %v10312 = vpack.c.bf16 %v10261, %v10260
      %v10313 = vpack.c.bf16 %v10263, %v10262
      %v10314 = vpack.c.bf16 %v10265, %v10264
      %v10315 = vpack.c.bf16 %v10267, %v10266
      %v10316 = vpack.c.bf16 %v10269, %v10268
      %v10317 = vpack.c.bf16 %v10271, %v10270
      %v10318 = vpack.c.bf16 %v10273, %v10272
      %v10319 = vpack.c.bf16 %v10275, %v10274
      %v10320 = vpack.c.bf16 %v10277, %v10276
      %v10321 = vpack.c.bf16 %v10279, %v10278
      %v10322 = vpack.c.bf16 %v10281, %v10280
      %v10323 = vpack.c.bf16 %v10283, %v10282
      %v10324 = vpack.c.bf16 %v10285, %v10284
      %v10325 = vpack.c.bf16 %v10287, %v10286
      %v10326 = vpack.c.bf16 %v10289, %v10288
      %v10327 = vpack.c.bf16 %v10291, %v10290
      %vm10328 = vcmask 64512
      %10329 = vst.msk [vmem:[#allocation2] sm:$0xff] %vm10328, %v10292
      %10330 = vst.msk [vmem:[#allocation2 + $0x8] sm:$0xff] %vm10328, %v10293
      %10331 = vst.msk [vmem:[#allocation2 + $0x10] sm:$0xff] %vm10328, %v10294
      %10332 = vst.msk [vmem:[#allocation2 + $0x18] sm:$0xff] %vm10328, %v10295
      %10333 = vst.msk [vmem:[#allocation2 + $0x20] sm:$0xff] %vm10328, %v10296
      %10334 = vst.msk [vmem:[#allocation2 + $0x28] sm:$0xff] %vm10328, %v10297
      %10335 = vst.msk [vmem:[#allocation2 + $0x30] sm:$0xff] %vm10328, %v10298
      %10336 = vst.msk [vmem:[#allocation2 + $0x38] sm:$0xff] %vm10328, %v10299
      %10337 = vst.msk [vmem:[#allocation2 + $0x40] sm:$0xff] %vm10328, %v10300
      %10338 = vst.msk [vmem:[#allocation2 + $0x48] sm:$0xff] %vm10328, %v10301
      %10339 = vst.msk [vmem:[#allocation2 + $0x50] sm:$0xff] %vm10328, %v10302
      %10340 = vst.msk [vmem:[#allocation2 + $0x58] sm:$0xff] %vm10328, %v10303
      %10341 = vst.msk [vmem:[#allocation2 + $0x60] sm:$0xff] %vm10328, %v10304
      %10342 = vst.msk [vmem:[#allocation2 + $0x68] sm:$0xff] %vm10328, %v10305
      %10343 = vst.msk [vmem:[#allocation2 + $0x70] sm:$0xff] %vm10328, %v10306
      %10344 = vst.msk [vmem:[#allocation2 + $0x78] sm:$0xff] %vm10328, %v10307
      %10345 = vst.msk [vmem:[#allocation2 + $0x80] sm:$0xff] %vm10328, %v10308
      %10346 = vst.msk [vmem:[#allocation2 + $0x88] sm:$0xff] %vm10328, %v10309
      %10347 = vst.msk [vmem:[#allocation2 + $0x90] sm:$0xff] %vm10328, %v10310
      %10348 = vst.msk [vmem:[#allocation2 + $0x98] sm:$0xff] %vm10328, %v10311
      %10349 = vst.msk [vmem:[#allocation2 + $0xa0] sm:$0xff] %vm10328, %v10312
      %10350 = vst.msk [vmem:[#allocation2 + $0xa8] sm:$0xff] %vm10328, %v10313
      %10351 = vst.msk [vmem:[#allocation2 + $0xb0] sm:$0xff] %vm10328, %v10314
      %10352 = vst.msk [vmem:[#allocation2 + $0xb8] sm:$0xff] %vm10328, %v10315
      %10353 = vst.msk [vmem:[#allocation2 + $0xc0] sm:$0xff] %vm10328, %v10316
      %10354 = vst.msk [vmem:[#allocation2 + $0xc8] sm:$0xff] %vm10328, %v10317
      %10355 = vst.msk [vmem:[#allocation2 + $0xd0] sm:$0xff] %vm10328, %v10318
      %10356 = vst.msk [vmem:[#allocation2 + $0xd8] sm:$0xff] %vm10328, %v10319
      %10357 = vst.msk [vmem:[#allocation2 + $0xe0] sm:$0xff] %vm10328, %v10320
      %10358 = vst.msk [vmem:[#allocation2 + $0xe8] sm:$0xff] %vm10328, %v10321
      %10359 = vst.msk [vmem:[#allocation2 + $0xf0] sm:$0xff] %vm10328, %v10322
      %10360 = vst.msk [vmem:[#allocation2 + $0xf8] sm:$0xff] %vm10328, %v10323
      %10361 = vst.msk [vmem:[#allocation2 + $0x100] sm:$0xff] %vm10328, %v10324
      %10362 = vst.msk [vmem:[#allocation2 + $0x108] sm:$0xff] %vm10328, %v10325
      %10363 = vst.msk [vmem:[#allocation2 + $0x110] sm:$0xff] %vm10328, %v10326
      %10364 = vst.msk [vmem:[#allocation2 + $0x118] sm:$0xff] %vm10328, %v10327
      %v10365 = vld [vmem:[#allocation2] sm:$0xff]
      %v10366 = vld [vmem:[#allocation2 + $0x10] sm:$0xff]
      %v10367 = vld [vmem:[#allocation2 + $0x20] sm:$0xff]
      %v10368 = vld [vmem:[#allocation2 + $0x30] sm:$0xff]
      %v10369 = vld [vmem:[#allocation2 + $0x40] sm:$0xff]
      %v10370 = vld [vmem:[#allocation2 + $0x50] sm:$0xff]
      %v10371 = vld [vmem:[#allocation2 + $0x60] sm:$0xff]
      %v10372 = vld [vmem:[#allocation2 + $0x70] sm:$0xff]
      %v10373 = vld [vmem:[#allocation2 + $0x80] sm:$0xff]
      %v10374 = vld [vmem:[#allocation2 + $0x90] sm:$0xff]
      %v10375 = vld [vmem:[#allocation2 + $0xa0] sm:$0xff]
      %v10376 = vld [vmem:[#allocation2 + $0xb0] sm:$0xff]
      %v10377 = vld [vmem:[#allocation2 + $0xc0] sm:$0xff]
      %v10378 = vld [vmem:[#allocation2 + $0xd0] sm:$0xff]
      %v10379 = vld [vmem:[#allocation2 + $0xe0] sm:$0xff]
      %v10380 = vld [vmem:[#allocation2 + $0xf0] sm:$0xff]
      %v10381 = vld [vmem:[%s3] sm:$0xf]
      %v10382 = vld [vmem:[#allocation2 + $0x8] sm:$0x1]
      %v10383 = vld [vmem:[#allocation2 + $0x18] sm:$0x1]
      %v10384 = vld [vmem:[#allocation2 + $0x28] sm:$0x1]
      %v10385 = vld [vmem:[#allocation2 + $0x38] sm:$0x1]
      %v10386 = vld [vmem:[#allocation2 + $0x48] sm:$0x1]
      %v10387 = vld [vmem:[#allocation2 + $0x58] sm:$0x1]
      %v10388 = vld [vmem:[#allocation2 + $0x68] sm:$0x1]
      %v10389 = vld [vmem:[#allocation2 + $0x78] sm:$0x1]
      %v10390 = vld [vmem:[#allocation2 + $0x88] sm:$0x1]
      %v10391 = vld [vmem:[#allocation2 + $0x98] sm:$0x1]
      %v10392 = vld [vmem:[#allocation2 + $0xa8] sm:$0x1]
      %v10393 = vld [vmem:[#allocation2 + $0xb8] sm:$0x1]
      %v10394 = vld [vmem:[#allocation2 + $0xc8] sm:$0x1]
      %v10395 = vld [vmem:[#allocation2 + $0xd8] sm:$0x1]
      %v10396 = vld [vmem:[#allocation2 + $0xe8] sm:$0x1]
      %v10397 = vld [vmem:[#allocation2 + $0xf8] sm:$0x1]
      %vm10398 = vsmask.f32 7424
      %v10400 = vshrl.u32 %v10365, 16
      %v10402 = vshll.u32 %v10365, 16
      %v10404 = vrot.slane %v10402, 1
      %v10405 = vor.u32 %v10400, %v10404
      %v10407 = vshll.u32 %v10382, 16
      %v10409 = vrot.slane %v10407, 1
      %v10410 = vsel %vm10398, %v10405, %v10409
      %v10412 = vshrl.u32 %v10366, 16
      %v10414 = vshll.u32 %v10366, 16
      %v10416 = vrot.slane %v10414, 1
      %v10417 = vor.u32 %v10412, %v10416
      %v10419 = vshll.u32 %v10383, 16
      %v10421 = vrot.slane %v10419, 1
      %v10422 = vsel %vm10398, %v10417, %v10421
      %v10424 = vshrl.u32 %v10367, 16
      %v10426 = vshll.u32 %v10367, 16
      %v10428 = vrot.slane %v10426, 1
      %v10429 = vor.u32 %v10424, %v10428
      %v10431 = vshll.u32 %v10384, 16
      %v10433 = vrot.slane %v10431, 1
      %v10434 = vsel %vm10398, %v10429, %v10433
      %v10436 = vshrl.u32 %v10368, 16
      %v10438 = vshll.u32 %v10368, 16
      %v10440 = vrot.slane %v10438, 1
      %v10441 = vor.u32 %v10436, %v10440
      %v10443 = vshll.u32 %v10385, 16
      %v10445 = vrot.slane %v10443, 1
      %v10446 = vsel %vm10398, %v10441, %v10445
      %v10448 = vshrl.u32 %v10369, 16
      %v10450 = vshll.u32 %v10369, 16
      %v10452 = vrot.slane %v10450, 1
      %v10453 = vor.u32 %v10448, %v10452
      %v10455 = vshll.u32 %v10386, 16
      %v10457 = vrot.slane %v10455, 1
      %v10458 = vsel %vm10398, %v10453, %v10457
      %v10460 = vshrl.u32 %v10370, 16
      %v10462 = vshll.u32 %v10370, 16
      %v10464 = vrot.slane %v10462, 1
      %v10465 = vor.u32 %v10460, %v10464
      %v10467 = vshll.u32 %v10387, 16
      %v10469 = vrot.slane %v10467, 1
      %v10470 = vsel %vm10398, %v10465, %v10469
      %v10472 = vshrl.u32 %v10371, 16
      %v10474 = vshll.u32 %v10371, 16
      %v10476 = vrot.slane %v10474, 1
      %v10477 = vor.u32 %v10472, %v10476
      %v10479 = vshll.u32 %v10388, 16
      %v10481 = vrot.slane %v10479, 1
      %v10482 = vsel %vm10398, %v10477, %v10481
      %v10484 = vshrl.u32 %v10372, 16
      %v10486 = vshll.u32 %v10372, 16
      %v10488 = vrot.slane %v10486, 1
      %v10489 = vor.u32 %v10484, %v10488
      %v10491 = vshll.u32 %v10389, 16
      %v10493 = vrot.slane %v10491, 1
      %v10494 = vsel %vm10398, %v10489, %v10493
      %v10496 = vshrl.u32 %v10373, 16
      %v10498 = vshll.u32 %v10373, 16
      %v10500 = vrot.slane %v10498, 1
      %v10501 = vor.u32 %v10496, %v10500
      %v10503 = vshll.u32 %v10390, 16
      %v10505 = vrot.slane %v10503, 1
      %v10506 = vsel %vm10398, %v10501, %v10505
      %v10508 = vshrl.u32 %v10374, 16
      %v10510 = vshll.u32 %v10374, 16
      %v10512 = vrot.slane %v10510, 1
      %v10513 = vor.u32 %v10508, %v10512
      %v10515 = vshll.u32 %v10391, 16
      %v10517 = vrot.slane %v10515, 1
      %v10518 = vsel %vm10398, %v10513, %v10517
      %v10520 = vshrl.u32 %v10375, 16
      %v10522 = vshll.u32 %v10375, 16
      %v10524 = vrot.slane %v10522, 1
      %v10525 = vor.u32 %v10520, %v10524
      %v10527 = vshll.u32 %v10392, 16
      %v10529 = vrot.slane %v10527, 1
      %v10530 = vsel %vm10398, %v10525, %v10529
      %v10532 = vshrl.u32 %v10376, 16
      %v10534 = vshll.u32 %v10376, 16
      %v10536 = vrot.slane %v10534, 1
      %v10537 = vor.u32 %v10532, %v10536
      %v10539 = vshll.u32 %v10393, 16
      %v10541 = vrot.slane %v10539, 1
      %v10542 = vsel %vm10398, %v10537, %v10541
      %v10544 = vshrl.u32 %v10377, 16
      %v10546 = vshll.u32 %v10377, 16
      %v10548 = vrot.slane %v10546, 1
      %v10549 = vor.u32 %v10544, %v10548
      %v10551 = vshll.u32 %v10394, 16
      %v10553 = vrot.slane %v10551, 1
      %v10554 = vsel %vm10398, %v10549, %v10553
      %v10556 = vshrl.u32 %v10378, 16
      %v10558 = vshll.u32 %v10378, 16
      %v10560 = vrot.slane %v10558, 1
      %v10561 = vor.u32 %v10556, %v10560
      %v10563 = vshll.u32 %v10395, 16
      %v10565 = vrot.slane %v10563, 1
      %v10566 = vsel %vm10398, %v10561, %v10565
      %v10568 = vshrl.u32 %v10379, 16
      %v10570 = vshll.u32 %v10379, 16
      %v10572 = vrot.slane %v10570, 1
      %v10573 = vor.u32 %v10568, %v10572
      %v10575 = vshll.u32 %v10396, 16
      %v10577 = vrot.slane %v10575, 1
      %v10578 = vsel %vm10398, %v10573, %v10577
      %v10580 = vshrl.u32 %v10380, 16
      %v10582 = vshll.u32 %v10380, 16
      %v10584 = vrot.slane %v10582, 1
      %v10585 = vor.u32 %v10580, %v10584
      %v10587 = vshll.u32 %v10397, 16
      %v10589 = vrot.slane %v10587, 1
      %v10590 = vsel %vm10398, %v10585, %v10589
      %s10591 = scalar_lea.vmem %s3, 4
      %v10592 = vld [vmem:[%s10591] sm:$0xf]
      %v10594 = vsel %vm10328, %v10410, 0
      %v10597 = vsel %vm10328, %v10422, 0
      %v10600 = vsel %vm10328, %v10434, 0
      %v10603 = vsel %vm10328, %v10446, 0
      %v10606 = vsel %vm10328, %v10458, 0
      %v10609 = vsel %vm10328, %v10470, 0
      %v10612 = vsel %vm10328, %v10482, 0
      %v10615 = vsel %vm10328, %v10494, 0
      %v10618 = vsel %vm10328, %v10506, 0
      %v10621 = vsel %vm10328, %v10518, 0
      %v10624 = vsel %vm10328, %v10530, 0
      %v10627 = vsel %vm10328, %v10542, 0
      %v10630 = vsel %vm10328, %v10554, 0
      %v10633 = vsel %vm10328, %v10566, 0
      %v10636 = vsel %vm10328, %v10578, 0
      %v10639 = vsel %vm10328, %v10590, 0
      %vm10641 = vcmask 1043456
      %v10643 = vsel %vm10641, %v10592, 0
      %10645 = vmatprep.subr.bf16.mxu0 0
      %10646 = vmatpush1.bf16.msra.mxu0 %v10643
      %10647 = vmatprep.subr.bf16.mxu0 0
      %10648 = vmatpush1.bf16.msra.mxu0 0
      %10649 = vmatprep.subr.bf16.mxu0 0
      %10650 = vmatpush1.bf16.msra.mxu0 0
      %10651 = vmatprep.subr.bf16.mxu0 0
      %10652 = vmatpush1.bf16.msra.mxu0 0
      %10653 = vmatprep.subr.bf16.mxu0 0
      %10654 = vmatpush1.bf16.msra.mxu0 0
      %10655 = vmatprep.subr.bf16.mxu0 0
      %10656 = vmatpush1.bf16.msra.mxu0 0
      %10657 = vmatprep.subr.bf16.mxu0 0
      %10658 = vmatpush1.bf16.msra.mxu0 0
      %10659 = vmatprep.subr.bf16.mxu0 0
      %10660 = vmatpush1.bf16.msra.mxu0 0
      %10661 = vmatprep.subr.bf16.mxu0 0
      %10662 = vmatpush1.bf16.msra.mxu0 0
      %10663 = vmatprep.subr.bf16.mxu0 0
      %10664 = vmatpush1.bf16.msra.mxu0 0
      %10665 = vmatprep.subr.bf16.mxu0 0
      %10666 = vmatpush1.bf16.msra.mxu0 0
      %10667 = vmatprep.subr.bf16.mxu0 0
      %10668 = vmatpush1.bf16.msra.mxu0 0
      %10669 = vmatprep.subr.bf16.mxu0 0
      %10670 = vmatpush1.bf16.msra.mxu0 0
      %10671 = vmatprep.subr.bf16.mxu0 0
      %10672 = vmatpush1.bf16.msra.mxu0 0
      %10673 = vmatprep.subr.bf16.mxu0 0
      %10674 = vmatpush1.bf16.msra.mxu0 0
      %10675 = vmatprep.subr.bf16.mxu0 0
      %10676 = vmatpush1.bf16.msra.mxu0 0
      %10677 = vmatprep.mubr.bf16.mxu0 0
      %10678 = vmatmul.mubr.bf16.gmra.mrb[0].mxu0 %v10594
      %v10679 = vpop.f32.mrb[0].mxu0
      %v10680 = vadd.f32 0.0, %v10679
      %v10681 = vpop.f32.mrb[0].mxu0
      %v10682 = vpop.f32.mrb[0].mxu0
      %v10683 = vadd.f32 0.0, %v10682
      %v10684 = vpop.f32.mrb[0].mxu0
      %10685 = vmatprep.mubr.bf16.mxu0 0
      %10686 = vmatmul.mubr.bf16.gmra.mrb[0].mxu0 %v10597
      %v10687 = vpop.f32.mrb[0].mxu0
      %v10688 = vadd.f32 0.0, %v10687
      %v10689 = vpop.f32.mrb[0].mxu0
      %v10690 = vpop.f32.mrb[0].mxu0
      %v10691 = vadd.f32 0.0, %v10690
      %v10692 = vpop.f32.mrb[0].mxu0
      %10693 = vmatprep.mubr.bf16.mxu0 0
      %10694 = vmatmul.mubr.bf16.gmra.mrb[0].mxu0 %v10600
      %v10695 = vpop.f32.mrb[0].mxu0
      %v10696 = vadd.f32 0.0, %v10695
      %v10697 = vpop.f32.mrb[0].mxu0
      %v10698 = vpop.f32.mrb[0].mxu0
      %v10699 = vadd.f32 0.0, %v10698
      %v10700 = vpop.f32.mrb[0].mxu0
      %10701 = vmatprep.mubr.bf16.mxu0 0
      %10702 = vmatmul.mubr.bf16.gmra.mrb[0].mxu0 %v10603
      %v10703 = vpop.f32.mrb[0].mxu0
      %v10704 = vadd.f32 0.0, %v10703
      %v10705 = vpop.f32.mrb[0].mxu0
      %v10706 = vpop.f32.mrb[0].mxu0
      %v10707 = vadd.f32 0.0, %v10706
      %v10708 = vpop.f32.mrb[0].mxu0
      %10709 = vmatprep.mubr.bf16.mxu0 0
      %10710 = vmatmul.mubr.bf16.gmra.mrb[0].mxu0 %v10606
      %v10711 = vpop.f32.mrb[0].mxu0
      %v10712 = vadd.f32 0.0, %v10711
      %v10713 = vpop.f32.mrb[0].mxu0
      %v10714 = vpop.f32.mrb[0].mxu0
      %v10715 = vadd.f32 0.0, %v10714
      %v10716 = vpop.f32.mrb[0].mxu0
      %10717 = vmatprep.mubr.bf16.mxu0 0
      %10718 = vmatmul.mubr.bf16.gmra.mrb[0].mxu0 %v10609
      %v10719 = vpop.f32.mrb[0].mxu0
      %v10720 = vadd.f32 0.0, %v10719
      %v10721 = vpop.f32.mrb[0].mxu0
      %v10722 = vpop.f32.mrb[0].mxu0
      %v10723 = vadd.f32 0.0, %v10722
      %v10724 = vpop.f32.mrb[0].mxu0
      %10725 = vmatprep.mubr.bf16.mxu0 0
      %10726 = vmatmul.mubr.bf16.gmra.mrb[0].mxu0 %v10612
      %v10727 = vpop.f32.mrb[0].mxu0
      %v10728 = vadd.f32 0.0, %v10727
      %v10729 = vpop.f32.mrb[0].mxu0
      %v10730 = vpop.f32.mrb[0].mxu0
      %v10731 = vadd.f32 0.0, %v10730
      %v10732 = vpop.f32.mrb[0].mxu0
      %10733 = vmatprep.mubr.bf16.mxu0 0
      %10734 = vmatmul.mubr.bf16.gmra.mrb[0].mxu0 %v10615
      %v10735 = vpop.f32.mrb[0].mxu0
      %v10736 = vadd.f32 0.0, %v10735
      %v10737 = vpop.f32.mrb[0].mxu0
      %v10738 = vpop.f32.mrb[0].mxu0
      %v10739 = vadd.f32 0.0, %v10738
      %v10740 = vpop.f32.mrb[0].mxu0
      %10741 = vmatprep.mubr.bf16.mxu0 0
      %10742 = vmatmul.mubr.bf16.gmra.mrb[0].mxu0 %v10618
      %v10743 = vpop.f32.mrb[0].mxu0
      %v10744 = vadd.f32 0.0, %v10743
      %v10745 = vpop.f32.mrb[0].mxu0
      %v10746 = vpop.f32.mrb[0].mxu0
      %v10747 = vadd.f32 0.0, %v10746
      %v10748 = vpop.f32.mrb[0].mxu0
      %10749 = vmatprep.mubr.bf16.mxu0 0
      %10750 = vmatmul.mubr.bf16.gmra.mrb[0].mxu0 %v10621
      %v10751 = vpop.f32.mrb[0].mxu0
      %v10752 = vadd.f32 0.0, %v10751
      %v10753 = vpop.f32.mrb[0].mxu0
      %v10754 = vpop.f32.mrb[0].mxu0
      %v10755 = vadd.f32 0.0, %v10754
      %v10756 = vpop.f32.mrb[0].mxu0
      %10757 = vmatprep.mubr.bf16.mxu0 0
      %10758 = vmatmul.mubr.bf16.gmra.mrb[0].mxu0 %v10624
      %v10759 = vpop.f32.mrb[0].mxu0
      %v10760 = vadd.f32 0.0, %v10759
      %v10761 = vpop.f32.mrb[0].mxu0
      %v10762 = vpop.f32.mrb[0].mxu0
      %v10763 = vadd.f32 0.0, %v10762
      %v10764 = vpop.f32.mrb[0].mxu0
      %10765 = vmatprep.mubr.bf16.mxu0 0
      %10766 = vmatmul.mubr.bf16.gmra.mrb[0].mxu0 %v10627
      %v10767 = vpop.f32.mrb[0].mxu0
      %v10768 = vadd.f32 0.0, %v10767
      %v10769 = vpop.f32.mrb[0].mxu0
      %v10770 = vpop.f32.mrb[0].mxu0
      %v10771 = vadd.f32 0.0, %v10770
      %v10772 = vpop.f32.mrb[0].mxu0
      %10773 = vmatprep.mubr.bf16.mxu0 0
      %10774 = vmatmul.mubr.bf16.gmra.mrb[0].mxu0 %v10630
      %v10775 = vpop.f32.mrb[0].mxu0
      %v10776 = vadd.f32 0.0, %v10775
      %v10777 = vpop.f32.mrb[0].mxu0
      %v10778 = vpop.f32.mrb[0].mxu0
      %v10779 = vadd.f32 0.0, %v10778
      %v10780 = vpop.f32.mrb[0].mxu0
      %10781 = vmatprep.mubr.bf16.mxu0 0
      %10782 = vmatmul.mubr.bf16.gmra.mrb[0].mxu0 %v10633
      %v10783 = vpop.f32.mrb[0].mxu0
      %v10784 = vadd.f32 0.0, %v10783
      %v10785 = vpop.f32.mrb[0].mxu0
      %v10786 = vpop.f32.mrb[0].mxu0
      %v10787 = vadd.f32 0.0, %v10786
      %v10788 = vpop.f32.mrb[0].mxu0
      %10789 = vmatprep.mubr.bf16.mxu0 0
      %10790 = vmatmul.mubr.bf16.gmra.mrb[0].mxu0 %v10636
      %v10791 = vpop.f32.mrb[0].mxu0
      %v10792 = vadd.f32 0.0, %v10791
      %v10793 = vpop.f32.mrb[0].mxu0
      %v10794 = vpop.f32.mrb[0].mxu0
      %v10795 = vadd.f32 0.0, %v10794
      %v10796 = vpop.f32.mrb[0].mxu0
      %10797 = vmatprep.mubr.bf16.mxu0 0
      %10798 = vmatmul.mubr.bf16.gmra.mrb[0].mxu0 %v10639
      %v10799 = vpop.f32.mrb[0].mxu0
      %v10800 = vadd.f32 0.0, %v10799
      %v10801 = vpop.f32.mrb[0].mxu0
      %v10802 = vpop.f32.mrb[0].mxu0
      %v10803 = vadd.f32 0.0, %v10802
      %v10804 = vpop.f32.mrb[0].mxu0
      %10805 = vdwg.mxu0
      %v10806 = vsel %vm10328, %v10365, 0
      %v10808 = vsel %vm10328, %v10366, 0
      %v10810 = vsel %vm10328, %v10367, 0
      %v10812 = vsel %vm10328, %v10368, 0
      %v10814 = vsel %vm10328, %v10369, 0
      %v10816 = vsel %vm10328, %v10370, 0
      %v10818 = vsel %vm10328, %v10371, 0
      %v10820 = vsel %vm10328, %v10372, 0
      %v10822 = vsel %vm10328, %v10373, 0
      %v10824 = vsel %vm10328, %v10374, 0
      %v10826 = vsel %vm10328, %v10375, 0
      %v10828 = vsel %vm10328, %v10376, 0
      %v10830 = vsel %vm10328, %v10377, 0
      %v10832 = vsel %vm10328, %v10378, 0
      %v10834 = vsel %vm10328, %v10379, 0
      %v10836 = vsel %vm10328, %v10380, 0
      %v10839 = vsel %vm10641, %v10381, 0
      %10841 = vmatprep.subr.bf16.mxu0 0
      %10842 = vmatpush1.bf16.msra.mxu0 %v10839
      %10843 = vmatprep.subr.bf16.mxu0 0
      %10844 = vmatpush1.bf16.msra.mxu0 0
      %10845 = vmatprep.subr.bf16.mxu0 0
      %10846 = vmatpush1.bf16.msra.mxu0 0
      %10847 = vmatprep.subr.bf16.mxu0 0
      %10848 = vmatpush1.bf16.msra.mxu0 0
      %10849 = vmatprep.subr.bf16.mxu0 0
      %10850 = vmatpush1.bf16.msra.mxu0 0
      %10851 = vmatprep.subr.bf16.mxu0 0
      %10852 = vmatpush1.bf16.msra.mxu0 0
      %10853 = vmatprep.subr.bf16.mxu0 0
      %10854 = vmatpush1.bf16.msra.mxu0 0
      %10855 = vmatprep.subr.bf16.mxu0 0
      %10856 = vmatpush1.bf16.msra.mxu0 0
      %10857 = vmatprep.subr.bf16.mxu0 0
      %10858 = vmatpush1.bf16.msra.mxu0 0
      %10859 = vmatprep.subr.bf16.mxu0 0
      %10860 = vmatpush1.bf16.msra.mxu0 0
      %10861 = vmatprep.subr.bf16.mxu0 0
      %10862 = vmatpush1.bf16.msra.mxu0 0
      %10863 = vmatprep.subr.bf16.mxu0 0
      %10864 = vmatpush1.bf16.msra.mxu0 0
      %10865 = vmatprep.subr.bf16.mxu0 0
      %10866 = vmatpush1.bf16.msra.mxu0 0
      %10867 = vmatprep.subr.bf16.mxu0 0
      %10868 = vmatpush1.bf16.msra.mxu0 0
      %10869 = vmatprep.subr.bf16.mxu0 0
      %10870 = vmatpush1.bf16.msra.mxu0 0
      %10871 = vmatprep.subr.bf16.mxu0 0
      %10872 = vmatpush1.bf16.msra.mxu0 0
      %10873 = vmatprep.mubr.bf16.mxu0 0
      %10874 = vmatmul.mubr.bf16.gmra.mrb[0].mxu0 %v10806
      %v10875 = vpop.f32.mrb[0].mxu0
      %v10876 = vadd.f32 %v10680, %v10875
      %v10877 = vpop.f32.mrb[0].mxu0
      %v10878 = vpop.f32.mrb[0].mxu0
      %v10879 = vadd.f32 %v10683, %v10878
      %v10880 = vpop.f32.mrb[0].mxu0
      %10881 = vmatprep.mubr.bf16.mxu0 0
      %10882 = vmatmul.mubr.bf16.gmra.mrb[0].mxu0 %v10808
      %v10883 = vpop.f32.mrb[0].mxu0
      %v10884 = vadd.f32 %v10688, %v10883
      %v10885 = vpop.f32.mrb[0].mxu0
      %v10886 = vpop.f32.mrb[0].mxu0
      %v10887 = vadd.f32 %v10691, %v10886
      %v10888 = vpop.f32.mrb[0].mxu0
      %10889 = vmatprep.mubr.bf16.mxu0 0
      %10890 = vmatmul.mubr.bf16.gmra.mrb[0].mxu0 %v10810
      %v10891 = vpop.f32.mrb[0].mxu0
      %v10892 = vadd.f32 %v10696, %v10891
      %v10893 = vpop.f32.mrb[0].mxu0
      %v10894 = vpop.f32.mrb[0].mxu0
      %v10895 = vadd.f32 %v10699, %v10894
      %v10896 = vpop.f32.mrb[0].mxu0
      %10897 = vmatprep.mubr.bf16.mxu0 0
      %10898 = vmatmul.mubr.bf16.gmra.mrb[0].mxu0 %v10812
      %v10899 = vpop.f32.mrb[0].mxu0
      %v10900 = vadd.f32 %v10704, %v10899
      %v10901 = vpop.f32.mrb[0].mxu0
      %v10902 = vpop.f32.mrb[0].mxu0
      %v10903 = vadd.f32 %v10707, %v10902
      %v10904 = vpop.f32.mrb[0].mxu0
      %10905 = vmatprep.mubr.bf16.mxu0 0
      %10906 = vmatmul.mubr.bf16.gmra.mrb[0].mxu0 %v10814
      %v10907 = vpop.f32.mrb[0].mxu0
      %v10908 = vadd.f32 %v10712, %v10907
      %v10909 = vpop.f32.mrb[0].mxu0
      %v10910 = vpop.f32.mrb[0].mxu0
      %v10911 = vadd.f32 %v10715, %v10910
      %v10912 = vpop.f32.mrb[0].mxu0
      %10913 = vmatprep.mubr.bf16.mxu0 0
      %10914 = vmatmul.mubr.bf16.gmra.mrb[0].mxu0 %v10816
      %v10915 = vpop.f32.mrb[0].mxu0
      %v10916 = vadd.f32 %v10720, %v10915
      %v10917 = vpop.f32.mrb[0].mxu0
      %v10918 = vpop.f32.mrb[0].mxu0
      %v10919 = vadd.f32 %v10723, %v10918
      %v10920 = vpop.f32.mrb[0].mxu0
      %10921 = vmatprep.mubr.bf16.mxu0 0
      %10922 = vmatmul.mubr.bf16.gmra.mrb[0].mxu0 %v10818
      %v10923 = vpop.f32.mrb[0].mxu0
      %v10924 = vadd.f32 %v10728, %v10923
      %v10925 = vpop.f32.mrb[0].mxu0
      %v10926 = vpop.f32.mrb[0].mxu0
      %v10927 = vadd.f32 %v10731, %v10926
      %v10928 = vpop.f32.mrb[0].mxu0
      %10929 = vmatprep.mubr.bf16.mxu0 0
      %10930 = vmatmul.mubr.bf16.gmra.mrb[0].mxu0 %v10820
      %v10931 = vpop.f32.mrb[0].mxu0
      %v10932 = vadd.f32 %v10736, %v10931
      %v10933 = vpop.f32.mrb[0].mxu0
      %v10934 = vpop.f32.mrb[0].mxu0
      %v10935 = vadd.f32 %v10739, %v10934
      %v10936 = vpop.f32.mrb[0].mxu0
      %10937 = vmatprep.mubr.bf16.mxu0 0
      %10938 = vmatmul.mubr.bf16.gmra.mrb[0].mxu0 %v10822
      %v10939 = vpop.f32.mrb[0].mxu0
      %v10940 = vadd.f32 %v10744, %v10939
      %v10941 = vpop.f32.mrb[0].mxu0
      %v10942 = vpop.f32.mrb[0].mxu0
      %v10943 = vadd.f32 %v10747, %v10942
      %v10944 = vpop.f32.mrb[0].mxu0
      %10945 = vmatprep.mubr.bf16.mxu0 0
      %10946 = vmatmul.mubr.bf16.gmra.mrb[0].mxu0 %v10824
      %v10947 = vpop.f32.mrb[0].mxu0
      %v10948 = vadd.f32 %v10752, %v10947
      %v10949 = vpop.f32.mrb[0].mxu0
      %v10950 = vpop.f32.mrb[0].mxu0
      %v10951 = vadd.f32 %v10755, %v10950
      %v10952 = vpop.f32.mrb[0].mxu0
      %10953 = vmatprep.mubr.bf16.mxu0 0
      %10954 = vmatmul.mubr.bf16.gmra.mrb[0].mxu0 %v10826
      %v10955 = vpop.f32.mrb[0].mxu0
      %v10956 = vadd.f32 %v10760, %v10955
      %v10957 = vpop.f32.mrb[0].mxu0
      %v10958 = vpop.f32.mrb[0].mxu0
      %v10959 = vadd.f32 %v10763, %v10958
      %v10960 = vpop.f32.mrb[0].mxu0
      %10961 = vmatprep.mubr.bf16.mxu0 0
      %10962 = vmatmul.mubr.bf16.gmra.mrb[0].mxu0 %v10828
      %v10963 = vpop.f32.mrb[0].mxu0
      %v10964 = vadd.f32 %v10768, %v10963
      %v10965 = vpop.f32.mrb[0].mxu0
      %v10966 = vpop.f32.mrb[0].mxu0
      %v10967 = vadd.f32 %v10771, %v10966
      %v10968 = vpop.f32.mrb[0].mxu0
      %10969 = vmatprep.mubr.bf16.mxu0 0
      %10970 = vmatmul.mubr.bf16.gmra.mrb[0].mxu0 %v10830
      %v10971 = vpop.f32.mrb[0].mxu0
      %v10972 = vadd.f32 %v10776, %v10971
      %v10973 = vpop.f32.mrb[0].mxu0
      %v10974 = vpop.f32.mrb[0].mxu0
      %v10975 = vadd.f32 %v10779, %v10974
      %v10976 = vpop.f32.mrb[0].mxu0
      %10977 = vmatprep.mubr.bf16.mxu0 0
      %10978 = vmatmul.mubr.bf16.gmra.mrb[0].mxu0 %v10832
      %v10979 = vpop.f32.mrb[0].mxu0
      %v10980 = vadd.f32 %v10784, %v10979
      %v10981 = vpop.f32.mrb[0].mxu0
      %v10982 = vpop.f32.mrb[0].mxu0
      %v10983 = vadd.f32 %v10787, %v10982
      %v10984 = vpop.f32.mrb[0].mxu0
      %10985 = vmatprep.mubr.bf16.mxu0 0
      %10986 = vmatmul.mubr.bf16.gmra.mrb[0].mxu0 %v10834
      %v10987 = vpop.f32.mrb[0].mxu0
      %v10988 = vadd.f32 %v10792, %v10987
      %v10989 = vpop.f32.mrb[0].mxu0
      %v10990 = vpop.f32.mrb[0].mxu0
      %v10991 = vadd.f32 %v10795, %v10990
      %v10992 = vpop.f32.mrb[0].mxu0
      %10993 = vmatprep.mubr.bf16.mxu0 0
      %10994 = vmatmul.mubr.bf16.gmra.mrb[0].mxu0 %v10836
      %v10995 = vpop.f32.mrb[0].mxu0
      %v10996 = vadd.f32 %v10800, %v10995
      %v10997 = vpop.f32.mrb[0].mxu0
      %v10998 = vpop.f32.mrb[0].mxu0
      %v10999 = vadd.f32 %v10803, %v10998
      %v11000 = vpop.f32.mrb[0].mxu0
      %11001 = vdwg.mxu0
      %v11002 = vld [vmem:[#allocation2] sm:$0xfe]
      %v11003 = vld [vmem:[#allocation2 + $0x10] sm:$0xfe]
      %v11004 = vld [vmem:[#allocation2 + $0x20] sm:$0xfe]
      %v11005 = vld [vmem:[#allocation2 + $0x30] sm:$0xfe]
      %v11006 = vld [vmem:[#allocation2 + $0x40] sm:$0xfe]
      %v11007 = vld [vmem:[#allocation2 + $0x50] sm:$0xfe]
      %v11008 = vld [vmem:[#allocation2 + $0x60] sm:$0xfe]
      %v11009 = vld [vmem:[#allocation2 + $0x70] sm:$0xfe]
      %v11010 = vld [vmem:[#allocation2 + $0x80] sm:$0xfe]
      %v11011 = vld [vmem:[#allocation2 + $0x90] sm:$0xfe]
      %v11012 = vld [vmem:[#allocation2 + $0xa0] sm:$0xfe]
      %v11013 = vld [vmem:[#allocation2 + $0xb0] sm:$0xfe]
      %v11014 = vld [vmem:[#allocation2 + $0xc0] sm:$0xfe]
      %v11015 = vld [vmem:[#allocation2 + $0xd0] sm:$0xfe]
      %v11016 = vld [vmem:[#allocation2 + $0xe0] sm:$0xfe]
      %v11017 = vld [vmem:[#allocation2 + $0xf0] sm:$0xfe]
      %vm11050 = vcmask 1046528
      %v11051 = vrot.slane %v11002, 1
      %v11052 = vrot.slane %v10382, 1
      %v11053 = vsel %vm11050, %v11051, %v11052
      %v11054 = vrot.slane %v11003, 1
      %v11055 = vrot.slane %v10383, 1
      %v11056 = vsel %vm11050, %v11054, %v11055
      %v11057 = vrot.slane %v11004, 1
      %v11058 = vrot.slane %v10384, 1
      %v11059 = vsel %vm11050, %v11057, %v11058
      %v11060 = vrot.slane %v11005, 1
      %v11061 = vrot.slane %v10385, 1
      %v11062 = vsel %vm11050, %v11060, %v11061
      %v11063 = vrot.slane %v11006, 1
      %v11064 = vrot.slane %v10386, 1
      %v11065 = vsel %vm11050, %v11063, %v11064
      %v11066 = vrot.slane %v11007, 1
      %v11067 = vrot.slane %v10387, 1
      %v11068 = vsel %vm11050, %v11066, %v11067
      %v11069 = vrot.slane %v11008, 1
      %v11070 = vrot.slane %v10388, 1
      %v11071 = vsel %vm11050, %v11069, %v11070
      %v11072 = vrot.slane %v11009, 1
      %v11073 = vrot.slane %v10389, 1
      %v11074 = vsel %vm11050, %v11072, %v11073
      %v11075 = vrot.slane %v11010, 1
      %v11076 = vrot.slane %v10390, 1
      %v11077 = vsel %vm11050, %v11075, %v11076
      %v11078 = vrot.slane %v11011, 1
      %v11079 = vrot.slane %v10391, 1
      %v11080 = vsel %vm11050, %v11078, %v11079
      %v11081 = vrot.slane %v11012, 1
      %v11082 = vrot.slane %v10392, 1
      %v11083 = vsel %vm11050, %v11081, %v11082
      %v11084 = vrot.slane %v11013, 1
      %v11085 = vrot.slane %v10393, 1
      %v11086 = vsel %vm11050, %v11084, %v11085
      %v11087 = vrot.slane %v11014, 1
      %v11088 = vrot.slane %v10394, 1
      %v11089 = vsel %vm11050, %v11087, %v11088
      %v11090 = vrot.slane %v11015, 1
      %v11091 = vrot.slane %v10395, 1
      %v11092 = vsel %vm11050, %v11090, %v11091
      %v11093 = vrot.slane %v11016, 1
      %v11094 = vrot.slane %v10396, 1
      %v11095 = vsel %vm11050, %v11093, %v11094
      %v11096 = vrot.slane %v11017, 1
      %v11097 = vrot.slane %v10397, 1
      %v11098 = vsel %vm11050, %v11096, %v11097
      %s11099 = scalar_lea.vmem %s3, 8
      %v11100 = vld [vmem:[%s11099] sm:$0xf]
      %v11102 = vsel %vm10328, %v11053, 0
      %v11105 = vsel %vm10328, %v11056, 0
      %v11108 = vsel %vm10328, %v11059, 0
      %v11111 = vsel %vm10328, %v11062, 0
      %v11114 = vsel %vm10328, %v11065, 0
      %v11117 = vsel %vm10328, %v11068, 0
      %v11120 = vsel %vm10328, %v11071, 0
      %v11123 = vsel %vm10328, %v11074, 0
      %v11126 = vsel %vm10328, %v11077, 0
      %v11129 = vsel %vm10328, %v11080, 0
      %v11132 = vsel %vm10328, %v11083, 0
      %v11135 = vsel %vm10328, %v11086, 0
      %v11138 = vsel %vm10328, %v11089, 0
      %v11141 = vsel %vm10328, %v11092, 0
      %v11144 = vsel %vm10328, %v11095, 0
      %v11147 = vsel %vm10328, %v11098, 0
      %v11150 = vsel %vm10641, %v11100, 0
      %11152 = vmatprep.subr.bf16.mxu0 0
      %11153 = vmatpush1.bf16.msra.mxu0 %v11150
      %11154 = vmatprep.subr.bf16.mxu0 0
      %11155 = vmatpush1.bf16.msra.mxu0 0
      %11156 = vmatprep.subr.bf16.mxu0 0
      %11157 = vmatpush1.bf16.msra.mxu0 0
      %11158 = vmatprep.subr.bf16.mxu0 0
      %11159 = vmatpush1.bf16.msra.mxu0 0
      %11160 = vmatprep.subr.bf16.mxu0 0
      %11161 = vmatpush1.bf16.msra.mxu0 0
      %11162 = vmatprep.subr.bf16.mxu0 0
      %11163 = vmatpush1.bf16.msra.mxu0 0
      %11164 = vmatprep.subr.bf16.mxu0 0
      %11165 = vmatpush1.bf16.msra.mxu0 0
      %11166 = vmatprep.subr.bf16.mxu0 0
      %11167 = vmatpush1.bf16.msra.mxu0 0
      %11168 = vmatprep.subr.bf16.mxu0 0
      %11169 = vmatpush1.bf16.msra.mxu0 0
      %11170 = vmatprep.subr.bf16.mxu0 0
      %11171 = vmatpush1.bf16.msra.mxu0 0
      %11172 = vmatprep.subr.bf16.mxu0 0
      %11173 = vmatpush1.bf16.msra.mxu0 0
      %11174 = vmatprep.subr.bf16.mxu0 0
      %11175 = vmatpush1.bf16.msra.mxu0 0
      %11176 = vmatprep.subr.bf16.mxu0 0
      %11177 = vmatpush1.bf16.msra.mxu0 0
      %11178 = vmatprep.subr.bf16.mxu0 0
      %11179 = vmatpush1.bf16.msra.mxu0 0
      %11180 = vmatprep.subr.bf16.mxu0 0
      %11181 = vmatpush1.bf16.msra.mxu0 0
      %11182 = vmatprep.subr.bf16.mxu0 0
      %11183 = vmatpush1.bf16.msra.mxu0 0
      %11184 = vmatprep.mubr.bf16.mxu0 0
      %11185 = vmatmul.mubr.bf16.gmra.mrb[0].mxu0 %v11102
      %v11186 = vpop.f32.mrb[0].mxu0
      %v11187 = vadd.f32 0.0, %v11186
      %v11188 = vpop.f32.mrb[0].mxu0
      %v11189 = vpop.f32.mrb[0].mxu0
      %v11190 = vadd.f32 0.0, %v11189
      %v11191 = vpop.f32.mrb[0].mxu0
      %11192 = vmatprep.mubr.bf16.mxu0 0
      %11193 = vmatmul.mubr.bf16.gmra.mrb[0].mxu0 %v11105
      %v11194 = vpop.f32.mrb[0].mxu0
      %v11195 = vadd.f32 0.0, %v11194
      %v11196 = vpop.f32.mrb[0].mxu0
      %v11197 = vpop.f32.mrb[0].mxu0
      %v11198 = vadd.f32 0.0, %v11197
      %v11199 = vpop.f32.mrb[0].mxu0
      %11200 = vmatprep.mubr.bf16.mxu0 0
      %11201 = vmatmul.mubr.bf16.gmra.mrb[0].mxu0 %v11108
      %v11202 = vpop.f32.mrb[0].mxu0
      %v11203 = vadd.f32 0.0, %v11202
      %v11204 = vpop.f32.mrb[0].mxu0
      %v11205 = vpop.f32.mrb[0].mxu0
      %v11206 = vadd.f32 0.0, %v11205
      %v11207 = vpop.f32.mrb[0].mxu0
      %11208 = vmatprep.mubr.bf16.mxu0 0
      %11209 = vmatmul.mubr.bf16.gmra.mrb[0].mxu0 %v11111
      %v11210 = vpop.f32.mrb[0].mxu0
      %v11211 = vadd.f32 0.0, %v11210
      %v11212 = vpop.f32.mrb[0].mxu0
      %v11213 = vpop.f32.mrb[0].mxu0
      %v11214 = vadd.f32 0.0, %v11213
      %v11215 = vpop.f32.mrb[0].mxu0
      %11216 = vmatprep.mubr.bf16.mxu0 0
      %11217 = vmatmul.mubr.bf16.gmra.mrb[0].mxu0 %v11114
      %v11218 = vpop.f32.mrb[0].mxu0
      %v11219 = vadd.f32 0.0, %v11218
      %v11220 = vpop.f32.mrb[0].mxu0
      %v11221 = vpop.f32.mrb[0].mxu0
      %v11222 = vadd.f32 0.0, %v11221
      %v11223 = vpop.f32.mrb[0].mxu0
      %11224 = vmatprep.mubr.bf16.mxu0 0
      %11225 = vmatmul.mubr.bf16.gmra.mrb[0].mxu0 %v11117
      %v11226 = vpop.f32.mrb[0].mxu0
      %v11227 = vadd.f32 0.0, %v11226
      %v11228 = vpop.f32.mrb[0].mxu0
      %v11229 = vpop.f32.mrb[0].mxu0
      %v11230 = vadd.f32 0.0, %v11229
      %v11231 = vpop.f32.mrb[0].mxu0
      %11232 = vmatprep.mubr.bf16.mxu0 0
      %11233 = vmatmul.mubr.bf16.gmra.mrb[0].mxu0 %v11120
      %v11234 = vpop.f32.mrb[0].mxu0
      %v11235 = vadd.f32 0.0, %v11234
      %v11236 = vpop.f32.mrb[0].mxu0
      %v11237 = vpop.f32.mrb[0].mxu0
      %v11238 = vadd.f32 0.0, %v11237
      %v11239 = vpop.f32.mrb[0].mxu0
      %11240 = vmatprep.mubr.bf16.mxu0 0
      %11241 = vmatmul.mubr.bf16.gmra.mrb[0].mxu0 %v11123
      %v11242 = vpop.f32.mrb[0].mxu0
      %v11243 = vadd.f32 0.0, %v11242
      %v11244 = vpop.f32.mrb[0].mxu0
      %v11245 = vpop.f32.mrb[0].mxu0
      %v11246 = vadd.f32 0.0, %v11245
      %v11247 = vpop.f32.mrb[0].mxu0
      %11248 = vmatprep.mubr.bf16.mxu0 0
      %11249 = vmatmul.mubr.bf16.gmra.mrb[0].mxu0 %v11126
      %v11250 = vpop.f32.mrb[0].mxu0
      %v11251 = vadd.f32 0.0, %v11250
      %v11252 = vpop.f32.mrb[0].mxu0
      %v11253 = vpop.f32.mrb[0].mxu0
      %v11254 = vadd.f32 0.0, %v11253
      %v11255 = vpop.f32.mrb[0].mxu0
      %11256 = vmatprep.mubr.bf16.mxu0 0
      %11257 = vmatmul.mubr.bf16.gmra.mrb[0].mxu0 %v11129
      %v11258 = vpop.f32.mrb[0].mxu0
      %v11259 = vadd.f32 0.0, %v11258
      %v11260 = vpop.f32.mrb[0].mxu0
      %v11261 = vpop.f32.mrb[0].mxu0
      %v11262 = vadd.f32 0.0, %v11261
      %v11263 = vpop.f32.mrb[0].mxu0
      %11264 = vmatprep.mubr.bf16.mxu0 0
      %11265 = vmatmul.mubr.bf16.gmra.mrb[0].mxu0 %v11132
      %v11266 = vpop.f32.mrb[0].mxu0
      %v11267 = vadd.f32 0.0, %v11266
      %v11268 = vpop.f32.mrb[0].mxu0
      %v11269 = vpop.f32.mrb[0].mxu0
      %v11270 = vadd.f32 0.0, %v11269
      %v11271 = vpop.f32.mrb[0].mxu0
      %11272 = vmatprep.mubr.bf16.mxu0 0
      %11273 = vmatmul.mubr.bf16.gmra.mrb[0].mxu0 %v11135
      %v11274 = vpop.f32.mrb[0].mxu0
      %v11275 = vadd.f32 0.0, %v11274
      %v11276 = vpop.f32.mrb[0].mxu0
      %v11277 = vpop.f32.mrb[0].mxu0
      %v11278 = vadd.f32 0.0, %v11277
      %v11279 = vpop.f32.mrb[0].mxu0
      %11280 = vmatprep.mubr.bf16.mxu0 0
      %11281 = vmatmul.mubr.bf16.gmra.mrb[0].mxu0 %v11138
      %v11282 = vpop.f32.mrb[0].mxu0
      %v11283 = vadd.f32 0.0, %v11282
      %v11284 = vpop.f32.mrb[0].mxu0
      %v11285 = vpop.f32.mrb[0].mxu0
      %v11286 = vadd.f32 0.0, %v11285
      %v11287 = vpop.f32.mrb[0].mxu0
      %11288 = vmatprep.mubr.bf16.mxu0 0
      %11289 = vmatmul.mubr.bf16.gmra.mrb[0].mxu0 %v11141
      %v11290 = vpop.f32.mrb[0].mxu0
      %v11291 = vadd.f32 0.0, %v11290
      %v11292 = vpop.f32.mrb[0].mxu0
      %v11293 = vpop.f32.mrb[0].mxu0
      %v11294 = vadd.f32 0.0, %v11293
      %v11295 = vpop.f32.mrb[0].mxu0
      %11296 = vmatprep.mubr.bf16.mxu0 0
      %11297 = vmatmul.mubr.bf16.gmra.mrb[0].mxu0 %v11144
      %v11298 = vpop.f32.mrb[0].mxu0
      %v11299 = vadd.f32 0.0, %v11298
      %v11300 = vpop.f32.mrb[0].mxu0
      %v11301 = vpop.f32.mrb[0].mxu0
      %v11302 = vadd.f32 0.0, %v11301
      %v11303 = vpop.f32.mrb[0].mxu0
      %11304 = vmatprep.mubr.bf16.mxu0 0
      %11305 = vmatmul.mubr.bf16.gmra.mrb[0].mxu0 %v11147
      %v11306 = vpop.f32.mrb[0].mxu0
      %v11307 = vadd.f32 0.0, %v11306
      %v11308 = vpop.f32.mrb[0].mxu0
      %v11309 = vpop.f32.mrb[0].mxu0
      %v11310 = vadd.f32 0.0, %v11309
      %v11311 = vpop.f32.mrb[0].mxu0
      %11312 = vdwg.mxu0
      %v11313 = vadd.f32 %v10876, %v11187
      %v11314 = vadd.f32 %v10879, %v11190
      %v11315 = vadd.f32 %v10884, %v11195
      %v11316 = vadd.f32 %v10887, %v11198
      %v11317 = vadd.f32 %v10892, %v11203
      %v11318 = vadd.f32 %v10895, %v11206
      %v11319 = vadd.f32 %v10900, %v11211
      %v11320 = vadd.f32 %v10903, %v11214
      %v11321 = vadd.f32 %v10908, %v11219
      %v11322 = vadd.f32 %v10911, %v11222
      %v11323 = vadd.f32 %v10916, %v11227
      %v11324 = vadd.f32 %v10919, %v11230
      %v11325 = vadd.f32 %v10924, %v11235
      %v11326 = vadd.f32 %v10927, %v11238
      %v11327 = vadd.f32 %v10932, %v11243
      %v11328 = vadd.f32 %v10935, %v11246
      %v11329 = vadd.f32 %v10940, %v11251
      %v11330 = vadd.f32 %v10943, %v11254
      %v11331 = vadd.f32 %v10948, %v11259
      %v11332 = vadd.f32 %v10951, %v11262
      %v11333 = vadd.f32 %v10956, %v11267
      %v11334 = vadd.f32 %v10959, %v11270
      %v11335 = vadd.f32 %v10964, %v11275
      %v11336 = vadd.f32 %v10967, %v11278
      %v11337 = vadd.f32 %v10972, %v11283
      %v11338 = vadd.f32 %v10975, %v11286
      %v11339 = vadd.f32 %v10980, %v11291
      %v11340 = vadd.f32 %v10983, %v11294
      %v11341 = vadd.f32 %v10988, %v11299
      %v11342 = vadd.f32 %v10991, %v11302
      %v11343 = vadd.f32 %v10996, %v11307
      %v11344 = vadd.f32 %v10999, %v11310
      %s11345 = scalar_lea.vmem [#allocation2], 16
      %v11346 = vld [vmem:[%s11345] sm:$0xff]
      %v11347 = vld [vmem:[%s11345 + $0x10] sm:$0xff]
      %v11348 = vld [vmem:[%s11345 + $0x20] sm:$0xff]
      %v11349 = vld [vmem:[%s11345 + $0x30] sm:$0xff]
      %v11350 = vld [vmem:[%s11345 + $0x40] sm:$0xff]
      %v11351 = vld [vmem:[%s11345 + $0x50] sm:$0xff]
      %v11352 = vld [vmem:[%s11345 + $0x60] sm:$0xff]
      %v11353 = vld [vmem:[%s11345 + $0x70] sm:$0xff]
      %v11354 = vld [vmem:[%s11345 + $0x80] sm:$0xff]
      %v11355 = vld [vmem:[%s11345 + $0x90] sm:$0xff]
      %v11356 = vld [vmem:[%s11345 + $0xa0] sm:$0xff]
      %v11357 = vld [vmem:[%s11345 + $0xb0] sm:$0xff]
      %v11358 = vld [vmem:[%s11345 + $0xc0] sm:$0xff]
      %v11359 = vld [vmem:[%s11345 + $0xd0] sm:$0xff]
      %v11360 = vld [vmem:[%s11345 + $0xe0] sm:$0xff]
      %v11361 = vld [vmem:[%s11345 + $0xf0] sm:$0xff]
      %s11362 = scalar_lea.vmem %s3, 12
      %v11363 = vld [vmem:[%s11362] sm:$0xf]
      %v11365 = vsel %vm10328, %v11346, 0
      %v11368 = vsel %vm10328, %v11347, 0
      %v11371 = vsel %vm10328, %v11348, 0
      %v11374 = vsel %vm10328, %v11349, 0
      %v11377 = vsel %vm10328, %v11350, 0
      %v11380 = vsel %vm10328, %v11351, 0
      %v11383 = vsel %vm10328, %v11352, 0
      %v11386 = vsel %vm10328, %v11353, 0
      %v11389 = vsel %vm10328, %v11354, 0
      %v11392 = vsel %vm10328, %v11355, 0
      %v11395 = vsel %vm10328, %v11356, 0
      %v11398 = vsel %vm10328, %v11357, 0
      %v11401 = vsel %vm10328, %v11358, 0
      %v11404 = vsel %vm10328, %v11359, 0
      %v11407 = vsel %vm10328, %v11360, 0
      %v11410 = vsel %vm10328, %v11361, 0
      %v11413 = vsel %vm10641, %v11363, 0
      %11415 = vmatprep.subr.bf16.mxu0 0
      %11416 = vmatpush1.bf16.msra.mxu0 %v11413
      %11417 = vmatprep.subr.bf16.mxu0 0
      %11418 = vmatpush1.bf16.msra.mxu0 0
      %11419 = vmatprep.subr.bf16.mxu0 0
      %11420 = vmatpush1.bf16.msra.mxu0 0
      %11421 = vmatprep.subr.bf16.mxu0 0
      %11422 = vmatpush1.bf16.msra.mxu0 0
      %11423 = vmatprep.subr.bf16.mxu0 0
      %11424 = vmatpush1.bf16.msra.mxu0 0
      %11425 = vmatprep.subr.bf16.mxu0 0
      %11426 = vmatpush1.bf16.msra.mxu0 0
      %11427 = vmatprep.subr.bf16.mxu0 0
      %11428 = vmatpush1.bf16.msra.mxu0 0
      %11429 = vmatprep.subr.bf16.mxu0 0
      %11430 = vmatpush1.bf16.msra.mxu0 0
      %11431 = vmatprep.subr.bf16.mxu0 0
      %11432 = vmatpush1.bf16.msra.mxu0 0
      %11433 = vmatprep.subr.bf16.mxu0 0
      %11434 = vmatpush1.bf16.msra.mxu0 0
      %11435 = vmatprep.subr.bf16.mxu0 0
      %11436 = vmatpush1.bf16.msra.mxu0 0
      %11437 = vmatprep.subr.bf16.mxu0 0
      %11438 = vmatpush1.bf16.msra.mxu0 0
      %11439 = vmatprep.subr.bf16.mxu0 0
      %11440 = vmatpush1.bf16.msra.mxu0 0
      %11441 = vmatprep.subr.bf16.mxu0 0
      %11442 = vmatpush1.bf16.msra.mxu0 0
      %11443 = vmatprep.subr.bf16.mxu0 0
      %11444 = vmatpush1.bf16.msra.mxu0 0
      %11445 = vmatprep.subr.bf16.mxu0 0
      %11446 = vmatpush1.bf16.msra.mxu0 0
      %11447 = vmatprep.mubr.bf16.mxu0 0
      %11448 = vmatmul.mubr.bf16.gmra.mrb[0].mxu0 %v11365
      %v11449 = vpop.f32.mrb[0].mxu0
      %v11450 = vadd.f32 0.0, %v11449
      %v11451 = vpop.f32.mrb[0].mxu0
      %v11452 = vpop.f32.mrb[0].mxu0
      %v11453 = vadd.f32 0.0, %v11452
      %v11454 = vpop.f32.mrb[0].mxu0
      %11455 = vmatprep.mubr.bf16.mxu0 0
      %11456 = vmatmul.mubr.bf16.gmra.mrb[0].mxu0 %v11368
      %v11457 = vpop.f32.mrb[0].mxu0
      %v11458 = vadd.f32 0.0, %v11457
      %v11459 = vpop.f32.mrb[0].mxu0
      %v11460 = vpop.f32.mrb[0].mxu0
      %v11461 = vadd.f32 0.0, %v11460
      %v11462 = vpop.f32.mrb[0].mxu0
      %11463 = vmatprep.mubr.bf16.mxu0 0
      %11464 = vmatmul.mubr.bf16.gmra.mrb[0].mxu0 %v11371
      %v11465 = vpop.f32.mrb[0].mxu0
      %v11466 = vadd.f32 0.0, %v11465
      %v11467 = vpop.f32.mrb[0].mxu0
      %v11468 = vpop.f32.mrb[0].mxu0
      %v11469 = vadd.f32 0.0, %v11468
      %v11470 = vpop.f32.mrb[0].mxu0
      %11471 = vmatprep.mubr.bf16.mxu0 0
      %11472 = vmatmul.mubr.bf16.gmra.mrb[0].mxu0 %v11374
      %v11473 = vpop.f32.mrb[0].mxu0
      %v11474 = vadd.f32 0.0, %v11473
      %v11475 = vpop.f32.mrb[0].mxu0
      %v11476 = vpop.f32.mrb[0].mxu0
      %v11477 = vadd.f32 0.0, %v11476
      %v11478 = vpop.f32.mrb[0].mxu0
      %11479 = vmatprep.mubr.bf16.mxu0 0
      %11480 = vmatmul.mubr.bf16.gmra.mrb[0].mxu0 %v11377
      %v11481 = vpop.f32.mrb[0].mxu0
      %v11482 = vadd.f32 0.0, %v11481
      %v11483 = vpop.f32.mrb[0].mxu0
      %v11484 = vpop.f32.mrb[0].mxu0
      %v11485 = vadd.f32 0.0, %v11484
      %v11486 = vpop.f32.mrb[0].mxu0
      %11487 = vmatprep.mubr.bf16.mxu0 0
      %11488 = vmatmul.mubr.bf16.gmra.mrb[0].mxu0 %v11380
      %v11489 = vpop.f32.mrb[0].mxu0
      %v11490 = vadd.f32 0.0, %v11489
      %v11491 = vpop.f32.mrb[0].mxu0
      %v11492 = vpop.f32.mrb[0].mxu0
      %v11493 = vadd.f32 0.0, %v11492
      %v11494 = vpop.f32.mrb[0].mxu0
      %11495 = vmatprep.mubr.bf16.mxu0 0
      %11496 = vmatmul.mubr.bf16.gmra.mrb[0].mxu0 %v11383
      %v11497 = vpop.f32.mrb[0].mxu0
      %v11498 = vadd.f32 0.0, %v11497
      %v11499 = vpop.f32.mrb[0].mxu0
      %v11500 = vpop.f32.mrb[0].mxu0
      %v11501 = vadd.f32 0.0, %v11500
      %v11502 = vpop.f32.mrb[0].mxu0
      %11503 = vmatprep.mubr.bf16.mxu0 0
      %11504 = vmatmul.mubr.bf16.gmra.mrb[0].mxu0 %v11386
      %v11505 = vpop.f32.mrb[0].mxu0
      %v11506 = vadd.f32 0.0, %v11505
      %v11507 = vpop.f32.mrb[0].mxu0
      %v11508 = vpop.f32.mrb[0].mxu0
      %v11509 = vadd.f32 0.0, %v11508
      %v11510 = vpop.f32.mrb[0].mxu0
      %11511 = vmatprep.mubr.bf16.mxu0 0
      %11512 = vmatmul.mubr.bf16.gmra.mrb[0].mxu0 %v11389
      %v11513 = vpop.f32.mrb[0].mxu0
      %v11514 = vadd.f32 0.0, %v11513
      %v11515 = vpop.f32.mrb[0].mxu0
      %v11516 = vpop.f32.mrb[0].mxu0
      %v11517 = vadd.f32 0.0, %v11516
      %v11518 = vpop.f32.mrb[0].mxu0
      %11519 = vmatprep.mubr.bf16.mxu0 0
      %11520 = vmatmul.mubr.bf16.gmra.mrb[0].mxu0 %v11392
      %v11521 = vpop.f32.mrb[0].mxu0
      %v11522 = vadd.f32 0.0, %v11521
      %v11523 = vpop.f32.mrb[0].mxu0
      %v11524 = vpop.f32.mrb[0].mxu0
      %v11525 = vadd.f32 0.0, %v11524
      %v11526 = vpop.f32.mrb[0].mxu0
      %11527 = vmatprep.mubr.bf16.mxu0 0
      %11528 = vmatmul.mubr.bf16.gmra.mrb[0].mxu0 %v11395
      %v11529 = vpop.f32.mrb[0].mxu0
      %v11530 = vadd.f32 0.0, %v11529
      %v11531 = vpop.f32.mrb[0].mxu0
      %v11532 = vpop.f32.mrb[0].mxu0
      %v11533 = vadd.f32 0.0, %v11532
      %v11534 = vpop.f32.mrb[0].mxu0
      %11535 = vmatprep.mubr.bf16.mxu0 0
      %11536 = vmatmul.mubr.bf16.gmra.mrb[0].mxu0 %v11398
      %v11537 = vpop.f32.mrb[0].mxu0
      %v11538 = vadd.f32 0.0, %v11537
      %v11539 = vpop.f32.mrb[0].mxu0
      %v11540 = vpop.f32.mrb[0].mxu0
      %v11541 = vadd.f32 0.0, %v11540
      %v11542 = vpop.f32.mrb[0].mxu0
      %11543 = vmatprep.mubr.bf16.mxu0 0
      %11544 = vmatmul.mubr.bf16.gmra.mrb[0].mxu0 %v11401
      %v11545 = vpop.f32.mrb[0].mxu0
      %v11546 = vadd.f32 0.0, %v11545
      %v11547 = vpop.f32.mrb[0].mxu0
      %v11548 = vpop.f32.mrb[0].mxu0
      %v11549 = vadd.f32 0.0, %v11548
      %v11550 = vpop.f32.mrb[0].mxu0
      %11551 = vmatprep.mubr.bf16.mxu0 0
      %11552 = vmatmul.mubr.bf16.gmra.mrb[0].mxu0 %v11404
      %v11553 = vpop.f32.mrb[0].mxu0
      %v11554 = vadd.f32 0.0, %v11553
      %v11555 = vpop.f32.mrb[0].mxu0
      %v11556 = vpop.f32.mrb[0].mxu0
      %v11557 = vadd.f32 0.0, %v11556
      %v11558 = vpop.f32.mrb[0].mxu0
      %11559 = vmatprep.mubr.bf16.mxu0 0
      %11560 = vmatmul.mubr.bf16.gmra.mrb[0].mxu0 %v11407
      %v11561 = vpop.f32.mrb[0].mxu0
      %v11562 = vadd.f32 0.0, %v11561
      %v11563 = vpop.f32.mrb[0].mxu0
      %v11564 = vpop.f32.mrb[0].mxu0
      %v11565 = vadd.f32 0.0, %v11564
      %v11566 = vpop.f32.mrb[0].mxu0
      %11567 = vmatprep.mubr.bf16.mxu0 0
      %11568 = vmatmul.mubr.bf16.gmra.mrb[0].mxu0 %v11410
      %v11569 = vpop.f32.mrb[0].mxu0
      %v11570 = vadd.f32 0.0, %v11569
      %v11571 = vpop.f32.mrb[0].mxu0
      %v11572 = vpop.f32.mrb[0].mxu0
      %v11573 = vadd.f32 0.0, %v11572
      %v11574 = vpop.f32.mrb[0].mxu0
      %11575 = vdwg.mxu0
      %v11576 = vadd.f32 %v11313, %v11450
      %v11577 = vadd.f32 %v11314, %v11453
      %v11578 = vadd.f32 %v11315, %v11458
      %v11579 = vadd.f32 %v11316, %v11461
      %v11580 = vadd.f32 %v11317, %v11466
      %v11581 = vadd.f32 %v11318, %v11469
      %v11582 = vadd.f32 %v11319, %v11474
      %v11583 = vadd.f32 %v11320, %v11477
      %v11584 = vadd.f32 %v11321, %v11482
      %v11585 = vadd.f32 %v11322, %v11485
      %v11586 = vadd.f32 %v11323, %v11490
      %v11587 = vadd.f32 %v11324, %v11493
      %v11588 = vadd.f32 %v11325, %v11498
      %v11589 = vadd.f32 %v11326, %v11501
      %v11590 = vadd.f32 %v11327, %v11506
      %v11591 = vadd.f32 %v11328, %v11509
      %v11592 = vadd.f32 %v11329, %v11514
      %v11593 = vadd.f32 %v11330, %v11517
      %v11594 = vadd.f32 %v11331, %v11522
      %v11595 = vadd.f32 %v11332, %v11525
      %v11596 = vadd.f32 %v11333, %v11530
      %v11597 = vadd.f32 %v11334, %v11533
      %v11598 = vadd.f32 %v11335, %v11538
      %v11599 = vadd.f32 %v11336, %v11541
      %v11600 = vadd.f32 %v11337, %v11546
      %v11601 = vadd.f32 %v11338, %v11549
      %v11602 = vadd.f32 %v11339, %v11554
      %v11603 = vadd.f32 %v11340, %v11557
      %v11604 = vadd.f32 %v11341, %v11562
      %v11605 = vadd.f32 %v11342, %v11565
      %v11606 = vadd.f32 %v11343, %v11570
      %v11607 = vadd.f32 %v11344, %v11573
      %v11608 = vld [vmem:[%s11345] sm:$0xff]
      %v11609 = vld [vmem:[%s11345 + $0x8] sm:$0x1]
      %v11610 = vld [vmem:[%s11345 + $0x10] sm:$0xff]
      %v11611 = vld [vmem:[%s11345 + $0x18] sm:$0x1]
      %v11612 = vld [vmem:[%s11345 + $0x20] sm:$0xff]
      %v11613 = vld [vmem:[%s11345 + $0x28] sm:$0x1]
      %v11614 = vld [vmem:[%s11345 + $0x30] sm:$0xff]
      %v11615 = vld [vmem:[%s11345 + $0x38] sm:$0x1]
      %v11616 = vld [vmem:[%s11345 + $0x40] sm:$0xff]
      %v11617 = vld [vmem:[%s11345 + $0x48] sm:$0x1]
      %v11618 = vld [vmem:[%s11345 + $0x50] sm:$0xff]
      %v11619 = vld [vmem:[%s11345 + $0x58] sm:$0x1]
      %v11620 = vld [vmem:[%s11345 + $0x60] sm:$0xff]
      %v11621 = vld [vmem:[%s11345 + $0x68] sm:$0x1]
      %v11622 = vld [vmem:[%s11345 + $0x70] sm:$0xff]
      %v11623 = vld [vmem:[%s11345 + $0x78] sm:$0x1]
      %v11624 = vld [vmem:[%s11345 + $0x80] sm:$0xff]
      %v11625 = vld [vmem:[%s11345 + $0x88] sm:$0x1]
      %v11626 = vld [vmem:[%s11345 + $0x90] sm:$0xff]
      %v11627 = vld [vmem:[%s11345 + $0x98] sm:$0x1]
      %v11628 = vld [vmem:[%s11345 + $0xa0] sm:$0xff]
      %v11629 = vld [vmem:[%s11345 + $0xa8] sm:$0x1]
      %v11630 = vld [vmem:[%s11345 + $0xb0] sm:$0xff]
      %v11631 = vld [vmem:[%s11345 + $0xb8] sm:$0x1]
      %v11632 = vld [vmem:[%s11345 + $0xc0] sm:$0xff]
      %v11633 = vld [vmem:[%s11345 + $0xc8] sm:$0x1]
      %v11634 = vld [vmem:[%s11345 + $0xd0] sm:$0xff]
      %v11635 = vld [vmem:[%s11345 + $0xd8] sm:$0x1]
      %v11636 = vld [vmem:[%s11345 + $0xe0] sm:$0xff]
      %v11637 = vld [vmem:[%s11345 + $0xe8] sm:$0x1]
      %v11638 = vld [vmem:[%s11345 + $0xf0] sm:$0xff]
      %v11639 = vld [vmem:[%s11345 + $0xf8] sm:$0x1]
      %v11641 = vshrl.u32 %v11608, 16
      %v11643 = vshll.u32 %v11608, 16
      %v11645 = vrot.slane %v11643, 1
      %v11646 = vor.u32 %v11641, %v11645
      %v11648 = vshll.u32 %v11609, 16
      %v11650 = vrot.slane %v11648, 1
      %v11651 = vsel %vm10398, %v11646, %v11650
      %v11653 = vshrl.u32 %v11610, 16
      %v11655 = vshll.u32 %v11610, 16
      %v11657 = vrot.slane %v11655, 1
      %v11658 = vor.u32 %v11653, %v11657
      %v11660 = vshll.u32 %v11611, 16
      %v11662 = vrot.slane %v11660, 1
      %v11663 = vsel %vm10398, %v11658, %v11662
      %v11665 = vshrl.u32 %v11612, 16
      %v11667 = vshll.u32 %v11612, 16
      %v11669 = vrot.slane %v11667, 1
      %v11670 = vor.u32 %v11665, %v11669
      %v11672 = vshll.u32 %v11613, 16
      %v11674 = vrot.slane %v11672, 1
      %v11675 = vsel %vm10398, %v11670, %v11674
      %v11677 = vshrl.u32 %v11614, 16
      %v11679 = vshll.u32 %v11614, 16
      %v11681 = vrot.slane %v11679, 1
      %v11682 = vor.u32 %v11677, %v11681
      %v11684 = vshll.u32 %v11615, 16
      %v11686 = vrot.slane %v11684, 1
      %v11687 = vsel %vm10398, %v11682, %v11686
      %v11689 = vshrl.u32 %v11616, 16
      %v11691 = vshll.u32 %v11616, 16
      %v11693 = vrot.slane %v11691, 1
      %v11694 = vor.u32 %v11689, %v11693
      %v11696 = vshll.u32 %v11617, 16
      %v11698 = vrot.slane %v11696, 1
      %v11699 = vsel %vm10398, %v11694, %v11698
      %v11701 = vshrl.u32 %v11618, 16
      %v11703 = vshll.u32 %v11618, 16
      %v11705 = vrot.slane %v11703, 1
      %v11706 = vor.u32 %v11701, %v11705
      %v11708 = vshll.u32 %v11619, 16
      %v11710 = vrot.slane %v11708, 1
      %v11711 = vsel %vm10398, %v11706, %v11710
      %v11713 = vshrl.u32 %v11620, 16
      %v11715 = vshll.u32 %v11620, 16
      %v11717 = vrot.slane %v11715, 1
      %v11718 = vor.u32 %v11713, %v11717
      %v11720 = vshll.u32 %v11621, 16
      %v11722 = vrot.slane %v11720, 1
      %v11723 = vsel %vm10398, %v11718, %v11722
      %v11725 = vshrl.u32 %v11622, 16
      %v11727 = vshll.u32 %v11622, 16
      %v11729 = vrot.slane %v11727, 1
      %v11730 = vor.u32 %v11725, %v11729
      %v11732 = vshll.u32 %v11623, 16
      %v11734 = vrot.slane %v11732, 1
      %v11735 = vsel %vm10398, %v11730, %v11734
      %v11737 = vshrl.u32 %v11624, 16
      %v11739 = vshll.u32 %v11624, 16
      %v11741 = vrot.slane %v11739, 1
      %v11742 = vor.u32 %v11737, %v11741
      %v11744 = vshll.u32 %v11625, 16
      %v11746 = vrot.slane %v11744, 1
      %v11747 = vsel %vm10398, %v11742, %v11746
      %v11749 = vshrl.u32 %v11626, 16
      %v11751 = vshll.u32 %v11626, 16
      %v11753 = vrot.slane %v11751, 1
      %v11754 = vor.u32 %v11749, %v11753
      %v11756 = vshll.u32 %v11627, 16
      %v11758 = vrot.slane %v11756, 1
      %v11759 = vsel %vm10398, %v11754, %v11758
      %v11761 = vshrl.u32 %v11628, 16
      %v11763 = vshll.u32 %v11628, 16
      %v11765 = vrot.slane %v11763, 1
      %v11766 = vor.u32 %v11761, %v11765
      %v11768 = vshll.u32 %v11629, 16
      %v11770 = vrot.slane %v11768, 1
      %v11771 = vsel %vm10398, %v11766, %v11770
      %v11773 = vshrl.u32 %v11630, 16
      %v11775 = vshll.u32 %v11630, 16
      %v11777 = vrot.slane %v11775, 1
      %v11778 = vor.u32 %v11773, %v11777
      %v11780 = vshll.u32 %v11631, 16
      %v11782 = vrot.slane %v11780, 1
      %v11783 = vsel %vm10398, %v11778, %v11782
      %v11785 = vshrl.u32 %v11632, 16
      %v11787 = vshll.u32 %v11632, 16
      %v11789 = vrot.slane %v11787, 1
      %v11790 = vor.u32 %v11785, %v11789
      %v11792 = vshll.u32 %v11633, 16
      %v11794 = vrot.slane %v11792, 1
      %v11795 = vsel %vm10398, %v11790, %v11794
      %v11797 = vshrl.u32 %v11634, 16
      %v11799 = vshll.u32 %v11634, 16
      %v11801 = vrot.slane %v11799, 1
      %v11802 = vor.u32 %v11797, %v11801
      %v11804 = vshll.u32 %v11635, 16
      %v11806 = vrot.slane %v11804, 1
      %v11807 = vsel %vm10398, %v11802, %v11806
      %v11809 = vshrl.u32 %v11636, 16
      %v11811 = vshll.u32 %v11636, 16
      %v11813 = vrot.slane %v11811, 1
      %v11814 = vor.u32 %v11809, %v11813
      %v11816 = vshll.u32 %v11637, 16
      %v11818 = vrot.slane %v11816, 1
      %v11819 = vsel %vm10398, %v11814, %v11818
      %v11821 = vshrl.u32 %v11638, 16
      %v11823 = vshll.u32 %v11638, 16
      %v11825 = vrot.slane %v11823, 1
      %v11826 = vor.u32 %v11821, %v11825
      %v11828 = vshll.u32 %v11639, 16
      %v11830 = vrot.slane %v11828, 1
      %v11831 = vsel %vm10398, %v11826, %v11830
      %s11832 = scalar_lea.vmem %s3, 16
      %v11833 = vld [vmem:[%s11832] sm:$0xf]
      %v11835 = vsel %vm10328, %v11651, 0
      %v11838 = vsel %vm10328, %v11663, 0
      %v11841 = vsel %vm10328, %v11675, 0
      %v11844 = vsel %vm10328, %v11687, 0
      %v11847 = vsel %vm10328, %v11699, 0
      %v11850 = vsel %vm10328, %v11711, 0
      %v11853 = vsel %vm10328, %v11723, 0
      %v11856 = vsel %vm10328, %v11735, 0
      %v11859 = vsel %vm10328, %v11747, 0
      %v11862 = vsel %vm10328, %v11759, 0
      %v11865 = vsel %vm10328, %v11771, 0
      %v11868 = vsel %vm10328, %v11783, 0
      %v11871 = vsel %vm10328, %v11795, 0
      %v11874 = vsel %vm10328, %v11807, 0
      %v11877 = vsel %vm10328, %v11819, 0
      %v11880 = vsel %vm10328, %v11831, 0
      %v11883 = vsel %vm10641, %v11833, 0
      %11885 = vmatprep.subr.bf16.mxu0 0
      %11886 = vmatpush1.bf16.msra.mxu0 %v11883
      %11887 = vmatprep.subr.bf16.mxu0 0
      %11888 = vmatpush1.bf16.msra.mxu0 0
      %11889 = vmatprep.subr.bf16.mxu0 0
      %11890 = vmatpush1.bf16.msra.mxu0 0
      %11891 = vmatprep.subr.bf16.mxu0 0
      %11892 = vmatpush1.bf16.msra.mxu0 0
      %11893 = vmatprep.subr.bf16.mxu0 0
      %11894 = vmatpush1.bf16.msra.mxu0 0
      %11895 = vmatprep.subr.bf16.mxu0 0
      %11896 = vmatpush1.bf16.msra.mxu0 0
      %11897 = vmatprep.subr.bf16.mxu0 0
      %11898 = vmatpush1.bf16.msra.mxu0 0
      %11899 = vmatprep.subr.bf16.mxu0 0
      %11900 = vmatpush1.bf16.msra.mxu0 0
      %11901 = vmatprep.subr.bf16.mxu0 0
      %11902 = vmatpush1.bf16.msra.mxu0 0
      %11903 = vmatprep.subr.bf16.mxu0 0
      %11904 = vmatpush1.bf16.msra.mxu0 0
      %11905 = vmatprep.subr.bf16.mxu0 0
      %11906 = vmatpush1.bf16.msra.mxu0 0
      %11907 = vmatprep.subr.bf16.mxu0 0
      %11908 = vmatpush1.bf16.msra.mxu0 0
      %11909 = vmatprep.subr.bf16.mxu0 0
      %11910 = vmatpush1.bf16.msra.mxu0 0
      %11911 = vmatprep.subr.bf16.mxu0 0
      %11912 = vmatpush1.bf16.msra.mxu0 0
      %11913 = vmatprep.subr.bf16.mxu0 0
      %11914 = vmatpush1.bf16.msra.mxu0 0
      %11915 = vmatprep.subr.bf16.mxu0 0
      %11916 = vmatpush1.bf16.msra.mxu0 0
      %11917 = vmatprep.mubr.bf16.mxu0 0
      %11918 = vmatmul.mubr.bf16.gmra.mrb[0].mxu0 %v11835
      %v11919 = vpop.f32.mrb[0].mxu0
      %v11920 = vadd.f32 0.0, %v11919
      %v11921 = vpop.f32.mrb[0].mxu0
      %v11922 = vpop.f32.mrb[0].mxu0
      %v11923 = vadd.f32 0.0, %v11922
      %v11924 = vpop.f32.mrb[0].mxu0
      %11925 = vmatprep.mubr.bf16.mxu0 0
      %11926 = vmatmul.mubr.bf16.gmra.mrb[0].mxu0 %v11838
      %v11927 = vpop.f32.mrb[0].mxu0
      %v11928 = vadd.f32 0.0, %v11927
      %v11929 = vpop.f32.mrb[0].mxu0
      %v11930 = vpop.f32.mrb[0].mxu0
      %v11931 = vadd.f32 0.0, %v11930
      %v11932 = vpop.f32.mrb[0].mxu0
      %11933 = vmatprep.mubr.bf16.mxu0 0
      %11934 = vmatmul.mubr.bf16.gmra.mrb[0].mxu0 %v11841
      %v11935 = vpop.f32.mrb[0].mxu0
      %v11936 = vadd.f32 0.0, %v11935
      %v11937 = vpop.f32.mrb[0].mxu0
      %v11938 = vpop.f32.mrb[0].mxu0
      %v11939 = vadd.f32 0.0, %v11938
      %v11940 = vpop.f32.mrb[0].mxu0
      %11941 = vmatprep.mubr.bf16.mxu0 0
      %11942 = vmatmul.mubr.bf16.gmra.mrb[0].mxu0 %v11844
      %v11943 = vpop.f32.mrb[0].mxu0
      %v11944 = vadd.f32 0.0, %v11943
      %v11945 = vpop.f32.mrb[0].mxu0
      %v11946 = vpop.f32.mrb[0].mxu0
      %v11947 = vadd.f32 0.0, %v11946
      %v11948 = vpop.f32.mrb[0].mxu0
      %11949 = vmatprep.mubr.bf16.mxu0 0
      %11950 = vmatmul.mubr.bf16.gmra.mrb[0].mxu0 %v11847
      %v11951 = vpop.f32.mrb[0].mxu0
      %v11952 = vadd.f32 0.0, %v11951
      %v11953 = vpop.f32.mrb[0].mxu0
      %v11954 = vpop.f32.mrb[0].mxu0
      %v11955 = vadd.f32 0.0, %v11954
      %v11956 = vpop.f32.mrb[0].mxu0
      %11957 = vmatprep.mubr.bf16.mxu0 0
      %11958 = vmatmul.mubr.bf16.gmra.mrb[0].mxu0 %v11850
      %v11959 = vpop.f32.mrb[0].mxu0
      %v11960 = vadd.f32 0.0, %v11959
      %v11961 = vpop.f32.mrb[0].mxu0
      %v11962 = vpop.f32.mrb[0].mxu0
      %v11963 = vadd.f32 0.0, %v11962
      %v11964 = vpop.f32.mrb[0].mxu0
      %11965 = vmatprep.mubr.bf16.mxu0 0
      %11966 = vmatmul.mubr.bf16.gmra.mrb[0].mxu0 %v11853
      %v11967 = vpop.f32.mrb[0].mxu0
      %v11968 = vadd.f32 0.0, %v11967
      %v11969 = vpop.f32.mrb[0].mxu0
      %v11970 = vpop.f32.mrb[0].mxu0
      %v11971 = vadd.f32 0.0, %v11970
      %v11972 = vpop.f32.mrb[0].mxu0
      %11973 = vmatprep.mubr.bf16.mxu0 0
      %11974 = vmatmul.mubr.bf16.gmra.mrb[0].mxu0 %v11856
      %v11975 = vpop.f32.mrb[0].mxu0
      %v11976 = vadd.f32 0.0, %v11975
      %v11977 = vpop.f32.mrb[0].mxu0
      %v11978 = vpop.f32.mrb[0].mxu0
      %v11979 = vadd.f32 0.0, %v11978
      %v11980 = vpop.f32.mrb[0].mxu0
      %11981 = vmatprep.mubr.bf16.mxu0 0
      %11982 = vmatmul.mubr.bf16.gmra.mrb[0].mxu0 %v11859
      %v11983 = vpop.f32.mrb[0].mxu0
      %v11984 = vadd.f32 0.0, %v11983
      %v11985 = vpop.f32.mrb[0].mxu0
      %v11986 = vpop.f32.mrb[0].mxu0
      %v11987 = vadd.f32 0.0, %v11986
      %v11988 = vpop.f32.mrb[0].mxu0
      %11989 = vmatprep.mubr.bf16.mxu0 0
      %11990 = vmatmul.mubr.bf16.gmra.mrb[0].mxu0 %v11862
      %v11991 = vpop.f32.mrb[0].mxu0
      %v11992 = vadd.f32 0.0, %v11991
      %v11993 = vpop.f32.mrb[0].mxu0
      %v11994 = vpop.f32.mrb[0].mxu0
      %v11995 = vadd.f32 0.0, %v11994
      %v11996 = vpop.f32.mrb[0].mxu0
      %11997 = vmatprep.mubr.bf16.mxu0 0
      %11998 = vmatmul.mubr.bf16.gmra.mrb[0].mxu0 %v11865
      %v11999 = vpop.f32.mrb[0].mxu0
      %v12000 = vadd.f32 0.0, %v11999
      %v12001 = vpop.f32.mrb[0].mxu0
      %v12002 = vpop.f32.mrb[0].mxu0
      %v12003 = vadd.f32 0.0, %v12002
      %v12004 = vpop.f32.mrb[0].mxu0
      %12005 = vmatprep.mubr.bf16.mxu0 0
      %12006 = vmatmul.mubr.bf16.gmra.mrb[0].mxu0 %v11868
      %v12007 = vpop.f32.mrb[0].mxu0
      %v12008 = vadd.f32 0.0, %v12007
      %v12009 = vpop.f32.mrb[0].mxu0
      %v12010 = vpop.f32.mrb[0].mxu0
      %v12011 = vadd.f32 0.0, %v12010
      %v12012 = vpop.f32.mrb[0].mxu0
      %12013 = vmatprep.mubr.bf16.mxu0 0
      %12014 = vmatmul.mubr.bf16.gmra.mrb[0].mxu0 %v11871
      %v12015 = vpop.f32.mrb[0].mxu0
      %v12016 = vadd.f32 0.0, %v12015
      %v12017 = vpop.f32.mrb[0].mxu0
      %v12018 = vpop.f32.mrb[0].mxu0
      %v12019 = vadd.f32 0.0, %v12018
      %v12020 = vpop.f32.mrb[0].mxu0
      %12021 = vmatprep.mubr.bf16.mxu0 0
      %12022 = vmatmul.mubr.bf16.gmra.mrb[0].mxu0 %v11874
      %v12023 = vpop.f32.mrb[0].mxu0
      %v12024 = vadd.f32 0.0, %v12023
      %v12025 = vpop.f32.mrb[0].mxu0
      %v12026 = vpop.f32.mrb[0].mxu0
      %v12027 = vadd.f32 0.0, %v12026
      %v12028 = vpop.f32.mrb[0].mxu0
      %12029 = vmatprep.mubr.bf16.mxu0 0
      %12030 = vmatmul.mubr.bf16.gmra.mrb[0].mxu0 %v11877
      %v12031 = vpop.f32.mrb[0].mxu0
      %v12032 = vadd.f32 0.0, %v12031
      %v12033 = vpop.f32.mrb[0].mxu0
      %v12034 = vpop.f32.mrb[0].mxu0
      %v12035 = vadd.f32 0.0, %v12034
      %v12036 = vpop.f32.mrb[0].mxu0
      %12037 = vmatprep.mubr.bf16.mxu0 0
      %12038 = vmatmul.mubr.bf16.gmra.mrb[0].mxu0 %v11880
      %v12039 = vpop.f32.mrb[0].mxu0
      %v12040 = vadd.f32 0.0, %v12039
      %v12041 = vpop.f32.mrb[0].mxu0
      %v12042 = vpop.f32.mrb[0].mxu0
      %v12043 = vadd.f32 0.0, %v12042
      %v12044 = vpop.f32.mrb[0].mxu0
      %12045 = vdwg.mxu0
      %v12046 = vadd.f32 %v11576, %v11920
      %v12047 = vadd.f32 %v11577, %v11923
      %v12048 = vadd.f32 %v11578, %v11928
      %v12049 = vadd.f32 %v11579, %v11931
      %v12050 = vadd.f32 %v11580, %v11936
      %v12051 = vadd.f32 %v11581, %v11939
      %v12052 = vadd.f32 %v11582, %v11944
      %v12053 = vadd.f32 %v11583, %v11947
      %v12054 = vadd.f32 %v11584, %v11952
      %v12055 = vadd.f32 %v11585, %v11955
      %v12056 = vadd.f32 %v11586, %v11960
      %v12057 = vadd.f32 %v11587, %v11963
      %v12058 = vadd.f32 %v11588, %v11968
      %v12059 = vadd.f32 %v11589, %v11971
      %v12060 = vadd.f32 %v11590, %v11976
      %v12061 = vadd.f32 %v11591, %v11979
      %v12062 = vadd.f32 %v11592, %v11984
      %v12063 = vadd.f32 %v11593, %v11987
      %v12064 = vadd.f32 %v11594, %v11992
      %v12065 = vadd.f32 %v11595, %v11995
      %v12066 = vadd.f32 %v11596, %v12000
      %v12067 = vadd.f32 %v11597, %v12003
      %v12068 = vadd.f32 %v11598, %v12008
      %v12069 = vadd.f32 %v11599, %v12011
      %v12070 = vadd.f32 %v11600, %v12016
      %v12071 = vadd.f32 %v11601, %v12019
      %v12072 = vadd.f32 %v11602, %v12024
      %v12073 = vadd.f32 %v11603, %v12027
      %v12074 = vadd.f32 %v11604, %v12032
      %v12075 = vadd.f32 %v11605, %v12035
      %v12076 = vadd.f32 %v11606, %v12040
      %v12077 = vadd.f32 %v11607, %v12043
      %v12078 = vld [vmem:[%s11345] sm:$0xfe]
      %v12079 = vld [vmem:[%s11345 + $0x10] sm:$0xfe]
      %v12080 = vld [vmem:[%s11345 + $0x20] sm:$0xfe]
      %v12081 = vld [vmem:[%s11345 + $0x30] sm:$0xfe]
      %v12082 = vld [vmem:[%s11345 + $0x40] sm:$0xfe]
      %v12083 = vld [vmem:[%s11345 + $0x50] sm:$0xfe]
      %v12084 = vld [vmem:[%s11345 + $0x60] sm:$0xfe]
      %v12085 = vld [vmem:[%s11345 + $0x70] sm:$0xfe]
      %v12086 = vld [vmem:[%s11345 + $0x80] sm:$0xfe]
      %v12087 = vld [vmem:[%s11345 + $0x90] sm:$0xfe]
      %v12088 = vld [vmem:[%s11345 + $0xa0] sm:$0xfe]
      %v12089 = vld [vmem:[%s11345 + $0xb0] sm:$0xfe]
      %v12090 = vld [vmem:[%s11345 + $0xc0] sm:$0xfe]
      %v12091 = vld [vmem:[%s11345 + $0xd0] sm:$0xfe]
      %v12092 = vld [vmem:[%s11345 + $0xe0] sm:$0xfe]
      %v12093 = vld [vmem:[%s11345 + $0xf0] sm:$0xfe]
      %v12126 = vrot.slane %v12078, 1
      %v12127 = vrot.slane %v11609, 1
      %v12128 = vsel %vm11050, %v12126, %v12127
      %v12129 = vrot.slane %v12079, 1
      %v12130 = vrot.slane %v11611, 1
      %v12131 = vsel %vm11050, %v12129, %v12130
      %v12132 = vrot.slane %v12080, 1
      %v12133 = vrot.slane %v11613, 1
      %v12134 = vsel %vm11050, %v12132, %v12133
      %v12135 = vrot.slane %v12081, 1
      %v12136 = vrot.slane %v11615, 1
      %v12137 = vsel %vm11050, %v12135, %v12136
      %v12138 = vrot.slane %v12082, 1
      %v12139 = vrot.slane %v11617, 1
      %v12140 = vsel %vm11050, %v12138, %v12139
      %v12141 = vrot.slane %v12083, 1
      %v12142 = vrot.slane %v11619, 1
      %v12143 = vsel %vm11050, %v12141, %v12142
      %v12144 = vrot.slane %v12084, 1
      %v12145 = vrot.slane %v11621, 1
      %v12146 = vsel %vm11050, %v12144, %v12145
      %v12147 = vrot.slane %v12085, 1
      %v12148 = vrot.slane %v11623, 1
      %v12149 = vsel %vm11050, %v12147, %v12148
      %v12150 = vrot.slane %v12086, 1
      %v12151 = vrot.slane %v11625, 1
      %v12152 = vsel %vm11050, %v12150, %v12151
      %v12153 = vrot.slane %v12087, 1
      %v12154 = vrot.slane %v11627, 1
      %v12155 = vsel %vm11050, %v12153, %v12154
      %v12156 = vrot.slane %v12088, 1
      %v12157 = vrot.slane %v11629, 1
      %v12158 = vsel %vm11050, %v12156, %v12157
      %v12159 = vrot.slane %v12089, 1
      %v12160 = vrot.slane %v11631, 1
      %v12161 = vsel %vm11050, %v12159, %v12160
      %v12162 = vrot.slane %v12090, 1
      %v12163 = vrot.slane %v11633, 1
      %v12164 = vsel %vm11050, %v12162, %v12163
      %v12165 = vrot.slane %v12091, 1
      %v12166 = vrot.slane %v11635, 1
      %v12167 = vsel %vm11050, %v12165, %v12166
      %v12168 = vrot.slane %v12092, 1
      %v12169 = vrot.slane %v11637, 1
      %v12170 = vsel %vm11050, %v12168, %v12169
      %v12171 = vrot.slane %v12093, 1
      %v12172 = vrot.slane %v11639, 1
      %v12173 = vsel %vm11050, %v12171, %v12172
      %s12174 = scalar_lea.vmem %s3, 20
      %v12175 = vld [vmem:[%s12174] sm:$0xf]
      %v12177 = vsel %vm10328, %v12128, 0
      %v12180 = vsel %vm10328, %v12131, 0
      %v12183 = vsel %vm10328, %v12134, 0
      %v12186 = vsel %vm10328, %v12137, 0
      %v12189 = vsel %vm10328, %v12140, 0
      %v12192 = vsel %vm10328, %v12143, 0
      %v12195 = vsel %vm10328, %v12146, 0
      %v12198 = vsel %vm10328, %v12149, 0
      %v12201 = vsel %vm10328, %v12152, 0
      %v12204 = vsel %vm10328, %v12155, 0
      %v12207 = vsel %vm10328, %v12158, 0
      %v12210 = vsel %vm10328, %v12161, 0
      %v12213 = vsel %vm10328, %v12164, 0
      %v12216 = vsel %vm10328, %v12167, 0
      %v12219 = vsel %vm10328, %v12170, 0
      %v12222 = vsel %vm10328, %v12173, 0
      %v12225 = vsel %vm10641, %v12175, 0
      %12227 = vmatprep.subr.bf16.mxu0 0
      %12228 = vmatpush1.bf16.msra.mxu0 %v12225
      %12229 = vmatprep.subr.bf16.mxu0 0
      %12230 = vmatpush1.bf16.msra.mxu0 0
      %12231 = vmatprep.subr.bf16.mxu0 0
      %12232 = vmatpush1.bf16.msra.mxu0 0
      %12233 = vmatprep.subr.bf16.mxu0 0
      %12234 = vmatpush1.bf16.msra.mxu0 0
      %12235 = vmatprep.subr.bf16.mxu0 0
      %12236 = vmatpush1.bf16.msra.mxu0 0
      %12237 = vmatprep.subr.bf16.mxu0 0
      %12238 = vmatpush1.bf16.msra.mxu0 0
      %12239 = vmatprep.subr.bf16.mxu0 0
      %12240 = vmatpush1.bf16.msra.mxu0 0
      %12241 = vmatprep.subr.bf16.mxu0 0
      %12242 = vmatpush1.bf16.msra.mxu0 0
      %12243 = vmatprep.subr.bf16.mxu0 0
      %12244 = vmatpush1.bf16.msra.mxu0 0
      %12245 = vmatprep.subr.bf16.mxu0 0
      %12246 = vmatpush1.bf16.msra.mxu0 0
      %12247 = vmatprep.subr.bf16.mxu0 0
      %12248 = vmatpush1.bf16.msra.mxu0 0
      %12249 = vmatprep.subr.bf16.mxu0 0
      %12250 = vmatpush1.bf16.msra.mxu0 0
      %12251 = vmatprep.subr.bf16.mxu0 0
      %12252 = vmatpush1.bf16.msra.mxu0 0
      %12253 = vmatprep.subr.bf16.mxu0 0
      %12254 = vmatpush1.bf16.msra.mxu0 0
      %12255 = vmatprep.subr.bf16.mxu0 0
      %12256 = vmatpush1.bf16.msra.mxu0 0
      %12257 = vmatprep.subr.bf16.mxu0 0
      %12258 = vmatpush1.bf16.msra.mxu0 0
      %12259 = vmatprep.mubr.bf16.mxu0 0
      %12260 = vmatmul.mubr.bf16.gmra.mrb[0].mxu0 %v12177
      %v12261 = vpop.f32.mrb[0].mxu0
      %v12262 = vadd.f32 0.0, %v12261
      %v12263 = vpop.f32.mrb[0].mxu0
      %v12264 = vpop.f32.mrb[0].mxu0
      %v12265 = vadd.f32 0.0, %v12264
      %v12266 = vpop.f32.mrb[0].mxu0
      %12267 = vmatprep.mubr.bf16.mxu0 0
      %12268 = vmatmul.mubr.bf16.gmra.mrb[0].mxu0 %v12180
      %v12269 = vpop.f32.mrb[0].mxu0
      %v12270 = vadd.f32 0.0, %v12269
      %v12271 = vpop.f32.mrb[0].mxu0
      %v12272 = vpop.f32.mrb[0].mxu0
      %v12273 = vadd.f32 0.0, %v12272
      %v12274 = vpop.f32.mrb[0].mxu0
      %12275 = vmatprep.mubr.bf16.mxu0 0
      %12276 = vmatmul.mubr.bf16.gmra.mrb[0].mxu0 %v12183
      %v12277 = vpop.f32.mrb[0].mxu0
      %v12278 = vadd.f32 0.0, %v12277
      %v12279 = vpop.f32.mrb[0].mxu0
      %v12280 = vpop.f32.mrb[0].mxu0
      %v12281 = vadd.f32 0.0, %v12280
      %v12282 = vpop.f32.mrb[0].mxu0
      %12283 = vmatprep.mubr.bf16.mxu0 0
      %12284 = vmatmul.mubr.bf16.gmra.mrb[0].mxu0 %v12186
      %v12285 = vpop.f32.mrb[0].mxu0
      %v12286 = vadd.f32 0.0, %v12285
      %v12287 = vpop.f32.mrb[0].mxu0
      %v12288 = vpop.f32.mrb[0].mxu0
      %v12289 = vadd.f32 0.0, %v12288
      %v12290 = vpop.f32.mrb[0].mxu0
      %12291 = vmatprep.mubr.bf16.mxu0 0
      %12292 = vmatmul.mubr.bf16.gmra.mrb[0].mxu0 %v12189
      %v12293 = vpop.f32.mrb[0].mxu0
      %v12294 = vadd.f32 0.0, %v12293
      %v12295 = vpop.f32.mrb[0].mxu0
      %v12296 = vpop.f32.mrb[0].mxu0
      %v12297 = vadd.f32 0.0, %v12296
      %v12298 = vpop.f32.mrb[0].mxu0
      %12299 = vmatprep.mubr.bf16.mxu0 0
      %12300 = vmatmul.mubr.bf16.gmra.mrb[0].mxu0 %v12192
      %v12301 = vpop.f32.mrb[0].mxu0
      %v12302 = vadd.f32 0.0, %v12301
      %v12303 = vpop.f32.mrb[0].mxu0
      %v12304 = vpop.f32.mrb[0].mxu0
      %v12305 = vadd.f32 0.0, %v12304
      %v12306 = vpop.f32.mrb[0].mxu0
      %12307 = vmatprep.mubr.bf16.mxu0 0
      %12308 = vmatmul.mubr.bf16.gmra.mrb[0].mxu0 %v12195
      %v12309 = vpop.f32.mrb[0].mxu0
      %v12310 = vadd.f32 0.0, %v12309
      %v12311 = vpop.f32.mrb[0].mxu0
      %v12312 = vpop.f32.mrb[0].mxu0
      %v12313 = vadd.f32 0.0, %v12312
      %v12314 = vpop.f32.mrb[0].mxu0
      %12315 = vmatprep.mubr.bf16.mxu0 0
      %12316 = vmatmul.mubr.bf16.gmra.mrb[0].mxu0 %v12198
      %v12317 = vpop.f32.mrb[0].mxu0
      %v12318 = vadd.f32 0.0, %v12317
      %v12319 = vpop.f32.mrb[0].mxu0
      %v12320 = vpop.f32.mrb[0].mxu0
      %v12321 = vadd.f32 0.0, %v12320
      %v12322 = vpop.f32.mrb[0].mxu0
      %12323 = vmatprep.mubr.bf16.mxu0 0
      %12324 = vmatmul.mubr.bf16.gmra.mrb[0].mxu0 %v12201
      %v12325 = vpop.f32.mrb[0].mxu0
      %v12326 = vadd.f32 0.0, %v12325
      %v12327 = vpop.f32.mrb[0].mxu0
      %v12328 = vpop.f32.mrb[0].mxu0
      %v12329 = vadd.f32 0.0, %v12328
      %v12330 = vpop.f32.mrb[0].mxu0
      %12331 = vmatprep.mubr.bf16.mxu0 0
      %12332 = vmatmul.mubr.bf16.gmra.mrb[0].mxu0 %v12204
      %v12333 = vpop.f32.mrb[0].mxu0
      %v12334 = vadd.f32 0.0, %v12333
      %v12335 = vpop.f32.mrb[0].mxu0
      %v12336 = vpop.f32.mrb[0].mxu0
      %v12337 = vadd.f32 0.0, %v12336
      %v12338 = vpop.f32.mrb[0].mxu0
      %12339 = vmatprep.mubr.bf16.mxu0 0
      %12340 = vmatmul.mubr.bf16.gmra.mrb[0].mxu0 %v12207
      %v12341 = vpop.f32.mrb[0].mxu0
      %v12342 = vadd.f32 0.0, %v12341
      %v12343 = vpop.f32.mrb[0].mxu0
      %v12344 = vpop.f32.mrb[0].mxu0
      %v12345 = vadd.f32 0.0, %v12344
      %v12346 = vpop.f32.mrb[0].mxu0
      %12347 = vmatprep.mubr.bf16.mxu0 0
      %12348 = vmatmul.mubr.bf16.gmra.mrb[0].mxu0 %v12210
      %v12349 = vpop.f32.mrb[0].mxu0
      %v12350 = vadd.f32 0.0, %v12349
      %v12351 = vpop.f32.mrb[0].mxu0
      %v12352 = vpop.f32.mrb[0].mxu0
      %v12353 = vadd.f32 0.0, %v12352
      %v12354 = vpop.f32.mrb[0].mxu0
      %12355 = vmatprep.mubr.bf16.mxu0 0
      %12356 = vmatmul.mubr.bf16.gmra.mrb[0].mxu0 %v12213
      %v12357 = vpop.f32.mrb[0].mxu0
      %v12358 = vadd.f32 0.0, %v12357
      %v12359 = vpop.f32.mrb[0].mxu0
      %v12360 = vpop.f32.mrb[0].mxu0
      %v12361 = vadd.f32 0.0, %v12360
      %v12362 = vpop.f32.mrb[0].mxu0
      %12363 = vmatprep.mubr.bf16.mxu0 0
      %12364 = vmatmul.mubr.bf16.gmra.mrb[0].mxu0 %v12216
      %v12365 = vpop.f32.mrb[0].mxu0
      %v12366 = vadd.f32 0.0, %v12365
      %v12367 = vpop.f32.mrb[0].mxu0
      %v12368 = vpop.f32.mrb[0].mxu0
      %v12369 = vadd.f32 0.0, %v12368
      %v12370 = vpop.f32.mrb[0].mxu0
      %12371 = vmatprep.mubr.bf16.mxu0 0
      %12372 = vmatmul.mubr.bf16.gmra.mrb[0].mxu0 %v12219
      %v12373 = vpop.f32.mrb[0].mxu0
      %v12374 = vadd.f32 0.0, %v12373
      %v12375 = vpop.f32.mrb[0].mxu0
      %v12376 = vpop.f32.mrb[0].mxu0
      %v12377 = vadd.f32 0.0, %v12376
      %v12378 = vpop.f32.mrb[0].mxu0
      %12379 = vmatprep.mubr.bf16.mxu0 0
      %12380 = vmatmul.mubr.bf16.gmra.mrb[0].mxu0 %v12222
      %v12381 = vpop.f32.mrb[0].mxu0
      %v12382 = vadd.f32 0.0, %v12381
      %v12383 = vpop.f32.mrb[0].mxu0
      %v12384 = vpop.f32.mrb[0].mxu0
      %v12385 = vadd.f32 0.0, %v12384
      %v12386 = vpop.f32.mrb[0].mxu0
      %12387 = vdwg.mxu0
      %v12388 = vadd.f32 %v12046, %v12262
      %v12389 = vadd.f32 %v12047, %v12265
      %v12390 = vadd.f32 %v12048, %v12270
      %v12391 = vadd.f32 %v12049, %v12273
      %v12392 = vadd.f32 %v12050, %v12278
      %v12393 = vadd.f32 %v12051, %v12281
      %v12394 = vadd.f32 %v12052, %v12286
      %v12395 = vadd.f32 %v12053, %v12289
      %v12396 = vadd.f32 %v12054, %v12294
      %v12397 = vadd.f32 %v12055, %v12297
      %v12398 = vadd.f32 %v12056, %v12302
      %v12399 = vadd.f32 %v12057, %v12305
      %v12400 = vadd.f32 %v12058, %v12310
      %v12401 = vadd.f32 %v12059, %v12313
      %v12402 = vadd.f32 %v12060, %v12318
      %v12403 = vadd.f32 %v12061, %v12321
      %v12404 = vadd.f32 %v12062, %v12326
      %v12405 = vadd.f32 %v12063, %v12329
      %v12406 = vadd.f32 %v12064, %v12334
      %v12407 = vadd.f32 %v12065, %v12337
      %v12408 = vadd.f32 %v12066, %v12342
      %v12409 = vadd.f32 %v12067, %v12345
      %v12410 = vadd.f32 %v12068, %v12350
      %v12411 = vadd.f32 %v12069, %v12353
      %v12412 = vadd.f32 %v12070, %v12358
      %v12413 = vadd.f32 %v12071, %v12361
      %v12414 = vadd.f32 %v12072, %v12366
      %v12415 = vadd.f32 %v12073, %v12369
      %v12416 = vadd.f32 %v12074, %v12374
      %v12417 = vadd.f32 %v12075, %v12377
      %v12418 = vadd.f32 %v12076, %v12382
      %v12419 = vadd.f32 %v12077, %v12385
      %s12420 = scalar_lea.vmem [#allocation2], 32
      %v12421 = vld [vmem:[%s12420] sm:$0xff]
      %v12422 = vld [vmem:[%s12420 + $0x10] sm:$0xff]
      %v12423 = vld [vmem:[%s12420 + $0x20] sm:$0xff]
      %v12424 = vld [vmem:[%s12420 + $0x30] sm:$0xff]
      %v12425 = vld [vmem:[%s12420 + $0x40] sm:$0xff]
      %v12426 = vld [vmem:[%s12420 + $0x50] sm:$0xff]
      %v12427 = vld [vmem:[%s12420 + $0x60] sm:$0xff]
      %v12428 = vld [vmem:[%s12420 + $0x70] sm:$0xff]
      %v12429 = vld [vmem:[%s12420 + $0x80] sm:$0xff]
      %v12430 = vld [vmem:[%s12420 + $0x90] sm:$0xff]
      %v12431 = vld [vmem:[%s12420 + $0xa0] sm:$0xff]
      %v12432 = vld [vmem:[%s12420 + $0xb0] sm:$0xff]
      %v12433 = vld [vmem:[%s12420 + $0xc0] sm:$0xff]
      %v12434 = vld [vmem:[%s12420 + $0xd0] sm:$0xff]
      %v12435 = vld [vmem:[%s12420 + $0xe0] sm:$0xff]
      %v12436 = vld [vmem:[%s12420 + $0xf0] sm:$0xff]
      %s12437 = scalar_lea.vmem %s3, 24
      %v12438 = vld [vmem:[%s12437] sm:$0xf]
      %v12440 = vsel %vm10328, %v12421, 0
      %v12443 = vsel %vm10328, %v12422, 0
      %v12446 = vsel %vm10328, %v12423, 0
      %v12449 = vsel %vm10328, %v12424, 0
      %v12452 = vsel %vm10328, %v12425, 0
      %v12455 = vsel %vm10328, %v12426, 0
      %v12458 = vsel %vm10328, %v12427, 0
      %v12461 = vsel %vm10328, %v12428, 0
      %v12464 = vsel %vm10328, %v12429, 0
      %v12467 = vsel %vm10328, %v12430, 0
      %v12470 = vsel %vm10328, %v12431, 0
      %v12473 = vsel %vm10328, %v12432, 0
      %v12476 = vsel %vm10328, %v12433, 0
      %v12479 = vsel %vm10328, %v12434, 0
      %v12482 = vsel %vm10328, %v12435, 0
      %v12485 = vsel %vm10328, %v12436, 0
      %v12488 = vsel %vm10641, %v12438, 0
      %12490 = vmatprep.subr.bf16.mxu0 0
      %12491 = vmatpush1.bf16.msra.mxu0 %v12488
      %12492 = vmatprep.subr.bf16.mxu0 0
      %12493 = vmatpush1.bf16.msra.mxu0 0
      %12494 = vmatprep.subr.bf16.mxu0 0
      %12495 = vmatpush1.bf16.msra.mxu0 0
      %12496 = vmatprep.subr.bf16.mxu0 0
      %12497 = vmatpush1.bf16.msra.mxu0 0
      %12498 = vmatprep.subr.bf16.mxu0 0
      %12499 = vmatpush1.bf16.msra.mxu0 0
      %12500 = vmatprep.subr.bf16.mxu0 0
      %12501 = vmatpush1.bf16.msra.mxu0 0
      %12502 = vmatprep.subr.bf16.mxu0 0
      %12503 = vmatpush1.bf16.msra.mxu0 0
      %12504 = vmatprep.subr.bf16.mxu0 0
      %12505 = vmatpush1.bf16.msra.mxu0 0
      %12506 = vmatprep.subr.bf16.mxu0 0
      %12507 = vmatpush1.bf16.msra.mxu0 0
      %12508 = vmatprep.subr.bf16.mxu0 0
      %12509 = vmatpush1.bf16.msra.mxu0 0
      %12510 = vmatprep.subr.bf16.mxu0 0
      %12511 = vmatpush1.bf16.msra.mxu0 0
      %12512 = vmatprep.subr.bf16.mxu0 0
      %12513 = vmatpush1.bf16.msra.mxu0 0
      %12514 = vmatprep.subr.bf16.mxu0 0
      %12515 = vmatpush1.bf16.msra.mxu0 0
      %12516 = vmatprep.subr.bf16.mxu0 0
      %12517 = vmatpush1.bf16.msra.mxu0 0
      %12518 = vmatprep.subr.bf16.mxu0 0
      %12519 = vmatpush1.bf16.msra.mxu0 0
      %12520 = vmatprep.subr.bf16.mxu0 0
      %12521 = vmatpush1.bf16.msra.mxu0 0
      %12522 = vmatprep.mubr.bf16.mxu0 0
      %12523 = vmatmul.mubr.bf16.gmra.mrb[0].mxu0 %v12440
      %v12524 = vpop.f32.mrb[0].mxu0
      %v12525 = vadd.f32 0.0, %v12524
      %v12526 = vpop.f32.mrb[0].mxu0
      %v12527 = vpop.f32.mrb[0].mxu0
      %v12528 = vadd.f32 0.0, %v12527
      %v12529 = vpop.f32.mrb[0].mxu0
      %12530 = vmatprep.mubr.bf16.mxu0 0
      %12531 = vmatmul.mubr.bf16.gmra.mrb[0].mxu0 %v12443
      %v12532 = vpop.f32.mrb[0].mxu0
      %v12533 = vadd.f32 0.0, %v12532
      %v12534 = vpop.f32.mrb[0].mxu0
      %v12535 = vpop.f32.mrb[0].mxu0
      %v12536 = vadd.f32 0.0, %v12535
      %v12537 = vpop.f32.mrb[0].mxu0
      %12538 = vmatprep.mubr.bf16.mxu0 0
      %12539 = vmatmul.mubr.bf16.gmra.mrb[0].mxu0 %v12446
      %v12540 = vpop.f32.mrb[0].mxu0
      %v12541 = vadd.f32 0.0, %v12540
      %v12542 = vpop.f32.mrb[0].mxu0
      %v12543 = vpop.f32.mrb[0].mxu0
      %v12544 = vadd.f32 0.0, %v12543
      %v12545 = vpop.f32.mrb[0].mxu0
      %12546 = vmatprep.mubr.bf16.mxu0 0
      %12547 = vmatmul.mubr.bf16.gmra.mrb[0].mxu0 %v12449
      %v12548 = vpop.f32.mrb[0].mxu0
      %v12549 = vadd.f32 0.0, %v12548
      %v12550 = vpop.f32.mrb[0].mxu0
      %v12551 = vpop.f32.mrb[0].mxu0
      %v12552 = vadd.f32 0.0, %v12551
      %v12553 = vpop.f32.mrb[0].mxu0
      %12554 = vmatprep.mubr.bf16.mxu0 0
      %12555 = vmatmul.mubr.bf16.gmra.mrb[0].mxu0 %v12452
      %v12556 = vpop.f32.mrb[0].mxu0
      %v12557 = vadd.f32 0.0, %v12556
      %v12558 = vpop.f32.mrb[0].mxu0
      %v12559 = vpop.f32.mrb[0].mxu0
      %v12560 = vadd.f32 0.0, %v12559
      %v12561 = vpop.f32.mrb[0].mxu0
      %12562 = vmatprep.mubr.bf16.mxu0 0
      %12563 = vmatmul.mubr.bf16.gmra.mrb[0].mxu0 %v12455
      %v12564 = vpop.f32.mrb[0].mxu0
      %v12565 = vadd.f32 0.0, %v12564
      %v12566 = vpop.f32.mrb[0].mxu0
      %v12567 = vpop.f32.mrb[0].mxu0
      %v12568 = vadd.f32 0.0, %v12567
      %v12569 = vpop.f32.mrb[0].mxu0
      %12570 = vmatprep.mubr.bf16.mxu0 0
      %12571 = vmatmul.mubr.bf16.gmra.mrb[0].mxu0 %v12458
      %v12572 = vpop.f32.mrb[0].mxu0
      %v12573 = vadd.f32 0.0, %v12572
      %v12574 = vpop.f32.mrb[0].mxu0
      %v12575 = vpop.f32.mrb[0].mxu0
      %v12576 = vadd.f32 0.0, %v12575
      %v12577 = vpop.f32.mrb[0].mxu0
      %12578 = vmatprep.mubr.bf16.mxu0 0
      %12579 = vmatmul.mubr.bf16.gmra.mrb[0].mxu0 %v12461
      %v12580 = vpop.f32.mrb[0].mxu0
      %v12581 = vadd.f32 0.0, %v12580
      %v12582 = vpop.f32.mrb[0].mxu0
      %v12583 = vpop.f32.mrb[0].mxu0
      %v12584 = vadd.f32 0.0, %v12583
      %v12585 = vpop.f32.mrb[0].mxu0
      %12586 = vmatprep.mubr.bf16.mxu0 0
      %12587 = vmatmul.mubr.bf16.gmra.mrb[0].mxu0 %v12464
      %v12588 = vpop.f32.mrb[0].mxu0
      %v12589 = vadd.f32 0.0, %v12588
      %v12590 = vpop.f32.mrb[0].mxu0
      %v12591 = vpop.f32.mrb[0].mxu0
      %v12592 = vadd.f32 0.0, %v12591
      %v12593 = vpop.f32.mrb[0].mxu0
      %12594 = vmatprep.mubr.bf16.mxu0 0
      %12595 = vmatmul.mubr.bf16.gmra.mrb[0].mxu0 %v12467
      %v12596 = vpop.f32.mrb[0].mxu0
      %v12597 = vadd.f32 0.0, %v12596
      %v12598 = vpop.f32.mrb[0].mxu0
      %v12599 = vpop.f32.mrb[0].mxu0
      %v12600 = vadd.f32 0.0, %v12599
      %v12601 = vpop.f32.mrb[0].mxu0
      %12602 = vmatprep.mubr.bf16.mxu0 0
      %12603 = vmatmul.mubr.bf16.gmra.mrb[0].mxu0 %v12470
      %v12604 = vpop.f32.mrb[0].mxu0
      %v12605 = vadd.f32 0.0, %v12604
      %v12606 = vpop.f32.mrb[0].mxu0
      %v12607 = vpop.f32.mrb[0].mxu0
      %v12608 = vadd.f32 0.0, %v12607
      %v12609 = vpop.f32.mrb[0].mxu0
      %12610 = vmatprep.mubr.bf16.mxu0 0
      %12611 = vmatmul.mubr.bf16.gmra.mrb[0].mxu0 %v12473
      %v12612 = vpop.f32.mrb[0].mxu0
      %v12613 = vadd.f32 0.0, %v12612
      %v12614 = vpop.f32.mrb[0].mxu0
      %v12615 = vpop.f32.mrb[0].mxu0
      %v12616 = vadd.f32 0.0, %v12615
      %v12617 = vpop.f32.mrb[0].mxu0
      %12618 = vmatprep.mubr.bf16.mxu0 0
      %12619 = vmatmul.mubr.bf16.gmra.mrb[0].mxu0 %v12476
      %v12620 = vpop.f32.mrb[0].mxu0
      %v12621 = vadd.f32 0.0, %v12620
      %v12622 = vpop.f32.mrb[0].mxu0
      %v12623 = vpop.f32.mrb[0].mxu0
      %v12624 = vadd.f32 0.0, %v12623
      %v12625 = vpop.f32.mrb[0].mxu0
      %12626 = vmatprep.mubr.bf16.mxu0 0
      %12627 = vmatmul.mubr.bf16.gmra.mrb[0].mxu0 %v12479
      %v12628 = vpop.f32.mrb[0].mxu0
      %v12629 = vadd.f32 0.0, %v12628
      %v12630 = vpop.f32.mrb[0].mxu0
      %v12631 = vpop.f32.mrb[0].mxu0
      %v12632 = vadd.f32 0.0, %v12631
      %v12633 = vpop.f32.mrb[0].mxu0
      %12634 = vmatprep.mubr.bf16.mxu0 0
      %12635 = vmatmul.mubr.bf16.gmra.mrb[0].mxu0 %v12482
      %v12636 = vpop.f32.mrb[0].mxu0
      %v12637 = vadd.f32 0.0, %v12636
      %v12638 = vpop.f32.mrb[0].mxu0
      %v12639 = vpop.f32.mrb[0].mxu0
      %v12640 = vadd.f32 0.0, %v12639
      %v12641 = vpop.f32.mrb[0].mxu0
      %12642 = vmatprep.mubr.bf16.mxu0 0
      %12643 = vmatmul.mubr.bf16.gmra.mrb[0].mxu0 %v12485
      %v12644 = vpop.f32.mrb[0].mxu0
      %v12645 = vadd.f32 0.0, %v12644
      %v12646 = vpop.f32.mrb[0].mxu0
      %v12647 = vpop.f32.mrb[0].mxu0
      %v12648 = vadd.f32 0.0, %v12647
      %v12649 = vpop.f32.mrb[0].mxu0
      %12650 = vdwg.mxu0
      %v12651 = vadd.f32 %v12388, %v12525
      %v12652 = vadd.f32 %v12389, %v12528
      %v12653 = vadd.f32 %v12390, %v12533
      %v12654 = vadd.f32 %v12391, %v12536
      %v12655 = vadd.f32 %v12392, %v12541
      %v12656 = vadd.f32 %v12393, %v12544
      %v12657 = vadd.f32 %v12394, %v12549
      %v12658 = vadd.f32 %v12395, %v12552
      %v12659 = vadd.f32 %v12396, %v12557
      %v12660 = vadd.f32 %v12397, %v12560
      %v12661 = vadd.f32 %v12398, %v12565
      %v12662 = vadd.f32 %v12399, %v12568
      %v12663 = vadd.f32 %v12400, %v12573
      %v12664 = vadd.f32 %v12401, %v12576
      %v12665 = vadd.f32 %v12402, %v12581
      %v12666 = vadd.f32 %v12403, %v12584
      %v12667 = vadd.f32 %v12404, %v12589
      %v12668 = vadd.f32 %v12405, %v12592
      %v12669 = vadd.f32 %v12406, %v12597
      %v12670 = vadd.f32 %v12407, %v12600
      %v12671 = vadd.f32 %v12408, %v12605
      %v12672 = vadd.f32 %v12409, %v12608
      %v12673 = vadd.f32 %v12410, %v12613
      %v12674 = vadd.f32 %v12411, %v12616
      %v12675 = vadd.f32 %v12412, %v12621
      %v12676 = vadd.f32 %v12413, %v12624
      %v12677 = vadd.f32 %v12414, %v12629
      %v12678 = vadd.f32 %v12415, %v12632
      %v12679 = vadd.f32 %v12416, %v12637
      %v12680 = vadd.f32 %v12417, %v12640
      %v12681 = vadd.f32 %v12418, %v12645
      %v12682 = vadd.f32 %v12419, %v12648
      %v12683 = vld [vmem:[%s12420] sm:$0xff]
      %v12684 = vld [vmem:[%s12420 + $0x8] sm:$0x1]
      %v12685 = vld [vmem:[%s12420 + $0x10] sm:$0xff]
      %v12686 = vld [vmem:[%s12420 + $0x18] sm:$0x1]
      %v12687 = vld [vmem:[%s12420 + $0x20] sm:$0xff]
      %v12688 = vld [vmem:[%s12420 + $0x28] sm:$0x1]
      %v12689 = vld [vmem:[%s12420 + $0x30] sm:$0xff]
      %v12690 = vld [vmem:[%s12420 + $0x38] sm:$0x1]
      %v12691 = vld [vmem:[%s12420 + $0x40] sm:$0xff]
      %v12692 = vld [vmem:[%s12420 + $0x48] sm:$0x1]
      %v12693 = vld [vmem:[%s12420 + $0x50] sm:$0xff]
      %v12694 = vld [vmem:[%s12420 + $0x58] sm:$0x1]
      %v12695 = vld [vmem:[%s12420 + $0x60] sm:$0xff]
      %v12696 = vld [vmem:[%s12420 + $0x68] sm:$0x1]
      %v12697 = vld [vmem:[%s12420 + $0x70] sm:$0xff]
      %v12698 = vld [vmem:[%s12420 + $0x78] sm:$0x1]
      %v12699 = vld [vmem:[%s12420 + $0x80] sm:$0xff]
      %v12700 = vld [vmem:[%s12420 + $0x88] sm:$0x1]
      %v12701 = vld [vmem:[%s12420 + $0x90] sm:$0xff]
      %v12702 = vld [vmem:[%s12420 + $0x98] sm:$0x1]
      %v12703 = vld [vmem:[%s12420 + $0xa0] sm:$0xff]
      %v12704 = vld [vmem:[%s12420 + $0xa8] sm:$0x1]
      %v12705 = vld [vmem:[%s12420 + $0xb0] sm:$0xff]
      %v12706 = vld [vmem:[%s12420 + $0xb8] sm:$0x1]
      %v12707 = vld [vmem:[%s12420 + $0xc0] sm:$0xff]
      %v12708 = vld [vmem:[%s12420 + $0xc8] sm:$0x1]
      %v12709 = vld [vmem:[%s12420 + $0xd0] sm:$0xff]
      %v12710 = vld [vmem:[%s12420 + $0xd8] sm:$0x1]
      %v12711 = vld [vmem:[%s12420 + $0xe0] sm:$0xff]
      %v12712 = vld [vmem:[%s12420 + $0xe8] sm:$0x1]
      %v12713 = vld [vmem:[%s12420 + $0xf0] sm:$0xff]
      %v12714 = vld [vmem:[%s12420 + $0xf8] sm:$0x1]
      %v12716 = vshrl.u32 %v12683, 16
      %v12718 = vshll.u32 %v12683, 16
      %v12720 = vrot.slane %v12718, 1
      %v12721 = vor.u32 %v12716, %v12720
      %v12723 = vshll.u32 %v12684, 16
      %v12725 = vrot.slane %v12723, 1
      %v12726 = vsel %vm10398, %v12721, %v12725
      %v12728 = vshrl.u32 %v12685, 16
      %v12730 = vshll.u32 %v12685, 16
      %v12732 = vrot.slane %v12730, 1
      %v12733 = vor.u32 %v12728, %v12732
      %v12735 = vshll.u32 %v12686, 16
      %v12737 = vrot.slane %v12735, 1
      %v12738 = vsel %vm10398, %v12733, %v12737
      %v12740 = vshrl.u32 %v12687, 16
      %v12742 = vshll.u32 %v12687, 16
      %v12744 = vrot.slane %v12742, 1
      %v12745 = vor.u32 %v12740, %v12744
      %v12747 = vshll.u32 %v12688, 16
      %v12749 = vrot.slane %v12747, 1
      %v12750 = vsel %vm10398, %v12745, %v12749
      %v12752 = vshrl.u32 %v12689, 16
      %v12754 = vshll.u32 %v12689, 16
      %v12756 = vrot.slane %v12754, 1
      %v12757 = vor.u32 %v12752, %v12756
      %v12759 = vshll.u32 %v12690, 16
      %v12761 = vrot.slane %v12759, 1
      %v12762 = vsel %vm10398, %v12757, %v12761
      %v12764 = vshrl.u32 %v12691, 16
      %v12766 = vshll.u32 %v12691, 16
      %v12768 = vrot.slane %v12766, 1
      %v12769 = vor.u32 %v12764, %v12768
      %v12771 = vshll.u32 %v12692, 16
      %v12773 = vrot.slane %v12771, 1
      %v12774 = vsel %vm10398, %v12769, %v12773
      %v12776 = vshrl.u32 %v12693, 16
      %v12778 = vshll.u32 %v12693, 16
      %v12780 = vrot.slane %v12778, 1
      %v12781 = vor.u32 %v12776, %v12780
      %v12783 = vshll.u32 %v12694, 16
      %v12785 = vrot.slane %v12783, 1
      %v12786 = vsel %vm10398, %v12781, %v12785
      %v12788 = vshrl.u32 %v12695, 16
      %v12790 = vshll.u32 %v12695, 16
      %v12792 = vrot.slane %v12790, 1
      %v12793 = vor.u32 %v12788, %v12792
      %v12795 = vshll.u32 %v12696, 16
      %v12797 = vrot.slane %v12795, 1
      %v12798 = vsel %vm10398, %v12793, %v12797
      %v12800 = vshrl.u32 %v12697, 16
      %v12802 = vshll.u32 %v12697, 16
      %v12804 = vrot.slane %v12802, 1
      %v12805 = vor.u32 %v12800, %v12804
      %v12807 = vshll.u32 %v12698, 16
      %v12809 = vrot.slane %v12807, 1
      %v12810 = vsel %vm10398, %v12805, %v12809
      %v12812 = vshrl.u32 %v12699, 16
      %v12814 = vshll.u32 %v12699, 16
      %v12816 = vrot.slane %v12814, 1
      %v12817 = vor.u32 %v12812, %v12816
      %v12819 = vshll.u32 %v12700, 16
      %v12821 = vrot.slane %v12819, 1
      %v12822 = vsel %vm10398, %v12817, %v12821
      %v12824 = vshrl.u32 %v12701, 16
      %v12826 = vshll.u32 %v12701, 16
      %v12828 = vrot.slane %v12826, 1
      %v12829 = vor.u32 %v12824, %v12828
      %v12831 = vshll.u32 %v12702, 16
      %v12833 = vrot.slane %v12831, 1
      %v12834 = vsel %vm10398, %v12829, %v12833
      %v12836 = vshrl.u32 %v12703, 16
      %v12838 = vshll.u32 %v12703, 16
      %v12840 = vrot.slane %v12838, 1
      %v12841 = vor.u32 %v12836, %v12840
      %v12843 = vshll.u32 %v12704, 16
      %v12845 = vrot.slane %v12843, 1
      %v12846 = vsel %vm10398, %v12841, %v12845
      %v12848 = vshrl.u32 %v12705, 16
      %v12850 = vshll.u32 %v12705, 16
      %v12852 = vrot.slane %v12850, 1
      %v12853 = vor.u32 %v12848, %v12852
      %v12855 = vshll.u32 %v12706, 16
      %v12857 = vrot.slane %v12855, 1
      %v12858 = vsel %vm10398, %v12853, %v12857
      %v12860 = vshrl.u32 %v12707, 16
      %v12862 = vshll.u32 %v12707, 16
      %v12864 = vrot.slane %v12862, 1
      %v12865 = vor.u32 %v12860, %v12864
      %v12867 = vshll.u32 %v12708, 16
      %v12869 = vrot.slane %v12867, 1
      %v12870 = vsel %vm10398, %v12865, %v12869
      %v12872 = vshrl.u32 %v12709, 16
      %v12874 = vshll.u32 %v12709, 16
      %v12876 = vrot.slane %v12874, 1
      %v12877 = vor.u32 %v12872, %v12876
      %v12879 = vshll.u32 %v12710, 16
      %v12881 = vrot.slane %v12879, 1
      %v12882 = vsel %vm10398, %v12877, %v12881
      %v12884 = vshrl.u32 %v12711, 16
      %v12886 = vshll.u32 %v12711, 16
      %v12888 = vrot.slane %v12886, 1
      %v12889 = vor.u32 %v12884, %v12888
      %v12891 = vshll.u32 %v12712, 16
      %v12893 = vrot.slane %v12891, 1
      %v12894 = vsel %vm10398, %v12889, %v12893
      %v12896 = vshrl.u32 %v12713, 16
      %v12898 = vshll.u32 %v12713, 16
      %v12900 = vrot.slane %v12898, 1
      %v12901 = vor.u32 %v12896, %v12900
      %v12903 = vshll.u32 %v12714, 16
      %v12905 = vrot.slane %v12903, 1
      %v12906 = vsel %vm10398, %v12901, %v12905
      %s12907 = scalar_lea.vmem %s3, 28
      %v12908 = vld [vmem:[%s12907] sm:$0xf]
      %v12910 = vsel %vm10328, %v12726, 0
      %v12913 = vsel %vm10328, %v12738, 0
      %v12916 = vsel %vm10328, %v12750, 0
      %v12919 = vsel %vm10328, %v12762, 0
      %v12922 = vsel %vm10328, %v12774, 0
      %v12925 = vsel %vm10328, %v12786, 0
      %v12928 = vsel %vm10328, %v12798, 0
      %v12931 = vsel %vm10328, %v12810, 0
      %v12934 = vsel %vm10328, %v12822, 0
      %v12937 = vsel %vm10328, %v12834, 0
      %v12940 = vsel %vm10328, %v12846, 0
      %v12943 = vsel %vm10328, %v12858, 0
      %v12946 = vsel %vm10328, %v12870, 0
      %v12949 = vsel %vm10328, %v12882, 0
      %v12952 = vsel %vm10328, %v12894, 0
      %v12955 = vsel %vm10328, %v12906, 0
      %v12958 = vsel %vm10641, %v12908, 0
      %12960 = vmatprep.subr.bf16.mxu0 0
      %12961 = vmatpush1.bf16.msra.mxu0 %v12958
      %12962 = vmatprep.subr.bf16.mxu0 0
      %12963 = vmatpush1.bf16.msra.mxu0 0
      %12964 = vmatprep.subr.bf16.mxu0 0
      %12965 = vmatpush1.bf16.msra.mxu0 0
      %12966 = vmatprep.subr.bf16.mxu0 0
      %12967 = vmatpush1.bf16.msra.mxu0 0
      %12968 = vmatprep.subr.bf16.mxu0 0
      %12969 = vmatpush1.bf16.msra.mxu0 0
      %12970 = vmatprep.subr.bf16.mxu0 0
      %12971 = vmatpush1.bf16.msra.mxu0 0
      %12972 = vmatprep.subr.bf16.mxu0 0
      %12973 = vmatpush1.bf16.msra.mxu0 0
      %12974 = vmatprep.subr.bf16.mxu0 0
      %12975 = vmatpush1.bf16.msra.mxu0 0
      %12976 = vmatprep.subr.bf16.mxu0 0
      %12977 = vmatpush1.bf16.msra.mxu0 0
      %12978 = vmatprep.subr.bf16.mxu0 0
      %12979 = vmatpush1.bf16.msra.mxu0 0
      %12980 = vmatprep.subr.bf16.mxu0 0
      %12981 = vmatpush1.bf16.msra.mxu0 0
      %12982 = vmatprep.subr.bf16.mxu0 0
      %12983 = vmatpush1.bf16.msra.mxu0 0
      %12984 = vmatprep.subr.bf16.mxu0 0
      %12985 = vmatpush1.bf16.msra.mxu0 0
      %12986 = vmatprep.subr.bf16.mxu0 0
      %12987 = vmatpush1.bf16.msra.mxu0 0
      %12988 = vmatprep.subr.bf16.mxu0 0
      %12989 = vmatpush1.bf16.msra.mxu0 0
      %12990 = vmatprep.subr.bf16.mxu0 0
      %12991 = vmatpush1.bf16.msra.mxu0 0
      %12992 = vmatprep.mubr.bf16.mxu0 0
      %12993 = vmatmul.mubr.bf16.gmra.mrb[0].mxu0 %v12910
      %v12994 = vpop.f32.mrb[0].mxu0
      %v12995 = vadd.f32 0.0, %v12994
      %v12996 = vpop.f32.mrb[0].mxu0
      %v12997 = vpop.f32.mrb[0].mxu0
      %v12998 = vadd.f32 0.0, %v12997
      %v12999 = vpop.f32.mrb[0].mxu0
      %13000 = vmatprep.mubr.bf16.mxu0 0
      %13001 = vmatmul.mubr.bf16.gmra.mrb[0].mxu0 %v12913
      %v13002 = vpop.f32.mrb[0].mxu0
      %v13003 = vadd.f32 0.0, %v13002
      %v13004 = vpop.f32.mrb[0].mxu0
      %v13005 = vpop.f32.mrb[0].mxu0
      %v13006 = vadd.f32 0.0, %v13005
      %v13007 = vpop.f32.mrb[0].mxu0
      %13008 = vmatprep.mubr.bf16.mxu0 0
      %13009 = vmatmul.mubr.bf16.gmra.mrb[0].mxu0 %v12916
      %v13010 = vpop.f32.mrb[0].mxu0
      %v13011 = vadd.f32 0.0, %v13010
      %v13012 = vpop.f32.mrb[0].mxu0
      %v13013 = vpop.f32.mrb[0].mxu0
      %v13014 = vadd.f32 0.0, %v13013
      %v13015 = vpop.f32.mrb[0].mxu0
      %13016 = vmatprep.mubr.bf16.mxu0 0
      %13017 = vmatmul.mubr.bf16.gmra.mrb[0].mxu0 %v12919
      %v13018 = vpop.f32.mrb[0].mxu0
      %v13019 = vadd.f32 0.0, %v13018
      %v13020 = vpop.f32.mrb[0].mxu0
      %v13021 = vpop.f32.mrb[0].mxu0
      %v13022 = vadd.f32 0.0, %v13021
      %v13023 = vpop.f32.mrb[0].mxu0
      %13024 = vmatprep.mubr.bf16.mxu0 0
      %13025 = vmatmul.mubr.bf16.gmra.mrb[0].mxu0 %v12922
      %v13026 = vpop.f32.mrb[0].mxu0
      %v13027 = vadd.f32 0.0, %v13026
      %v13028 = vpop.f32.mrb[0].mxu0
      %v13029 = vpop.f32.mrb[0].mxu0
      %v13030 = vadd.f32 0.0, %v13029
      %v13031 = vpop.f32.mrb[0].mxu0
      %13032 = vmatprep.mubr.bf16.mxu0 0
      %13033 = vmatmul.mubr.bf16.gmra.mrb[0].mxu0 %v12925
      %v13034 = vpop.f32.mrb[0].mxu0
      %v13035 = vadd.f32 0.0, %v13034
      %v13036 = vpop.f32.mrb[0].mxu0
      %v13037 = vpop.f32.mrb[0].mxu0
      %v13038 = vadd.f32 0.0, %v13037
      %v13039 = vpop.f32.mrb[0].mxu0
      %13040 = vmatprep.mubr.bf16.mxu0 0
      %13041 = vmatmul.mubr.bf16.gmra.mrb[0].mxu0 %v12928
      %v13042 = vpop.f32.mrb[0].mxu0
      %v13043 = vadd.f32 0.0, %v13042
      %v13044 = vpop.f32.mrb[0].mxu0
      %v13045 = vpop.f32.mrb[0].mxu0
      %v13046 = vadd.f32 0.0, %v13045
      %v13047 = vpop.f32.mrb[0].mxu0
      %13048 = vmatprep.mubr.bf16.mxu0 0
      %13049 = vmatmul.mubr.bf16.gmra.mrb[0].mxu0 %v12931
      %v13050 = vpop.f32.mrb[0].mxu0
      %v13051 = vadd.f32 0.0, %v13050
      %v13052 = vpop.f32.mrb[0].mxu0
      %v13053 = vpop.f32.mrb[0].mxu0
      %v13054 = vadd.f32 0.0, %v13053
      %v13055 = vpop.f32.mrb[0].mxu0
      %13056 = vmatprep.mubr.bf16.mxu0 0
      %13057 = vmatmul.mubr.bf16.gmra.mrb[0].mxu0 %v12934
      %v13058 = vpop.f32.mrb[0].mxu0
      %v13059 = vadd.f32 0.0, %v13058
      %v13060 = vpop.f32.mrb[0].mxu0
      %v13061 = vpop.f32.mrb[0].mxu0
      %v13062 = vadd.f32 0.0, %v13061
      %v13063 = vpop.f32.mrb[0].mxu0
      %13064 = vmatprep.mubr.bf16.mxu0 0
      %13065 = vmatmul.mubr.bf16.gmra.mrb[0].mxu0 %v12937
      %v13066 = vpop.f32.mrb[0].mxu0
      %v13067 = vadd.f32 0.0, %v13066
      %v13068 = vpop.f32.mrb[0].mxu0
      %v13069 = vpop.f32.mrb[0].mxu0
      %v13070 = vadd.f32 0.0, %v13069
      %v13071 = vpop.f32.mrb[0].mxu0
      %13072 = vmatprep.mubr.bf16.mxu0 0
      %13073 = vmatmul.mubr.bf16.gmra.mrb[0].mxu0 %v12940
      %v13074 = vpop.f32.mrb[0].mxu0
      %v13075 = vadd.f32 0.0, %v13074
      %v13076 = vpop.f32.mrb[0].mxu0
      %v13077 = vpop.f32.mrb[0].mxu0
      %v13078 = vadd.f32 0.0, %v13077
      %v13079 = vpop.f32.mrb[0].mxu0
      %13080 = vmatprep.mubr.bf16.mxu0 0
      %13081 = vmatmul.mubr.bf16.gmra.mrb[0].mxu0 %v12943
      %v13082 = vpop.f32.mrb[0].mxu0
      %v13083 = vadd.f32 0.0, %v13082
      %v13084 = vpop.f32.mrb[0].mxu0
      %v13085 = vpop.f32.mrb[0].mxu0
      %v13086 = vadd.f32 0.0, %v13085
      %v13087 = vpop.f32.mrb[0].mxu0
      %13088 = vmatprep.mubr.bf16.mxu0 0
      %13089 = vmatmul.mubr.bf16.gmra.mrb[0].mxu0 %v12946
      %v13090 = vpop.f32.mrb[0].mxu0
      %v13091 = vadd.f32 0.0, %v13090
      %v13092 = vpop.f32.mrb[0].mxu0
      %v13093 = vpop.f32.mrb[0].mxu0
      %v13094 = vadd.f32 0.0, %v13093
      %v13095 = vpop.f32.mrb[0].mxu0
      %13096 = vmatprep.mubr.bf16.mxu0 0
      %13097 = vmatmul.mubr.bf16.gmra.mrb[0].mxu0 %v12949
      %v13098 = vpop.f32.mrb[0].mxu0
      %v13099 = vadd.f32 0.0, %v13098
      %v13100 = vpop.f32.mrb[0].mxu0
      %v13101 = vpop.f32.mrb[0].mxu0
      %v13102 = vadd.f32 0.0, %v13101
      %v13103 = vpop.f32.mrb[0].mxu0
      %13104 = vmatprep.mubr.bf16.mxu0 0
      %13105 = vmatmul.mubr.bf16.gmra.mrb[0].mxu0 %v12952
      %v13106 = vpop.f32.mrb[0].mxu0
      %v13107 = vadd.f32 0.0, %v13106
      %v13108 = vpop.f32.mrb[0].mxu0
      %v13109 = vpop.f32.mrb[0].mxu0
      %v13110 = vadd.f32 0.0, %v13109
      %v13111 = vpop.f32.mrb[0].mxu0
      %13112 = vmatprep.mubr.bf16.mxu0 0
      %13113 = vmatmul.mubr.bf16.gmra.mrb[0].mxu0 %v12955
      %v13114 = vpop.f32.mrb[0].mxu0
      %v13115 = vadd.f32 0.0, %v13114
      %v13116 = vpop.f32.mrb[0].mxu0
      %v13117 = vpop.f32.mrb[0].mxu0
      %v13118 = vadd.f32 0.0, %v13117
      %v13119 = vpop.f32.mrb[0].mxu0
      %13120 = vdwg.mxu0
      %v13121 = vadd.f32 %v12651, %v12995
      %v13122 = vadd.f32 %v12652, %v12998
      %v13123 = vadd.f32 %v12653, %v13003
      %v13124 = vadd.f32 %v12654, %v13006
      %v13125 = vadd.f32 %v12655, %v13011
      %v13126 = vadd.f32 %v12656, %v13014
      %v13127 = vadd.f32 %v12657, %v13019
      %v13128 = vadd.f32 %v12658, %v13022
      %v13129 = vadd.f32 %v12659, %v13027
      %v13130 = vadd.f32 %v12660, %v13030
      %v13131 = vadd.f32 %v12661, %v13035
      %v13132 = vadd.f32 %v12662, %v13038
      %v13133 = vadd.f32 %v12663, %v13043
      %v13134 = vadd.f32 %v12664, %v13046
      %v13135 = vadd.f32 %v12665, %v13051
      %v13136 = vadd.f32 %v12666, %v13054
      %v13137 = vadd.f32 %v12667, %v13059
      %v13138 = vadd.f32 %v12668, %v13062
      %v13139 = vadd.f32 %v12669, %v13067
      %v13140 = vadd.f32 %v12670, %v13070
      %v13141 = vadd.f32 %v12671, %v13075
      %v13142 = vadd.f32 %v12672, %v13078
      %v13143 = vadd.f32 %v12673, %v13083
      %v13144 = vadd.f32 %v12674, %v13086
      %v13145 = vadd.f32 %v12675, %v13091
      %v13146 = vadd.f32 %v12676, %v13094
      %v13147 = vadd.f32 %v12677, %v13099
      %v13148 = vadd.f32 %v12678, %v13102
      %v13149 = vadd.f32 %v12679, %v13107
      %v13150 = vadd.f32 %v12680, %v13110
      %v13151 = vadd.f32 %v12681, %v13115
      %v13152 = vadd.f32 %v12682, %v13118
      %v13153 = vld [vmem:[%s12420] sm:$0xfe]
      %v13154 = vld [vmem:[%s12420 + $0x10] sm:$0xfe]
      %v13155 = vld [vmem:[%s12420 + $0x20] sm:$0xfe]
      %v13156 = vld [vmem:[%s12420 + $0x30] sm:$0xfe]
      %v13157 = vld [vmem:[%s12420 + $0x40] sm:$0xfe]
      %v13158 = vld [vmem:[%s12420 + $0x50] sm:$0xfe]
      %v13159 = vld [vmem:[%s12420 + $0x60] sm:$0xfe]
      %v13160 = vld [vmem:[%s12420 + $0x70] sm:$0xfe]
      %v13161 = vld [vmem:[%s12420 + $0x80] sm:$0xfe]
      %v13162 = vld [vmem:[%s12420 + $0x90] sm:$0xfe]
      %v13163 = vld [vmem:[%s12420 + $0xa0] sm:$0xfe]
      %v13164 = vld [vmem:[%s12420 + $0xb0] sm:$0xfe]
      %v13165 = vld [vmem:[%s12420 + $0xc0] sm:$0xfe]
      %v13166 = vld [vmem:[%s12420 + $0xd0] sm:$0xfe]
      %v13167 = vld [vmem:[%s12420 + $0xe0] sm:$0xfe]
      %v13168 = vld [vmem:[%s12420 + $0xf0] sm:$0xfe]
      %v13201 = vrot.slane %v13153, 1
      %v13202 = vrot.slane %v12684, 1
      %v13203 = vsel %vm11050, %v13201, %v13202
      %v13204 = vrot.slane %v13154, 1
      %v13205 = vrot.slane %v12686, 1
      %v13206 = vsel %vm11050, %v13204, %v13205
      %v13207 = vrot.slane %v13155, 1
      %v13208 = vrot.slane %v12688, 1
      %v13209 = vsel %vm11050, %v13207, %v13208
      %v13210 = vrot.slane %v13156, 1
      %v13211 = vrot.slane %v12690, 1
      %v13212 = vsel %vm11050, %v13210, %v13211
      %v13213 = vrot.slane %v13157, 1
      %v13214 = vrot.slane %v12692, 1
      %v13215 = vsel %vm11050, %v13213, %v13214
      %v13216 = vrot.slane %v13158, 1
      %v13217 = vrot.slane %v12694, 1
      %v13218 = vsel %vm11050, %v13216, %v13217
      %v13219 = vrot.slane %v13159, 1
      %v13220 = vrot.slane %v12696, 1
      %v13221 = vsel %vm11050, %v13219, %v13220
      %v13222 = vrot.slane %v13160, 1
      %v13223 = vrot.slane %v12698, 1
      %v13224 = vsel %vm11050, %v13222, %v13223
      %v13225 = vrot.slane %v13161, 1
      %v13226 = vrot.slane %v12700, 1
      %v13227 = vsel %vm11050, %v13225, %v13226
      %v13228 = vrot.slane %v13162, 1
      %v13229 = vrot.slane %v12702, 1
      %v13230 = vsel %vm11050, %v13228, %v13229
      %v13231 = vrot.slane %v13163, 1
      %v13232 = vrot.slane %v12704, 1
      %v13233 = vsel %vm11050, %v13231, %v13232
      %v13234 = vrot.slane %v13164, 1
      %v13235 = vrot.slane %v12706, 1
      %v13236 = vsel %vm11050, %v13234, %v13235
      %v13237 = vrot.slane %v13165, 1
      %v13238 = vrot.slane %v12708, 1
      %v13239 = vsel %vm11050, %v13237, %v13238
      %v13240 = vrot.slane %v13166, 1
      %v13241 = vrot.slane %v12710, 1
      %v13242 = vsel %vm11050, %v13240, %v13241
      %v13243 = vrot.slane %v13167, 1
      %v13244 = vrot.slane %v12712, 1
      %v13245 = vsel %vm11050, %v13243, %v13244
      %v13246 = vrot.slane %v13168, 1
      %v13247 = vrot.slane %v12714, 1
      %v13248 = vsel %vm11050, %v13246, %v13247
      %s13249 = scalar_lea.vmem %s3, 32
      %v13250 = vld [vmem:[%s13249] sm:$0xf]
      %v13252 = vsel %vm10328, %v13203, 0
      %v13255 = vsel %vm10328, %v13206, 0
      %v13258 = vsel %vm10328, %v13209, 0
      %v13261 = vsel %vm10328, %v13212, 0
      %v13264 = vsel %vm10328, %v13215, 0
      %v13267 = vsel %vm10328, %v13218, 0
      %v13270 = vsel %vm10328, %v13221, 0
      %v13273 = vsel %vm10328, %v13224, 0
      %v13276 = vsel %vm10328, %v13227, 0
      %v13279 = vsel %vm10328, %v13230, 0
      %v13282 = vsel %vm10328, %v13233, 0
      %v13285 = vsel %vm10328, %v13236, 0
      %v13288 = vsel %vm10328, %v13239, 0
      %v13291 = vsel %vm10328, %v13242, 0
      %v13294 = vsel %vm10328, %v13245, 0
      %v13297 = vsel %vm10328, %v13248, 0
      %v13300 = vsel %vm10641, %v13250, 0
      %13302 = vmatprep.subr.bf16.mxu0 0
      %13303 = vmatpush1.bf16.msra.mxu0 %v13300
      %13304 = vmatprep.subr.bf16.mxu0 0
      %13305 = vmatpush1.bf16.msra.mxu0 0
      %13306 = vmatprep.subr.bf16.mxu0 0
      %13307 = vmatpush1.bf16.msra.mxu0 0
      %13308 = vmatprep.subr.bf16.mxu0 0
      %13309 = vmatpush1.bf16.msra.mxu0 0
      %13310 = vmatprep.subr.bf16.mxu0 0
      %13311 = vmatpush1.bf16.msra.mxu0 0
      %13312 = vmatprep.subr.bf16.mxu0 0
      %13313 = vmatpush1.bf16.msra.mxu0 0
      %13314 = vmatprep.subr.bf16.mxu0 0
      %13315 = vmatpush1.bf16.msra.mxu0 0
      %13316 = vmatprep.subr.bf16.mxu0 0
      %13317 = vmatpush1.bf16.msra.mxu0 0
      %13318 = vmatprep.subr.bf16.mxu0 0
      %13319 = vmatpush1.bf16.msra.mxu0 0
      %13320 = vmatprep.subr.bf16.mxu0 0
      %13321 = vmatpush1.bf16.msra.mxu0 0
      %13322 = vmatprep.subr.bf16.mxu0 0
      %13323 = vmatpush1.bf16.msra.mxu0 0
      %13324 = vmatprep.subr.bf16.mxu0 0
      %13325 = vmatpush1.bf16.msra.mxu0 0
      %13326 = vmatprep.subr.bf16.mxu0 0
      %13327 = vmatpush1.bf16.msra.mxu0 0
      %13328 = vmatprep.subr.bf16.mxu0 0
      %13329 = vmatpush1.bf16.msra.mxu0 0
      %13330 = vmatprep.subr.bf16.mxu0 0
      %13331 = vmatpush1.bf16.msra.mxu0 0
      %13332 = vmatprep.subr.bf16.mxu0 0
      %13333 = vmatpush1.bf16.msra.mxu0 0
      %13334 = vmatprep.mubr.bf16.mxu0 0
      %13335 = vmatmul.mubr.bf16.gmra.mrb[0].mxu0 %v13252
      %v13336 = vpop.f32.mrb[0].mxu0
      %v13337 = vadd.f32 0.0, %v13336
      %v13338 = vpop.f32.mrb[0].mxu0
      %v13339 = vpop.f32.mrb[0].mxu0
      %v13340 = vadd.f32 0.0, %v13339
      %v13341 = vpop.f32.mrb[0].mxu0
      %13342 = vmatprep.mubr.bf16.mxu0 0
      %13343 = vmatmul.mubr.bf16.gmra.mrb[0].mxu0 %v13255
      %v13344 = vpop.f32.mrb[0].mxu0
      %v13345 = vadd.f32 0.0, %v13344
      %v13346 = vpop.f32.mrb[0].mxu0
      %v13347 = vpop.f32.mrb[0].mxu0
      %v13348 = vadd.f32 0.0, %v13347
      %v13349 = vpop.f32.mrb[0].mxu0
      %13350 = vmatprep.mubr.bf16.mxu0 0
      %13351 = vmatmul.mubr.bf16.gmra.mrb[0].mxu0 %v13258
      %v13352 = vpop.f32.mrb[0].mxu0
      %v13353 = vadd.f32 0.0, %v13352
      %v13354 = vpop.f32.mrb[0].mxu0
      %v13355 = vpop.f32.mrb[0].mxu0
      %v13356 = vadd.f32 0.0, %v13355
      %v13357 = vpop.f32.mrb[0].mxu0
      %13358 = vmatprep.mubr.bf16.mxu0 0
      %13359 = vmatmul.mubr.bf16.gmra.mrb[0].mxu0 %v13261
      %v13360 = vpop.f32.mrb[0].mxu0
      %v13361 = vadd.f32 0.0, %v13360
      %v13362 = vpop.f32.mrb[0].mxu0
      %v13363 = vpop.f32.mrb[0].mxu0
      %v13364 = vadd.f32 0.0, %v13363
      %v13365 = vpop.f32.mrb[0].mxu0
      %13366 = vmatprep.mubr.bf16.mxu0 0
      %13367 = vmatmul.mubr.bf16.gmra.mrb[0].mxu0 %v13264
      %v13368 = vpop.f32.mrb[0].mxu0
      %v13369 = vadd.f32 0.0, %v13368
      %v13370 = vpop.f32.mrb[0].mxu0
      %v13371 = vpop.f32.mrb[0].mxu0
      %v13372 = vadd.f32 0.0, %v13371
      %v13373 = vpop.f32.mrb[0].mxu0
      %13374 = vmatprep.mubr.bf16.mxu0 0
      %13375 = vmatmul.mubr.bf16.gmra.mrb[0].mxu0 %v13267
      %v13376 = vpop.f32.mrb[0].mxu0
      %v13377 = vadd.f32 0.0, %v13376
      %v13378 = vpop.f32.mrb[0].mxu0
      %v13379 = vpop.f32.mrb[0].mxu0
      %v13380 = vadd.f32 0.0, %v13379
      %v13381 = vpop.f32.mrb[0].mxu0
      %13382 = vmatprep.mubr.bf16.mxu0 0
      %13383 = vmatmul.mubr.bf16.gmra.mrb[0].mxu0 %v13270
      %v13384 = vpop.f32.mrb[0].mxu0
      %v13385 = vadd.f32 0.0, %v13384
      %v13386 = vpop.f32.mrb[0].mxu0
      %v13387 = vpop.f32.mrb[0].mxu0
      %v13388 = vadd.f32 0.0, %v13387
      %v13389 = vpop.f32.mrb[0].mxu0
      %13390 = vmatprep.mubr.bf16.mxu0 0
      %13391 = vmatmul.mubr.bf16.gmra.mrb[0].mxu0 %v13273
      %v13392 = vpop.f32.mrb[0].mxu0
      %v13393 = vadd.f32 0.0, %v13392
      %v13394 = vpop.f32.mrb[0].mxu0
      %v13395 = vpop.f32.mrb[0].mxu0
      %v13396 = vadd.f32 0.0, %v13395
      %v13397 = vpop.f32.mrb[0].mxu0
      %13398 = vmatprep.mubr.bf16.mxu0 0
      %13399 = vmatmul.mubr.bf16.gmra.mrb[0].mxu0 %v13276
      %v13400 = vpop.f32.mrb[0].mxu0
      %v13401 = vadd.f32 0.0, %v13400
      %v13402 = vpop.f32.mrb[0].mxu0
      %v13403 = vpop.f32.mrb[0].mxu0
      %v13404 = vadd.f32 0.0, %v13403
      %v13405 = vpop.f32.mrb[0].mxu0
      %13406 = vmatprep.mubr.bf16.mxu0 0
      %13407 = vmatmul.mubr.bf16.gmra.mrb[0].mxu0 %v13279
      %v13408 = vpop.f32.mrb[0].mxu0
      %v13409 = vadd.f32 0.0, %v13408
      %v13410 = vpop.f32.mrb[0].mxu0
      %v13411 = vpop.f32.mrb[0].mxu0
      %v13412 = vadd.f32 0.0, %v13411
      %v13413 = vpop.f32.mrb[0].mxu0
      %13414 = vmatprep.mubr.bf16.mxu0 0
      %13415 = vmatmul.mubr.bf16.gmra.mrb[0].mxu0 %v13282
      %v13416 = vpop.f32.mrb[0].mxu0
      %v13417 = vadd.f32 0.0, %v13416
      %v13418 = vpop.f32.mrb[0].mxu0
      %v13419 = vpop.f32.mrb[0].mxu0
      %v13420 = vadd.f32 0.0, %v13419
      %v13421 = vpop.f32.mrb[0].mxu0
      %13422 = vmatprep.mubr.bf16.mxu0 0
      %13423 = vmatmul.mubr.bf16.gmra.mrb[0].mxu0 %v13285
      %v13424 = vpop.f32.mrb[0].mxu0
      %v13425 = vadd.f32 0.0, %v13424
      %v13426 = vpop.f32.mrb[0].mxu0
      %v13427 = vpop.f32.mrb[0].mxu0
      %v13428 = vadd.f32 0.0, %v13427
      %v13429 = vpop.f32.mrb[0].mxu0
      %13430 = vmatprep.mubr.bf16.mxu0 0
      %13431 = vmatmul.mubr.bf16.gmra.mrb[0].mxu0 %v13288
      %v13432 = vpop.f32.mrb[0].mxu0
      %v13433 = vadd.f32 0.0, %v13432
      %v13434 = vpop.f32.mrb[0].mxu0
      %v13435 = vpop.f32.mrb[0].mxu0
      %v13436 = vadd.f32 0.0, %v13435
      %v13437 = vpop.f32.mrb[0].mxu0
      %13438 = vmatprep.mubr.bf16.mxu0 0
      %13439 = vmatmul.mubr.bf16.gmra.mrb[0].mxu0 %v13291
      %v13440 = vpop.f32.mrb[0].mxu0
      %v13441 = vadd.f32 0.0, %v13440
      %v13442 = vpop.f32.mrb[0].mxu0
      %v13443 = vpop.f32.mrb[0].mxu0
      %v13444 = vadd.f32 0.0, %v13443
      %v13445 = vpop.f32.mrb[0].mxu0
      %13446 = vmatprep.mubr.bf16.mxu0 0
      %13447 = vmatmul.mubr.bf16.gmra.mrb[0].mxu0 %v13294
      %v13448 = vpop.f32.mrb[0].mxu0
      %v13449 = vadd.f32 0.0, %v13448
      %v13450 = vpop.f32.mrb[0].mxu0
      %v13451 = vpop.f32.mrb[0].mxu0
      %v13452 = vadd.f32 0.0, %v13451
      %v13453 = vpop.f32.mrb[0].mxu0
      %13454 = vmatprep.mubr.bf16.mxu0 0
      %13455 = vmatmul.mubr.bf16.gmra.mrb[0].mxu0 %v13297
      %v13456 = vpop.f32.mrb[0].mxu0
      %v13457 = vadd.f32 0.0, %v13456
      %v13458 = vpop.f32.mrb[0].mxu0
      %v13459 = vpop.f32.mrb[0].mxu0
      %v13460 = vadd.f32 0.0, %v13459
      %v13461 = vpop.f32.mrb[0].mxu0
      %13462 = vdwg.mxu0
      %v13463 = vadd.f32 %v13121, %v13337
      %v13464 = vadd.f32 %v13122, %v13340
      %v13465 = vadd.f32 %v13123, %v13345
      %v13466 = vadd.f32 %v13124, %v13348
      %v13467 = vadd.f32 %v13125, %v13353
      %v13468 = vadd.f32 %v13126, %v13356
      %v13469 = vadd.f32 %v13127, %v13361
      %v13470 = vadd.f32 %v13128, %v13364
      %v13471 = vadd.f32 %v13129, %v13369
      %v13472 = vadd.f32 %v13130, %v13372
      %v13473 = vadd.f32 %v13131, %v13377
      %v13474 = vadd.f32 %v13132, %v13380
      %v13475 = vadd.f32 %v13133, %v13385
      %v13476 = vadd.f32 %v13134, %v13388
      %v13477 = vadd.f32 %v13135, %v13393
      %v13478 = vadd.f32 %v13136, %v13396
      %v13479 = vadd.f32 %v13137, %v13401
      %v13480 = vadd.f32 %v13138, %v13404
      %v13481 = vadd.f32 %v13139, %v13409
      %v13482 = vadd.f32 %v13140, %v13412
      %v13483 = vadd.f32 %v13141, %v13417
      %v13484 = vadd.f32 %v13142, %v13420
      %v13485 = vadd.f32 %v13143, %v13425
      %v13486 = vadd.f32 %v13144, %v13428
      %v13487 = vadd.f32 %v13145, %v13433
      %v13488 = vadd.f32 %v13146, %v13436
      %v13489 = vadd.f32 %v13147, %v13441
      %v13490 = vadd.f32 %v13148, %v13444
      %v13491 = vadd.f32 %v13149, %v13449
      %v13492 = vadd.f32 %v13150, %v13452
      %v13493 = vadd.f32 %v13151, %v13457
      %v13494 = vadd.f32 %v13152, %v13460
      %v13495 = vld [vmem:[%s4] sm:$0x1]
      %v13496 = vlaneseq
      %v13497 = vshrl.u32 %v13496, 7
      %v13498 = vsub.s32 0, %v13497
      %v13499 = vrot.slane %v13495, %v13498
      %v13500 = vmul.f32 %v13463, %v13499
      %v13501 = vmul.f32 %v13464, %v13499
      %v13502 = vmul.f32 %v13465, %v13499
      %v13503 = vmul.f32 %v13466, %v13499
      %v13504 = vmul.f32 %v13467, %v13499
      %v13505 = vmul.f32 %v13468, %v13499
      %v13506 = vmul.f32 %v13469, %v13499
      %v13507 = vmul.f32 %v13470, %v13499
      %v13508 = vmul.f32 %v13471, %v13499
      %v13509 = vmul.f32 %v13472, %v13499
      %v13510 = vmul.f32 %v13473, %v13499
      %v13511 = vmul.f32 %v13474, %v13499
      %v13512 = vmul.f32 %v13475, %v13499
      %v13513 = vmul.f32 %v13476, %v13499
      %v13514 = vmul.f32 %v13477, %v13499
      %v13515 = vmul.f32 %v13478, %v13499
      %v13516 = vmul.f32 %v13479, %v13499
      %v13517 = vmul.f32 %v13480, %v13499
      %v13518 = vmul.f32 %v13481, %v13499
      %v13519 = vmul.f32 %v13482, %v13499
      %v13520 = vmul.f32 %v13483, %v13499
      %v13521 = vmul.f32 %v13484, %v13499
      %v13522 = vmul.f32 %v13485, %v13499
      %v13523 = vmul.f32 %v13486, %v13499
      %v13524 = vmul.f32 %v13487, %v13499
      %v13525 = vmul.f32 %v13488, %v13499
      %v13526 = vmul.f32 %v13489, %v13499
      %v13527 = vmul.f32 %v13490, %v13499
      %v13528 = vmul.f32 %v13491, %v13499
      %v13529 = vmul.f32 %v13492, %v13499
      %v13530 = vmul.f32 %v13493, %v13499
      %v13531 = vmul.f32 %v13494, %v13499
      %v13532 = vld [vmem:[%s4 + $0x1] sm:$0x1]
      %v13533 = vlaneseq
      %v13534 = vshrl.u32 %v13533, 7
      %v13535 = vsub.s32 0, %v13534
      %v13536 = vrot.slane %v13532, %v13535
      %v13537 = vadd.f32 %v13500, %v13536
      %v13538 = vadd.f32 %v13501, %v13536
      %v13539 = vadd.f32 %v13502, %v13536
      %v13540 = vadd.f32 %v13503, %v13536
      %v13541 = vadd.f32 %v13504, %v13536
      %v13542 = vadd.f32 %v13505, %v13536
      %v13543 = vadd.f32 %v13506, %v13536
      %v13544 = vadd.f32 %v13507, %v13536
      %v13545 = vadd.f32 %v13508, %v13536
      %v13546 = vadd.f32 %v13509, %v13536
      %v13547 = vadd.f32 %v13510, %v13536
      %v13548 = vadd.f32 %v13511, %v13536
      %v13549 = vadd.f32 %v13512, %v13536
      %v13550 = vadd.f32 %v13513, %v13536
      %v13551 = vadd.f32 %v13514, %v13536
      %v13552 = vadd.f32 %v13515, %v13536
      %v13553 = vadd.f32 %v13516, %v13536
      %v13554 = vadd.f32 %v13517, %v13536
      %v13555 = vadd.f32 %v13518, %v13536
      %v13556 = vadd.f32 %v13519, %v13536
      %v13557 = vadd.f32 %v13520, %v13536
      %v13558 = vadd.f32 %v13521, %v13536
      %v13559 = vadd.f32 %v13522, %v13536
      %v13560 = vadd.f32 %v13523, %v13536
      %v13561 = vadd.f32 %v13524, %v13536
      %v13562 = vadd.f32 %v13525, %v13536
      %v13563 = vadd.f32 %v13526, %v13536
      %v13564 = vadd.f32 %v13527, %v13536
      %v13565 = vadd.f32 %v13528, %v13536
      %v13566 = vadd.f32 %v13529, %v13536
      %v13567 = vadd.f32 %v13530, %v13536
      %v13568 = vadd.f32 %v13531, %v13536
      %v13569 = vmax.f32 %v13537, 0.0
      %v13570 = vmax.f32 %v13538, 0.0
      %v13571 = vmax.f32 %v13539, 0.0
      %v13572 = vmax.f32 %v13540, 0.0
      %v13573 = vmax.f32 %v13541, 0.0
      %v13574 = vmax.f32 %v13542, 0.0
      %v13575 = vmax.f32 %v13543, 0.0
      %v13576 = vmax.f32 %v13544, 0.0
      %v13577 = vmax.f32 %v13545, 0.0
      %v13578 = vmax.f32 %v13546, 0.0
      %v13579 = vmax.f32 %v13547, 0.0
      %v13580 = vmax.f32 %v13548, 0.0
      %v13581 = vmax.f32 %v13549, 0.0
      %v13582 = vmax.f32 %v13550, 0.0
      %v13583 = vmax.f32 %v13551, 0.0
      %v13584 = vmax.f32 %v13552, 0.0
      %v13585 = vmax.f32 %v13553, 0.0
      %v13586 = vmax.f32 %v13554, 0.0
      %v13587 = vmax.f32 %v13555, 0.0
      %v13588 = vmax.f32 %v13556, 0.0
      %v13589 = vmax.f32 %v13557, 0.0
      %v13590 = vmax.f32 %v13558, 0.0
      %v13591 = vmax.f32 %v13559, 0.0
      %v13592 = vmax.f32 %v13560, 0.0
      %v13593 = vmax.f32 %v13561, 0.0
      %v13594 = vmax.f32 %v13562, 0.0
      %v13595 = vmax.f32 %v13563, 0.0
      %v13596 = vmax.f32 %v13564, 0.0
      %v13597 = vmax.f32 %v13565, 0.0
      %v13598 = vmax.f32 %v13566, 0.0
      %v13599 = vmax.f32 %v13567, 0.0
      %v13600 = vmax.f32 %v13568, 0.0
      %13601 = vst [vmem:[%s262] sm:$0xff] %v13569
      %13602 = vst [vmem:[%s262 + $0x8] sm:$0xff] %v13570
      %13603 = vst [vmem:[%s262 + $0x10] sm:$0xff] %v13571
      %13604 = vst [vmem:[%s262 + $0x18] sm:$0xff] %v13572
      %13605 = vst [vmem:[%s262 + $0x20] sm:$0xff] %v13573
      %13606 = vst [vmem:[%s262 + $0x28] sm:$0xff] %v13574
      %13607 = vst [vmem:[%s262 + $0x30] sm:$0xff] %v13575
      %13608 = vst [vmem:[%s262 + $0x38] sm:$0xff] %v13576
      %13609 = vst [vmem:[%s262 + $0x40] sm:$0xff] %v13577
      %13610 = vst [vmem:[%s262 + $0x48] sm:$0xff] %v13578
      %13611 = vst [vmem:[%s262 + $0x50] sm:$0xff] %v13579
      %13612 = vst [vmem:[%s262 + $0x58] sm:$0xff] %v13580
      %13613 = vst [vmem:[%s262 + $0x60] sm:$0xff] %v13581
      %13614 = vst [vmem:[%s262 + $0x68] sm:$0xff] %v13582
      %13615 = vst [vmem:[%s262 + $0x70] sm:$0xff] %v13583
      %13616 = vst [vmem:[%s262 + $0x78] sm:$0xff] %v13584
      %13617 = vst [vmem:[%s262 + $0x80] sm:$0xff] %v13585
      %13618 = vst [vmem:[%s262 + $0x88] sm:$0xff] %v13586
      %13619 = vst [vmem:[%s262 + $0x90] sm:$0xff] %v13587
      %13620 = vst [vmem:[%s262 + $0x98] sm:$0xff] %v13588
      %13621 = vst [vmem:[%s262 + $0xa0] sm:$0xff] %v13589
      %13622 = vst [vmem:[%s262 + $0xa8] sm:$0xff] %v13590
      %13623 = vst [vmem:[%s262 + $0xb0] sm:$0xff] %v13591
      %13624 = vst [vmem:[%s262 + $0xb8] sm:$0xff] %v13592
      %13625 = vst [vmem:[%s262 + $0xc0] sm:$0xff] %v13593
      %13626 = vst [vmem:[%s262 + $0xc8] sm:$0xff] %v13594
      %13627 = vst [vmem:[%s262 + $0xd0] sm:$0xff] %v13595
      %13628 = vst [vmem:[%s262 + $0xd8] sm:$0xff] %v13596
      %13629 = vst [vmem:[%s262 + $0xe0] sm:$0xff] %v13597
      %13630 = vst [vmem:[%s262 + $0xe8] sm:$0xff] %v13598
      %13631 = vst [vmem:[%s262 + $0xf0] sm:$0xff] %v13599
      %13632 = vst [vmem:[%s262 + $0xf8] sm:$0xff] %v13600
      %s13633 = smul.u32 16, %s21
      %p13634 = scmp.lt.s32.totalorder %s20, 1
      %s13635 = scalar_select %p13634, %s20, 1
      %p13636 = scmp.lt.s32.totalorder %s13633, 15
      %s13637 = scalar_select %p13636, %s13633, 15
      %s13638 = smul.addr %s13637, 2
      %s13639 = smul.addr %s13635, 32
      %s13640 = sadd.s32 %s13638, %s13639
      %s13641 = smul.addr %s13640, 8
      %s13642 = scalar_lea.vmem %s5, %s13641
      // Predicated region
      $region41: #{unet_conv2_forward.1} parent=39 // pred_check
        %p13643 = pneg %p160
      $region42: #{unet_conv2_forward.1} parent=39 // pred_check_branch
        %13645 = sbr.rel (%p13643) target = $region44
      $region43: #{unet_conv2_forward.1} parent=39 // pred_region
        %s13646 = smul.u32 16, %s21
      $region44: #{unet_conv2_forward.1} parent=39 // pred_fallthru
        _
    $region40: #{unet_conv2_forward.1} parent=5 // pred_fallthru
      _
    %p13647 = scmp.le.s32.totalorder 2, %s11
    // Predicated region
    $region45: #{unet_conv2_forward.1} parent=5 // pred_check
      %p13648 = pneg %p13647
    $region46: #{unet_conv2_forward.1} parent=5 // pred_check_branch
      %13650 = sbr.rel (%p13648) target = $region48
    $region47: #{unet_conv2_forward.1} parent=5 // pred_region
      %s13651 = ssub.s32 %s11, 2
      // Predicated region
      $region49: #{unet_conv2_forward.1} parent=47 // pred_check
        %p13652 = pneg %p166
      $region50: #{unet_conv2_forward.1} parent=47 // pred_check_branch
        %13654 = sbr.rel (%p13652) target = $region52
      $region51: #{unet_conv2_forward.1} parent=47 // pred_region
        %s13655 = smul.u32 16, %s23
        %p13656 = scmp.lt.s32.totalorder %s22, 1
        %s13657 = scalar_select %p13656, %s22, 1
        %p13658 = scmp.lt.s32.totalorder %s13655, 15
        %s13659 = scalar_select %p13658, %s13655, 15
        %s13660 = smul.addr %s13659, 2
        %s13661 = smul.addr %s13657, 32
        %s13662 = sadd.s32 %s13660, %s13661
        %s13663 = smul.addr %s13662, 8
        %s13664 = scalar_lea.vmem %s5, %s13663
      $region52: #{unet_conv2_forward.1} parent=47 // pred_fallthru
        _
    $region48: #{unet_conv2_forward.1} parent=5 // pred_fallthru
      _
  $region6: #{unet_conv2_forward.1} parent=0 // loop_footer
    %s15 = sadd.s32 1, %s11
  $region7: #{unet_conv2_forward.1} parent=0 // loop_footer_branch
    %10 = sbr.rel target = $region3
  $region8: #{unet_conv2_forward.1} parent=0 // loop_exit
    _

</llo_original>
